<compile_context>
chip_gen: v7x
topology: tpu7x:2x2x1
jax: 0.10.0
libtpu: 0.0.40
codegen_flags: <defaults>
</compile_context>

<pallas_src>
import functools

import jax
import jax.numpy as jnp
from jax import lax
from jax.experimental import pallas as pl
from jax.experimental.pallas import tpu as pltpu


# ----------------------------------------------------------------------------
# Pallas kernel: Bt batch chains of the full NMF iteration per grid step.
# ----------------------------------------------------------------------------
def _nmf_kernel(x_ref, d0_ref, o_ref, *, steps: int, bt: int, n: int,
                lane_fold: bool, fast_math: bool):
    # x_ref : (Bt, D, N)   input features for this group of batch elements
    # d0_ref: (D, R)       initial (normalized) dictionary, shared across batch
    # o_ref : (1, D, Bt*N) if lane_fold else (Bt, D, N)   reconstruction Dm C^T
    eps = jnp.float32(1e-6)

    # dot_general dimension numbers (no materialized transposes):
    contract00 = (((0,), (0,)), ((), ()))   # lhs^T @ rhs   (contract leading axes)
    contract11 = (((1,), (1,)), ((), ()))   # lhs  @ rhs^T  (contract trailing axes)

    mxu_dtype = jnp.bfloat16 if fast_math else jnp.float32

    def _div(num, den):
        # fast: EUP approx reciprocal (frees VALU slots); precise: exact divide
        if fast_math:
            return num * pl.reciprocal(den, approx=True)
        return num / den

    Dm0 = d0_ref[...].astype(jnp.float32)          # (D, R), f32 master copy
    Dm0_mxu = Dm0.astype(mxu_dtype)

    # Step-0 Gram is identical for every chain -> hoist out of the batch loop.
    Gd0 = lax.dot_general(Dm0, Dm0, contract00,
                          preferred_element_type=jnp.float32)            # (R, R)

    # --- init: C = softmax(x^T Dm0, axis=-1); keep logits for step-0 reuse ---
    Cs, Dms, tops = [], [], []
    for b in range(bt):
        x_b = x_ref[b].astype(mxu_dtype)           # read from resident VMEM block
        logits = lax.dot_general(x_b, Dm0_mxu, contract00,
                                 preferred_element_type=jnp.float32)     # (N, R)
        m = jnp.max(logits, axis=-1, keepdims=True)
        e = jnp.exp(logits - m)
        Cs.append(_div(e, jnp.sum(e, axis=-1, keepdims=True)))           # (N, R)
        Dms.append(Dm0)
        tops.append(logits)

    # --- multiplicative updates; independent chains interleaved (bt <= 4) ---
    for step in range(steps):
        for b in range(bt):
            Cb, Dm = Cs[b], Dms[b]
            # Re-read x from the VMEM input block each use (don't hold copies
            # live across the whole unrolled loop).
            x_b = x_ref[b].astype(mxu_dtype)                              # (D, N)

            # C update:  top_c = x^T Dm ; bot_c = C (Dm^T Dm)
            if step == 0:
                top_c = tops[b]                                           # reuse logits
                Gd = Gd0
            else:
                top_c = lax.dot_general(x_b, Dm.astype(mxu_dtype), contract00,
                                        preferred_element_type=jnp.float32)  # (N, R)
                Gd = lax.dot_general(Dm, Dm, contract00,
                                     preferred_element_type=jnp.float32)     # (R, R)
            bot_c = jnp.dot(Cb, Gd, preferred_element_type=jnp.float32)      # (N, R)
            Cb = Cb * (_div(top_c, bot_c) + eps)

            # D update:  top_d = x C ; bot_d = Dm (C^T C)
            top_d = jnp.dot(x_b, Cb.astype(mxu_dtype),
                            preferred_element_type=jnp.float32)              # (D, R)
            Gc = lax.dot_general(Cb, Cb, contract00,
                                 preferred_element_type=jnp.float32)         # (R, R)
            bot_d = jnp.dot(Dm, Gc, preferred_element_type=jnp.float32)      # (D, R)
            Dm = Dm * (_div(top_d, bot_d) + eps)

            Cs[b], Dms[b] = Cb, Dm

    # --- reconstruction x_hat = Dm C^T, stored per chain so the writeback of
    #     chain b overlaps the matmul of chain b+1 (no concatenate slab) ---
    for b in range(bt):
        xhat = lax.dot_general(Dms[b].astype(mxu_dtype), Cs[b].astype(mxu_dtype),
                               contract11,
                               preferred_element_type=jnp.float32)           # (D, N)
        if lane_fold:
            o_ref[:, :, pl.ds(b * n, n)] = xhat[None].astype(o_ref.dtype)
        else:
            o_ref[b] = xhat.astype(o_ref.dtype)

    # TODO(synk): the PyTorch module also mutates its D_matrix buffer in eval
    # mode (EMA over the batch + renormalize); that stateful side effect does
    # not affect the returned tensor and is omitted here.


# ----------------------------------------------------------------------------
# VMEM budget & batch-tile selection.
# ----------------------------------------------------------------------------
def _vmem_estimate(bt: int, D: int, N: int, R: int,
                   x_bytes: int, out_bytes: int) -> int:
    in_blk = 2 * bt * D * N * x_bytes                 # double-buffered input block
    out_blk = 2 * D * (bt * N) * out_bytes            # double-buffered output block
    # f32 live intermediates per chain: C, top_c (N,R); Dm, top_d (D,R);
    # xhat (D,N); two (R,R) Grams.
    per_chain = 4 * (2 * N * R + 2 * D * R + D * N + 2 * R * R)
    return in_blk + out_blk + bt * per_chain + (2 << 20)   # + compiler scratch margin


def _pick_block_b(B: int, D: int, N: int, R: int, x_bytes: int, out_bytes: int,
                  max_interleave: int, vmem_budget: int) -> int:
    cands = [bt for bt in range(1, min(B, max_interleave) + 1) if B % bt == 0]
    fitting = [bt for bt in cands
               if _vmem_estimate(bt, D, N, R, x_bytes, out_bytes) <= vmem_budget]
    if not fitting:
        # TODO(synk): fall back to N-chunk streaming of x (pl.ANY + manual DMA)
        # for shapes that don't fit VMEM even at Bt=1.
        fitting = [1]

    def score(bt):
        g = B // bt
        lane_dense = (N % 128 == 0) or ((bt * N) % 128 == 0)
        # Priority: keep both v7x TensorCores busy (G >= 2) > lane-dense
        # (unmasked) output writeback > larger interleave depth.
        return (g >= 2, lane_dense, bt)

    return max(fitting, key=score)


# ----------------------------------------------------------------------------
# Wrapper: NCHW -> (B, D, N), grid over batch groups, reshape back to NCHW.
# ----------------------------------------------------------------------------
def nmf_forward(x_nchw, d_matrix, *, steps: int = 6, fast_math: bool = True,
                max_interleave: int = 4, vmem_budget_bytes: int = 48 << 20):
    B, C, H, W = x_nchw.shape
    D = C                      # S == 1 (module default); S > 1 not supported here
    N = H * W
    R = d_matrix.shape[-1]

    out_dtype = x_nchw.dtype
    x_kernel_dtype = jnp.bfloat16 if fast_math else x_nchw.dtype
    x_bytes = jnp.dtype(x_kernel_dtype).itemsize
    out_bytes = jnp.dtype(out_dtype).itemsize

    Bt = _pick_block_b(B, D, N, R, x_bytes, out_bytes,
                       max_interleave, vmem_budget_bytes)
    G = B // Bt
    # Fold batch into lanes only when it actually makes the output lane-dense.
    lane_fold = (N % 128 != 0) and ((Bt * N) % 128 == 0)

    est = _vmem_estimate(Bt, D, N, R, x_bytes, out_bytes)
    vmem_limit = int(min(56 << 20, max(16 << 20, est)))

    # Carry x in the kernel dtype (bf16 in fast mode: halves HBM DMA + VMEM tile).
    x = x_nchw.reshape(B, D, N).astype(x_kernel_dtype)
    d_in = d_matrix.astype(jnp.float32)

    if lane_fold:
        out_shape = jax.ShapeDtypeStruct((G, D, Bt * N), out_dtype)
        out_spec = pl.BlockSpec((1, D, Bt * N), lambda g: (g, 0, 0))
    else:
        out_shape = jax.ShapeDtypeStruct((B, D, N), out_dtype)
        out_spec = pl.BlockSpec((Bt, D, N), lambda g: (g, 0, 0))

    kernel = functools.partial(_nmf_kernel, steps=steps, bt=Bt, n=N,
                               lane_fold=lane_fold, fast_math=fast_math)

    out = pl.pallas_call(
        kernel,
        out_shape=out_shape,
        grid_spec=pltpu.PrefetchScalarGridSpec(
            num_scalar_prefetch=0,
            grid=(G,),
            in_specs=[
                pl.BlockSpec((Bt, D, N), lambda g: (g, 0, 0)),
                pl.BlockSpec((D, R), lambda g: (0, 0)),
            ],
            out_specs=out_spec,
        ),
        compiler_params=pltpu.CompilerParams(
            dimension_semantics=("parallel",),
            vmem_limit_bytes=vmem_limit),
    )(x, d_in)

    if lane_fold:
        out = out.reshape(G, D, Bt, N)
        out = jnp.transpose(out, (0, 2, 1, 3))      # (G, Bt, D, N)
    return out.reshape(B, C, H, W)


# ----------------------------------------------------------------------------
# Pure-JAX reference (mirrors the PyTorch einsums) for correctness checks.
# ----------------------------------------------------------------------------
def nmf_reference(x_nchw, d_matrix, *, steps: int = 6):
    B, C, H, W = x_nchw.shape
    D, N = C, H * W
    x = x_nchw.reshape(B, D, N).astype(jnp.float32)
    Dm = jnp.broadcast_to(d_matrix[None], (B,) + d_matrix.shape).astype(jnp.float32)

    Cm = jnp.einsum('bdn,bdr->bnr', x, Dm)
    Cm = jax.nn.softmax(Cm, axis=-1)
    for _ in range(steps):
        top = jnp.einsum('bdn,bdr->bnr', x, Dm)
        bot = jnp.einsum('bnr,bdr->bdn', Cm, Dm)
        bot = jnp.einsum('bdn,bdr->bnr', bot, Dm)
        Cm = Cm * (top / bot + 1e-6)
        top = jnp.einsum('bdn,bnr->bdr', x, Cm)
        bot = jnp.einsum('bnr,bdr->bdn', Cm, Dm)
        bot = jnp.einsum('bdn,bnr->bdr', bot, Cm)
        Dm = Dm * (top / bot + 1e-6)
    xh = jnp.einsum('bnr,bdr->bdn', Cm, Dm)
    return xh.reshape(B, C, H, W)


if __name__ == "__main__":
    key = jax.random.PRNGKey(0)
    kx, kd, kx2 = jax.random.split(key, 3)

    R, steps = 16, 6

    # D_matrix init: uniform(0,1) then L2-normalize along the D axis
    # (matches torch.rand + F.normalize(dim=1)).
    C = 32
    d_raw = jax.random.uniform(kd, (C, R), dtype=jnp.float32)
    d_matrix = d_raw / jnp.sqrt(jnp.sum(d_raw * d_raw, axis=0, keepdims=True))

    # Case 1: lane-dense spatial dim (N = 256), B = 2 keeps G >= 2 (both TCs).
    B, H, W = 2, 16, 16
    x = jax.random.uniform(kx, (B, C, H, W), dtype=jnp.float32)
    ref = nmf_reference(x, d_matrix, steps=steps)

    # Precise path (f32 MXU operands, exact divides): tight check.
    out_precise = jax.block_until_ready(
        nmf_forward(x, d_matrix, steps=steps, fast_math=False))
    assert out_precise.shape == (B, C, H, W)
    assert jnp.allclose(out_precise, ref, rtol=1e-3, atol=1e-3), \
        float(jnp.max(jnp.abs(out_precise - ref)))

    # Fast path (bf16 MXU operands, approx EUP reciprocals): relaxed check.
    out_fast = jax.block_until_ready(
        nmf_forward(x, d_matrix, steps=steps, fast_math=True))
    rel = float(jnp.linalg.norm(out_fast - ref) / jnp.linalg.norm(ref))
    assert out_fast.shape == (B, C, H, W) and rel < 5e-2, rel

    # Case 2: non-lane-dense N (64) exercises the lane-folded output path
    # (picks Bt = 2 -> 128-lane output block, G = 2).
    B2, H2, W2 = 4, 8, 8
    x2 = jax.random.uniform(kx2, (B2, C, H2, W2), dtype=jnp.float32)
    ref2 = nmf_reference(x2, d_matrix, steps=steps)
    out2 = jax.block_until_ready(
        nmf_forward(x2, d_matrix, steps=steps, fast_math=True))
    rel2 = float(jnp.linalg.norm(out2 - ref2) / jnp.linalg.norm(ref2))
    assert out2.shape == (B2, C, H2, W2) and rel2 < 5e-2, rel2

    print("KERNEL_OK")
</pallas_src>

<mosaic_0001>
module attributes {stable_mosaic.version = 11 : i64} {
  func.func @_nmf_kernel(%arg0: i32, %arg1: memref<1x32x256xf32, #tpu.memory_space<vmem>>, %arg2: memref<32x16xf32, #tpu.memory_space<vmem>>, %arg3: memref<1x32x256xf32, #tpu.memory_space<vmem>>) attributes {dimension_semantics = [#tpu.dimension_semantics<parallel>], iteration_bounds = array<i64: 2>, scalar_prefetch = 0 : i64, scratch_operands = 0 : i64, tpu.core_type = #tpu.core_type<tc>, window_params = [{transform_indices = @transform_0, window_bounds = array<i64: 1, 32, 256>}, {pipeline_mode = #tpu.pipeline_mode<synchronous>, transform_indices = @transform_1, window_bounds = array<i64: 32, 16>}, {transform_indices = @transform_2, window_bounds = array<i64: 1, 32, 256>}]} {
    %c0 = arith.constant 0 : index
    %c0_0 = arith.constant 0 : index
    %0 = vector.load %arg2[%c0, %c0_0] : memref<32x16xf32, #tpu.memory_space<vmem>>, vector<32x16xf32>
    %cst = arith.constant dense<0.000000e+00> : vector<16x16xf32>
    %1 = tpu.matmul %0, %0, %cst {dimension_numbers = #tpu.dot_dimension_numbers<[0], [0], [1], [1], [0, 1, 1, 1], [], []>} : vector<32x16xf32>, vector<32x16xf32>, vector<16x16xf32> -> vector<16x16xf32>
    %c0_1 = arith.constant 0 : index
    %c0_2 = arith.constant 0 : index
    %c0_3 = arith.constant 0 : index
    %2 = vector.load %arg1[%c0_1, %c0_2, %c0_3] : memref<1x32x256xf32, #tpu.memory_space<vmem>>, vector<1x32x256xf32>
    %3 = vector.shape_cast %2 : vector<1x32x256xf32> to vector<32x256xf32>
    %cst_4 = arith.constant dense<0.000000e+00> : vector<256x16xf32>
    %4 = tpu.matmul %3, %0, %cst_4 {dimension_numbers = #tpu.dot_dimension_numbers<[0], [0], [1], [1], [0, 1, 1, 1], [], []>} : vector<32x256xf32>, vector<32x16xf32>, vector<256x16xf32> -> vector<256x16xf32>
    %cst_5 = arith.constant dense<0xFF800000> : vector<256xf32>
    %5 = vector.multi_reduction <maximumf>, %4, %cst_5 [1] : vector<256x16xf32> to vector<256xf32>
    %6 = vector.shape_cast %5 : vector<256xf32> to vector<256x1xf32>
    %7 = vector.broadcast %6 : vector<256x1xf32> to vector<256x16xf32>
    %8 = arith.subf %4, %7 : vector<256x16xf32>
    %9 = math.exp %8 : vector<256x16xf32>
    %cst_6 = arith.constant dense<0.000000e+00> : vector<256xf32>
    %10 = vector.multi_reduction <add>, %9, %cst_6 [1] : vector<256x16xf32> to vector<256xf32>
    %11 = vector.shape_cast %10 : vector<256xf32> to vector<256x1xf32>
    %12 = vector.broadcast %11 : vector<256x1xf32> to vector<256x16xf32>
    %13 = arith.divf %9, %12 : vector<256x16xf32>
    %c0_7 = arith.constant 0 : index
    %c0_8 = arith.constant 0 : index
    %c0_9 = arith.constant 0 : index
    %14 = vector.load %arg1[%c0_7, %c0_8, %c0_9] : memref<1x32x256xf32, #tpu.memory_space<vmem>>, vector<1x32x256xf32>
    %15 = vector.shape_cast %14 : vector<1x32x256xf32> to vector<32x256xf32>
    %cst_10 = arith.constant dense<0.000000e+00> : vector<256x16xf32>
    %16 = tpu.matmul %13, %1, %cst_10 {dimension_numbers = #tpu.dot_dimension_numbers<[1], [0], [0], [1], [0, 0, 1, 1], [], []>} : vector<256x16xf32>, vector<16x16xf32>, vector<256x16xf32> -> vector<256x16xf32>
    %17 = arith.divf %4, %16 : vector<256x16xf32>
    %cst_11 = arith.constant 9.99999997E-7 : f32
    %18 = vector.broadcast %cst_11 : f32 to vector<256x16xf32>
    %19 = arith.addf %17, %18 : vector<256x16xf32>
    %20 = arith.mulf %13, %19 : vector<256x16xf32>
    %cst_12 = arith.constant dense<0.000000e+00> : vector<32x16xf32>
    %21 = tpu.matmul %15, %20, %cst_12 {dimension_numbers = #tpu.dot_dimension_numbers<[1], [0], [0], [1], [0, 0, 1, 1], [], []>} : vector<32x256xf32>, vector<256x16xf32>, vector<32x16xf32> -> vector<32x16xf32>
    %cst_13 = arith.constant dense<0.000000e+00> : vector<16x16xf32>
    %22 = tpu.matmul %20, %20, %cst_13 {dimension_numbers = #tpu.dot_dimension_numbers<[0], [0], [1], [1], [0, 1, 1, 1], [], []>} : vector<256x16xf32>, vector<256x16xf32>, vector<16x16xf32> -> vector<16x16xf32>
    %cst_14 = arith.constant dense<0.000000e+00> : vector<32x16xf32>
    %23 = tpu.matmul %0, %22, %cst_14 {dimension_numbers = #tpu.dot_dimension_numbers<[1], [0], [0], [1], [0, 0, 1, 1], [], []>} : vector<32x16xf32>, vector<16x16xf32>, vector<32x16xf32> -> vector<32x16xf32>
    %24 = arith.divf %21, %23 : vector<32x16xf32>
    %cst_15 = arith.constant 9.99999997E-7 : f32
    %25 = vector.broadcast %cst_15 : f32 to vector<32x16xf32>
    %26 = arith.addf %24, %25 : vector<32x16xf32>
    %27 = arith.mulf %0, %26 : vector<32x16xf32>
    %c0_16 = arith.constant 0 : index
    %c0_17 = arith.constant 0 : index
    %c0_18 = arith.constant 0 : index
    %28 = vector.load %arg1[%c0_16, %c0_17, %c0_18] : memref<1x32x256xf32, #tpu.memory_space<vmem>>, vector<1x32x256xf32>
    %29 = vector.shape_cast %28 : vector<1x32x256xf32> to vector<32x256xf32>
    %cst_19 = arith.constant dense<0.000000e+00> : vector<256x16xf32>
    %30 = tpu.matmul %29, %27, %cst_19 {dimension_numbers = #tpu.dot_dimension_numbers<[0], [0], [1], [1], [0, 1, 1, 1], [], []>} : vector<32x256xf32>, vector<32x16xf32>, vector<256x16xf32> -> vector<256x16xf32>
    %cst_20 = arith.constant dense<0.000000e+00> : vector<16x16xf32>
    %31 = tpu.matmul %27, %27, %cst_20 {dimension_numbers = #tpu.dot_dimension_numbers<[0], [0], [1], [1], [0, 1, 1, 1], [], []>} : vector<32x16xf32>, vector<32x16xf32>, vector<16x16xf32> -> vector<16x16xf32>
    %cst_21 = arith.constant dense<0.000000e+00> : vector<256x16xf32>
    %32 = tpu.matmul %20, %31, %cst_21 {dimension_numbers = #tpu.dot_dimension_numbers<[1], [0], [0], [1], [0, 0, 1, 1], [], []>} : vector<256x16xf32>, vector<16x16xf32>, vector<256x16xf32> -> vector<256x16xf32>
    %33 = arith.divf %30, %32 : vector<256x16xf32>
    %cst_22 = arith.constant 9.99999997E-7 : f32
    %34 = vector.broadcast %cst_22 : f32 to vector<256x16xf32>
    %35 = arith.addf %33, %34 : vector<256x16xf32>
    %36 = arith.mulf %20, %35 : vector<256x16xf32>
    %cst_23 = arith.constant dense<0.000000e+00> : vector<32x16xf32>
    %37 = tpu.matmul %29, %36, %cst_23 {dimension_numbers = #tpu.dot_dimension_numbers<[1], [0], [0], [1], [0, 0, 1, 1], [], []>} : vector<32x256xf32>, vector<256x16xf32>, vector<32x16xf32> -> vector<32x16xf32>
    %cst_24 = arith.constant dense<0.000000e+00> : vector<16x16xf32>
    %38 = tpu.matmul %36, %36, %cst_24 {dimension_numbers = #tpu.dot_dimension_numbers<[0], [0], [1], [1], [0, 1, 1, 1], [], []>} : vector<256x16xf32>, vector<256x16xf32>, vector<16x16xf32> -> vector<16x16xf32>
    %cst_25 = arith.constant dense<0.000000e+00> : vector<32x16xf32>
    %39 = tpu.matmul %27, %38, %cst_25 {dimension_numbers = #tpu.dot_dimension_numbers<[1], [0], [0], [1], [0, 0, 1, 1], [], []>} : vector<32x16xf32>, vector<16x16xf32>, vector<32x16xf32> -> vector<32x16xf32>
    %40 = arith.divf %37, %39 : vector<32x16xf32>
    %cst_26 = arith.constant 9.99999997E-7 : f32
    %41 = vector.broadcast %cst_26 : f32 to vector<32x16xf32>
    %42 = arith.addf %40, %41 : vector<32x16xf32>
    %43 = arith.mulf %27, %42 : vector<32x16xf32>
    %c0_27 = arith.constant 0 : index
    %c0_28 = arith.constant 0 : index
    %c0_29 = arith.constant 0 : index
    %44 = vector.load %arg1[%c0_27, %c0_28, %c0_29] : memref<1x32x256xf32, #tpu.memory_space<vmem>>, vector<1x32x256xf32>
    %45 = vector.shape_cast %44 : vector<1x32x256xf32> to vector<32x256xf32>
    %cst_30 = arith.constant dense<0.000000e+00> : vector<256x16xf32>
    %46 = tpu.matmul %45, %43, %cst_30 {dimension_numbers = #tpu.dot_dimension_numbers<[0], [0], [1], [1], [0, 1, 1, 1], [], []>} : vector<32x256xf32>, vector<32x16xf32>, vector<256x16xf32> -> vector<256x16xf32>
    %cst_31 = arith.constant dense<0.000000e+00> : vector<16x16xf32>
    %47 = tpu.matmul %43, %43, %cst_31 {dimension_numbers = #tpu.dot_dimension_numbers<[0], [0], [1], [1], [0, 1, 1, 1], [], []>} : vector<32x16xf32>, vector<32x16xf32>, vector<16x16xf32> -> vector<16x16xf32>
    %cst_32 = arith.constant dense<0.000000e+00> : vector<256x16xf32>
    %48 = tpu.matmul %36, %47, %cst_32 {dimension_numbers = #tpu.dot_dimension_numbers<[1], [0], [0], [1], [0, 0, 1, 1], [], []>} : vector<256x16xf32>, vector<16x16xf32>, vector<256x16xf32> -> vector<256x16xf32>
    %49 = arith.divf %46, %48 : vector<256x16xf32>
    %cst_33 = arith.constant 9.99999997E-7 : f32
    %50 = vector.broadcast %cst_33 : f32 to vector<256x16xf32>
    %51 = arith.addf %49, %50 : vector<256x16xf32>
    %52 = arith.mulf %36, %51 : vector<256x16xf32>
    %cst_34 = arith.constant dense<0.000000e+00> : vector<32x16xf32>
    %53 = tpu.matmul %45, %52, %cst_34 {dimension_numbers = #tpu.dot_dimension_numbers<[1], [0], [0], [1], [0, 0, 1, 1], [], []>} : vector<32x256xf32>, vector<256x16xf32>, vector<32x16xf32> -> vector<32x16xf32>
    %cst_35 = arith.constant dense<0.000000e+00> : vector<16x16xf32>
    %54 = tpu.matmul %52, %52, %cst_35 {dimension_numbers = #tpu.dot_dimension_numbers<[0], [0], [1], [1], [0, 1, 1, 1], [], []>} : vector<256x16xf32>, vector<256x16xf32>, vector<16x16xf32> -> vector<16x16xf32>
    %cst_36 = arith.constant dense<0.000000e+00> : vector<32x16xf32>
    %55 = tpu.matmul %43, %54, %cst_36 {dimension_numbers = #tpu.dot_dimension_numbers<[1], [0], [0], [1], [0, 0, 1, 1], [], []>} : vector<32x16xf32>, vector<16x16xf32>, vector<32x16xf32> -> vector<32x16xf32>
    %56 = arith.divf %53, %55 : vector<32x16xf32>
    %cst_37 = arith.constant 9.99999997E-7 : f32
    %57 = vector.broadcast %cst_37 : f32 to vector<32x16xf32>
    %58 = arith.addf %56, %57 : vector<32x16xf32>
    %59 = arith.mulf %43, %58 : vector<32x16xf32>
    %c0_38 = arith.constant 0 : index
    %c0_39 = arith.constant 0 : index
    %c0_40 = arith.constant 0 : index
    %60 = vector.load %arg1[%c0_38, %c0_39, %c0_40] : memref<1x32x256xf32, #tpu.memory_space<vmem>>, vector<1x32x256xf32>
    %61 = vector.shape_cast %60 : vector<1x32x256xf32> to vector<32x256xf32>
    %cst_41 = arith.constant dense<0.000000e+00> : vector<256x16xf32>
    %62 = tpu.matmul %61, %59, %cst_41 {dimension_numbers = #tpu.dot_dimension_numbers<[0], [0], [1], [1], [0, 1, 1, 1], [], []>} : vector<32x256xf32>, vector<32x16xf32>, vector<256x16xf32> -> vector<256x16xf32>
    %cst_42 = arith.constant dense<0.000000e+00> : vector<16x16xf32>
    %63 = tpu.matmul %59, %59, %cst_42 {dimension_numbers = #tpu.dot_dimension_numbers<[0], [0], [1], [1], [0, 1, 1, 1], [], []>} : vector<32x16xf32>, vector<32x16xf32>, vector<16x16xf32> -> vector<16x16xf32>
    %cst_43 = arith.constant dense<0.000000e+00> : vector<256x16xf32>
    %64 = tpu.matmul %52, %63, %cst_43 {dimension_numbers = #tpu.dot_dimension_numbers<[1], [0], [0], [1], [0, 0, 1, 1], [], []>} : vector<256x16xf32>, vector<16x16xf32>, vector<256x16xf32> -> vector<256x16xf32>
    %65 = arith.divf %62, %64 : vector<256x16xf32>
    %cst_44 = arith.constant 9.99999997E-7 : f32
    %66 = vector.broadcast %cst_44 : f32 to vector<256x16xf32>
    %67 = arith.addf %65, %66 : vector<256x16xf32>
    %68 = arith.mulf %52, %67 : vector<256x16xf32>
    %cst_45 = arith.constant dense<0.000000e+00> : vector<32x16xf32>
    %69 = tpu.matmul %61, %68, %cst_45 {dimension_numbers = #tpu.dot_dimension_numbers<[1], [0], [0], [1], [0, 0, 1, 1], [], []>} : vector<32x256xf32>, vector<256x16xf32>, vector<32x16xf32> -> vector<32x16xf32>
    %cst_46 = arith.constant dense<0.000000e+00> : vector<16x16xf32>
    %70 = tpu.matmul %68, %68, %cst_46 {dimension_numbers = #tpu.dot_dimension_numbers<[0], [0], [1], [1], [0, 1, 1, 1], [], []>} : vector<256x16xf32>, vector<256x16xf32>, vector<16x16xf32> -> vector<16x16xf32>
    %cst_47 = arith.constant dense<0.000000e+00> : vector<32x16xf32>
    %71 = tpu.matmul %59, %70, %cst_47 {dimension_numbers = #tpu.dot_dimension_numbers<[1], [0], [0], [1], [0, 0, 1, 1], [], []>} : vector<32x16xf32>, vector<16x16xf32>, vector<32x16xf32> -> vector<32x16xf32>
    %72 = arith.divf %69, %71 : vector<32x16xf32>
    %cst_48 = arith.constant 9.99999997E-7 : f32
    %73 = vector.broadcast %cst_48 : f32 to vector<32x16xf32>
    %74 = arith.addf %72, %73 : vector<32x16xf32>
    %75 = arith.mulf %59, %74 : vector<32x16xf32>
    %c0_49 = arith.constant 0 : index
    %c0_50 = arith.constant 0 : index
    %c0_51 = arith.constant 0 : index
    %76 = vector.load %arg1[%c0_49, %c0_50, %c0_51] : memref<1x32x256xf32, #tpu.memory_space<vmem>>, vector<1x32x256xf32>
    %77 = vector.shape_cast %76 : vector<1x32x256xf32> to vector<32x256xf32>
    %cst_52 = arith.constant dense<0.000000e+00> : vector<256x16xf32>
    %78 = tpu.matmul %77, %75, %cst_52 {dimension_numbers = #tpu.dot_dimension_numbers<[0], [0], [1], [1], [0, 1, 1, 1], [], []>} : vector<32x256xf32>, vector<32x16xf32>, vector<256x16xf32> -> vector<256x16xf32>
    %cst_53 = arith.constant dense<0.000000e+00> : vector<16x16xf32>
    %79 = tpu.matmul %75, %75, %cst_53 {dimension_numbers = #tpu.dot_dimension_numbers<[0], [0], [1], [1], [0, 1, 1, 1], [], []>} : vector<32x16xf32>, vector<32x16xf32>, vector<16x16xf32> -> vector<16x16xf32>
    %cst_54 = arith.constant dense<0.000000e+00> : vector<256x16xf32>
    %80 = tpu.matmul %68, %79, %cst_54 {dimension_numbers = #tpu.dot_dimension_numbers<[1], [0], [0], [1], [0, 0, 1, 1], [], []>} : vector<256x16xf32>, vector<16x16xf32>, vector<256x16xf32> -> vector<256x16xf32>
    %81 = arith.divf %78, %80 : vector<256x16xf32>
    %cst_55 = arith.constant 9.99999997E-7 : f32
    %82 = vector.broadcast %cst_55 : f32 to vector<256x16xf32>
    %83 = arith.addf %81, %82 : vector<256x16xf32>
    %84 = arith.mulf %68, %83 : vector<256x16xf32>
    %cst_56 = arith.constant dense<0.000000e+00> : vector<32x16xf32>
    %85 = tpu.matmul %77, %84, %cst_56 {dimension_numbers = #tpu.dot_dimension_numbers<[1], [0], [0], [1], [0, 0, 1, 1], [], []>} : vector<32x256xf32>, vector<256x16xf32>, vector<32x16xf32> -> vector<32x16xf32>
    %cst_57 = arith.constant dense<0.000000e+00> : vector<16x16xf32>
    %86 = tpu.matmul %84, %84, %cst_57 {dimension_numbers = #tpu.dot_dimension_numbers<[0], [0], [1], [1], [0, 1, 1, 1], [], []>} : vector<256x16xf32>, vector<256x16xf32>, vector<16x16xf32> -> vector<16x16xf32>
    %cst_58 = arith.constant dense<0.000000e+00> : vector<32x16xf32>
    %87 = tpu.matmul %75, %86, %cst_58 {dimension_numbers = #tpu.dot_dimension_numbers<[1], [0], [0], [1], [0, 0, 1, 1], [], []>} : vector<32x16xf32>, vector<16x16xf32>, vector<32x16xf32> -> vector<32x16xf32>
    %88 = arith.divf %85, %87 : vector<32x16xf32>
    %cst_59 = arith.constant 9.99999997E-7 : f32
    %89 = vector.broadcast %cst_59 : f32 to vector<32x16xf32>
    %90 = arith.addf %88, %89 : vector<32x16xf32>
    %91 = arith.mulf %75, %90 : vector<32x16xf32>
    %c0_60 = arith.constant 0 : index
    %c0_61 = arith.constant 0 : index
    %c0_62 = arith.constant 0 : index
    %92 = vector.load %arg1[%c0_60, %c0_61, %c0_62] : memref<1x32x256xf32, #tpu.memory_space<vmem>>, vector<1x32x256xf32>
    %93 = vector.shape_cast %92 : vector<1x32x256xf32> to vector<32x256xf32>
    %cst_63 = arith.constant dense<0.000000e+00> : vector<256x16xf32>
    %94 = tpu.matmul %93, %91, %cst_63 {dimension_numbers = #tpu.dot_dimension_numbers<[0], [0], [1], [1], [0, 1, 1, 1], [], []>} : vector<32x256xf32>, vector<32x16xf32>, vector<256x16xf32> -> vector<256x16xf32>
    %cst_64 = arith.constant dense<0.000000e+00> : vector<16x16xf32>
    %95 = tpu.matmul %91, %91, %cst_64 {dimension_numbers = #tpu.dot_dimension_numbers<[0], [0], [1], [1], [0, 1, 1, 1], [], []>} : vector<32x16xf32>, vector<32x16xf32>, vector<16x16xf32> -> vector<16x16xf32>
    %cst_65 = arith.constant dense<0.000000e+00> : vector<256x16xf32>
    %96 = tpu.matmul %84, %95, %cst_65 {dimension_numbers = #tpu.dot_dimension_numbers<[1], [0], [0], [1], [0, 0, 1, 1], [], []>} : vector<256x16xf32>, vector<16x16xf32>, vector<256x16xf32> -> vector<256x16xf32>
    %97 = arith.divf %94, %96 : vector<256x16xf32>
    %cst_66 = arith.constant 9.99999997E-7 : f32
    %98 = vector.broadcast %cst_66 : f32 to vector<256x16xf32>
    %99 = arith.addf %97, %98 : vector<256x16xf32>
    %100 = arith.mulf %84, %99 : vector<256x16xf32>
    %cst_67 = arith.constant dense<0.000000e+00> : vector<32x16xf32>
    %101 = tpu.matmul %93, %100, %cst_67 {dimension_numbers = #tpu.dot_dimension_numbers<[1], [0], [0], [1], [0, 0, 1, 1], [], []>} : vector<32x256xf32>, vector<256x16xf32>, vector<32x16xf32> -> vector<32x16xf32>
    %cst_68 = arith.constant dense<0.000000e+00> : vector<16x16xf32>
    %102 = tpu.matmul %100, %100, %cst_68 {dimension_numbers = #tpu.dot_dimension_numbers<[0], [0], [1], [1], [0, 1, 1, 1], [], []>} : vector<256x16xf32>, vector<256x16xf32>, vector<16x16xf32> -> vector<16x16xf32>
    %cst_69 = arith.constant dense<0.000000e+00> : vector<32x16xf32>
    %103 = tpu.matmul %91, %102, %cst_69 {dimension_numbers = #tpu.dot_dimension_numbers<[1], [0], [0], [1], [0, 0, 1, 1], [], []>} : vector<32x16xf32>, vector<16x16xf32>, vector<32x16xf32> -> vector<32x16xf32>
    %104 = arith.divf %101, %103 : vector<32x16xf32>
    %cst_70 = arith.constant 9.99999997E-7 : f32
    %105 = vector.broadcast %cst_70 : f32 to vector<32x16xf32>
    %106 = arith.addf %104, %105 : vector<32x16xf32>
    %107 = arith.mulf %91, %106 : vector<32x16xf32>
    %cst_71 = arith.constant dense<0.000000e+00> : vector<32x256xf32>
    %108 = tpu.matmul %107, %100, %cst_71 {dimension_numbers = #tpu.dot_dimension_numbers<[1], [1], [0], [0], [0, 0, 1, 0], [], []>} : vector<32x16xf32>, vector<256x16xf32>, vector<32x256xf32> -> vector<32x256xf32>
    %c0_72 = arith.constant 0 : index
    %c0_73 = arith.constant 0 : index
    %c0_74 = arith.constant 0 : index
    %109 = vector.load %arg3[%c0_72, %c0_73, %c0_74] : memref<1x32x256xf32, #tpu.memory_space<vmem>>, vector<1x32x256xf32>
    %110 = vector.shape_cast %109 : vector<1x32x256xf32> to vector<32x256xf32>
    %111 = vector.shape_cast %108 : vector<32x256xf32> to vector<1x32x256xf32>
    tpu.vector_store %arg3[%c0_72, %c0_73, %c0_74], %111 {strides = array<i32>} : memref<1x32x256xf32, #tpu.memory_space<vmem>>, vector<1x32x256xf32>,
    return
  }
  func.func @transform_0(%arg0: i32) -> (i32, i32, i32) {
    %c0_i32 = arith.constant 0 : i32
    %c0_i32_0 = arith.constant 0 : i32
    %c0_i32_1 = arith.constant 0 : i32
    return %arg0, %c0_i32, %c0_i32_0 : i32, i32, i32
  }
  func.func @transform_1(%arg0: i32) -> (i32, i32) {
    %c0_i32 = arith.constant 0 : i32
    %c0_i32_0 = arith.constant 0 : i32
    %c0_i32_1 = arith.constant 0 : i32
    return %c0_i32, %c0_i32_0 : i32, i32
  }
  func.func @transform_2(%arg0: i32) -> (i32, i32, i32) {
    %c0_i32 = arith.constant 0 : i32
    %c0_i32_0 = arith.constant 0 : i32
    %c0_i32_1 = arith.constant 0 : i32
    return %arg0, %c0_i32, %c0_i32_0 : i32, i32, i32
  }
}

</mosaic_0001>

<llo_original>
// kernel: tpu_custom_call.1
$region0: #{tpu_custom_call.1}
  #allocation0 [shape = 'u32[]', space=smem, size = 0x4, offset = 0x4, fixed_abs, tag = 'smem constant byte address 0x4 - core index']
  #allocation1 [shape = 'u32[144,128]{1,0:T(1,128)}', space=vmem, size = 0x12000, scoped, tag = 'internal scratch']
  %s0 = inlined_call_operand.hbm [shape: f32[2,32,256], index: 0, kind: input, shape index: {}]
  %s1 = inlined_call_operand.vmem [shape: f32[32,16], index: 1, kind: input, shape index: {}]
  %s2 = inlined_call_operand.hbm [shape: f32[2,32,256], index: 2, kind: output, shape index: {}]
  %s3 = sld [smem:[#allocation0]]
  $region45: #{tpu_custom_call.1} parent=0
    _
  %s5 = ssub.s32 1, %s3
  %s6 = scalar_select 0, %s5, %s3
  $region1: #{tpu_custom_call.1} parent=0
    #allocation2 [shape = 'u8[65536]{0}', space=vmem, size = 0x10000, scoped, tag = 'input window, operand 0']
    #allocation3 [shape = 's32[2]{0}', space=sflag, size = 0x8, scoped, tag = 'scoped memory for tpu_custom_call.1']
    #allocation4 [shape = 's32[2]{0}', space=sflag, size = 0x8, scoped, tag = 'scoped memory for tpu_custom_call.1']
    #allocation5 [shape = 'u8[65536]{0}', space=vmem, size = 0x10000, scoped, tag = 'output window, operand 0']
    %7 = vsyncpa [#allocation3], 0
    %s8 = scalar_lea.sflag [#allocation3], 1
    %9 = vsyncpa %s8, 0
    %10 = vsyncpa [#allocation4], 0
    %s11 = scalar_lea.sflag [#allocation4], 1
    %12 = vsyncpa %s11, 0
    loop: start=0, step=1, limit=4
    $region2: #{tpu_custom_call.1} parent=1 // loop_pre_header
      _
    $region3: #{tpu_custom_call.1} parent=1 // loop_header
      %s14 = sphi 0, %s18
      %p15 = scmp.ge.s32.totalorder %s14, 4
      %s24 = sphi 0, %s26
      %s27 = sphi 0, %s24
      %s28 = sphi 0, %s27
      %s44 = sphi 0, %s28
      %s48 = sphi 0, %s48
      %s50 = sphi 0, %s48
      %s51 = sphi 0, %s50
      %s65 = sphi 0, %s51
      %s71 = sphi 0, %s73
      %s74 = sphi 0, %s71
      %s75 = sphi 0, %s74
      %s91 = sphi 0, %s75
    $region4: #{tpu_custom_call.1} parent=1 // loop_header_branch
      %17 = sbr.rel (%p15) target = $region8
    $region5: #{tpu_custom_call.1} parent=1 // loop_body
      %s19 = ssub.s32 %s14, 1
      %s20 = ssub.s32 %s14, 2
      %s21 = sadd.s32 %s14, 1
      %s22 = ssub.s32 %s14, %s21
      %p23 = scmp.eq.s32.totalorder %s22, 0
      %s25 = sadd.s32 %s24, 1
      %s26 = scalar_select %p23, %s24, %s25
      %p29 = pneg %p23
      %p30 = scmp.eq.s32.totalorder %s14, 1
      %p31 = por %p29, %p30
      %p32 = scmp.ne.s32.totalorder %s24, %s27
      %p33 = scmp.eq.s32.totalorder %s14, 0
      %p34 = por %p32, %p33
      %p35 = scmp.ne.s32.totalorder %s24, %s27
      %p36 = scmp.eq.s32.totalorder %s19, 1
      %p37 = por %p35, %p36
      %p38 = scmp.ne.s32.totalorder %s27, %s28
      %p39 = scmp.eq.s32.totalorder %s19, 0
      %p40 = por %p38, %p39
      %p41 = scmp.ne.s32.totalorder %s27, %s28
      %p42 = scmp.eq.s32.totalorder %s20, 1
      %p43 = por %p41, %p42
      %p45 = scmp.ne.s32.totalorder %s28, %s44
      %p46 = scmp.eq.s32.totalorder %s20, 0
      %p47 = por %p45, %p46
      %s49 = sadd.s32 %s48, 1
      %p52 = scmp.eq.s32.totalorder %s14, 1
      %p53 = scmp.ne.s32.totalorder %s48, %s50
      %p54 = scmp.eq.s32.totalorder %s14, 0
      %p55 = por %p53, %p54
      %p56 = scmp.ne.s32.totalorder %s48, %s50
      %p57 = scmp.eq.s32.totalorder %s19, 1
      %p58 = por %p56, %p57
      %p59 = scmp.ne.s32.totalorder %s50, %s51
      %p60 = scmp.eq.s32.totalorder %s19, 0
      %p61 = por %p59, %p60
      %p62 = scmp.ne.s32.totalorder %s50, %s51
      %p63 = scmp.eq.s32.totalorder %s20, 1
      %p64 = por %p62, %p63
      %p66 = scmp.ne.s32.totalorder %s51, %s65
      %p67 = scmp.eq.s32.totalorder %s20, 0
      %p68 = por %p66, %p67
      %s69 = ssub.s32 %s14, %s21
      %p70 = scmp.eq.s32.totalorder %s69, 0
      %s72 = sadd.s32 %s71, 1
      %s73 = scalar_select %p70, %s71, %s72
      %p76 = pneg %p70
      %p77 = scmp.eq.s32.totalorder %s14, 1
      %p78 = por %p76, %p77
      %p79 = scmp.ne.s32.totalorder %s71, %s74
      %p80 = scmp.eq.s32.totalorder %s14, 0
      %p81 = por %p79, %p80
      %p82 = scmp.ne.s32.totalorder %s71, %s74
      %p83 = scmp.eq.s32.totalorder %s19, 1
      %p84 = por %p82, %p83
      %p85 = scmp.ne.s32.totalorder %s74, %s75
      %p86 = scmp.eq.s32.totalorder %s19, 0
      %p87 = por %p85, %p86
      %p88 = scmp.ne.s32.totalorder %s74, %s75
      %p89 = scmp.eq.s32.totalorder %s20, 1
      %p90 = por %p88, %p89
      %p92 = scmp.ne.s32.totalorder %s75, %s91
      %p93 = scmp.eq.s32.totalorder %s20, 0
      %p94 = por %p92, %p93
      %p95 = scmp.le.s32.totalorder 1, %s14
      %p96 = scmp.lt.s32.totalorder %s14, 3
      %p97 = pnand %p95, %p96
      %p98 = pneg %p97
      // Predicated region
      $region9: #{tpu_custom_call.1} parent=5 // pred_check
        _
      $region10: #{tpu_custom_call.1} parent=5 // pred_check_branch
        %100 = sbr.rel (%p97) target = $region12
      $region11: #{tpu_custom_call.1} parent=5 // pred_region
        %s101 = ssub.s32 %s14, 1
        // Predicated region
        $region13: #{tpu_custom_call.1} parent=11 // pred_check
          %p102 = pneg %p61
        $region14: #{tpu_custom_call.1} parent=11 // pred_check_branch
          %104 = sbr.rel (%p102) target = $region16
        $region15: #{tpu_custom_call.1} parent=11 // pred_region
          _
        $region16: #{tpu_custom_call.1} parent=11 // pred_fallthru
          _
      $region12: #{tpu_custom_call.1} parent=5 // pred_fallthru
        _
      %p105 = scmp.lt.s32.totalorder %s14, 2
      // Predicated region
      $region17: #{tpu_custom_call.1} parent=5 // pred_check
        %p106 = pneg %p105
      $region18: #{tpu_custom_call.1} parent=5 // pred_check_branch
        %108 = sbr.rel (%p106) target = $region20
      $region19: #{tpu_custom_call.1} parent=5 // pred_region
        // Predicated region
        $region21: #{tpu_custom_call.1} parent=19 // pred_check
          %p109 = pneg %p34
        $region22: #{tpu_custom_call.1} parent=19 // pred_check_branch
          %111 = sbr.rel (%p109) target = $region24
        $region23: #{tpu_custom_call.1} parent=19 // pred_region
          %s112 = sand.u32 %s24, 1
          %s113 = scalar_lea.sflag [#allocation3], %s112
          %s114 = sand.u32 %s24, 1
          %s115 = smul.addr %s114, 64
          %s116 = scalar_lea.vmem [#allocation2], %s115
          %s118 = ssub.s32 1024, 1024
          %119 = vsyncadd %s113, %s118
          %s120 = smul.addr %s14, 8
          %s121 = smul.addr %s120, 128
          %s122 = scalar_lea.hbm %s0, %s121
          %s123 = sshll.u32 %s116, 4
          %s124 = int_to_ptr.vmem [resolvable:$true] %s123
          %129 = dma.hbm_to_vmem [thread:$0]  %s122, 1024, %s124, %s113, 256, 256, 16
        $region24: #{tpu_custom_call.1} parent=19 // pred_fallthru
          _
      $region20: #{tpu_custom_call.1} parent=5 // pred_fallthru
        _
      %p130 = scmp.le.s32.totalorder 1, %s14
      %p131 = scmp.lt.s32.totalorder %s14, 3
      %p132 = pnand %p130, %p131
      %p133 = pneg %p132
      // Predicated region
      $region25: #{tpu_custom_call.1} parent=5 // pred_check
        _
      $region26: #{tpu_custom_call.1} parent=5 // pred_check_branch
        %135 = sbr.rel (%p132) target = $region28
      $region27: #{tpu_custom_call.1} parent=5 // pred_region
        %s136 = ssub.s32 %s14, 1
        %s137 = sand.u32 %s27, 1
        %s138 = scalar_lea.sflag [#allocation3], %s137
        %s139 = sand.u32 %s27, 1
        %s140 = smul.addr %s139, 64
        %s141 = scalar_lea.vmem [#allocation2], %s140
        // Predicated region
        $region29: #{tpu_custom_call.1} parent=27 // pred_check
          %p142 = pneg %p40
        $region30: #{tpu_custom_call.1} parent=27 // pred_check_branch
          %144 = sbr.rel (%p142) target = $region32
        $region31: #{tpu_custom_call.1} parent=27 // pred_region
          %145 = dma.done %s138, 1024
        $region32: #{tpu_custom_call.1} parent=27 // pred_fallthru
          _
        %s146 = sand.u32 %s27, 1
        %s147 = scalar_lea.sflag [#allocation3], %s146
        %s148 = sand.u32 %s27, 1
        %s149 = smul.addr %s148, 64
        %s150 = scalar_lea.vmem [#allocation2], %s149
        %p151 = pneg %p40
        %p152 = pneg %p37
        %p153 = pneg %p61
        %p154 = pneg %p58
        %p155 = pneg %p87
        %p156 = pneg %p84
        %s157 = sand.u32 %s74, 1
        %s158 = scalar_lea.sflag [#allocation4], %s157
        %s159 = sand.u32 %s74, 1
        %s160 = smul.addr %s159, 64
        %s161 = scalar_lea.vmem [#allocation5], %s160
        %v162 = vld [vmem:[%s1] sm:$0xff]
        %v163 = vld [vmem:[%s1 + $0x8] sm:$0xff]
        %v164 = vld [vmem:[%s1 + $0x10] sm:$0xff]
        %v165 = vld [vmem:[%s1 + $0x18] sm:$0xff]
        %166 = vxpose.xlu0.b32.start [1/16] %v162, 128
        %167 = vxpose.xlu0.b32.cont [2/16] %v163, 128
        %168 = vxpose.xlu0.b32.cont [3/16] %v164, 128
        %169 = vxpose.xlu0.b32.cont [4/16] %v165, 128
        %170 = vxpose.xlu0.b32.cont [5/16] 0.0, 128
        %171 = vxpose.xlu0.b32.cont [6/16] 0.0, 128
        %172 = vxpose.xlu0.b32.cont [7/16] 0.0, 128
        %173 = vxpose.xlu0.b32.cont [8/16] 0.0, 128
        %174 = vxpose.xlu0.b32.cont [9/16] 0.0, 128
        %175 = vxpose.xlu0.b32.cont [10/16] 0.0, 128
        %176 = vxpose.xlu0.b32.cont [11/16] 0.0, 128
        %177 = vxpose.xlu0.b32.cont [12/16] 0.0, 128
        %178 = vxpose.xlu0.b32.cont [13/16] 0.0, 128
        %179 = vxpose.xlu0.b32.cont [14/16] 0.0, 128
        %180 = vxpose.xlu0.b32.cont [15/16] 0.0, 128
        %181 = vxpose.xlu0.b32.end [16/16] 0.0, 128
        %v182 = vpop.trf.xlu0
        %v183 = vpop.trf.xlu0
        %v184 = vpop.trf.xlu0
        %v185 = vpop.trf.xlu0
        %v186 = vpop.trf.xlu0
        %v187 = vpop.trf.xlu0
        %v188 = vpop.trf.xlu0
        %v189 = vpop.trf.xlu0
        %v190 = vpop.trf.xlu0
        %v191 = vpop.trf.xlu0
        %v192 = vpop.trf.xlu0
        %v193 = vpop.trf.xlu0
        %v194 = vpop.trf.xlu0
        %v195 = vpop.trf.xlu0
        %v196 = vpop.trf.xlu0
        %v197 = vpop.trf.xlu0
        %vm198 = vcmask 261120
        %v200 = vsel %vm198, %v182, 0
        %v203 = vsel %vm198, %v183, 0
        %205 = vmatprep.subr.mxu0 0.0
        %206 = vmatpush1.msra.mxu0 %v162
        %207 = vmatprep.subr.mxu0 0.0
        %208 = vmatpush1.msra.mxu0 %v163
        %209 = vmatprep.subr.mxu0 0.0
        %210 = vmatpush1.msra.mxu0 %v164
        %211 = vmatprep.subr.mxu0 0.0
        %212 = vmatpush1.msra.mxu0 %v165
        %213 = vmatprep.subr.mxu0 0.0
        %214 = vmatpush1.msra.mxu0 0.0
        %215 = vmatprep.subr.mxu0 0.0
        %216 = vmatpush1.msra.mxu0 0.0
        %217 = vmatprep.subr.mxu0 0.0
        %218 = vmatpush1.msra.mxu0 0.0
        %219 = vmatprep.subr.mxu0 0.0
        %220 = vmatpush1.msra.mxu0 0.0
        %221 = vmatprep.subr.mxu0 0.0
        %222 = vmatpush1.msra.mxu0 0.0
        %223 = vmatprep.subr.mxu0 0.0
        %224 = vmatpush1.msra.mxu0 0.0
        %225 = vmatprep.subr.mxu0 0.0
        %226 = vmatpush1.msra.mxu0 0.0
        %227 = vmatprep.subr.mxu0 0.0
        %228 = vmatpush1.msra.mxu0 0.0
        %229 = vmatprep.subr.mxu0 0.0
        %230 = vmatpush1.msra.mxu0 0.0
        %231 = vmatprep.subr.mxu0 0.0
        %232 = vmatpush1.msra.mxu0 0.0
        %233 = vmatprep.subr.mxu0 0.0
        %234 = vmatpush1.msra.mxu0 0.0
        %235 = vmatprep.subr.mxu0 0.0
        %236 = vmatpush1.msra.mxu0 0.0
        %237 = vmatprep.subr.mxu0 0.0
        %238 = vmatpush1.msra.mxu0 0.0
        %239 = vmatprep.subr.mxu0 0.0
        %240 = vmatpush1.msra.mxu0 0.0
        %241 = vmatprep.subr.mxu0 0.0
        %242 = vmatpush1.msra.mxu0 0.0
        %243 = vmatprep.subr.mxu0 0.0
        %244 = vmatpush1.msra.mxu0 0.0
        %245 = vmatprep.subr.mxu0 0.0
        %246 = vmatpush1.msra.mxu0 0.0
        %247 = vmatprep.subr.mxu0 0.0
        %248 = vmatpush1.msra.mxu0 0.0
        %249 = vmatprep.subr.mxu0 0.0
        %250 = vmatpush1.msra.mxu0 0.0
        %251 = vmatprep.subr.mxu0 0.0
        %252 = vmatpush1.msra.mxu0 0.0
        %253 = vmatprep.subr.mxu0 0.0
        %254 = vmatpush1.msra.mxu0 0.0
        %255 = vmatprep.subr.mxu0 0.0
        %256 = vmatpush1.msra.mxu0 0.0
        %257 = vmatprep.subr.mxu0 0.0
        %258 = vmatpush1.msra.mxu0 0.0
        %259 = vmatprep.subr.mxu0 0.0
        %260 = vmatpush1.msra.mxu0 0.0
        %261 = vmatprep.subr.mxu0 0.0
        %262 = vmatpush1.msra.mxu0 0.0
        %263 = vmatprep.subr.mxu0 0.0
        %264 = vmatpush1.msra.mxu0 0.0
        %265 = vmatprep.subr.mxu0 0.0
        %266 = vmatpush1.msra.mxu0 0.0
        %267 = vmatprep.subr.mxu0 0.0
        %268 = vmatpush1.msra.mxu0 0.0
        %269 = vmatprep.mubr.f32.mxu0 0.0
        %270 = vmatmul.mubr.f32.gmra.mrb[0].mxu0 %v200
        %v271 = vpop.f32.mrb[0].mxu0
        %v272 = vadd.f32 0.0, %v271
        %v273 = vpop.f32.mrb[0].mxu0
        %274 = vmatprep.mubr.f32.mxu0 0.0
        %275 = vmatmul.mubr.f32.gmra.mrb[0].mxu0 %v203
        %v276 = vpop.f32.mrb[0].mxu0
        %v277 = vadd.f32 0.0, %v276
        %v278 = vpop.f32.mrb[0].mxu0
        %279 = vdwg.mxu0
        %v280 = vld [vmem:[%s141] sm:$0xff]
        %v281 = vld [vmem:[%s141 + $0x8] sm:$0xff]
        %v282 = vld [vmem:[%s141 + $0x10] sm:$0xff]
        %v283 = vld [vmem:[%s141 + $0x18] sm:$0xff]
        %v284 = vld [vmem:[%s141 + $0x20] sm:$0xff]
        %v285 = vld [vmem:[%s141 + $0x28] sm:$0xff]
        %v286 = vld [vmem:[%s141 + $0x30] sm:$0xff]
        %v287 = vld [vmem:[%s141 + $0x38] sm:$0xff]
        %288 = vxpose.xlu0.b32.start [1/16] %v280, 128
        %289 = vxpose.xlu0.b32.cont [2/16] %v282, 128
        %290 = vxpose.xlu0.b32.cont [3/16] %v284, 128
        %291 = vxpose.xlu0.b32.cont [4/16] %v286, 128
        %292 = vxpose.xlu0.b32.cont [5/16] 0.0, 128
        %293 = vxpose.xlu0.b32.cont [6/16] 0.0, 128
        %294 = vxpose.xlu0.b32.cont [7/16] 0.0, 128
        %295 = vxpose.xlu0.b32.cont [8/16] 0.0, 128
        %296 = vxpose.xlu0.b32.cont [9/16] 0.0, 128
        %297 = vxpose.xlu0.b32.cont [10/16] 0.0, 128
        %298 = vxpose.xlu0.b32.cont [11/16] 0.0, 128
        %299 = vxpose.xlu0.b32.cont [12/16] 0.0, 128
        %300 = vxpose.xlu0.b32.cont [13/16] 0.0, 128
        %301 = vxpose.xlu0.b32.cont [14/16] 0.0, 128
        %302 = vxpose.xlu0.b32.cont [15/16] 0.0, 128
        %303 = vxpose.xlu0.b32.end [16/16] 0.0, 128
        %v304 = vpop.trf.xlu0
        %v305 = vpop.trf.xlu0
        %v306 = vpop.trf.xlu0
        %v307 = vpop.trf.xlu0
        %v308 = vpop.trf.xlu0
        %v309 = vpop.trf.xlu0
        %v310 = vpop.trf.xlu0
        %v311 = vpop.trf.xlu0
        %v312 = vpop.trf.xlu0
        %v313 = vpop.trf.xlu0
        %v314 = vpop.trf.xlu0
        %v315 = vpop.trf.xlu0
        %v316 = vpop.trf.xlu0
        %v317 = vpop.trf.xlu0
        %v318 = vpop.trf.xlu0
        %v319 = vpop.trf.xlu0
        %320 = vxpose.xlu0.b32.start [1/16] %v281, 128
        %321 = vxpose.xlu0.b32.cont [2/16] %v283, 128
        %322 = vxpose.xlu0.b32.cont [3/16] %v285, 128
        %323 = vxpose.xlu0.b32.cont [4/16] %v287, 128
        %324 = vxpose.xlu0.b32.cont [5/16] 0.0, 128
        %325 = vxpose.xlu0.b32.cont [6/16] 0.0, 128
        %326 = vxpose.xlu0.b32.cont [7/16] 0.0, 128
        %327 = vxpose.xlu0.b32.cont [8/16] 0.0, 128
        %328 = vxpose.xlu0.b32.cont [9/16] 0.0, 128
        %329 = vxpose.xlu0.b32.cont [10/16] 0.0, 128
        %330 = vxpose.xlu0.b32.cont [11/16] 0.0, 128
        %331 = vxpose.xlu0.b32.cont [12/16] 0.0, 128
        %332 = vxpose.xlu0.b32.cont [13/16] 0.0, 128
        %333 = vxpose.xlu0.b32.cont [14/16] 0.0, 128
        %334 = vxpose.xlu0.b32.cont [15/16] 0.0, 128
        %335 = vxpose.xlu0.b32.end [16/16] 0.0, 128
        %v336 = vpop.trf.xlu0
        %v337 = vpop.trf.xlu0
        %v338 = vpop.trf.xlu0
        %v339 = vpop.trf.xlu0
        %v340 = vpop.trf.xlu0
        %v341 = vpop.trf.xlu0
        %v342 = vpop.trf.xlu0
        %v343 = vpop.trf.xlu0
        %v344 = vpop.trf.xlu0
        %v345 = vpop.trf.xlu0
        %v346 = vpop.trf.xlu0
        %v347 = vpop.trf.xlu0
        %v348 = vpop.trf.xlu0
        %v349 = vpop.trf.xlu0
        %v350 = vpop.trf.xlu0
        %v351 = vpop.trf.xlu0
        %v353 = vsel %vm198, %v304, 0
        %v356 = vsel %vm198, %v305, 0
        %v359 = vsel %vm198, %v306, 0
        %v362 = vsel %vm198, %v307, 0
        %v365 = vsel %vm198, %v308, 0
        %v368 = vsel %vm198, %v309, 0
        %v371 = vsel %vm198, %v310, 0
        %v374 = vsel %vm198, %v311, 0
        %v377 = vsel %vm198, %v312, 0
        %v380 = vsel %vm198, %v313, 0
        %v383 = vsel %vm198, %v314, 0
        %v386 = vsel %vm198, %v315, 0
        %v389 = vsel %vm198, %v316, 0
        %v392 = vsel %vm198, %v317, 0
        %v395 = vsel %vm198, %v318, 0
        %v398 = vsel %vm198, %v319, 0
        %v401 = vsel %vm198, %v336, 0
        %v404 = vsel %vm198, %v337, 0
        %v407 = vsel %vm198, %v338, 0
        %v410 = vsel %vm198, %v339, 0
        %v413 = vsel %vm198, %v340, 0
        %v416 = vsel %vm198, %v341, 0
        %v419 = vsel %vm198, %v342, 0
        %v422 = vsel %vm198, %v343, 0
        %v425 = vsel %vm198, %v344, 0
        %v428 = vsel %vm198, %v345, 0
        %v431 = vsel %vm198, %v346, 0
        %v434 = vsel %vm198, %v347, 0
        %v437 = vsel %vm198, %v348, 0
        %v440 = vsel %vm198, %v349, 0
        %v443 = vsel %vm198, %v350, 0
        %v446 = vsel %vm198, %v351, 0
        %448 = vmatprep.subr.mxu0 0.0
        %449 = vmatpush1.msra.mxu0 %v162
        %450 = vmatprep.subr.mxu0 0.0
        %451 = vmatpush1.msra.mxu0 %v163
        %452 = vmatprep.subr.mxu0 0.0
        %453 = vmatpush1.msra.mxu0 %v164
        %454 = vmatprep.subr.mxu0 0.0
        %455 = vmatpush1.msra.mxu0 %v165
        %456 = vmatprep.subr.mxu0 0.0
        %457 = vmatpush1.msra.mxu0 0.0
        %458 = vmatprep.subr.mxu0 0.0
        %459 = vmatpush1.msra.mxu0 0.0
        %460 = vmatprep.subr.mxu0 0.0
        %461 = vmatpush1.msra.mxu0 0.0
        %462 = vmatprep.subr.mxu0 0.0
        %463 = vmatpush1.msra.mxu0 0.0
        %464 = vmatprep.subr.mxu0 0.0
        %465 = vmatpush1.msra.mxu0 0.0
        %466 = vmatprep.subr.mxu0 0.0
        %467 = vmatpush1.msra.mxu0 0.0
        %468 = vmatprep.subr.mxu0 0.0
        %469 = vmatpush1.msra.mxu0 0.0
        %470 = vmatprep.subr.mxu0 0.0
        %471 = vmatpush1.msra.mxu0 0.0
        %472 = vmatprep.subr.mxu0 0.0
        %473 = vmatpush1.msra.mxu0 0.0
        %474 = vmatprep.subr.mxu0 0.0
        %475 = vmatpush1.msra.mxu0 0.0
        %476 = vmatprep.subr.mxu0 0.0
        %477 = vmatpush1.msra.mxu0 0.0
        %478 = vmatprep.subr.mxu0 0.0
        %479 = vmatpush1.msra.mxu0 0.0
        %480 = vmatprep.subr.mxu0 0.0
        %481 = vmatpush1.msra.mxu0 0.0
        %482 = vmatprep.subr.mxu0 0.0
        %483 = vmatpush1.msra.mxu0 0.0
        %484 = vmatprep.subr.mxu0 0.0
        %485 = vmatpush1.msra.mxu0 0.0
        %486 = vmatprep.subr.mxu0 0.0
        %487 = vmatpush1.msra.mxu0 0.0
        %488 = vmatprep.subr.mxu0 0.0
        %489 = vmatpush1.msra.mxu0 0.0
        %490 = vmatprep.subr.mxu0 0.0
        %491 = vmatpush1.msra.mxu0 0.0
        %492 = vmatprep.subr.mxu0 0.0
        %493 = vmatpush1.msra.mxu0 0.0
        %494 = vmatprep.subr.mxu0 0.0
        %495 = vmatpush1.msra.mxu0 0.0
        %496 = vmatprep.subr.mxu0 0.0
        %497 = vmatpush1.msra.mxu0 0.0
        %498 = vmatprep.subr.mxu0 0.0
        %499 = vmatpush1.msra.mxu0 0.0
        %500 = vmatprep.subr.mxu0 0.0
        %501 = vmatpush1.msra.mxu0 0.0
        %502 = vmatprep.subr.mxu0 0.0
        %503 = vmatpush1.msra.mxu0 0.0
        %504 = vmatprep.subr.mxu0 0.0
        %505 = vmatpush1.msra.mxu0 0.0
        %506 = vmatprep.subr.mxu0 0.0
        %507 = vmatpush1.msra.mxu0 0.0
        %508 = vmatprep.subr.mxu0 0.0
        %509 = vmatpush1.msra.mxu0 0.0
        %510 = vmatprep.subr.mxu0 0.0
        %511 = vmatpush1.msra.mxu0 0.0
        %512 = vmatprep.mubr.f32.mxu0 0.0
        %513 = vmatmul.mubr.f32.gmra.mrb[0].mxu0 %v353
        %v514 = vpop.f32.mrb[0].mxu0
        %v515 = vadd.f32 0.0, %v514
        %v516 = vpop.f32.mrb[0].mxu0
        %517 = vmatprep.mubr.f32.mxu0 0.0
        %518 = vmatmul.mubr.f32.gmra.mrb[0].mxu0 %v356
        %v519 = vpop.f32.mrb[0].mxu0
        %v520 = vadd.f32 0.0, %v519
        %v521 = vpop.f32.mrb[0].mxu0
        %522 = vmatprep.mubr.f32.mxu0 0.0
        %523 = vmatmul.mubr.f32.gmra.mrb[0].mxu0 %v359
        %v524 = vpop.f32.mrb[0].mxu0
        %v525 = vadd.f32 0.0, %v524
        %v526 = vpop.f32.mrb[0].mxu0
        %527 = vmatprep.mubr.f32.mxu0 0.0
        %528 = vmatmul.mubr.f32.gmra.mrb[0].mxu0 %v362
        %v529 = vpop.f32.mrb[0].mxu0
        %v530 = vadd.f32 0.0, %v529
        %v531 = vpop.f32.mrb[0].mxu0
        %532 = vmatprep.mubr.f32.mxu0 0.0
        %533 = vmatmul.mubr.f32.gmra.mrb[0].mxu0 %v365
        %v534 = vpop.f32.mrb[0].mxu0
        %v535 = vadd.f32 0.0, %v534
        %v536 = vpop.f32.mrb[0].mxu0
        %537 = vmatprep.mubr.f32.mxu0 0.0
        %538 = vmatmul.mubr.f32.gmra.mrb[0].mxu0 %v368
        %v539 = vpop.f32.mrb[0].mxu0
        %v540 = vadd.f32 0.0, %v539
        %v541 = vpop.f32.mrb[0].mxu0
        %542 = vmatprep.mubr.f32.mxu0 0.0
        %543 = vmatmul.mubr.f32.gmra.mrb[0].mxu0 %v371
        %v544 = vpop.f32.mrb[0].mxu0
        %v545 = vadd.f32 0.0, %v544
        %v546 = vpop.f32.mrb[0].mxu0
        %547 = vmatprep.mubr.f32.mxu0 0.0
        %548 = vmatmul.mubr.f32.gmra.mrb[0].mxu0 %v374
        %v549 = vpop.f32.mrb[0].mxu0
        %v550 = vadd.f32 0.0, %v549
        %v551 = vpop.f32.mrb[0].mxu0
        %552 = vmatprep.mubr.f32.mxu0 0.0
        %553 = vmatmul.mubr.f32.gmra.mrb[0].mxu0 %v377
        %v554 = vpop.f32.mrb[0].mxu0
        %v555 = vadd.f32 0.0, %v554
        %v556 = vpop.f32.mrb[0].mxu0
        %557 = vmatprep.mubr.f32.mxu0 0.0
        %558 = vmatmul.mubr.f32.gmra.mrb[0].mxu0 %v380
        %v559 = vpop.f32.mrb[0].mxu0
        %v560 = vadd.f32 0.0, %v559
        %v561 = vpop.f32.mrb[0].mxu0
        %562 = vmatprep.mubr.f32.mxu0 0.0
        %563 = vmatmul.mubr.f32.gmra.mrb[0].mxu0 %v383
        %v564 = vpop.f32.mrb[0].mxu0
        %v565 = vadd.f32 0.0, %v564
        %v566 = vpop.f32.mrb[0].mxu0
        %567 = vmatprep.mubr.f32.mxu0 0.0
        %568 = vmatmul.mubr.f32.gmra.mrb[0].mxu0 %v386
        %v569 = vpop.f32.mrb[0].mxu0
        %v570 = vadd.f32 0.0, %v569
        %v571 = vpop.f32.mrb[0].mxu0
        %572 = vmatprep.mubr.f32.mxu0 0.0
        %573 = vmatmul.mubr.f32.gmra.mrb[0].mxu0 %v389
        %v574 = vpop.f32.mrb[0].mxu0
        %v575 = vadd.f32 0.0, %v574
        %v576 = vpop.f32.mrb[0].mxu0
        %577 = vmatprep.mubr.f32.mxu0 0.0
        %578 = vmatmul.mubr.f32.gmra.mrb[0].mxu0 %v392
        %v579 = vpop.f32.mrb[0].mxu0
        %v580 = vadd.f32 0.0, %v579
        %v581 = vpop.f32.mrb[0].mxu0
        %582 = vmatprep.mubr.f32.mxu0 0.0
        %583 = vmatmul.mubr.f32.gmra.mrb[0].mxu0 %v395
        %v584 = vpop.f32.mrb[0].mxu0
        %v585 = vadd.f32 0.0, %v584
        %v586 = vpop.f32.mrb[0].mxu0
        %587 = vmatprep.mubr.f32.mxu0 0.0
        %588 = vmatmul.mubr.f32.gmra.mrb[0].mxu0 %v398
        %v589 = vpop.f32.mrb[0].mxu0
        %v590 = vadd.f32 0.0, %v589
        %v591 = vpop.f32.mrb[0].mxu0
        %592 = vmatprep.mubr.f32.mxu0 0.0
        %593 = vmatmul.mubr.f32.gmra.mrb[0].mxu0 %v401
        %v594 = vpop.f32.mrb[0].mxu0
        %v595 = vadd.f32 0.0, %v594
        %v596 = vpop.f32.mrb[0].mxu0
        %597 = vmatprep.mubr.f32.mxu0 0.0
        %598 = vmatmul.mubr.f32.gmra.mrb[0].mxu0 %v404
        %v599 = vpop.f32.mrb[0].mxu0
        %v600 = vadd.f32 0.0, %v599
        %v601 = vpop.f32.mrb[0].mxu0
        %602 = vmatprep.mubr.f32.mxu0 0.0
        %603 = vmatmul.mubr.f32.gmra.mrb[0].mxu0 %v407
        %v604 = vpop.f32.mrb[0].mxu0
        %v605 = vadd.f32 0.0, %v604
        %v606 = vpop.f32.mrb[0].mxu0
        %607 = vmatprep.mubr.f32.mxu0 0.0
        %608 = vmatmul.mubr.f32.gmra.mrb[0].mxu0 %v410
        %v609 = vpop.f32.mrb[0].mxu0
        %v610 = vadd.f32 0.0, %v609
        %v611 = vpop.f32.mrb[0].mxu0
        %612 = vmatprep.mubr.f32.mxu0 0.0
        %613 = vmatmul.mubr.f32.gmra.mrb[0].mxu0 %v413
        %v614 = vpop.f32.mrb[0].mxu0
        %v615 = vadd.f32 0.0, %v614
        %v616 = vpop.f32.mrb[0].mxu0
        %617 = vmatprep.mubr.f32.mxu0 0.0
        %618 = vmatmul.mubr.f32.gmra.mrb[0].mxu0 %v416
        %v619 = vpop.f32.mrb[0].mxu0
        %v620 = vadd.f32 0.0, %v619
        %v621 = vpop.f32.mrb[0].mxu0
        %622 = vmatprep.mubr.f32.mxu0 0.0
        %623 = vmatmul.mubr.f32.gmra.mrb[0].mxu0 %v419
        %v624 = vpop.f32.mrb[0].mxu0
        %v625 = vadd.f32 0.0, %v624
        %v626 = vpop.f32.mrb[0].mxu0
        %627 = vmatprep.mubr.f32.mxu0 0.0
        %628 = vmatmul.mubr.f32.gmra.mrb[0].mxu0 %v422
        %v629 = vpop.f32.mrb[0].mxu0
        %v630 = vadd.f32 0.0, %v629
        %v631 = vpop.f32.mrb[0].mxu0
        %632 = vmatprep.mubr.f32.mxu0 0.0
        %633 = vmatmul.mubr.f32.gmra.mrb[0].mxu0 %v425
        %v634 = vpop.f32.mrb[0].mxu0
        %v635 = vadd.f32 0.0, %v634
        %v636 = vpop.f32.mrb[0].mxu0
        %637 = vmatprep.mubr.f32.mxu0 0.0
        %638 = vmatmul.mubr.f32.gmra.mrb[0].mxu0 %v428
        %v639 = vpop.f32.mrb[0].mxu0
        %v640 = vadd.f32 0.0, %v639
        %v641 = vpop.f32.mrb[0].mxu0
        %642 = vmatprep.mubr.f32.mxu0 0.0
        %643 = vmatmul.mubr.f32.gmra.mrb[0].mxu0 %v431
        %v644 = vpop.f32.mrb[0].mxu0
        %v645 = vadd.f32 0.0, %v644
        %v646 = vpop.f32.mrb[0].mxu0
        %647 = vmatprep.mubr.f32.mxu0 0.0
        %648 = vmatmul.mubr.f32.gmra.mrb[0].mxu0 %v434
        %v649 = vpop.f32.mrb[0].mxu0
        %v650 = vadd.f32 0.0, %v649
        %v651 = vpop.f32.mrb[0].mxu0
        %652 = vmatprep.mubr.f32.mxu0 0.0
        %653 = vmatmul.mubr.f32.gmra.mrb[0].mxu0 %v437
        %v654 = vpop.f32.mrb[0].mxu0
        %v655 = vadd.f32 0.0, %v654
        %v656 = vpop.f32.mrb[0].mxu0
        %657 = vmatprep.mubr.f32.mxu0 0.0
        %658 = vmatmul.mubr.f32.gmra.mrb[0].mxu0 %v440
        %v659 = vpop.f32.mrb[0].mxu0
        %v660 = vadd.f32 0.0, %v659
        %v661 = vpop.f32.mrb[0].mxu0
        %662 = vmatprep.mubr.f32.mxu0 0.0
        %663 = vmatmul.mubr.f32.gmra.mrb[0].mxu0 %v443
        %v664 = vpop.f32.mrb[0].mxu0
        %v665 = vadd.f32 0.0, %v664
        %v666 = vpop.f32.mrb[0].mxu0
        %667 = vmatprep.mubr.f32.mxu0 0.0
        %668 = vmatmul.mubr.f32.gmra.mrb[0].mxu0 %v446
        %v669 = vpop.f32.mrb[0].mxu0
        %v670 = vadd.f32 0.0, %v669
        %v671 = vpop.f32.mrb[0].mxu0
        %672 = vdwg.mxu0
        %vm673 = vcmask 130048
        %v674 = vsel %vm673, %v515, -inf
        %675 = vmax.xlane.f32.xlu0 %v674
        %v676 = vpop.xlane.xlu0 %675
        %v677 = vsel %vm673, %v520, -inf
        %678 = vmax.xlane.f32.xlu0 %v677
        %v679 = vpop.xlane.xlu0 %678
        %v680 = vsel %vm673, %v525, -inf
        %681 = vmax.xlane.f32.xlu0 %v680
        %v682 = vpop.xlane.xlu0 %681
        %v683 = vsel %vm673, %v530, -inf
        %684 = vmax.xlane.f32.xlu0 %v683
        %v685 = vpop.xlane.xlu0 %684
        %v686 = vsel %vm673, %v535, -inf
        %687 = vmax.xlane.f32.xlu0 %v686
        %v688 = vpop.xlane.xlu0 %687
        %v689 = vsel %vm673, %v540, -inf
        %690 = vmax.xlane.f32.xlu0 %v689
        %v691 = vpop.xlane.xlu0 %690
        %v692 = vsel %vm673, %v545, -inf
        %693 = vmax.xlane.f32.xlu0 %v692
        %v694 = vpop.xlane.xlu0 %693
        %v695 = vsel %vm673, %v550, -inf
        %696 = vmax.xlane.f32.xlu0 %v695
        %v697 = vpop.xlane.xlu0 %696
        %v698 = vsel %vm673, %v555, -inf
        %699 = vmax.xlane.f32.xlu0 %v698
        %v700 = vpop.xlane.xlu0 %699
        %v701 = vsel %vm673, %v560, -inf
        %702 = vmax.xlane.f32.xlu0 %v701
        %v703 = vpop.xlane.xlu0 %702
        %v704 = vsel %vm673, %v565, -inf
        %705 = vmax.xlane.f32.xlu0 %v704
        %v706 = vpop.xlane.xlu0 %705
        %v707 = vsel %vm673, %v570, -inf
        %708 = vmax.xlane.f32.xlu0 %v707
        %v709 = vpop.xlane.xlu0 %708
        %v710 = vsel %vm673, %v575, -inf
        %711 = vmax.xlane.f32.xlu0 %v710
        %v712 = vpop.xlane.xlu0 %711
        %v713 = vsel %vm673, %v580, -inf
        %714 = vmax.xlane.f32.xlu0 %v713
        %v715 = vpop.xlane.xlu0 %714
        %v716 = vsel %vm673, %v585, -inf
        %717 = vmax.xlane.f32.xlu0 %v716
        %v718 = vpop.xlane.xlu0 %717
        %v719 = vsel %vm673, %v590, -inf
        %720 = vmax.xlane.f32.xlu0 %v719
        %v721 = vpop.xlane.xlu0 %720
        %v722 = vsel %vm673, %v595, -inf
        %723 = vmax.xlane.f32.xlu0 %v722
        %v724 = vpop.xlane.xlu0 %723
        %v725 = vsel %vm673, %v600, -inf
        %726 = vmax.xlane.f32.xlu0 %v725
        %v727 = vpop.xlane.xlu0 %726
        %v728 = vsel %vm673, %v605, -inf
        %729 = vmax.xlane.f32.xlu0 %v728
        %v730 = vpop.xlane.xlu0 %729
        %v731 = vsel %vm673, %v610, -inf
        %732 = vmax.xlane.f32.xlu0 %v731
        %v733 = vpop.xlane.xlu0 %732
        %v734 = vsel %vm673, %v615, -inf
        %735 = vmax.xlane.f32.xlu0 %v734
        %v736 = vpop.xlane.xlu0 %735
        %v737 = vsel %vm673, %v620, -inf
        %738 = vmax.xlane.f32.xlu0 %v737
        %v739 = vpop.xlane.xlu0 %738
        %v740 = vsel %vm673, %v625, -inf
        %741 = vmax.xlane.f32.xlu0 %v740
        %v742 = vpop.xlane.xlu0 %741
        %v743 = vsel %vm673, %v630, -inf
        %744 = vmax.xlane.f32.xlu0 %v743
        %v745 = vpop.xlane.xlu0 %744
        %v746 = vsel %vm673, %v635, -inf
        %747 = vmax.xlane.f32.xlu0 %v746
        %v748 = vpop.xlane.xlu0 %747
        %v749 = vsel %vm673, %v640, -inf
        %750 = vmax.xlane.f32.xlu0 %v749
        %v751 = vpop.xlane.xlu0 %750
        %v752 = vsel %vm673, %v645, -inf
        %753 = vmax.xlane.f32.xlu0 %v752
        %v754 = vpop.xlane.xlu0 %753
        %v755 = vsel %vm673, %v650, -inf
        %756 = vmax.xlane.f32.xlu0 %v755
        %v757 = vpop.xlane.xlu0 %756
        %v758 = vsel %vm673, %v655, -inf
        %759 = vmax.xlane.f32.xlu0 %v758
        %v760 = vpop.xlane.xlu0 %759
        %v761 = vsel %vm673, %v660, -inf
        %762 = vmax.xlane.f32.xlu0 %v761
        %v763 = vpop.xlane.xlu0 %762
        %v764 = vsel %vm673, %v665, -inf
        %765 = vmax.xlane.f32.xlu0 %v764
        %v766 = vpop.xlane.xlu0 %765
        %v767 = vsel %vm673, %v670, -inf
        %768 = vmax.xlane.f32.xlu0 %v767
        %v769 = vpop.xlane.xlu0 %768
        %v770 = vsub.f32 %v515, %v676
        %v771 = vsub.f32 %v520, %v679
        %v772 = vsub.f32 %v525, %v682
        %v773 = vsub.f32 %v530, %v685
        %v774 = vsub.f32 %v535, %v688
        %v775 = vsub.f32 %v540, %v691
        %v776 = vsub.f32 %v545, %v694
        %v777 = vsub.f32 %v550, %v697
        %v778 = vsub.f32 %v555, %v700
        %v779 = vsub.f32 %v560, %v703
        %v780 = vsub.f32 %v565, %v706
        %v781 = vsub.f32 %v570, %v709
        %v782 = vsub.f32 %v575, %v712
        %v783 = vsub.f32 %v580, %v715
        %v784 = vsub.f32 %v585, %v718
        %v785 = vsub.f32 %v590, %v721
        %v786 = vsub.f32 %v595, %v724
        %v787 = vsub.f32 %v600, %v727
        %v788 = vsub.f32 %v605, %v730
        %v789 = vsub.f32 %v610, %v733
        %v790 = vsub.f32 %v615, %v736
        %v791 = vsub.f32 %v620, %v739
        %v792 = vsub.f32 %v625, %v742
        %v793 = vsub.f32 %v630, %v745
        %v794 = vsub.f32 %v635, %v748
        %v795 = vsub.f32 %v640, %v751
        %v796 = vsub.f32 %v645, %v754
        %v797 = vsub.f32 %v650, %v757
        %v798 = vsub.f32 %v655, %v760
        %v799 = vsub.f32 %v660, %v763
        %v800 = vsub.f32 %v665, %v766
        %v801 = vsub.f32 %v670, %v769
        %v802 = vmul.f32 %v770, 1.442695
        %v803 = vpow.pop %v802
        %v804 = vmul.f32 %v771, 1.442695
        %v805 = vpow.pop %v804
        %v806 = vmul.f32 %v772, 1.442695
        %v807 = vpow.pop %v806
        %v808 = vmul.f32 %v773, 1.442695
        %v809 = vpow.pop %v808
        %v810 = vmul.f32 %v774, 1.442695
        %v811 = vpow.pop %v810
        %v812 = vmul.f32 %v775, 1.442695
        %v813 = vpow.pop %v812
        %v814 = vmul.f32 %v776, 1.442695
        %v815 = vpow.pop %v814
        %v816 = vmul.f32 %v777, 1.442695
        %v817 = vpow.pop %v816
        %v818 = vmul.f32 %v778, 1.442695
        %v819 = vpow.pop %v818
        %v820 = vmul.f32 %v779, 1.442695
        %v821 = vpow.pop %v820
        %v822 = vmul.f32 %v780, 1.442695
        %v823 = vpow.pop %v822
        %v824 = vmul.f32 %v781, 1.442695
        %v825 = vpow.pop %v824
        %v826 = vmul.f32 %v782, 1.442695
        %v827 = vpow.pop %v826
        %v828 = vmul.f32 %v783, 1.442695
        %v829 = vpow.pop %v828
        %v830 = vmul.f32 %v784, 1.442695
        %v831 = vpow.pop %v830
        %v832 = vmul.f32 %v785, 1.442695
        %v833 = vpow.pop %v832
        %v834 = vmul.f32 %v786, 1.442695
        %v835 = vpow.pop %v834
        %v836 = vmul.f32 %v787, 1.442695
        %v837 = vpow.pop %v836
        %v838 = vmul.f32 %v788, 1.442695
        %v839 = vpow.pop %v838
        %v840 = vmul.f32 %v789, 1.442695
        %v841 = vpow.pop %v840
        %v842 = vmul.f32 %v790, 1.442695
        %v843 = vpow.pop %v842
        %v844 = vmul.f32 %v791, 1.442695
        %v845 = vpow.pop %v844
        %v846 = vmul.f32 %v792, 1.442695
        %v847 = vpow.pop %v846
        %v848 = vmul.f32 %v793, 1.442695
        %v849 = vpow.pop %v848
        %v850 = vmul.f32 %v794, 1.442695
        %v851 = vpow.pop %v850
        %v852 = vmul.f32 %v795, 1.442695
        %v853 = vpow.pop %v852
        %v854 = vmul.f32 %v796, 1.442695
        %v855 = vpow.pop %v854
        %v856 = vmul.f32 %v797, 1.442695
        %v857 = vpow.pop %v856
        %v858 = vmul.f32 %v798, 1.442695
        %v859 = vpow.pop %v858
        %v860 = vmul.f32 %v799, 1.442695
        %v861 = vpow.pop %v860
        %v862 = vmul.f32 %v800, 1.442695
        %v863 = vpow.pop %v862
        %v864 = vmul.f32 %v801, 1.442695
        %v865 = vpow.pop %v864
        %v866 = vsel %vm673, %v803, 0.0
        %867 = vadd.xlane.f32.xlu0 %v866
        %v868 = vpop.xlane.xlu0 %867
        %v869 = vsel %vm673, %v805, 0.0
        %870 = vadd.xlane.f32.xlu0 %v869
        %v871 = vpop.xlane.xlu0 %870
        %v872 = vsel %vm673, %v807, 0.0
        %873 = vadd.xlane.f32.xlu0 %v872
        %v874 = vpop.xlane.xlu0 %873
        %v875 = vsel %vm673, %v809, 0.0
        %876 = vadd.xlane.f32.xlu0 %v875
        %v877 = vpop.xlane.xlu0 %876
        %v878 = vsel %vm673, %v811, 0.0
        %879 = vadd.xlane.f32.xlu0 %v878
        %v880 = vpop.xlane.xlu0 %879
        %v881 = vsel %vm673, %v813, 0.0
        %882 = vadd.xlane.f32.xlu0 %v881
        %v883 = vpop.xlane.xlu0 %882
        %v884 = vsel %vm673, %v815, 0.0
        %885 = vadd.xlane.f32.xlu0 %v884
        %v886 = vpop.xlane.xlu0 %885
        %v887 = vsel %vm673, %v817, 0.0
        %888 = vadd.xlane.f32.xlu0 %v887
        %v889 = vpop.xlane.xlu0 %888
        %v890 = vsel %vm673, %v819, 0.0
        %891 = vadd.xlane.f32.xlu0 %v890
        %v892 = vpop.xlane.xlu0 %891
        %v893 = vsel %vm673, %v821, 0.0
        %894 = vadd.xlane.f32.xlu0 %v893
        %v895 = vpop.xlane.xlu0 %894
        %v896 = vsel %vm673, %v823, 0.0
        %897 = vadd.xlane.f32.xlu0 %v896
        %v898 = vpop.xlane.xlu0 %897
        %v899 = vsel %vm673, %v825, 0.0
        %900 = vadd.xlane.f32.xlu0 %v899
        %v901 = vpop.xlane.xlu0 %900
        %v902 = vsel %vm673, %v827, 0.0
        %903 = vadd.xlane.f32.xlu0 %v902
        %v904 = vpop.xlane.xlu0 %903
        %v905 = vsel %vm673, %v829, 0.0
        %906 = vadd.xlane.f32.xlu0 %v905
        %v907 = vpop.xlane.xlu0 %906
        %v908 = vsel %vm673, %v831, 0.0
        %909 = vadd.xlane.f32.xlu0 %v908
        %v910 = vpop.xlane.xlu0 %909
        %v911 = vsel %vm673, %v833, 0.0
        %912 = vadd.xlane.f32.xlu0 %v911
        %v913 = vpop.xlane.xlu0 %912
        %v914 = vsel %vm673, %v835, 0.0
        %915 = vadd.xlane.f32.xlu0 %v914
        %v916 = vpop.xlane.xlu0 %915
        %v917 = vsel %vm673, %v837, 0.0
        %918 = vadd.xlane.f32.xlu0 %v917
        %v919 = vpop.xlane.xlu0 %918
        %v920 = vsel %vm673, %v839, 0.0
        %921 = vadd.xlane.f32.xlu0 %v920
        %v922 = vpop.xlane.xlu0 %921
        %v923 = vsel %vm673, %v841, 0.0
        %924 = vadd.xlane.f32.xlu0 %v923
        %v925 = vpop.xlane.xlu0 %924
        %v926 = vsel %vm673, %v843, 0.0
        %927 = vadd.xlane.f32.xlu0 %v926
        %v928 = vpop.xlane.xlu0 %927
        %v929 = vsel %vm673, %v845, 0.0
        %930 = vadd.xlane.f32.xlu0 %v929
        %v931 = vpop.xlane.xlu0 %930
        %v932 = vsel %vm673, %v847, 0.0
        %933 = vadd.xlane.f32.xlu0 %v932
        %v934 = vpop.xlane.xlu0 %933
        %v935 = vsel %vm673, %v849, 0.0
        %936 = vadd.xlane.f32.xlu0 %v935
        %v937 = vpop.xlane.xlu0 %936
        %v938 = vsel %vm673, %v851, 0.0
        %939 = vadd.xlane.f32.xlu0 %v938
        %v940 = vpop.xlane.xlu0 %939
        %v941 = vsel %vm673, %v853, 0.0
        %942 = vadd.xlane.f32.xlu0 %v941
        %v943 = vpop.xlane.xlu0 %942
        %v944 = vsel %vm673, %v855, 0.0
        %945 = vadd.xlane.f32.xlu0 %v944
        %v946 = vpop.xlane.xlu0 %945
        %v947 = vsel %vm673, %v857, 0.0
        %948 = vadd.xlane.f32.xlu0 %v947
        %v949 = vpop.xlane.xlu0 %948
        %v950 = vsel %vm673, %v859, 0.0
        %951 = vadd.xlane.f32.xlu0 %v950
        %v952 = vpop.xlane.xlu0 %951
        %v953 = vsel %vm673, %v861, 0.0
        %954 = vadd.xlane.f32.xlu0 %v953
        %v955 = vpop.xlane.xlu0 %954
        %v956 = vsel %vm673, %v863, 0.0
        %957 = vadd.xlane.f32.xlu0 %v956
        %v958 = vpop.xlane.xlu0 %957
        %v959 = vsel %vm673, %v865, 0.0
        %960 = vadd.xlane.f32.xlu0 %v959
        %v961 = vpop.xlane.xlu0 %960
        %v962 = vrcp.pop %v868
        %v963 = vmul.f32 %v803, %v962
        %v964 = vrcp.pop %v871
        %v965 = vmul.f32 %v805, %v964
        %v966 = vrcp.pop %v874
        %v967 = vmul.f32 %v807, %v966
        %v968 = vrcp.pop %v877
        %v969 = vmul.f32 %v809, %v968
        %v970 = vrcp.pop %v880
        %v971 = vmul.f32 %v811, %v970
        %v972 = vrcp.pop %v883
        %v973 = vmul.f32 %v813, %v972
        %v974 = vrcp.pop %v886
        %v975 = vmul.f32 %v815, %v974
        %v976 = vrcp.pop %v889
        %v977 = vmul.f32 %v817, %v976
        %v978 = vrcp.pop %v892
        %v979 = vmul.f32 %v819, %v978
        %v980 = vrcp.pop %v895
        %v981 = vmul.f32 %v821, %v980
        %v982 = vrcp.pop %v898
        %v983 = vmul.f32 %v823, %v982
        %v984 = vrcp.pop %v901
        %v985 = vmul.f32 %v825, %v984
        %v986 = vrcp.pop %v904
        %v987 = vmul.f32 %v827, %v986
        %v988 = vrcp.pop %v907
        %v989 = vmul.f32 %v829, %v988
        %v990 = vrcp.pop %v910
        %v991 = vmul.f32 %v831, %v990
        %v992 = vrcp.pop %v913
        %v993 = vmul.f32 %v833, %v992
        %v994 = vrcp.pop %v916
        %v995 = vmul.f32 %v835, %v994
        %v996 = vrcp.pop %v919
        %v997 = vmul.f32 %v837, %v996
        %v998 = vrcp.pop %v922
        %v999 = vmul.f32 %v839, %v998
        %v1000 = vrcp.pop %v925
        %v1001 = vmul.f32 %v841, %v1000
        %v1002 = vrcp.pop %v928
        %v1003 = vmul.f32 %v843, %v1002
        %v1004 = vrcp.pop %v931
        %v1005 = vmul.f32 %v845, %v1004
        %v1006 = vrcp.pop %v934
        %v1007 = vmul.f32 %v847, %v1006
        %v1008 = vrcp.pop %v937
        %v1009 = vmul.f32 %v849, %v1008
        %v1010 = vrcp.pop %v940
        %v1011 = vmul.f32 %v851, %v1010
        %v1012 = vrcp.pop %v943
        %v1013 = vmul.f32 %v853, %v1012
        %v1014 = vrcp.pop %v946
        %v1015 = vmul.f32 %v855, %v1014
        %v1016 = vrcp.pop %v949
        %v1017 = vmul.f32 %v857, %v1016
        %v1018 = vrcp.pop %v952
        %v1019 = vmul.f32 %v859, %v1018
        %v1020 = vrcp.pop %v955
        %v1021 = vmul.f32 %v861, %v1020
        %v1022 = vrcp.pop %v958
        %v1023 = vmul.f32 %v863, %v1022
        %v1024 = vrcp.pop %v961
        %v1025 = vmul.f32 %v865, %v1024
        %v1027 = vsel %vm673, %v963, 0
        %v1030 = vsel %vm673, %v965, 0
        %v1033 = vsel %vm673, %v967, 0
        %v1036 = vsel %vm673, %v969, 0
        %v1039 = vsel %vm673, %v971, 0
        %v1042 = vsel %vm673, %v973, 0
        %v1045 = vsel %vm673, %v975, 0
        %v1048 = vsel %vm673, %v977, 0
        %v1051 = vsel %vm673, %v979, 0
        %v1054 = vsel %vm673, %v981, 0
        %v1057 = vsel %vm673, %v983, 0
        %v1060 = vsel %vm673, %v985, 0
        %v1063 = vsel %vm673, %v987, 0
        %v1066 = vsel %vm673, %v989, 0
        %v1069 = vsel %vm673, %v991, 0
        %v1072 = vsel %vm673, %v993, 0
        %v1075 = vsel %vm673, %v995, 0
        %v1078 = vsel %vm673, %v997, 0
        %v1081 = vsel %vm673, %v999, 0
        %v1084 = vsel %vm673, %v1001, 0
        %v1087 = vsel %vm673, %v1003, 0
        %v1090 = vsel %vm673, %v1005, 0
        %v1093 = vsel %vm673, %v1007, 0
        %v1096 = vsel %vm673, %v1009, 0
        %v1099 = vsel %vm673, %v1011, 0
        %v1102 = vsel %vm673, %v1013, 0
        %v1105 = vsel %vm673, %v1015, 0
        %v1108 = vsel %vm673, %v1017, 0
        %v1111 = vsel %vm673, %v1019, 0
        %v1114 = vsel %vm673, %v1021, 0
        %v1117 = vsel %vm673, %v1023, 0
        %v1120 = vsel %vm673, %v1025, 0
        %1122 = vmatprep.subr.mxu0 0.0
        %1123 = vmatpush1.msra.mxu0 %v272
        %1124 = vmatprep.subr.mxu0 0.0
        %1125 = vmatpush1.msra.mxu0 %v277
        %1126 = vmatprep.subr.mxu0 0.0
        %1127 = vmatpush1.msra.mxu0 0.0
        %1128 = vmatprep.subr.mxu0 0.0
        %1129 = vmatpush1.msra.mxu0 0.0
        %1130 = vmatprep.subr.mxu0 0.0
        %1131 = vmatpush1.msra.mxu0 0.0
        %1132 = vmatprep.subr.mxu0 0.0
        %1133 = vmatpush1.msra.mxu0 0.0
        %1134 = vmatprep.subr.mxu0 0.0
        %1135 = vmatpush1.msra.mxu0 0.0
        %1136 = vmatprep.subr.mxu0 0.0
        %1137 = vmatpush1.msra.mxu0 0.0
        %1138 = vmatprep.subr.mxu0 0.0
        %1139 = vmatpush1.msra.mxu0 0.0
        %1140 = vmatprep.subr.mxu0 0.0
        %1141 = vmatpush1.msra.mxu0 0.0
        %1142 = vmatprep.subr.mxu0 0.0
        %1143 = vmatpush1.msra.mxu0 0.0
        %1144 = vmatprep.subr.mxu0 0.0
        %1145 = vmatpush1.msra.mxu0 0.0
        %1146 = vmatprep.subr.mxu0 0.0
        %1147 = vmatpush1.msra.mxu0 0.0
        %1148 = vmatprep.subr.mxu0 0.0
        %1149 = vmatpush1.msra.mxu0 0.0
        %1150 = vmatprep.subr.mxu0 0.0
        %1151 = vmatpush1.msra.mxu0 0.0
        %1152 = vmatprep.subr.mxu0 0.0
        %1153 = vmatpush1.msra.mxu0 0.0
        %1154 = vmatprep.subr.mxu0 0.0
        %1155 = vmatpush1.msra.mxu0 0.0
        %1156 = vmatprep.subr.mxu0 0.0
        %1157 = vmatpush1.msra.mxu0 0.0
        %1158 = vmatprep.subr.mxu0 0.0
        %1159 = vmatpush1.msra.mxu0 0.0
        %1160 = vmatprep.subr.mxu0 0.0
        %1161 = vmatpush1.msra.mxu0 0.0
        %1162 = vmatprep.subr.mxu0 0.0
        %1163 = vmatpush1.msra.mxu0 0.0
        %1164 = vmatprep.subr.mxu0 0.0
        %1165 = vmatpush1.msra.mxu0 0.0
        %1166 = vmatprep.subr.mxu0 0.0
        %1167 = vmatpush1.msra.mxu0 0.0
        %1168 = vmatprep.subr.mxu0 0.0
        %1169 = vmatpush1.msra.mxu0 0.0
        %1170 = vmatprep.subr.mxu0 0.0
        %1171 = vmatpush1.msra.mxu0 0.0
        %1172 = vmatprep.subr.mxu0 0.0
        %1173 = vmatpush1.msra.mxu0 0.0
        %1174 = vmatprep.subr.mxu0 0.0
        %1175 = vmatpush1.msra.mxu0 0.0
        %1176 = vmatprep.subr.mxu0 0.0
        %1177 = vmatpush1.msra.mxu0 0.0
        %1178 = vmatprep.subr.mxu0 0.0
        %1179 = vmatpush1.msra.mxu0 0.0
        %1180 = vmatprep.subr.mxu0 0.0
        %1181 = vmatpush1.msra.mxu0 0.0
        %1182 = vmatprep.subr.mxu0 0.0
        %1183 = vmatpush1.msra.mxu0 0.0
        %1184 = vmatprep.subr.mxu0 0.0
        %1185 = vmatpush1.msra.mxu0 0.0
        %1186 = vmatprep.mubr.f32.mxu0 0.0
        %1187 = vmatmul.mubr.f32.gmra.mrb[0].mxu0 %v1027
        %v1188 = vpop.f32.mrb[0].mxu0
        %v1189 = vadd.f32 0.0, %v1188
        %v1190 = vpop.f32.mrb[0].mxu0
        %1191 = vmatprep.mubr.f32.mxu0 0.0
        %1192 = vmatmul.mubr.f32.gmra.mrb[0].mxu0 %v1030
        %v1193 = vpop.f32.mrb[0].mxu0
        %v1194 = vadd.f32 0.0, %v1193
        %v1195 = vpop.f32.mrb[0].mxu0
        %1196 = vmatprep.mubr.f32.mxu0 0.0
        %1197 = vmatmul.mubr.f32.gmra.mrb[0].mxu0 %v1033
        %v1198 = vpop.f32.mrb[0].mxu0
        %v1199 = vadd.f32 0.0, %v1198
        %v1200 = vpop.f32.mrb[0].mxu0
        %1201 = vmatprep.mubr.f32.mxu0 0.0
        %1202 = vmatmul.mubr.f32.gmra.mrb[0].mxu0 %v1036
        %v1203 = vpop.f32.mrb[0].mxu0
        %v1204 = vadd.f32 0.0, %v1203
        %v1205 = vpop.f32.mrb[0].mxu0
        %1206 = vmatprep.mubr.f32.mxu0 0.0
        %1207 = vmatmul.mubr.f32.gmra.mrb[0].mxu0 %v1039
        %v1208 = vpop.f32.mrb[0].mxu0
        %v1209 = vadd.f32 0.0, %v1208
        %v1210 = vpop.f32.mrb[0].mxu0
        %1211 = vmatprep.mubr.f32.mxu0 0.0
        %1212 = vmatmul.mubr.f32.gmra.mrb[0].mxu0 %v1042
        %v1213 = vpop.f32.mrb[0].mxu0
        %v1214 = vadd.f32 0.0, %v1213
        %v1215 = vpop.f32.mrb[0].mxu0
        %1216 = vmatprep.mubr.f32.mxu0 0.0
        %1217 = vmatmul.mubr.f32.gmra.mrb[0].mxu0 %v1045
        %v1218 = vpop.f32.mrb[0].mxu0
        %v1219 = vadd.f32 0.0, %v1218
        %v1220 = vpop.f32.mrb[0].mxu0
        %1221 = vmatprep.mubr.f32.mxu0 0.0
        %1222 = vmatmul.mubr.f32.gmra.mrb[0].mxu0 %v1048
        %v1223 = vpop.f32.mrb[0].mxu0
        %v1224 = vadd.f32 0.0, %v1223
        %v1225 = vpop.f32.mrb[0].mxu0
        %1226 = vmatprep.mubr.f32.mxu0 0.0
        %1227 = vmatmul.mubr.f32.gmra.mrb[0].mxu0 %v1051
        %v1228 = vpop.f32.mrb[0].mxu0
        %v1229 = vadd.f32 0.0, %v1228
        %v1230 = vpop.f32.mrb[0].mxu0
        %1231 = vmatprep.mubr.f32.mxu0 0.0
        %1232 = vmatmul.mubr.f32.gmra.mrb[0].mxu0 %v1054
        %v1233 = vpop.f32.mrb[0].mxu0
        %v1234 = vadd.f32 0.0, %v1233
        %v1235 = vpop.f32.mrb[0].mxu0
        %1236 = vmatprep.mubr.f32.mxu0 0.0
        %1237 = vmatmul.mubr.f32.gmra.mrb[0].mxu0 %v1057
        %v1238 = vpop.f32.mrb[0].mxu0
        %v1239 = vadd.f32 0.0, %v1238
        %v1240 = vpop.f32.mrb[0].mxu0
        %1241 = vmatprep.mubr.f32.mxu0 0.0
        %1242 = vmatmul.mubr.f32.gmra.mrb[0].mxu0 %v1060
        %v1243 = vpop.f32.mrb[0].mxu0
        %v1244 = vadd.f32 0.0, %v1243
        %v1245 = vpop.f32.mrb[0].mxu0
        %1246 = vmatprep.mubr.f32.mxu0 0.0
        %1247 = vmatmul.mubr.f32.gmra.mrb[0].mxu0 %v1063
        %v1248 = vpop.f32.mrb[0].mxu0
        %v1249 = vadd.f32 0.0, %v1248
        %v1250 = vpop.f32.mrb[0].mxu0
        %1251 = vmatprep.mubr.f32.mxu0 0.0
        %1252 = vmatmul.mubr.f32.gmra.mrb[0].mxu0 %v1066
        %v1253 = vpop.f32.mrb[0].mxu0
        %v1254 = vadd.f32 0.0, %v1253
        %v1255 = vpop.f32.mrb[0].mxu0
        %1256 = vmatprep.mubr.f32.mxu0 0.0
        %1257 = vmatmul.mubr.f32.gmra.mrb[0].mxu0 %v1069
        %v1258 = vpop.f32.mrb[0].mxu0
        %v1259 = vadd.f32 0.0, %v1258
        %v1260 = vpop.f32.mrb[0].mxu0
        %1261 = vmatprep.mubr.f32.mxu0 0.0
        %1262 = vmatmul.mubr.f32.gmra.mrb[0].mxu0 %v1072
        %v1263 = vpop.f32.mrb[0].mxu0
        %v1264 = vadd.f32 0.0, %v1263
        %v1265 = vpop.f32.mrb[0].mxu0
        %1266 = vmatprep.mubr.f32.mxu0 0.0
        %1267 = vmatmul.mubr.f32.gmra.mrb[0].mxu0 %v1075
        %v1268 = vpop.f32.mrb[0].mxu0
        %v1269 = vadd.f32 0.0, %v1268
        %v1270 = vpop.f32.mrb[0].mxu0
        %1271 = vmatprep.mubr.f32.mxu0 0.0
        %1272 = vmatmul.mubr.f32.gmra.mrb[0].mxu0 %v1078
        %v1273 = vpop.f32.mrb[0].mxu0
        %v1274 = vadd.f32 0.0, %v1273
        %v1275 = vpop.f32.mrb[0].mxu0
        %1276 = vmatprep.mubr.f32.mxu0 0.0
        %1277 = vmatmul.mubr.f32.gmra.mrb[0].mxu0 %v1081
        %v1278 = vpop.f32.mrb[0].mxu0
        %v1279 = vadd.f32 0.0, %v1278
        %v1280 = vpop.f32.mrb[0].mxu0
        %1281 = vmatprep.mubr.f32.mxu0 0.0
        %1282 = vmatmul.mubr.f32.gmra.mrb[0].mxu0 %v1084
        %v1283 = vpop.f32.mrb[0].mxu0
        %v1284 = vadd.f32 0.0, %v1283
        %v1285 = vpop.f32.mrb[0].mxu0
        %1286 = vmatprep.mubr.f32.mxu0 0.0
        %1287 = vmatmul.mubr.f32.gmra.mrb[0].mxu0 %v1087
        %v1288 = vpop.f32.mrb[0].mxu0
        %v1289 = vadd.f32 0.0, %v1288
        %v1290 = vpop.f32.mrb[0].mxu0
        %1291 = vmatprep.mubr.f32.mxu0 0.0
        %1292 = vmatmul.mubr.f32.gmra.mrb[0].mxu0 %v1090
        %v1293 = vpop.f32.mrb[0].mxu0
        %v1294 = vadd.f32 0.0, %v1293
        %v1295 = vpop.f32.mrb[0].mxu0
        %1296 = vmatprep.mubr.f32.mxu0 0.0
        %1297 = vmatmul.mubr.f32.gmra.mrb[0].mxu0 %v1093
        %v1298 = vpop.f32.mrb[0].mxu0
        %v1299 = vadd.f32 0.0, %v1298
        %v1300 = vpop.f32.mrb[0].mxu0
        %1301 = vmatprep.mubr.f32.mxu0 0.0
        %1302 = vmatmul.mubr.f32.gmra.mrb[0].mxu0 %v1096
        %v1303 = vpop.f32.mrb[0].mxu0
        %v1304 = vadd.f32 0.0, %v1303
        %v1305 = vpop.f32.mrb[0].mxu0
        %1306 = vmatprep.mubr.f32.mxu0 0.0
        %1307 = vmatmul.mubr.f32.gmra.mrb[0].mxu0 %v1099
        %v1308 = vpop.f32.mrb[0].mxu0
        %v1309 = vadd.f32 0.0, %v1308
        %v1310 = vpop.f32.mrb[0].mxu0
        %1311 = vmatprep.mubr.f32.mxu0 0.0
        %1312 = vmatmul.mubr.f32.gmra.mrb[0].mxu0 %v1102
        %v1313 = vpop.f32.mrb[0].mxu0
        %v1314 = vadd.f32 0.0, %v1313
        %v1315 = vpop.f32.mrb[0].mxu0
        %1316 = vmatprep.mubr.f32.mxu0 0.0
        %1317 = vmatmul.mubr.f32.gmra.mrb[0].mxu0 %v1105
        %v1318 = vpop.f32.mrb[0].mxu0
        %v1319 = vadd.f32 0.0, %v1318
        %v1320 = vpop.f32.mrb[0].mxu0
        %1321 = vmatprep.mubr.f32.mxu0 0.0
        %1322 = vmatmul.mubr.f32.gmra.mrb[0].mxu0 %v1108
        %v1323 = vpop.f32.mrb[0].mxu0
        %v1324 = vadd.f32 0.0, %v1323
        %v1325 = vpop.f32.mrb[0].mxu0
        %1326 = vmatprep.mubr.f32.mxu0 0.0
        %1327 = vmatmul.mubr.f32.gmra.mrb[0].mxu0 %v1111
        %v1328 = vpop.f32.mrb[0].mxu0
        %v1329 = vadd.f32 0.0, %v1328
        %v1330 = vpop.f32.mrb[0].mxu0
        %1331 = vmatprep.mubr.f32.mxu0 0.0
        %1332 = vmatmul.mubr.f32.gmra.mrb[0].mxu0 %v1114
        %v1333 = vpop.f32.mrb[0].mxu0
        %v1334 = vadd.f32 0.0, %v1333
        %v1335 = vpop.f32.mrb[0].mxu0
        %1336 = vmatprep.mubr.f32.mxu0 0.0
        %1337 = vmatmul.mubr.f32.gmra.mrb[0].mxu0 %v1117
        %v1338 = vpop.f32.mrb[0].mxu0
        %v1339 = vadd.f32 0.0, %v1338
        %v1340 = vpop.f32.mrb[0].mxu0
        %1341 = vmatprep.mubr.f32.mxu0 0.0
        %1342 = vmatmul.mubr.f32.gmra.mrb[0].mxu0 %v1120
        %v1343 = vpop.f32.mrb[0].mxu0
        %v1344 = vadd.f32 0.0, %v1343
        %v1345 = vpop.f32.mrb[0].mxu0
        %1346 = vdwg.mxu0
        %v1347 = vrcp.pop %v1189
        %v1348 = vmul.f32 %v515, %v1347
        %v1349 = vrcp.pop %v1194
        %v1350 = vmul.f32 %v520, %v1349
        %v1351 = vrcp.pop %v1199
        %v1352 = vmul.f32 %v525, %v1351
        %v1353 = vrcp.pop %v1204
        %v1354 = vmul.f32 %v530, %v1353
        %v1355 = vrcp.pop %v1209
        %v1356 = vmul.f32 %v535, %v1355
        %v1357 = vrcp.pop %v1214
        %v1358 = vmul.f32 %v540, %v1357
        %v1359 = vrcp.pop %v1219
        %v1360 = vmul.f32 %v545, %v1359
        %v1361 = vrcp.pop %v1224
        %v1362 = vmul.f32 %v550, %v1361
        %v1363 = vrcp.pop %v1229
        %v1364 = vmul.f32 %v555, %v1363
        %v1365 = vrcp.pop %v1234
        %v1366 = vmul.f32 %v560, %v1365
        %v1367 = vrcp.pop %v1239
        %v1368 = vmul.f32 %v565, %v1367
        %v1369 = vrcp.pop %v1244
        %v1370 = vmul.f32 %v570, %v1369
        %v1371 = vrcp.pop %v1249
        %v1372 = vmul.f32 %v575, %v1371
        %v1373 = vrcp.pop %v1254
        %v1374 = vmul.f32 %v580, %v1373
        %v1375 = vrcp.pop %v1259
        %v1376 = vmul.f32 %v585, %v1375
        %v1377 = vrcp.pop %v1264
        %v1378 = vmul.f32 %v590, %v1377
        %v1379 = vrcp.pop %v1269
        %v1380 = vmul.f32 %v595, %v1379
        %v1381 = vrcp.pop %v1274
        %v1382 = vmul.f32 %v600, %v1381
        %v1383 = vrcp.pop %v1279
        %v1384 = vmul.f32 %v605, %v1383
        %v1385 = vrcp.pop %v1284
        %v1386 = vmul.f32 %v610, %v1385
        %v1387 = vrcp.pop %v1289
        %v1388 = vmul.f32 %v615, %v1387
        %v1389 = vrcp.pop %v1294
        %v1390 = vmul.f32 %v620, %v1389
        %v1391 = vrcp.pop %v1299
        %v1392 = vmul.f32 %v625, %v1391
        %v1393 = vrcp.pop %v1304
        %v1394 = vmul.f32 %v630, %v1393
        %v1395 = vrcp.pop %v1309
        %v1396 = vmul.f32 %v635, %v1395
        %v1397 = vrcp.pop %v1314
        %v1398 = vmul.f32 %v640, %v1397
        %v1399 = vrcp.pop %v1319
        %v1400 = vmul.f32 %v645, %v1399
        %v1401 = vrcp.pop %v1324
        %v1402 = vmul.f32 %v650, %v1401
        %v1403 = vrcp.pop %v1329
        %v1404 = vmul.f32 %v655, %v1403
        %v1405 = vrcp.pop %v1334
        %v1406 = vmul.f32 %v660, %v1405
        %v1407 = vrcp.pop %v1339
        %v1408 = vmul.f32 %v665, %v1407
        %v1409 = vrcp.pop %v1344
        %v1410 = vmul.f32 %v670, %v1409
        %v1411 = vadd.f32 %v1348, 1e-06
        %v1412 = vadd.f32 %v1350, 1e-06
        %v1413 = vadd.f32 %v1352, 1e-06
        %v1414 = vadd.f32 %v1354, 1e-06
        %v1415 = vadd.f32 %v1356, 1e-06
        %v1416 = vadd.f32 %v1358, 1e-06
        %v1417 = vadd.f32 %v1360, 1e-06
        %v1418 = vadd.f32 %v1362, 1e-06
        %v1419 = vadd.f32 %v1364, 1e-06
        %v1420 = vadd.f32 %v1366, 1e-06
        %v1421 = vadd.f32 %v1368, 1e-06
        %v1422 = vadd.f32 %v1370, 1e-06
        %v1423 = vadd.f32 %v1372, 1e-06
        %v1424 = vadd.f32 %v1374, 1e-06
        %v1425 = vadd.f32 %v1376, 1e-06
        %v1426 = vadd.f32 %v1378, 1e-06
        %v1427 = vadd.f32 %v1380, 1e-06
        %v1428 = vadd.f32 %v1382, 1e-06
        %v1429 = vadd.f32 %v1384, 1e-06
        %v1430 = vadd.f32 %v1386, 1e-06
        %v1431 = vadd.f32 %v1388, 1e-06
        %v1432 = vadd.f32 %v1390, 1e-06
        %v1433 = vadd.f32 %v1392, 1e-06
        %v1434 = vadd.f32 %v1394, 1e-06
        %v1435 = vadd.f32 %v1396, 1e-06
        %v1436 = vadd.f32 %v1398, 1e-06
        %v1437 = vadd.f32 %v1400, 1e-06
        %v1438 = vadd.f32 %v1402, 1e-06
        %v1439 = vadd.f32 %v1404, 1e-06
        %v1440 = vadd.f32 %v1406, 1e-06
        %v1441 = vadd.f32 %v1408, 1e-06
        %v1442 = vadd.f32 %v1410, 1e-06
        %v1443 = vmul.f32 %v963, %v1411
        %v1444 = vmul.f32 %v965, %v1412
        %v1445 = vmul.f32 %v967, %v1413
        %v1446 = vmul.f32 %v969, %v1414
        %v1447 = vmul.f32 %v971, %v1415
        %v1448 = vmul.f32 %v973, %v1416
        %v1449 = vmul.f32 %v975, %v1417
        %v1450 = vmul.f32 %v977, %v1418
        %v1451 = vmul.f32 %v979, %v1419
        %v1452 = vmul.f32 %v981, %v1420
        %v1453 = vmul.f32 %v983, %v1421
        %v1454 = vmul.f32 %v985, %v1422
        %v1455 = vmul.f32 %v987, %v1423
        %v1456 = vmul.f32 %v989, %v1424
        %v1457 = vmul.f32 %v991, %v1425
        %v1458 = vmul.f32 %v993, %v1426
        %v1459 = vmul.f32 %v995, %v1427
        %v1460 = vmul.f32 %v997, %v1428
        %v1461 = vmul.f32 %v999, %v1429
        %v1462 = vmul.f32 %v1001, %v1430
        %v1463 = vmul.f32 %v1003, %v1431
        %v1464 = vmul.f32 %v1005, %v1432
        %v1465 = vmul.f32 %v1007, %v1433
        %v1466 = vmul.f32 %v1009, %v1434
        %v1467 = vmul.f32 %v1011, %v1435
        %v1468 = vmul.f32 %v1013, %v1436
        %v1469 = vmul.f32 %v1015, %v1437
        %v1470 = vmul.f32 %v1017, %v1438
        %v1471 = vmul.f32 %v1019, %v1439
        %v1472 = vmul.f32 %v1021, %v1440
        %v1473 = vmul.f32 %v1023, %v1441
        %v1474 = vmul.f32 %v1025, %v1442
        %1475 = vmatprep.subr.mxu0 0.0
        %1476 = vmatpush1.msra.mxu0 %v1443
        %1477 = vmatprep.subr.mxu0 0.0
        %1478 = vmatpush1.msra.mxu0 %v1444
        %1479 = vmatprep.subr.mxu0 0.0
        %1480 = vmatpush1.msra.mxu0 %v1445
        %1481 = vmatprep.subr.mxu0 0.0
        %1482 = vmatpush1.msra.mxu0 %v1446
        %1483 = vmatprep.subr.mxu0 0.0
        %1484 = vmatpush1.msra.mxu0 %v1447
        %1485 = vmatprep.subr.mxu0 0.0
        %1486 = vmatpush1.msra.mxu0 %v1448
        %1487 = vmatprep.subr.mxu0 0.0
        %1488 = vmatpush1.msra.mxu0 %v1449
        %1489 = vmatprep.subr.mxu0 0.0
        %1490 = vmatpush1.msra.mxu0 %v1450
        %1491 = vmatprep.subr.mxu0 0.0
        %1492 = vmatpush1.msra.mxu0 %v1451
        %1493 = vmatprep.subr.mxu0 0.0
        %1494 = vmatpush1.msra.mxu0 %v1452
        %1495 = vmatprep.subr.mxu0 0.0
        %1496 = vmatpush1.msra.mxu0 %v1453
        %1497 = vmatprep.subr.mxu0 0.0
        %1498 = vmatpush1.msra.mxu0 %v1454
        %1499 = vmatprep.subr.mxu0 0.0
        %1500 = vmatpush1.msra.mxu0 %v1455
        %1501 = vmatprep.subr.mxu0 0.0
        %1502 = vmatpush1.msra.mxu0 %v1456
        %1503 = vmatprep.subr.mxu0 0.0
        %1504 = vmatpush1.msra.mxu0 %v1457
        %1505 = vmatprep.subr.mxu0 0.0
        %1506 = vmatpush1.msra.mxu0 %v1458
        %1507 = vmatprep.subr.mxu0 0.0
        %1508 = vmatpush1.msra.mxu0 %v1459
        %1509 = vmatprep.subr.mxu0 0.0
        %1510 = vmatpush1.msra.mxu0 %v1460
        %1511 = vmatprep.subr.mxu0 0.0
        %1512 = vmatpush1.msra.mxu0 %v1461
        %1513 = vmatprep.subr.mxu0 0.0
        %1514 = vmatpush1.msra.mxu0 %v1462
        %1515 = vmatprep.subr.mxu0 0.0
        %1516 = vmatpush1.msra.mxu0 %v1463
        %1517 = vmatprep.subr.mxu0 0.0
        %1518 = vmatpush1.msra.mxu0 %v1464
        %1519 = vmatprep.subr.mxu0 0.0
        %1520 = vmatpush1.msra.mxu0 %v1465
        %1521 = vmatprep.subr.mxu0 0.0
        %1522 = vmatpush1.msra.mxu0 %v1466
        %1523 = vmatprep.subr.mxu0 0.0
        %1524 = vmatpush1.msra.mxu0 %v1467
        %1525 = vmatprep.subr.mxu0 0.0
        %1526 = vmatpush1.msra.mxu0 %v1468
        %1527 = vmatprep.subr.mxu0 0.0
        %1528 = vmatpush1.msra.mxu0 %v1469
        %1529 = vmatprep.subr.mxu0 0.0
        %1530 = vmatpush1.msra.mxu0 %v1470
        %1531 = vmatprep.subr.mxu0 0.0
        %1532 = vmatpush1.msra.mxu0 %v1471
        %1533 = vmatprep.subr.mxu0 0.0
        %1534 = vmatpush1.msra.mxu0 %v1472
        %1535 = vmatprep.subr.mxu0 0.0
        %1536 = vmatpush1.msra.mxu0 %v1473
        %1537 = vmatprep.subr.mxu0 0.0
        %1538 = vmatpush1.msra.mxu0 %v1474
        %1539 = vmatprep.mubr.f32.mxu0 %v281
        %1540 = vmatmul.mubr.f32.gmra.mrb[0].mxu0 %v280
        %v1541 = vpop.f32.mrb[0].mxu0
        %v1542 = vadd.f32 0.0, %v1541
        %v1543 = vpop.f32.mrb[0].mxu0
        %1544 = vmatprep.mubr.f32.mxu0 %v283
        %1545 = vmatmul.mubr.f32.gmra.mrb[0].mxu0 %v282
        %v1546 = vpop.f32.mrb[0].mxu0
        %v1547 = vadd.f32 0.0, %v1546
        %v1548 = vpop.f32.mrb[0].mxu0
        %1549 = vmatprep.mubr.f32.mxu0 %v285
        %1550 = vmatmul.mubr.f32.gmra.mrb[0].mxu0 %v284
        %v1551 = vpop.f32.mrb[0].mxu0
        %v1552 = vadd.f32 0.0, %v1551
        %v1553 = vpop.f32.mrb[0].mxu0
        %1554 = vmatprep.mubr.f32.mxu0 %v287
        %1555 = vmatmul.mubr.f32.gmra.mrb[0].mxu0 %v286
        %v1556 = vpop.f32.mrb[0].mxu0
        %v1557 = vadd.f32 0.0, %v1556
        %v1558 = vpop.f32.mrb[0].mxu0
        %1559 = vdwg.mxu0
        %1560 = vxpose.xlu0.b32.start [1/16] %v1443, 128
        %1561 = vxpose.xlu0.b32.cont [2/16] %v1444, 128
        %1562 = vxpose.xlu0.b32.cont [3/16] %v1445, 128
        %1563 = vxpose.xlu0.b32.cont [4/16] %v1446, 128
        %1564 = vxpose.xlu0.b32.cont [5/16] %v1447, 128
        %1565 = vxpose.xlu0.b32.cont [6/16] %v1448, 128
        %1566 = vxpose.xlu0.b32.cont [7/16] %v1449, 128
        %1567 = vxpose.xlu0.b32.cont [8/16] %v1450, 128
        %1568 = vxpose.xlu0.b32.cont [9/16] %v1451, 128
        %1569 = vxpose.xlu0.b32.cont [10/16] %v1452, 128
        %1570 = vxpose.xlu0.b32.cont [11/16] %v1453, 128
        %1571 = vxpose.xlu0.b32.cont [12/16] %v1454, 128
        %1572 = vxpose.xlu0.b32.cont [13/16] %v1455, 128
        %1573 = vxpose.xlu0.b32.cont [14/16] %v1456, 128
        %1574 = vxpose.xlu0.b32.cont [15/16] %v1457, 128
        %1575 = vxpose.xlu0.b32.end [16/16] %v1458, 128
        %v1576 = vpop.trf.xlu0
        %v1577 = vpop.trf.xlu0
        %v1578 = vpop.trf.xlu0
        %v1579 = vpop.trf.xlu0
        %v1580 = vpop.trf.xlu0
        %v1581 = vpop.trf.xlu0
        %v1582 = vpop.trf.xlu0
        %v1583 = vpop.trf.xlu0
        %v1584 = vpop.trf.xlu0
        %v1585 = vpop.trf.xlu0
        %v1586 = vpop.trf.xlu0
        %v1587 = vpop.trf.xlu0
        %v1588 = vpop.trf.xlu0
        %v1589 = vpop.trf.xlu0
        %v1590 = vpop.trf.xlu0
        %v1591 = vpop.trf.xlu0
        %1592 = vxpose.xlu0.b32.start [1/16] %v1459, 128
        %1593 = vxpose.xlu0.b32.cont [2/16] %v1460, 128
        %1594 = vxpose.xlu0.b32.cont [3/16] %v1461, 128
        %1595 = vxpose.xlu0.b32.cont [4/16] %v1462, 128
        %1596 = vxpose.xlu0.b32.cont [5/16] %v1463, 128
        %1597 = vxpose.xlu0.b32.cont [6/16] %v1464, 128
        %1598 = vxpose.xlu0.b32.cont [7/16] %v1465, 128
        %1599 = vxpose.xlu0.b32.cont [8/16] %v1466, 128
        %1600 = vxpose.xlu0.b32.cont [9/16] %v1467, 128
        %1601 = vxpose.xlu0.b32.cont [10/16] %v1468, 128
        %1602 = vxpose.xlu0.b32.cont [11/16] %v1469, 128
        %1603 = vxpose.xlu0.b32.cont [12/16] %v1470, 128
        %1604 = vxpose.xlu0.b32.cont [13/16] %v1471, 128
        %1605 = vxpose.xlu0.b32.cont [14/16] %v1472, 128
        %1606 = vxpose.xlu0.b32.cont [15/16] %v1473, 128
        %1607 = vxpose.xlu0.b32.end [16/16] %v1474, 128
        %v1608 = vpop.trf.xlu0
        %v1609 = vpop.trf.xlu0
        %v1610 = vpop.trf.xlu0
        %v1611 = vpop.trf.xlu0
        %v1612 = vpop.trf.xlu0
        %v1613 = vpop.trf.xlu0
        %v1614 = vpop.trf.xlu0
        %v1615 = vpop.trf.xlu0
        %v1616 = vpop.trf.xlu0
        %v1617 = vpop.trf.xlu0
        %v1618 = vpop.trf.xlu0
        %v1619 = vpop.trf.xlu0
        %v1620 = vpop.trf.xlu0
        %v1621 = vpop.trf.xlu0
        %v1622 = vpop.trf.xlu0
        %v1623 = vpop.trf.xlu0
        %1624 = vmatprep.subr.mxu0 0.0
        %1625 = vmatpush1.msra.mxu0 %v1443
        %1626 = vmatprep.subr.mxu0 0.0
        %1627 = vmatpush1.msra.mxu0 %v1444
        %1628 = vmatprep.subr.mxu0 0.0
        %1629 = vmatpush1.msra.mxu0 %v1445
        %1630 = vmatprep.subr.mxu0 0.0
        %1631 = vmatpush1.msra.mxu0 %v1446
        %1632 = vmatprep.subr.mxu0 0.0
        %1633 = vmatpush1.msra.mxu0 %v1447
        %1634 = vmatprep.subr.mxu0 0.0
        %1635 = vmatpush1.msra.mxu0 %v1448
        %1636 = vmatprep.subr.mxu0 0.0
        %1637 = vmatpush1.msra.mxu0 %v1449
        %1638 = vmatprep.subr.mxu0 0.0
        %1639 = vmatpush1.msra.mxu0 %v1450
        %1640 = vmatprep.subr.mxu0 0.0
        %1641 = vmatpush1.msra.mxu0 %v1451
        %1642 = vmatprep.subr.mxu0 0.0
        %1643 = vmatpush1.msra.mxu0 %v1452
        %1644 = vmatprep.subr.mxu0 0.0
        %1645 = vmatpush1.msra.mxu0 %v1453
        %1646 = vmatprep.subr.mxu0 0.0
        %1647 = vmatpush1.msra.mxu0 %v1454
        %1648 = vmatprep.subr.mxu0 0.0
        %1649 = vmatpush1.msra.mxu0 %v1455
        %1650 = vmatprep.subr.mxu0 0.0
        %1651 = vmatpush1.msra.mxu0 %v1456
        %1652 = vmatprep.subr.mxu0 0.0
        %1653 = vmatpush1.msra.mxu0 %v1457
        %1654 = vmatprep.subr.mxu0 0.0
        %1655 = vmatpush1.msra.mxu0 %v1458
        %1656 = vmatprep.subr.mxu0 0.0
        %1657 = vmatpush1.msra.mxu0 %v1459
        %1658 = vmatprep.subr.mxu0 0.0
        %1659 = vmatpush1.msra.mxu0 %v1460
        %1660 = vmatprep.subr.mxu0 0.0
        %1661 = vmatpush1.msra.mxu0 %v1461
        %1662 = vmatprep.subr.mxu0 0.0
        %1663 = vmatpush1.msra.mxu0 %v1462
        %1664 = vmatprep.subr.mxu0 0.0
        %1665 = vmatpush1.msra.mxu0 %v1463
        %1666 = vmatprep.subr.mxu0 0.0
        %1667 = vmatpush1.msra.mxu0 %v1464
        %1668 = vmatprep.subr.mxu0 0.0
        %1669 = vmatpush1.msra.mxu0 %v1465
        %1670 = vmatprep.subr.mxu0 0.0
        %1671 = vmatpush1.msra.mxu0 %v1466
        %1672 = vmatprep.subr.mxu0 0.0
        %1673 = vmatpush1.msra.mxu0 %v1467
        %1674 = vmatprep.subr.mxu0 0.0
        %1675 = vmatpush1.msra.mxu0 %v1468
        %1676 = vmatprep.subr.mxu0 0.0
        %1677 = vmatpush1.msra.mxu0 %v1469
        %1678 = vmatprep.subr.mxu0 0.0
        %1679 = vmatpush1.msra.mxu0 %v1470
        %1680 = vmatprep.subr.mxu0 0.0
        %1681 = vmatpush1.msra.mxu0 %v1471
        %1682 = vmatprep.subr.mxu0 0.0
        %1683 = vmatpush1.msra.mxu0 %v1472
        %1684 = vmatprep.subr.mxu0 0.0
        %1685 = vmatpush1.msra.mxu0 %v1473
        %1686 = vmatprep.subr.mxu0 0.0
        %1687 = vmatpush1.msra.mxu0 %v1474
        %1688 = vmatprep.mubr.f32.mxu0 %v1608
        %1689 = vmatmul.mubr.f32.gmra.mrb[0].mxu0 %v1576
        %v1690 = vpop.f32.mrb[0].mxu0
        %v1691 = vadd.f32 0.0, %v1690
        %v1692 = vpop.f32.mrb[0].mxu0
        %1693 = vmatprep.mubr.f32.mxu0 %v1609
        %1694 = vmatmul.mubr.f32.gmra.mrb[0].mxu0 %v1577
        %v1695 = vpop.f32.mrb[0].mxu0
        %v1696 = vadd.f32 0.0, %v1695
        %v1697 = vpop.f32.mrb[0].mxu0
        %1698 = vdwg.mxu0
        %v1700 = vsel %vm673, %v162, 0
        %v1703 = vsel %vm673, %v163, 0
        %v1706 = vsel %vm673, %v164, 0
        %v1709 = vsel %vm673, %v165, 0
        %1711 = vmatprep.subr.mxu0 0.0
        %1712 = vmatpush1.msra.mxu0 %v1691
        %1713 = vmatprep.subr.mxu0 0.0
        %1714 = vmatpush1.msra.mxu0 %v1696
        %1715 = vmatprep.subr.mxu0 0.0
        %1716 = vmatpush1.msra.mxu0 0.0
        %1717 = vmatprep.subr.mxu0 0.0
        %1718 = vmatpush1.msra.mxu0 0.0
        %1719 = vmatprep.subr.mxu0 0.0
        %1720 = vmatpush1.msra.mxu0 0.0
        %1721 = vmatprep.subr.mxu0 0.0
        %1722 = vmatpush1.msra.mxu0 0.0
        %1723 = vmatprep.subr.mxu0 0.0
        %1724 = vmatpush1.msra.mxu0 0.0
        %1725 = vmatprep.subr.mxu0 0.0
        %1726 = vmatpush1.msra.mxu0 0.0
        %1727 = vmatprep.subr.mxu0 0.0
        %1728 = vmatpush1.msra.mxu0 0.0
        %1729 = vmatprep.subr.mxu0 0.0
        %1730 = vmatpush1.msra.mxu0 0.0
        %1731 = vmatprep.subr.mxu0 0.0
        %1732 = vmatpush1.msra.mxu0 0.0
        %1733 = vmatprep.subr.mxu0 0.0
        %1734 = vmatpush1.msra.mxu0 0.0
        %1735 = vmatprep.subr.mxu0 0.0
        %1736 = vmatpush1.msra.mxu0 0.0
        %1737 = vmatprep.subr.mxu0 0.0
        %1738 = vmatpush1.msra.mxu0 0.0
        %1739 = vmatprep.subr.mxu0 0.0
        %1740 = vmatpush1.msra.mxu0 0.0
        %1741 = vmatprep.subr.mxu0 0.0
        %1742 = vmatpush1.msra.mxu0 0.0
        %1743 = vmatprep.subr.mxu0 0.0
        %1744 = vmatpush1.msra.mxu0 0.0
        %1745 = vmatprep.subr.mxu0 0.0
        %1746 = vmatpush1.msra.mxu0 0.0
        %1747 = vmatprep.subr.mxu0 0.0
        %1748 = vmatpush1.msra.mxu0 0.0
        %1749 = vmatprep.subr.mxu0 0.0
        %1750 = vmatpush1.msra.mxu0 0.0
        %1751 = vmatprep.subr.mxu0 0.0
        %1752 = vmatpush1.msra.mxu0 0.0
        %1753 = vmatprep.subr.mxu0 0.0
        %1754 = vmatpush1.msra.mxu0 0.0
        %1755 = vmatprep.subr.mxu0 0.0
        %1756 = vmatpush1.msra.mxu0 0.0
        %1757 = vmatprep.subr.mxu0 0.0
        %1758 = vmatpush1.msra.mxu0 0.0
        %1759 = vmatprep.subr.mxu0 0.0
        %1760 = vmatpush1.msra.mxu0 0.0
        %1761 = vmatprep.subr.mxu0 0.0
        %1762 = vmatpush1.msra.mxu0 0.0
        %1763 = vmatprep.subr.mxu0 0.0
        %1764 = vmatpush1.msra.mxu0 0.0
        %1765 = vmatprep.subr.mxu0 0.0
        %1766 = vmatpush1.msra.mxu0 0.0
        %1767 = vmatprep.subr.mxu0 0.0
        %1768 = vmatpush1.msra.mxu0 0.0
        %1769 = vmatprep.subr.mxu0 0.0
        %1770 = vmatpush1.msra.mxu0 0.0
        %1771 = vmatprep.subr.mxu0 0.0
        %1772 = vmatpush1.msra.mxu0 0.0
        %1773 = vmatprep.subr.mxu0 0.0
        %1774 = vmatpush1.msra.mxu0 0.0
        %1775 = vmatprep.mubr.f32.mxu0 0.0
        %1776 = vmatmul.mubr.f32.gmra.mrb[0].mxu0 %v1700
        %v1777 = vpop.f32.mrb[0].mxu0
        %v1778 = vadd.f32 0.0, %v1777
        %v1779 = vpop.f32.mrb[0].mxu0
        %1780 = vmatprep.mubr.f32.mxu0 0.0
        %1781 = vmatmul.mubr.f32.gmra.mrb[0].mxu0 %v1703
        %v1782 = vpop.f32.mrb[0].mxu0
        %v1783 = vadd.f32 0.0, %v1782
        %v1784 = vpop.f32.mrb[0].mxu0
        %1785 = vmatprep.mubr.f32.mxu0 0.0
        %1786 = vmatmul.mubr.f32.gmra.mrb[0].mxu0 %v1706
        %v1787 = vpop.f32.mrb[0].mxu0
        %v1788 = vadd.f32 0.0, %v1787
        %v1789 = vpop.f32.mrb[0].mxu0
        %1790 = vmatprep.mubr.f32.mxu0 0.0
        %1791 = vmatmul.mubr.f32.gmra.mrb[0].mxu0 %v1709
        %v1792 = vpop.f32.mrb[0].mxu0
        %v1793 = vadd.f32 0.0, %v1792
        %v1794 = vpop.f32.mrb[0].mxu0
        %1795 = vdwg.mxu0
        %v1796 = vrcp.pop %v1778
        %v1797 = vmul.f32 %v1542, %v1796
        %v1798 = vrcp.pop %v1783
        %v1799 = vmul.f32 %v1547, %v1798
        %v1800 = vrcp.pop %v1788
        %v1801 = vmul.f32 %v1552, %v1800
        %v1802 = vrcp.pop %v1793
        %v1803 = vmul.f32 %v1557, %v1802
        %v1804 = vadd.f32 %v1797, 1e-06
        %v1805 = vadd.f32 %v1799, 1e-06
        %v1806 = vadd.f32 %v1801, 1e-06
        %v1807 = vadd.f32 %v1803, 1e-06
        %v1808 = vmul.f32 %v162, %v1804
        %v1809 = vmul.f32 %v163, %v1805
        %v1810 = vmul.f32 %v164, %v1806
        %v1811 = vmul.f32 %v165, %v1807
        %1812 = vmatprep.subr.mxu0 0.0
        %1813 = vmatpush1.msra.mxu0 %v1808
        %1814 = vmatprep.subr.mxu0 0.0
        %1815 = vmatpush1.msra.mxu0 %v1809
        %1816 = vmatprep.subr.mxu0 0.0
        %1817 = vmatpush1.msra.mxu0 %v1810
        %1818 = vmatprep.subr.mxu0 0.0
        %1819 = vmatpush1.msra.mxu0 %v1811
        %1820 = vmatprep.subr.mxu0 0.0
        %1821 = vmatpush1.msra.mxu0 0.0
        %1822 = vmatprep.subr.mxu0 0.0
        %1823 = vmatpush1.msra.mxu0 0.0
        %1824 = vmatprep.subr.mxu0 0.0
        %1825 = vmatpush1.msra.mxu0 0.0
        %1826 = vmatprep.subr.mxu0 0.0
        %1827 = vmatpush1.msra.mxu0 0.0
        %1828 = vmatprep.subr.mxu0 0.0
        %1829 = vmatpush1.msra.mxu0 0.0
        %1830 = vmatprep.subr.mxu0 0.0
        %1831 = vmatpush1.msra.mxu0 0.0
        %1832 = vmatprep.subr.mxu0 0.0
        %1833 = vmatpush1.msra.mxu0 0.0
        %1834 = vmatprep.subr.mxu0 0.0
        %1835 = vmatpush1.msra.mxu0 0.0
        %1836 = vmatprep.subr.mxu0 0.0
        %1837 = vmatpush1.msra.mxu0 0.0
        %1838 = vmatprep.subr.mxu0 0.0
        %1839 = vmatpush1.msra.mxu0 0.0
        %1840 = vmatprep.subr.mxu0 0.0
        %1841 = vmatpush1.msra.mxu0 0.0
        %1842 = vmatprep.subr.mxu0 0.0
        %1843 = vmatpush1.msra.mxu0 0.0
        %1844 = vmatprep.subr.mxu0 0.0
        %1845 = vmatpush1.msra.mxu0 0.0
        %1846 = vmatprep.subr.mxu0 0.0
        %1847 = vmatpush1.msra.mxu0 0.0
        %1848 = vmatprep.subr.mxu0 0.0
        %1849 = vmatpush1.msra.mxu0 0.0
        %1850 = vmatprep.subr.mxu0 0.0
        %1851 = vmatpush1.msra.mxu0 0.0
        %1852 = vmatprep.subr.mxu0 0.0
        %1853 = vmatpush1.msra.mxu0 0.0
        %1854 = vmatprep.subr.mxu0 0.0
        %1855 = vmatpush1.msra.mxu0 0.0
        %1856 = vmatprep.subr.mxu0 0.0
        %1857 = vmatpush1.msra.mxu0 0.0
        %1858 = vmatprep.subr.mxu0 0.0
        %1859 = vmatpush1.msra.mxu0 0.0
        %1860 = vmatprep.subr.mxu0 0.0
        %1861 = vmatpush1.msra.mxu0 0.0
        %1862 = vmatprep.subr.mxu0 0.0
        %1863 = vmatpush1.msra.mxu0 0.0
        %1864 = vmatprep.subr.mxu0 0.0
        %1865 = vmatpush1.msra.mxu0 0.0
        %1866 = vmatprep.subr.mxu0 0.0
        %1867 = vmatpush1.msra.mxu0 0.0
        %1868 = vmatprep.subr.mxu0 0.0
        %1869 = vmatpush1.msra.mxu0 0.0
        %1870 = vmatprep.subr.mxu0 0.0
        %1871 = vmatpush1.msra.mxu0 0.0
        %1872 = vmatprep.subr.mxu0 0.0
        %1873 = vmatpush1.msra.mxu0 0.0
        %1874 = vmatprep.subr.mxu0 0.0
        %1875 = vmatpush1.msra.mxu0 0.0
        %1876 = vmatprep.mubr.f32.mxu0 0.0
        %1877 = vmatmul.mubr.f32.gmra.mrb[0].mxu0 %v353
        %v1878 = vpop.f32.mrb[0].mxu0
        %v1879 = vadd.f32 0.0, %v1878
        %v1880 = vpop.f32.mrb[0].mxu0
        %1881 = vmatprep.mubr.f32.mxu0 0.0
        %1882 = vmatmul.mubr.f32.gmra.mrb[0].mxu0 %v356
        %v1883 = vpop.f32.mrb[0].mxu0
        %v1884 = vadd.f32 0.0, %v1883
        %v1885 = vpop.f32.mrb[0].mxu0
        %1886 = vmatprep.mubr.f32.mxu0 0.0
        %1887 = vmatmul.mubr.f32.gmra.mrb[0].mxu0 %v359
        %v1888 = vpop.f32.mrb[0].mxu0
        %v1889 = vadd.f32 0.0, %v1888
        %v1890 = vpop.f32.mrb[0].mxu0
        %1891 = vmatprep.mubr.f32.mxu0 0.0
        %1892 = vmatmul.mubr.f32.gmra.mrb[0].mxu0 %v362
        %v1893 = vpop.f32.mrb[0].mxu0
        %v1894 = vadd.f32 0.0, %v1893
        %v1895 = vpop.f32.mrb[0].mxu0
        %1896 = vmatprep.mubr.f32.mxu0 0.0
        %1897 = vmatmul.mubr.f32.gmra.mrb[0].mxu0 %v365
        %v1898 = vpop.f32.mrb[0].mxu0
        %v1899 = vadd.f32 0.0, %v1898
        %v1900 = vpop.f32.mrb[0].mxu0
        %1901 = vmatprep.mubr.f32.mxu0 0.0
        %1902 = vmatmul.mubr.f32.gmra.mrb[0].mxu0 %v368
        %v1903 = vpop.f32.mrb[0].mxu0
        %v1904 = vadd.f32 0.0, %v1903
        %v1905 = vpop.f32.mrb[0].mxu0
        %1906 = vmatprep.mubr.f32.mxu0 0.0
        %1907 = vmatmul.mubr.f32.gmra.mrb[0].mxu0 %v371
        %v1908 = vpop.f32.mrb[0].mxu0
        %v1909 = vadd.f32 0.0, %v1908
        %v1910 = vpop.f32.mrb[0].mxu0
        %1911 = vmatprep.mubr.f32.mxu0 0.0
        %1912 = vmatmul.mubr.f32.gmra.mrb[0].mxu0 %v374
        %v1913 = vpop.f32.mrb[0].mxu0
        %v1914 = vadd.f32 0.0, %v1913
        %v1915 = vpop.f32.mrb[0].mxu0
        %1916 = vmatprep.mubr.f32.mxu0 0.0
        %1917 = vmatmul.mubr.f32.gmra.mrb[0].mxu0 %v377
        %v1918 = vpop.f32.mrb[0].mxu0
        %v1919 = vadd.f32 0.0, %v1918
        %v1920 = vpop.f32.mrb[0].mxu0
        %1921 = vmatprep.mubr.f32.mxu0 0.0
        %1922 = vmatmul.mubr.f32.gmra.mrb[0].mxu0 %v380
        %v1923 = vpop.f32.mrb[0].mxu0
        %v1924 = vadd.f32 0.0, %v1923
        %v1925 = vpop.f32.mrb[0].mxu0
        %1926 = vmatprep.mubr.f32.mxu0 0.0
        %1927 = vmatmul.mubr.f32.gmra.mrb[0].mxu0 %v383
        %v1928 = vpop.f32.mrb[0].mxu0
        %v1929 = vadd.f32 0.0, %v1928
        %v1930 = vpop.f32.mrb[0].mxu0
        %1931 = vmatprep.mubr.f32.mxu0 0.0
        %1932 = vmatmul.mubr.f32.gmra.mrb[0].mxu0 %v386
        %v1933 = vpop.f32.mrb[0].mxu0
        %v1934 = vadd.f32 0.0, %v1933
        %v1935 = vpop.f32.mrb[0].mxu0
        %1936 = vmatprep.mubr.f32.mxu0 0.0
        %1937 = vmatmul.mubr.f32.gmra.mrb[0].mxu0 %v389
        %v1938 = vpop.f32.mrb[0].mxu0
        %v1939 = vadd.f32 0.0, %v1938
        %v1940 = vpop.f32.mrb[0].mxu0
        %1941 = vmatprep.mubr.f32.mxu0 0.0
        %1942 = vmatmul.mubr.f32.gmra.mrb[0].mxu0 %v392
        %v1943 = vpop.f32.mrb[0].mxu0
        %v1944 = vadd.f32 0.0, %v1943
        %v1945 = vpop.f32.mrb[0].mxu0
        %1946 = vmatprep.mubr.f32.mxu0 0.0
        %1947 = vmatmul.mubr.f32.gmra.mrb[0].mxu0 %v395
        %v1948 = vpop.f32.mrb[0].mxu0
        %v1949 = vadd.f32 0.0, %v1948
        %v1950 = vpop.f32.mrb[0].mxu0
        %1951 = vmatprep.mubr.f32.mxu0 0.0
        %1952 = vmatmul.mubr.f32.gmra.mrb[0].mxu0 %v398
        %v1953 = vpop.f32.mrb[0].mxu0
        %v1954 = vadd.f32 0.0, %v1953
        %v1955 = vpop.f32.mrb[0].mxu0
        %1956 = vmatprep.mubr.f32.mxu0 0.0
        %1957 = vmatmul.mubr.f32.gmra.mrb[0].mxu0 %v401
        %v1958 = vpop.f32.mrb[0].mxu0
        %v1959 = vadd.f32 0.0, %v1958
        %v1960 = vpop.f32.mrb[0].mxu0
        %1961 = vmatprep.mubr.f32.mxu0 0.0
        %1962 = vmatmul.mubr.f32.gmra.mrb[0].mxu0 %v404
        %v1963 = vpop.f32.mrb[0].mxu0
        %v1964 = vadd.f32 0.0, %v1963
        %v1965 = vpop.f32.mrb[0].mxu0
        %1966 = vmatprep.mubr.f32.mxu0 0.0
        %1967 = vmatmul.mubr.f32.gmra.mrb[0].mxu0 %v407
        %v1968 = vpop.f32.mrb[0].mxu0
        %v1969 = vadd.f32 0.0, %v1968
        %v1970 = vpop.f32.mrb[0].mxu0
        %1971 = vmatprep.mubr.f32.mxu0 0.0
        %1972 = vmatmul.mubr.f32.gmra.mrb[0].mxu0 %v410
        %v1973 = vpop.f32.mrb[0].mxu0
        %v1974 = vadd.f32 0.0, %v1973
        %v1975 = vpop.f32.mrb[0].mxu0
        %1976 = vmatprep.mubr.f32.mxu0 0.0
        %1977 = vmatmul.mubr.f32.gmra.mrb[0].mxu0 %v413
        %v1978 = vpop.f32.mrb[0].mxu0
        %v1979 = vadd.f32 0.0, %v1978
        %v1980 = vpop.f32.mrb[0].mxu0
        %1981 = vmatprep.mubr.f32.mxu0 0.0
        %1982 = vmatmul.mubr.f32.gmra.mrb[0].mxu0 %v416
        %v1983 = vpop.f32.mrb[0].mxu0
        %v1984 = vadd.f32 0.0, %v1983
        %v1985 = vpop.f32.mrb[0].mxu0
        %1986 = vmatprep.mubr.f32.mxu0 0.0
        %1987 = vmatmul.mubr.f32.gmra.mrb[0].mxu0 %v419
        %v1988 = vpop.f32.mrb[0].mxu0
        %v1989 = vadd.f32 0.0, %v1988
        %v1990 = vpop.f32.mrb[0].mxu0
        %1991 = vmatprep.mubr.f32.mxu0 0.0
        %1992 = vmatmul.mubr.f32.gmra.mrb[0].mxu0 %v422
        %v1993 = vpop.f32.mrb[0].mxu0
        %v1994 = vadd.f32 0.0, %v1993
        %v1995 = vpop.f32.mrb[0].mxu0
        %1996 = vmatprep.mubr.f32.mxu0 0.0
        %1997 = vmatmul.mubr.f32.gmra.mrb[0].mxu0 %v425
        %v1998 = vpop.f32.mrb[0].mxu0
        %v1999 = vadd.f32 0.0, %v1998
        %v2000 = vpop.f32.mrb[0].mxu0
        %2001 = vmatprep.mubr.f32.mxu0 0.0
        %2002 = vmatmul.mubr.f32.gmra.mrb[0].mxu0 %v428
        %v2003 = vpop.f32.mrb[0].mxu0
        %v2004 = vadd.f32 0.0, %v2003
        %v2005 = vpop.f32.mrb[0].mxu0
        %2006 = vmatprep.mubr.f32.mxu0 0.0
        %2007 = vmatmul.mubr.f32.gmra.mrb[0].mxu0 %v431
        %v2008 = vpop.f32.mrb[0].mxu0
        %v2009 = vadd.f32 0.0, %v2008
        %v2010 = vpop.f32.mrb[0].mxu0
        %2011 = vmatprep.mubr.f32.mxu0 0.0
        %2012 = vmatmul.mubr.f32.gmra.mrb[0].mxu0 %v434
        %v2013 = vpop.f32.mrb[0].mxu0
        %v2014 = vadd.f32 0.0, %v2013
        %v2015 = vpop.f32.mrb[0].mxu0
        %2016 = vmatprep.mubr.f32.mxu0 0.0
        %2017 = vmatmul.mubr.f32.gmra.mrb[0].mxu0 %v437
        %v2018 = vpop.f32.mrb[0].mxu0
        %v2019 = vadd.f32 0.0, %v2018
        %v2020 = vpop.f32.mrb[0].mxu0
        %2021 = vmatprep.mubr.f32.mxu0 0.0
        %2022 = vmatmul.mubr.f32.gmra.mrb[0].mxu0 %v440
        %v2023 = vpop.f32.mrb[0].mxu0
        %v2024 = vadd.f32 0.0, %v2023
        %v2025 = vpop.f32.mrb[0].mxu0
        %2026 = vmatprep.mubr.f32.mxu0 0.0
        %2027 = vmatmul.mubr.f32.gmra.mrb[0].mxu0 %v443
        %v2028 = vpop.f32.mrb[0].mxu0
        %v2029 = vadd.f32 0.0, %v2028
        %v2030 = vpop.f32.mrb[0].mxu0
        %2031 = vmatprep.mubr.f32.mxu0 0.0
        %2032 = vmatmul.mubr.f32.gmra.mrb[0].mxu0 %v446
        %v2033 = vpop.f32.mrb[0].mxu0
        %v2034 = vadd.f32 0.0, %v2033
        %v2035 = vpop.f32.mrb[0].mxu0
        %2036 = vdwg.mxu0
        %2037 = vxpose.xlu0.b32.start [1/16] %v1808, 128
        %2038 = vxpose.xlu0.b32.cont [2/16] %v1809, 128
        %2039 = vxpose.xlu0.b32.cont [3/16] %v1810, 128
        %2040 = vxpose.xlu0.b32.cont [4/16] %v1811, 128
        %2041 = vxpose.xlu0.b32.cont [5/16] 0.0, 128
        %2042 = vxpose.xlu0.b32.cont [6/16] 0.0, 128
        %2043 = vxpose.xlu0.b32.cont [7/16] 0.0, 128
        %2044 = vxpose.xlu0.b32.cont [8/16] 0.0, 128
        %2045 = vxpose.xlu0.b32.cont [9/16] 0.0, 128
        %2046 = vxpose.xlu0.b32.cont [10/16] 0.0, 128
        %2047 = vxpose.xlu0.b32.cont [11/16] 0.0, 128
        %2048 = vxpose.xlu0.b32.cont [12/16] 0.0, 128
        %2049 = vxpose.xlu0.b32.cont [13/16] 0.0, 128
        %2050 = vxpose.xlu0.b32.cont [14/16] 0.0, 128
        %2051 = vxpose.xlu0.b32.cont [15/16] 0.0, 128
        %2052 = vxpose.xlu0.b32.end [16/16] 0.0, 128
        %v2053 = vpop.trf.xlu0
        %v2054 = vpop.trf.xlu0
        %v2055 = vpop.trf.xlu0
        %v2056 = vpop.trf.xlu0
        %v2057 = vpop.trf.xlu0
        %v2058 = vpop.trf.xlu0
        %v2059 = vpop.trf.xlu0
        %v2060 = vpop.trf.xlu0
        %v2061 = vpop.trf.xlu0
        %v2062 = vpop.trf.xlu0
        %v2063 = vpop.trf.xlu0
        %v2064 = vpop.trf.xlu0
        %v2065 = vpop.trf.xlu0
        %v2066 = vpop.trf.xlu0
        %v2067 = vpop.trf.xlu0
        %v2068 = vpop.trf.xlu0
        %v2070 = vsel %vm198, %v2053, 0
        %v2073 = vsel %vm198, %v2054, 0
        %2075 = vmatprep.subr.mxu0 0.0
        %2076 = vmatpush1.msra.mxu0 %v1808
        %2077 = vmatprep.subr.mxu0 0.0
        %2078 = vmatpush1.msra.mxu0 %v1809
        %2079 = vmatprep.subr.mxu0 0.0
        %2080 = vmatpush1.msra.mxu0 %v1810
        %2081 = vmatprep.subr.mxu0 0.0
        %2082 = vmatpush1.msra.mxu0 %v1811
        %2083 = vmatprep.subr.mxu0 0.0
        %2084 = vmatpush1.msra.mxu0 0.0
        %2085 = vmatprep.subr.mxu0 0.0
        %2086 = vmatpush1.msra.mxu0 0.0
        %2087 = vmatprep.subr.mxu0 0.0
        %2088 = vmatpush1.msra.mxu0 0.0
        %2089 = vmatprep.subr.mxu0 0.0
        %2090 = vmatpush1.msra.mxu0 0.0
        %2091 = vmatprep.subr.mxu0 0.0
        %2092 = vmatpush1.msra.mxu0 0.0
        %2093 = vmatprep.subr.mxu0 0.0
        %2094 = vmatpush1.msra.mxu0 0.0
        %2095 = vmatprep.subr.mxu0 0.0
        %2096 = vmatpush1.msra.mxu0 0.0
        %2097 = vmatprep.subr.mxu0 0.0
        %2098 = vmatpush1.msra.mxu0 0.0
        %2099 = vmatprep.subr.mxu0 0.0
        %2100 = vmatpush1.msra.mxu0 0.0
        %2101 = vmatprep.subr.mxu0 0.0
        %2102 = vmatpush1.msra.mxu0 0.0
        %2103 = vmatprep.subr.mxu0 0.0
        %2104 = vmatpush1.msra.mxu0 0.0
        %2105 = vmatprep.subr.mxu0 0.0
        %2106 = vmatpush1.msra.mxu0 0.0
        %2107 = vmatprep.subr.mxu0 0.0
        %2108 = vmatpush1.msra.mxu0 0.0
        %2109 = vmatprep.subr.mxu0 0.0
        %2110 = vmatpush1.msra.mxu0 0.0
        %2111 = vmatprep.subr.mxu0 0.0
        %2112 = vmatpush1.msra.mxu0 0.0
        %2113 = vmatprep.subr.mxu0 0.0
        %2114 = vmatpush1.msra.mxu0 0.0
        %2115 = vmatprep.subr.mxu0 0.0
        %2116 = vmatpush1.msra.mxu0 0.0
        %2117 = vmatprep.subr.mxu0 0.0
        %2118 = vmatpush1.msra.mxu0 0.0
        %2119 = vmatprep.subr.mxu0 0.0
        %2120 = vmatpush1.msra.mxu0 0.0
        %2121 = vmatprep.subr.mxu0 0.0
        %2122 = vmatpush1.msra.mxu0 0.0
        %2123 = vmatprep.subr.mxu0 0.0
        %2124 = vmatpush1.msra.mxu0 0.0
        %2125 = vmatprep.subr.mxu0 0.0
        %2126 = vmatpush1.msra.mxu0 0.0
        %2127 = vmatprep.subr.mxu0 0.0
        %2128 = vmatpush1.msra.mxu0 0.0
        %2129 = vmatprep.subr.mxu0 0.0
        %2130 = vmatpush1.msra.mxu0 0.0
        %2131 = vmatprep.subr.mxu0 0.0
        %2132 = vmatpush1.msra.mxu0 0.0
        %2133 = vmatprep.subr.mxu0 0.0
        %2134 = vmatpush1.msra.mxu0 0.0
        %2135 = vmatprep.subr.mxu0 0.0
        %2136 = vmatpush1.msra.mxu0 0.0
        %2137 = vmatprep.subr.mxu0 0.0
        %2138 = vmatpush1.msra.mxu0 0.0
        %2139 = vmatprep.mubr.f32.mxu0 0.0
        %2140 = vmatmul.mubr.f32.gmra.mrb[0].mxu0 %v2070
        %v2141 = vpop.f32.mrb[0].mxu0
        %v2142 = vadd.f32 0.0, %v2141
        %v2143 = vpop.f32.mrb[0].mxu0
        %2144 = vmatprep.mubr.f32.mxu0 0.0
        %2145 = vmatmul.mubr.f32.gmra.mrb[0].mxu0 %v2073
        %v2146 = vpop.f32.mrb[0].mxu0
        %v2147 = vadd.f32 0.0, %v2146
        %v2148 = vpop.f32.mrb[0].mxu0
        %2149 = vdwg.mxu0
        %v2151 = vsel %vm673, %v1443, 0
        %v2154 = vsel %vm673, %v1444, 0
        %v2157 = vsel %vm673, %v1445, 0
        %v2160 = vsel %vm673, %v1446, 0
        %v2163 = vsel %vm673, %v1447, 0
        %v2166 = vsel %vm673, %v1448, 0
        %v2169 = vsel %vm673, %v1449, 0
        %v2172 = vsel %vm673, %v1450, 0
        %v2175 = vsel %vm673, %v1451, 0
        %v2178 = vsel %vm673, %v1452, 0
        %v2181 = vsel %vm673, %v1453, 0
        %v2184 = vsel %vm673, %v1454, 0
        %v2187 = vsel %vm673, %v1455, 0
        %v2190 = vsel %vm673, %v1456, 0
        %v2193 = vsel %vm673, %v1457, 0
        %v2196 = vsel %vm673, %v1458, 0
        %v2199 = vsel %vm673, %v1459, 0
        %v2202 = vsel %vm673, %v1460, 0
        %v2205 = vsel %vm673, %v1461, 0
        %v2208 = vsel %vm673, %v1462, 0
        %v2211 = vsel %vm673, %v1463, 0
        %v2214 = vsel %vm673, %v1464, 0
        %v2217 = vsel %vm673, %v1465, 0
        %v2220 = vsel %vm673, %v1466, 0
        %v2223 = vsel %vm673, %v1467, 0
        %v2226 = vsel %vm673, %v1468, 0
        %v2229 = vsel %vm673, %v1469, 0
        %v2232 = vsel %vm673, %v1470, 0
        %v2235 = vsel %vm673, %v1471, 0
        %v2238 = vsel %vm673, %v1472, 0
        %v2241 = vsel %vm673, %v1473, 0
        %v2244 = vsel %vm673, %v1474, 0
        %2246 = vmatprep.subr.mxu0 0.0
        %2247 = vmatpush1.msra.mxu0 %v2142
        %2248 = vmatprep.subr.mxu0 0.0
        %2249 = vmatpush1.msra.mxu0 %v2147
        %2250 = vmatprep.subr.mxu0 0.0
        %2251 = vmatpush1.msra.mxu0 0.0
        %2252 = vmatprep.subr.mxu0 0.0
        %2253 = vmatpush1.msra.mxu0 0.0
        %2254 = vmatprep.subr.mxu0 0.0
        %2255 = vmatpush1.msra.mxu0 0.0
        %2256 = vmatprep.subr.mxu0 0.0
        %2257 = vmatpush1.msra.mxu0 0.0
        %2258 = vmatprep.subr.mxu0 0.0
        %2259 = vmatpush1.msra.mxu0 0.0
        %2260 = vmatprep.subr.mxu0 0.0
        %2261 = vmatpush1.msra.mxu0 0.0
        %2262 = vmatprep.subr.mxu0 0.0
        %2263 = vmatpush1.msra.mxu0 0.0
        %2264 = vmatprep.subr.mxu0 0.0
        %2265 = vmatpush1.msra.mxu0 0.0
        %2266 = vmatprep.subr.mxu0 0.0
        %2267 = vmatpush1.msra.mxu0 0.0
        %2268 = vmatprep.subr.mxu0 0.0
        %2269 = vmatpush1.msra.mxu0 0.0
        %2270 = vmatprep.subr.mxu0 0.0
        %2271 = vmatpush1.msra.mxu0 0.0
        %2272 = vmatprep.subr.mxu0 0.0
        %2273 = vmatpush1.msra.mxu0 0.0
        %2274 = vmatprep.subr.mxu0 0.0
        %2275 = vmatpush1.msra.mxu0 0.0
        %2276 = vmatprep.subr.mxu0 0.0
        %2277 = vmatpush1.msra.mxu0 0.0
        %2278 = vmatprep.subr.mxu0 0.0
        %2279 = vmatpush1.msra.mxu0 0.0
        %2280 = vmatprep.subr.mxu0 0.0
        %2281 = vmatpush1.msra.mxu0 0.0
        %2282 = vmatprep.subr.mxu0 0.0
        %2283 = vmatpush1.msra.mxu0 0.0
        %2284 = vmatprep.subr.mxu0 0.0
        %2285 = vmatpush1.msra.mxu0 0.0
        %2286 = vmatprep.subr.mxu0 0.0
        %2287 = vmatpush1.msra.mxu0 0.0
        %2288 = vmatprep.subr.mxu0 0.0
        %2289 = vmatpush1.msra.mxu0 0.0
        %2290 = vmatprep.subr.mxu0 0.0
        %2291 = vmatpush1.msra.mxu0 0.0
        %2292 = vmatprep.subr.mxu0 0.0
        %2293 = vmatpush1.msra.mxu0 0.0
        %2294 = vmatprep.subr.mxu0 0.0
        %2295 = vmatpush1.msra.mxu0 0.0
        %2296 = vmatprep.subr.mxu0 0.0
        %2297 = vmatpush1.msra.mxu0 0.0
        %2298 = vmatprep.subr.mxu0 0.0
        %2299 = vmatpush1.msra.mxu0 0.0
        %2300 = vmatprep.subr.mxu0 0.0
        %2301 = vmatpush1.msra.mxu0 0.0
        %2302 = vmatprep.subr.mxu0 0.0
        %2303 = vmatpush1.msra.mxu0 0.0
        %2304 = vmatprep.subr.mxu0 0.0
        %2305 = vmatpush1.msra.mxu0 0.0
        %2306 = vmatprep.subr.mxu0 0.0
        %2307 = vmatpush1.msra.mxu0 0.0
        %2308 = vmatprep.subr.mxu0 0.0
        %2309 = vmatpush1.msra.mxu0 0.0
        %2310 = vmatprep.mubr.f32.mxu0 0.0
        %2311 = vmatmul.mubr.f32.gmra.mrb[0].mxu0 %v2151
        %v2312 = vpop.f32.mrb[0].mxu0
        %v2313 = vadd.f32 0.0, %v2312
        %v2314 = vpop.f32.mrb[0].mxu0
        %2315 = vmatprep.mubr.f32.mxu0 0.0
        %2316 = vmatmul.mubr.f32.gmra.mrb[0].mxu0 %v2154
        %v2317 = vpop.f32.mrb[0].mxu0
        %v2318 = vadd.f32 0.0, %v2317
        %v2319 = vpop.f32.mrb[0].mxu0
        %2320 = vmatprep.mubr.f32.mxu0 0.0
        %2321 = vmatmul.mubr.f32.gmra.mrb[0].mxu0 %v2157
        %v2322 = vpop.f32.mrb[0].mxu0
        %v2323 = vadd.f32 0.0, %v2322
        %v2324 = vpop.f32.mrb[0].mxu0
        %2325 = vmatprep.mubr.f32.mxu0 0.0
        %2326 = vmatmul.mubr.f32.gmra.mrb[0].mxu0 %v2160
        %v2327 = vpop.f32.mrb[0].mxu0
        %v2328 = vadd.f32 0.0, %v2327
        %v2329 = vpop.f32.mrb[0].mxu0
        %2330 = vmatprep.mubr.f32.mxu0 0.0
        %2331 = vmatmul.mubr.f32.gmra.mrb[0].mxu0 %v2163
        %v2332 = vpop.f32.mrb[0].mxu0
        %v2333 = vadd.f32 0.0, %v2332
        %v2334 = vpop.f32.mrb[0].mxu0
        %2335 = vmatprep.mubr.f32.mxu0 0.0
        %2336 = vmatmul.mubr.f32.gmra.mrb[0].mxu0 %v2166
        %v2337 = vpop.f32.mrb[0].mxu0
        %v2338 = vadd.f32 0.0, %v2337
        %v2339 = vpop.f32.mrb[0].mxu0
        %2340 = vmatprep.mubr.f32.mxu0 0.0
        %2341 = vmatmul.mubr.f32.gmra.mrb[0].mxu0 %v2169
        %v2342 = vpop.f32.mrb[0].mxu0
        %v2343 = vadd.f32 0.0, %v2342
        %v2344 = vpop.f32.mrb[0].mxu0
        %2345 = vmatprep.mubr.f32.mxu0 0.0
        %2346 = vmatmul.mubr.f32.gmra.mrb[0].mxu0 %v2172
        %v2347 = vpop.f32.mrb[0].mxu0
        %v2348 = vadd.f32 0.0, %v2347
        %v2349 = vpop.f32.mrb[0].mxu0
        %2350 = vmatprep.mubr.f32.mxu0 0.0
        %2351 = vmatmul.mubr.f32.gmra.mrb[0].mxu0 %v2175
        %v2352 = vpop.f32.mrb[0].mxu0
        %v2353 = vadd.f32 0.0, %v2352
        %v2354 = vpop.f32.mrb[0].mxu0
        %2355 = vmatprep.mubr.f32.mxu0 0.0
        %2356 = vmatmul.mubr.f32.gmra.mrb[0].mxu0 %v2178
        %v2357 = vpop.f32.mrb[0].mxu0
        %v2358 = vadd.f32 0.0, %v2357
        %v2359 = vpop.f32.mrb[0].mxu0
        %2360 = vmatprep.mubr.f32.mxu0 0.0
        %2361 = vmatmul.mubr.f32.gmra.mrb[0].mxu0 %v2181
        %v2362 = vpop.f32.mrb[0].mxu0
        %v2363 = vadd.f32 0.0, %v2362
        %v2364 = vpop.f32.mrb[0].mxu0
        %2365 = vmatprep.mubr.f32.mxu0 0.0
        %2366 = vmatmul.mubr.f32.gmra.mrb[0].mxu0 %v2184
        %v2367 = vpop.f32.mrb[0].mxu0
        %v2368 = vadd.f32 0.0, %v2367
        %v2369 = vpop.f32.mrb[0].mxu0
        %2370 = vmatprep.mubr.f32.mxu0 0.0
        %2371 = vmatmul.mubr.f32.gmra.mrb[0].mxu0 %v2187
        %v2372 = vpop.f32.mrb[0].mxu0
        %v2373 = vadd.f32 0.0, %v2372
        %v2374 = vpop.f32.mrb[0].mxu0
        %2375 = vmatprep.mubr.f32.mxu0 0.0
        %2376 = vmatmul.mubr.f32.gmra.mrb[0].mxu0 %v2190
        %v2377 = vpop.f32.mrb[0].mxu0
        %v2378 = vadd.f32 0.0, %v2377
        %v2379 = vpop.f32.mrb[0].mxu0
        %2380 = vmatprep.mubr.f32.mxu0 0.0
        %2381 = vmatmul.mubr.f32.gmra.mrb[0].mxu0 %v2193
        %v2382 = vpop.f32.mrb[0].mxu0
        %v2383 = vadd.f32 0.0, %v2382
        %v2384 = vpop.f32.mrb[0].mxu0
        %2385 = vmatprep.mubr.f32.mxu0 0.0
        %2386 = vmatmul.mubr.f32.gmra.mrb[0].mxu0 %v2196
        %v2387 = vpop.f32.mrb[0].mxu0
        %v2388 = vadd.f32 0.0, %v2387
        %v2389 = vpop.f32.mrb[0].mxu0
        %2390 = vmatprep.mubr.f32.mxu0 0.0
        %2391 = vmatmul.mubr.f32.gmra.mrb[0].mxu0 %v2199
        %v2392 = vpop.f32.mrb[0].mxu0
        %v2393 = vadd.f32 0.0, %v2392
        %v2394 = vpop.f32.mrb[0].mxu0
        %2395 = vmatprep.mubr.f32.mxu0 0.0
        %2396 = vmatmul.mubr.f32.gmra.mrb[0].mxu0 %v2202
        %v2397 = vpop.f32.mrb[0].mxu0
        %v2398 = vadd.f32 0.0, %v2397
        %v2399 = vpop.f32.mrb[0].mxu0
        %2400 = vmatprep.mubr.f32.mxu0 0.0
        %2401 = vmatmul.mubr.f32.gmra.mrb[0].mxu0 %v2205
        %v2402 = vpop.f32.mrb[0].mxu0
        %v2403 = vadd.f32 0.0, %v2402
        %v2404 = vpop.f32.mrb[0].mxu0
        %2405 = vmatprep.mubr.f32.mxu0 0.0
        %2406 = vmatmul.mubr.f32.gmra.mrb[0].mxu0 %v2208
        %v2407 = vpop.f32.mrb[0].mxu0
        %v2408 = vadd.f32 0.0, %v2407
        %v2409 = vpop.f32.mrb[0].mxu0
        %2410 = vmatprep.mubr.f32.mxu0 0.0
        %2411 = vmatmul.mubr.f32.gmra.mrb[0].mxu0 %v2211
        %v2412 = vpop.f32.mrb[0].mxu0
        %v2413 = vadd.f32 0.0, %v2412
        %v2414 = vpop.f32.mrb[0].mxu0
        %2415 = vmatprep.mubr.f32.mxu0 0.0
        %2416 = vmatmul.mubr.f32.gmra.mrb[0].mxu0 %v2214
        %v2417 = vpop.f32.mrb[0].mxu0
        %v2418 = vadd.f32 0.0, %v2417
        %v2419 = vpop.f32.mrb[0].mxu0
        %2420 = vmatprep.mubr.f32.mxu0 0.0
        %2421 = vmatmul.mubr.f32.gmra.mrb[0].mxu0 %v2217
        %v2422 = vpop.f32.mrb[0].mxu0
        %v2423 = vadd.f32 0.0, %v2422
        %v2424 = vpop.f32.mrb[0].mxu0
        %2425 = vmatprep.mubr.f32.mxu0 0.0
        %2426 = vmatmul.mubr.f32.gmra.mrb[0].mxu0 %v2220
        %v2427 = vpop.f32.mrb[0].mxu0
        %v2428 = vadd.f32 0.0, %v2427
        %v2429 = vpop.f32.mrb[0].mxu0
        %2430 = vmatprep.mubr.f32.mxu0 0.0
        %2431 = vmatmul.mubr.f32.gmra.mrb[0].mxu0 %v2223
        %v2432 = vpop.f32.mrb[0].mxu0
        %v2433 = vadd.f32 0.0, %v2432
        %v2434 = vpop.f32.mrb[0].mxu0
        %2435 = vmatprep.mubr.f32.mxu0 0.0
        %2436 = vmatmul.mubr.f32.gmra.mrb[0].mxu0 %v2226
        %v2437 = vpop.f32.mrb[0].mxu0
        %v2438 = vadd.f32 0.0, %v2437
        %v2439 = vpop.f32.mrb[0].mxu0
        %2440 = vmatprep.mubr.f32.mxu0 0.0
        %2441 = vmatmul.mubr.f32.gmra.mrb[0].mxu0 %v2229
        %v2442 = vpop.f32.mrb[0].mxu0
        %v2443 = vadd.f32 0.0, %v2442
        %v2444 = vpop.f32.mrb[0].mxu0
        %2445 = vmatprep.mubr.f32.mxu0 0.0
        %2446 = vmatmul.mubr.f32.gmra.mrb[0].mxu0 %v2232
        %v2447 = vpop.f32.mrb[0].mxu0
        %v2448 = vadd.f32 0.0, %v2447
        %v2449 = vpop.f32.mrb[0].mxu0
        %2450 = vmatprep.mubr.f32.mxu0 0.0
        %2451 = vmatmul.mubr.f32.gmra.mrb[0].mxu0 %v2235
        %v2452 = vpop.f32.mrb[0].mxu0
        %v2453 = vadd.f32 0.0, %v2452
        %v2454 = vpop.f32.mrb[0].mxu0
        %2455 = vmatprep.mubr.f32.mxu0 0.0
        %2456 = vmatmul.mubr.f32.gmra.mrb[0].mxu0 %v2238
        %v2457 = vpop.f32.mrb[0].mxu0
        %v2458 = vadd.f32 0.0, %v2457
        %v2459 = vpop.f32.mrb[0].mxu0
        %2460 = vmatprep.mubr.f32.mxu0 0.0
        %2461 = vmatmul.mubr.f32.gmra.mrb[0].mxu0 %v2241
        %v2462 = vpop.f32.mrb[0].mxu0
        %v2463 = vadd.f32 0.0, %v2462
        %v2464 = vpop.f32.mrb[0].mxu0
        %2465 = vmatprep.mubr.f32.mxu0 0.0
        %2466 = vmatmul.mubr.f32.gmra.mrb[0].mxu0 %v2244
        %v2467 = vpop.f32.mrb[0].mxu0
        %v2468 = vadd.f32 0.0, %v2467
        %v2469 = vpop.f32.mrb[0].mxu0
        %2470 = vdwg.mxu0
        %v2471 = vrcp.pop %v2313
        %v2472 = vmul.f32 %v1879, %v2471
        %v2473 = vrcp.pop %v2318
        %v2474 = vmul.f32 %v1884, %v2473
        %v2475 = vrcp.pop %v2323
        %v2476 = vmul.f32 %v1889, %v2475
        %v2477 = vrcp.pop %v2328
        %v2478 = vmul.f32 %v1894, %v2477
        %v2479 = vrcp.pop %v2333
        %v2480 = vmul.f32 %v1899, %v2479
        %v2481 = vrcp.pop %v2338
        %v2482 = vmul.f32 %v1904, %v2481
        %v2483 = vrcp.pop %v2343
        %v2484 = vmul.f32 %v1909, %v2483
        %v2485 = vrcp.pop %v2348
        %v2486 = vmul.f32 %v1914, %v2485
        %v2487 = vrcp.pop %v2353
        %v2488 = vmul.f32 %v1919, %v2487
        %v2489 = vrcp.pop %v2358
        %v2490 = vmul.f32 %v1924, %v2489
        %v2491 = vrcp.pop %v2363
        %v2492 = vmul.f32 %v1929, %v2491
        %v2493 = vrcp.pop %v2368
        %v2494 = vmul.f32 %v1934, %v2493
        %v2495 = vrcp.pop %v2373
        %v2496 = vmul.f32 %v1939, %v2495
        %v2497 = vrcp.pop %v2378
        %v2498 = vmul.f32 %v1944, %v2497
        %v2499 = vrcp.pop %v2383
        %v2500 = vmul.f32 %v1949, %v2499
        %v2501 = vrcp.pop %v2388
        %v2502 = vmul.f32 %v1954, %v2501
        %v2503 = vrcp.pop %v2393
        %v2504 = vmul.f32 %v1959, %v2503
        %v2505 = vrcp.pop %v2398
        %v2506 = vmul.f32 %v1964, %v2505
        %v2507 = vrcp.pop %v2403
        %v2508 = vmul.f32 %v1969, %v2507
        %v2509 = vrcp.pop %v2408
        %v2510 = vmul.f32 %v1974, %v2509
        %v2511 = vrcp.pop %v2413
        %v2512 = vmul.f32 %v1979, %v2511
        %v2513 = vrcp.pop %v2418
        %v2514 = vmul.f32 %v1984, %v2513
        %v2515 = vrcp.pop %v2423
        %v2516 = vmul.f32 %v1989, %v2515
        %v2517 = vrcp.pop %v2428
        %v2518 = vmul.f32 %v1994, %v2517
        %v2519 = vrcp.pop %v2433
        %v2520 = vmul.f32 %v1999, %v2519
        %v2521 = vrcp.pop %v2438
        %v2522 = vmul.f32 %v2004, %v2521
        %v2523 = vrcp.pop %v2443
        %v2524 = vmul.f32 %v2009, %v2523
        %v2525 = vrcp.pop %v2448
        %v2526 = vmul.f32 %v2014, %v2525
        %v2527 = vrcp.pop %v2453
        %v2528 = vmul.f32 %v2019, %v2527
        %v2529 = vrcp.pop %v2458
        %v2530 = vmul.f32 %v2024, %v2529
        %v2531 = vrcp.pop %v2463
        %v2532 = vmul.f32 %v2029, %v2531
        %v2533 = vrcp.pop %v2468
        %v2534 = vmul.f32 %v2034, %v2533
        %v2535 = vadd.f32 %v2472, 1e-06
        %v2536 = vadd.f32 %v2474, 1e-06
        %v2537 = vadd.f32 %v2476, 1e-06
        %v2538 = vadd.f32 %v2478, 1e-06
        %v2539 = vadd.f32 %v2480, 1e-06
        %v2540 = vadd.f32 %v2482, 1e-06
        %v2541 = vadd.f32 %v2484, 1e-06
        %v2542 = vadd.f32 %v2486, 1e-06
        %v2543 = vadd.f32 %v2488, 1e-06
        %v2544 = vadd.f32 %v2490, 1e-06
        %v2545 = vadd.f32 %v2492, 1e-06
        %v2546 = vadd.f32 %v2494, 1e-06
        %v2547 = vadd.f32 %v2496, 1e-06
        %v2548 = vadd.f32 %v2498, 1e-06
        %v2549 = vadd.f32 %v2500, 1e-06
        %v2550 = vadd.f32 %v2502, 1e-06
        %v2551 = vadd.f32 %v2504, 1e-06
        %v2552 = vadd.f32 %v2506, 1e-06
        %v2553 = vadd.f32 %v2508, 1e-06
        %v2554 = vadd.f32 %v2510, 1e-06
        %v2555 = vadd.f32 %v2512, 1e-06
        %v2556 = vadd.f32 %v2514, 1e-06
        %v2557 = vadd.f32 %v2516, 1e-06
        %v2558 = vadd.f32 %v2518, 1e-06
        %v2559 = vadd.f32 %v2520, 1e-06
        %v2560 = vadd.f32 %v2522, 1e-06
        %v2561 = vadd.f32 %v2524, 1e-06
        %v2562 = vadd.f32 %v2526, 1e-06
        %v2563 = vadd.f32 %v2528, 1e-06
        %v2564 = vadd.f32 %v2530, 1e-06
        %v2565 = vadd.f32 %v2532, 1e-06
        %v2566 = vadd.f32 %v2534, 1e-06
        %v2567 = vmul.f32 %v1443, %v2535
        %v2568 = vmul.f32 %v1444, %v2536
        %v2569 = vmul.f32 %v1445, %v2537
        %v2570 = vmul.f32 %v1446, %v2538
        %v2571 = vmul.f32 %v1447, %v2539
        %v2572 = vmul.f32 %v1448, %v2540
        %v2573 = vmul.f32 %v1449, %v2541
        %v2574 = vmul.f32 %v1450, %v2542
        %v2575 = vmul.f32 %v1451, %v2543
        %v2576 = vmul.f32 %v1452, %v2544
        %v2577 = vmul.f32 %v1453, %v2545
        %v2578 = vmul.f32 %v1454, %v2546
        %v2579 = vmul.f32 %v1455, %v2547
        %v2580 = vmul.f32 %v1456, %v2548
        %v2581 = vmul.f32 %v1457, %v2549
        %v2582 = vmul.f32 %v1458, %v2550
        %v2583 = vmul.f32 %v1459, %v2551
        %v2584 = vmul.f32 %v1460, %v2552
        %v2585 = vmul.f32 %v1461, %v2553
        %v2586 = vmul.f32 %v1462, %v2554
        %v2587 = vmul.f32 %v1463, %v2555
        %v2588 = vmul.f32 %v1464, %v2556
        %v2589 = vmul.f32 %v1465, %v2557
        %v2590 = vmul.f32 %v1466, %v2558
        %v2591 = vmul.f32 %v1467, %v2559
        %v2592 = vmul.f32 %v1468, %v2560
        %v2593 = vmul.f32 %v1469, %v2561
        %v2594 = vmul.f32 %v1470, %v2562
        %v2595 = vmul.f32 %v1471, %v2563
        %v2596 = vmul.f32 %v1472, %v2564
        %v2597 = vmul.f32 %v1473, %v2565
        %v2598 = vmul.f32 %v1474, %v2566
        %2599 = vmatprep.subr.mxu0 0.0
        %2600 = vmatpush1.msra.mxu0 %v2567
        %2601 = vmatprep.subr.mxu0 0.0
        %2602 = vmatpush1.msra.mxu0 %v2568
        %2603 = vmatprep.subr.mxu0 0.0
        %2604 = vmatpush1.msra.mxu0 %v2569
        %2605 = vmatprep.subr.mxu0 0.0
        %2606 = vmatpush1.msra.mxu0 %v2570
        %2607 = vmatprep.subr.mxu0 0.0
        %2608 = vmatpush1.msra.mxu0 %v2571
        %2609 = vmatprep.subr.mxu0 0.0
        %2610 = vmatpush1.msra.mxu0 %v2572
        %2611 = vmatprep.subr.mxu0 0.0
        %2612 = vmatpush1.msra.mxu0 %v2573
        %2613 = vmatprep.subr.mxu0 0.0
        %2614 = vmatpush1.msra.mxu0 %v2574
        %2615 = vmatprep.subr.mxu0 0.0
        %2616 = vmatpush1.msra.mxu0 %v2575
        %2617 = vmatprep.subr.mxu0 0.0
        %2618 = vmatpush1.msra.mxu0 %v2576
        %2619 = vmatprep.subr.mxu0 0.0
        %2620 = vmatpush1.msra.mxu0 %v2577
        %2621 = vmatprep.subr.mxu0 0.0
        %2622 = vmatpush1.msra.mxu0 %v2578
        %2623 = vmatprep.subr.mxu0 0.0
        %2624 = vmatpush1.msra.mxu0 %v2579
        %2625 = vmatprep.subr.mxu0 0.0
        %2626 = vmatpush1.msra.mxu0 %v2580
        %2627 = vmatprep.subr.mxu0 0.0
        %2628 = vmatpush1.msra.mxu0 %v2581
        %2629 = vmatprep.subr.mxu0 0.0
        %2630 = vmatpush1.msra.mxu0 %v2582
        %2631 = vmatprep.subr.mxu0 0.0
        %2632 = vmatpush1.msra.mxu0 %v2583
        %2633 = vmatprep.subr.mxu0 0.0
        %2634 = vmatpush1.msra.mxu0 %v2584
        %2635 = vmatprep.subr.mxu0 0.0
        %2636 = vmatpush1.msra.mxu0 %v2585
        %2637 = vmatprep.subr.mxu0 0.0
        %2638 = vmatpush1.msra.mxu0 %v2586
        %2639 = vmatprep.subr.mxu0 0.0
        %2640 = vmatpush1.msra.mxu0 %v2587
        %2641 = vmatprep.subr.mxu0 0.0
        %2642 = vmatpush1.msra.mxu0 %v2588
        %2643 = vmatprep.subr.mxu0 0.0
        %2644 = vmatpush1.msra.mxu0 %v2589
        %2645 = vmatprep.subr.mxu0 0.0
        %2646 = vmatpush1.msra.mxu0 %v2590
        %2647 = vmatprep.subr.mxu0 0.0
        %2648 = vmatpush1.msra.mxu0 %v2591
        %2649 = vmatprep.subr.mxu0 0.0
        %2650 = vmatpush1.msra.mxu0 %v2592
        %2651 = vmatprep.subr.mxu0 0.0
        %2652 = vmatpush1.msra.mxu0 %v2593
        %2653 = vmatprep.subr.mxu0 0.0
        %2654 = vmatpush1.msra.mxu0 %v2594
        %2655 = vmatprep.subr.mxu0 0.0
        %2656 = vmatpush1.msra.mxu0 %v2595
        %2657 = vmatprep.subr.mxu0 0.0
        %2658 = vmatpush1.msra.mxu0 %v2596
        %2659 = vmatprep.subr.mxu0 0.0
        %2660 = vmatpush1.msra.mxu0 %v2597
        %2661 = vmatprep.subr.mxu0 0.0
        %2662 = vmatpush1.msra.mxu0 %v2598
        %2663 = vmatprep.mubr.f32.mxu0 %v281
        %2664 = vmatmul.mubr.f32.gmra.mrb[0].mxu0 %v280
        %v2665 = vpop.f32.mrb[0].mxu0
        %v2666 = vadd.f32 0.0, %v2665
        %v2667 = vpop.f32.mrb[0].mxu0
        %2668 = vmatprep.mubr.f32.mxu0 %v283
        %2669 = vmatmul.mubr.f32.gmra.mrb[0].mxu0 %v282
        %v2670 = vpop.f32.mrb[0].mxu0
        %v2671 = vadd.f32 0.0, %v2670
        %v2672 = vpop.f32.mrb[0].mxu0
        %2673 = vmatprep.mubr.f32.mxu0 %v285
        %2674 = vmatmul.mubr.f32.gmra.mrb[0].mxu0 %v284
        %v2675 = vpop.f32.mrb[0].mxu0
        %v2676 = vadd.f32 0.0, %v2675
        %v2677 = vpop.f32.mrb[0].mxu0
        %2678 = vmatprep.mubr.f32.mxu0 %v287
        %2679 = vmatmul.mubr.f32.gmra.mrb[0].mxu0 %v286
        %v2680 = vpop.f32.mrb[0].mxu0
        %v2681 = vadd.f32 0.0, %v2680
        %v2682 = vpop.f32.mrb[0].mxu0
        %2683 = vdwg.mxu0
        %2684 = vxpose.xlu0.b32.start [1/16] %v2567, 128
        %2685 = vxpose.xlu0.b32.cont [2/16] %v2568, 128
        %2686 = vxpose.xlu0.b32.cont [3/16] %v2569, 128
        %2687 = vxpose.xlu0.b32.cont [4/16] %v2570, 128
        %2688 = vxpose.xlu0.b32.cont [5/16] %v2571, 128
        %2689 = vxpose.xlu0.b32.cont [6/16] %v2572, 128
        %2690 = vxpose.xlu0.b32.cont [7/16] %v2573, 128
        %2691 = vxpose.xlu0.b32.cont [8/16] %v2574, 128
        %2692 = vxpose.xlu0.b32.cont [9/16] %v2575, 128
        %2693 = vxpose.xlu0.b32.cont [10/16] %v2576, 128
        %2694 = vxpose.xlu0.b32.cont [11/16] %v2577, 128
        %2695 = vxpose.xlu0.b32.cont [12/16] %v2578, 128
        %2696 = vxpose.xlu0.b32.cont [13/16] %v2579, 128
        %2697 = vxpose.xlu0.b32.cont [14/16] %v2580, 128
        %2698 = vxpose.xlu0.b32.cont [15/16] %v2581, 128
        %2699 = vxpose.xlu0.b32.end [16/16] %v2582, 128
        %v2700 = vpop.trf.xlu0
        %v2701 = vpop.trf.xlu0
        %v2702 = vpop.trf.xlu0
        %v2703 = vpop.trf.xlu0
        %v2704 = vpop.trf.xlu0
        %v2705 = vpop.trf.xlu0
        %v2706 = vpop.trf.xlu0
        %v2707 = vpop.trf.xlu0
        %v2708 = vpop.trf.xlu0
        %v2709 = vpop.trf.xlu0
        %v2710 = vpop.trf.xlu0
        %v2711 = vpop.trf.xlu0
        %v2712 = vpop.trf.xlu0
        %v2713 = vpop.trf.xlu0
        %v2714 = vpop.trf.xlu0
        %v2715 = vpop.trf.xlu0
        %2716 = vxpose.xlu0.b32.start [1/16] %v2583, 128
        %2717 = vxpose.xlu0.b32.cont [2/16] %v2584, 128
        %2718 = vxpose.xlu0.b32.cont [3/16] %v2585, 128
        %2719 = vxpose.xlu0.b32.cont [4/16] %v2586, 128
        %2720 = vxpose.xlu0.b32.cont [5/16] %v2587, 128
        %2721 = vxpose.xlu0.b32.cont [6/16] %v2588, 128
        %2722 = vxpose.xlu0.b32.cont [7/16] %v2589, 128
        %2723 = vxpose.xlu0.b32.cont [8/16] %v2590, 128
        %2724 = vxpose.xlu0.b32.cont [9/16] %v2591, 128
        %2725 = vxpose.xlu0.b32.cont [10/16] %v2592, 128
        %2726 = vxpose.xlu0.b32.cont [11/16] %v2593, 128
        %2727 = vxpose.xlu0.b32.cont [12/16] %v2594, 128
        %2728 = vxpose.xlu0.b32.cont [13/16] %v2595, 128
        %2729 = vxpose.xlu0.b32.cont [14/16] %v2596, 128
        %2730 = vxpose.xlu0.b32.cont [15/16] %v2597, 128
        %2731 = vxpose.xlu0.b32.end [16/16] %v2598, 128
        %v2732 = vpop.trf.xlu0
        %v2733 = vpop.trf.xlu0
        %v2734 = vpop.trf.xlu0
        %v2735 = vpop.trf.xlu0
        %v2736 = vpop.trf.xlu0
        %v2737 = vpop.trf.xlu0
        %v2738 = vpop.trf.xlu0
        %v2739 = vpop.trf.xlu0
        %v2740 = vpop.trf.xlu0
        %v2741 = vpop.trf.xlu0
        %v2742 = vpop.trf.xlu0
        %v2743 = vpop.trf.xlu0
        %v2744 = vpop.trf.xlu0
        %v2745 = vpop.trf.xlu0
        %v2746 = vpop.trf.xlu0
        %v2747 = vpop.trf.xlu0
        %2748 = vmatprep.subr.mxu0 0.0
        %2749 = vmatpush1.msra.mxu0 %v2567
        %2750 = vmatprep.subr.mxu0 0.0
        %2751 = vmatpush1.msra.mxu0 %v2568
        %2752 = vmatprep.subr.mxu0 0.0
        %2753 = vmatpush1.msra.mxu0 %v2569
        %2754 = vmatprep.subr.mxu0 0.0
        %2755 = vmatpush1.msra.mxu0 %v2570
        %2756 = vmatprep.subr.mxu0 0.0
        %2757 = vmatpush1.msra.mxu0 %v2571
        %2758 = vmatprep.subr.mxu0 0.0
        %2759 = vmatpush1.msra.mxu0 %v2572
        %2760 = vmatprep.subr.mxu0 0.0
        %2761 = vmatpush1.msra.mxu0 %v2573
        %2762 = vmatprep.subr.mxu0 0.0
        %2763 = vmatpush1.msra.mxu0 %v2574
        %2764 = vmatprep.subr.mxu0 0.0
        %2765 = vmatpush1.msra.mxu0 %v2575
        %2766 = vmatprep.subr.mxu0 0.0
        %2767 = vmatpush1.msra.mxu0 %v2576
        %2768 = vmatprep.subr.mxu0 0.0
        %2769 = vmatpush1.msra.mxu0 %v2577
        %2770 = vmatprep.subr.mxu0 0.0
        %2771 = vmatpush1.msra.mxu0 %v2578
        %2772 = vmatprep.subr.mxu0 0.0
        %2773 = vmatpush1.msra.mxu0 %v2579
        %2774 = vmatprep.subr.mxu0 0.0
        %2775 = vmatpush1.msra.mxu0 %v2580
        %2776 = vmatprep.subr.mxu0 0.0
        %2777 = vmatpush1.msra.mxu0 %v2581
        %2778 = vmatprep.subr.mxu0 0.0
        %2779 = vmatpush1.msra.mxu0 %v2582
        %2780 = vmatprep.subr.mxu0 0.0
        %2781 = vmatpush1.msra.mxu0 %v2583
        %2782 = vmatprep.subr.mxu0 0.0
        %2783 = vmatpush1.msra.mxu0 %v2584
        %2784 = vmatprep.subr.mxu0 0.0
        %2785 = vmatpush1.msra.mxu0 %v2585
        %2786 = vmatprep.subr.mxu0 0.0
        %2787 = vmatpush1.msra.mxu0 %v2586
        %2788 = vmatprep.subr.mxu0 0.0
        %2789 = vmatpush1.msra.mxu0 %v2587
        %2790 = vmatprep.subr.mxu0 0.0
        %2791 = vmatpush1.msra.mxu0 %v2588
        %2792 = vmatprep.subr.mxu0 0.0
        %2793 = vmatpush1.msra.mxu0 %v2589
        %2794 = vmatprep.subr.mxu0 0.0
        %2795 = vmatpush1.msra.mxu0 %v2590
        %2796 = vmatprep.subr.mxu0 0.0
        %2797 = vmatpush1.msra.mxu0 %v2591
        %2798 = vmatprep.subr.mxu0 0.0
        %2799 = vmatpush1.msra.mxu0 %v2592
        %2800 = vmatprep.subr.mxu0 0.0
        %2801 = vmatpush1.msra.mxu0 %v2593
        %2802 = vmatprep.subr.mxu0 0.0
        %2803 = vmatpush1.msra.mxu0 %v2594
        %2804 = vmatprep.subr.mxu0 0.0
        %2805 = vmatpush1.msra.mxu0 %v2595
        %2806 = vmatprep.subr.mxu0 0.0
        %2807 = vmatpush1.msra.mxu0 %v2596
        %2808 = vmatprep.subr.mxu0 0.0
        %2809 = vmatpush1.msra.mxu0 %v2597
        %2810 = vmatprep.subr.mxu0 0.0
        %2811 = vmatpush1.msra.mxu0 %v2598
        %2812 = vmatprep.mubr.f32.mxu0 %v2732
        %2813 = vmatmul.mubr.f32.gmra.mrb[0].mxu0 %v2700
        %v2814 = vpop.f32.mrb[0].mxu0
        %v2815 = vadd.f32 0.0, %v2814
        %v2816 = vpop.f32.mrb[0].mxu0
        %2817 = vmatprep.mubr.f32.mxu0 %v2733
        %2818 = vmatmul.mubr.f32.gmra.mrb[0].mxu0 %v2701
        %v2819 = vpop.f32.mrb[0].mxu0
        %v2820 = vadd.f32 0.0, %v2819
        %v2821 = vpop.f32.mrb[0].mxu0
        %2822 = vdwg.mxu0
        %v2824 = vsel %vm673, %v1808, 0
        %v2827 = vsel %vm673, %v1809, 0
        %v2830 = vsel %vm673, %v1810, 0
        %v2833 = vsel %vm673, %v1811, 0
        %2835 = vmatprep.subr.mxu0 0.0
        %2836 = vmatpush1.msra.mxu0 %v2815
        %2837 = vmatprep.subr.mxu0 0.0
        %2838 = vmatpush1.msra.mxu0 %v2820
        %2839 = vmatprep.subr.mxu0 0.0
        %2840 = vmatpush1.msra.mxu0 0.0
        %2841 = vmatprep.subr.mxu0 0.0
        %2842 = vmatpush1.msra.mxu0 0.0
        %2843 = vmatprep.subr.mxu0 0.0
        %2844 = vmatpush1.msra.mxu0 0.0
        %2845 = vmatprep.subr.mxu0 0.0
        %2846 = vmatpush1.msra.mxu0 0.0
        %2847 = vmatprep.subr.mxu0 0.0
        %2848 = vmatpush1.msra.mxu0 0.0
        %2849 = vmatprep.subr.mxu0 0.0
        %2850 = vmatpush1.msra.mxu0 0.0
        %2851 = vmatprep.subr.mxu0 0.0
        %2852 = vmatpush1.msra.mxu0 0.0
        %2853 = vmatprep.subr.mxu0 0.0
        %2854 = vmatpush1.msra.mxu0 0.0
        %2855 = vmatprep.subr.mxu0 0.0
        %2856 = vmatpush1.msra.mxu0 0.0
        %2857 = vmatprep.subr.mxu0 0.0
        %2858 = vmatpush1.msra.mxu0 0.0
        %2859 = vmatprep.subr.mxu0 0.0
        %2860 = vmatpush1.msra.mxu0 0.0
        %2861 = vmatprep.subr.mxu0 0.0
        %2862 = vmatpush1.msra.mxu0 0.0
        %2863 = vmatprep.subr.mxu0 0.0
        %2864 = vmatpush1.msra.mxu0 0.0
        %2865 = vmatprep.subr.mxu0 0.0
        %2866 = vmatpush1.msra.mxu0 0.0
        %2867 = vmatprep.subr.mxu0 0.0
        %2868 = vmatpush1.msra.mxu0 0.0
        %2869 = vmatprep.subr.mxu0 0.0
        %2870 = vmatpush1.msra.mxu0 0.0
        %2871 = vmatprep.subr.mxu0 0.0
        %2872 = vmatpush1.msra.mxu0 0.0
        %2873 = vmatprep.subr.mxu0 0.0
        %2874 = vmatpush1.msra.mxu0 0.0
        %2875 = vmatprep.subr.mxu0 0.0
        %2876 = vmatpush1.msra.mxu0 0.0
        %2877 = vmatprep.subr.mxu0 0.0
        %2878 = vmatpush1.msra.mxu0 0.0
        %2879 = vmatprep.subr.mxu0 0.0
        %2880 = vmatpush1.msra.mxu0 0.0
        %2881 = vmatprep.subr.mxu0 0.0
        %2882 = vmatpush1.msra.mxu0 0.0
        %2883 = vmatprep.subr.mxu0 0.0
        %2884 = vmatpush1.msra.mxu0 0.0
        %2885 = vmatprep.subr.mxu0 0.0
        %2886 = vmatpush1.msra.mxu0 0.0
        %2887 = vmatprep.subr.mxu0 0.0
        %2888 = vmatpush1.msra.mxu0 0.0
        %2889 = vmatprep.subr.mxu0 0.0
        %2890 = vmatpush1.msra.mxu0 0.0
        %2891 = vmatprep.subr.mxu0 0.0
        %2892 = vmatpush1.msra.mxu0 0.0
        %2893 = vmatprep.subr.mxu0 0.0
        %2894 = vmatpush1.msra.mxu0 0.0
        %2895 = vmatprep.subr.mxu0 0.0
        %2896 = vmatpush1.msra.mxu0 0.0
        %2897 = vmatprep.subr.mxu0 0.0
        %2898 = vmatpush1.msra.mxu0 0.0
        %2899 = vmatprep.mubr.f32.mxu0 0.0
        %2900 = vmatmul.mubr.f32.gmra.mrb[0].mxu0 %v2824
        %v2901 = vpop.f32.mrb[0].mxu0
        %v2902 = vadd.f32 0.0, %v2901
        %v2903 = vpop.f32.mrb[0].mxu0
        %2904 = vmatprep.mubr.f32.mxu0 0.0
        %2905 = vmatmul.mubr.f32.gmra.mrb[0].mxu0 %v2827
        %v2906 = vpop.f32.mrb[0].mxu0
        %v2907 = vadd.f32 0.0, %v2906
        %v2908 = vpop.f32.mrb[0].mxu0
        %2909 = vmatprep.mubr.f32.mxu0 0.0
        %2910 = vmatmul.mubr.f32.gmra.mrb[0].mxu0 %v2830
        %v2911 = vpop.f32.mrb[0].mxu0
        %v2912 = vadd.f32 0.0, %v2911
        %v2913 = vpop.f32.mrb[0].mxu0
        %2914 = vmatprep.mubr.f32.mxu0 0.0
        %2915 = vmatmul.mubr.f32.gmra.mrb[0].mxu0 %v2833
        %v2916 = vpop.f32.mrb[0].mxu0
        %v2917 = vadd.f32 0.0, %v2916
        %v2918 = vpop.f32.mrb[0].mxu0
        %2919 = vdwg.mxu0
        %v2920 = vrcp.pop %v2902
        %v2921 = vmul.f32 %v2666, %v2920
        %v2922 = vrcp.pop %v2907
        %v2923 = vmul.f32 %v2671, %v2922
        %v2924 = vrcp.pop %v2912
        %v2925 = vmul.f32 %v2676, %v2924
        %v2926 = vrcp.pop %v2917
        %v2927 = vmul.f32 %v2681, %v2926
        %v2928 = vadd.f32 %v2921, 1e-06
        %v2929 = vadd.f32 %v2923, 1e-06
        %v2930 = vadd.f32 %v2925, 1e-06
        %v2931 = vadd.f32 %v2927, 1e-06
        %v2932 = vmul.f32 %v1808, %v2928
        %v2933 = vmul.f32 %v1809, %v2929
        %v2934 = vmul.f32 %v1810, %v2930
        %v2935 = vmul.f32 %v1811, %v2931
        %2936 = vmatprep.subr.mxu0 0.0
        %2937 = vmatpush1.msra.mxu0 %v2932
        %2938 = vmatprep.subr.mxu0 0.0
        %2939 = vmatpush1.msra.mxu0 %v2933
        %2940 = vmatprep.subr.mxu0 0.0
        %2941 = vmatpush1.msra.mxu0 %v2934
        %2942 = vmatprep.subr.mxu0 0.0
        %2943 = vmatpush1.msra.mxu0 %v2935
        %2944 = vmatprep.subr.mxu0 0.0
        %2945 = vmatpush1.msra.mxu0 0.0
        %2946 = vmatprep.subr.mxu0 0.0
        %2947 = vmatpush1.msra.mxu0 0.0
        %2948 = vmatprep.subr.mxu0 0.0
        %2949 = vmatpush1.msra.mxu0 0.0
        %2950 = vmatprep.subr.mxu0 0.0
        %2951 = vmatpush1.msra.mxu0 0.0
        %2952 = vmatprep.subr.mxu0 0.0
        %2953 = vmatpush1.msra.mxu0 0.0
        %2954 = vmatprep.subr.mxu0 0.0
        %2955 = vmatpush1.msra.mxu0 0.0
        %2956 = vmatprep.subr.mxu0 0.0
        %2957 = vmatpush1.msra.mxu0 0.0
        %2958 = vmatprep.subr.mxu0 0.0
        %2959 = vmatpush1.msra.mxu0 0.0
        %2960 = vmatprep.subr.mxu0 0.0
        %2961 = vmatpush1.msra.mxu0 0.0
        %2962 = vmatprep.subr.mxu0 0.0
        %2963 = vmatpush1.msra.mxu0 0.0
        %2964 = vmatprep.subr.mxu0 0.0
        %2965 = vmatpush1.msra.mxu0 0.0
        %2966 = vmatprep.subr.mxu0 0.0
        %2967 = vmatpush1.msra.mxu0 0.0
        %2968 = vmatprep.subr.mxu0 0.0
        %2969 = vmatpush1.msra.mxu0 0.0
        %2970 = vmatprep.subr.mxu0 0.0
        %2971 = vmatpush1.msra.mxu0 0.0
        %2972 = vmatprep.subr.mxu0 0.0
        %2973 = vmatpush1.msra.mxu0 0.0
        %2974 = vmatprep.subr.mxu0 0.0
        %2975 = vmatpush1.msra.mxu0 0.0
        %2976 = vmatprep.subr.mxu0 0.0
        %2977 = vmatpush1.msra.mxu0 0.0
        %2978 = vmatprep.subr.mxu0 0.0
        %2979 = vmatpush1.msra.mxu0 0.0
        %2980 = vmatprep.subr.mxu0 0.0
        %2981 = vmatpush1.msra.mxu0 0.0
        %2982 = vmatprep.subr.mxu0 0.0
        %2983 = vmatpush1.msra.mxu0 0.0
        %2984 = vmatprep.subr.mxu0 0.0
        %2985 = vmatpush1.msra.mxu0 0.0
        %2986 = vmatprep.subr.mxu0 0.0
        %2987 = vmatpush1.msra.mxu0 0.0
        %2988 = vmatprep.subr.mxu0 0.0
        %2989 = vmatpush1.msra.mxu0 0.0
        %2990 = vmatprep.subr.mxu0 0.0
        %2991 = vmatpush1.msra.mxu0 0.0
        %2992 = vmatprep.subr.mxu0 0.0
        %2993 = vmatpush1.msra.mxu0 0.0
        %2994 = vmatprep.subr.mxu0 0.0
        %2995 = vmatpush1.msra.mxu0 0.0
        %2996 = vmatprep.subr.mxu0 0.0
        %2997 = vmatpush1.msra.mxu0 0.0
        %2998 = vmatprep.subr.mxu0 0.0
        %2999 = vmatpush1.msra.mxu0 0.0
        %3000 = vmatprep.mubr.f32.mxu0 0.0
        %3001 = vmatmul.mubr.f32.gmra.mrb[0].mxu0 %v353
        %v3002 = vpop.f32.mrb[0].mxu0
        %v3003 = vadd.f32 0.0, %v3002
        %v3004 = vpop.f32.mrb[0].mxu0
        %3005 = vmatprep.mubr.f32.mxu0 0.0
        %3006 = vmatmul.mubr.f32.gmra.mrb[0].mxu0 %v356
        %v3007 = vpop.f32.mrb[0].mxu0
        %v3008 = vadd.f32 0.0, %v3007
        %v3009 = vpop.f32.mrb[0].mxu0
        %3010 = vmatprep.mubr.f32.mxu0 0.0
        %3011 = vmatmul.mubr.f32.gmra.mrb[0].mxu0 %v359
        %v3012 = vpop.f32.mrb[0].mxu0
        %v3013 = vadd.f32 0.0, %v3012
        %v3014 = vpop.f32.mrb[0].mxu0
        %3015 = vmatprep.mubr.f32.mxu0 0.0
        %3016 = vmatmul.mubr.f32.gmra.mrb[0].mxu0 %v362
        %v3017 = vpop.f32.mrb[0].mxu0
        %v3018 = vadd.f32 0.0, %v3017
        %v3019 = vpop.f32.mrb[0].mxu0
        %3020 = vmatprep.mubr.f32.mxu0 0.0
        %3021 = vmatmul.mubr.f32.gmra.mrb[0].mxu0 %v365
        %v3022 = vpop.f32.mrb[0].mxu0
        %v3023 = vadd.f32 0.0, %v3022
        %v3024 = vpop.f32.mrb[0].mxu0
        %3025 = vmatprep.mubr.f32.mxu0 0.0
        %3026 = vmatmul.mubr.f32.gmra.mrb[0].mxu0 %v368
        %v3027 = vpop.f32.mrb[0].mxu0
        %v3028 = vadd.f32 0.0, %v3027
        %v3029 = vpop.f32.mrb[0].mxu0
        %3030 = vmatprep.mubr.f32.mxu0 0.0
        %3031 = vmatmul.mubr.f32.gmra.mrb[0].mxu0 %v371
        %v3032 = vpop.f32.mrb[0].mxu0
        %v3033 = vadd.f32 0.0, %v3032
        %v3034 = vpop.f32.mrb[0].mxu0
        %3035 = vmatprep.mubr.f32.mxu0 0.0
        %3036 = vmatmul.mubr.f32.gmra.mrb[0].mxu0 %v374
        %v3037 = vpop.f32.mrb[0].mxu0
        %v3038 = vadd.f32 0.0, %v3037
        %v3039 = vpop.f32.mrb[0].mxu0
        %3040 = vmatprep.mubr.f32.mxu0 0.0
        %3041 = vmatmul.mubr.f32.gmra.mrb[0].mxu0 %v377
        %v3042 = vpop.f32.mrb[0].mxu0
        %v3043 = vadd.f32 0.0, %v3042
        %v3044 = vpop.f32.mrb[0].mxu0
        %3045 = vmatprep.mubr.f32.mxu0 0.0
        %3046 = vmatmul.mubr.f32.gmra.mrb[0].mxu0 %v380
        %v3047 = vpop.f32.mrb[0].mxu0
        %v3048 = vadd.f32 0.0, %v3047
        %v3049 = vpop.f32.mrb[0].mxu0
        %3050 = vmatprep.mubr.f32.mxu0 0.0
        %3051 = vmatmul.mubr.f32.gmra.mrb[0].mxu0 %v383
        %v3052 = vpop.f32.mrb[0].mxu0
        %v3053 = vadd.f32 0.0, %v3052
        %v3054 = vpop.f32.mrb[0].mxu0
        %3055 = vmatprep.mubr.f32.mxu0 0.0
        %3056 = vmatmul.mubr.f32.gmra.mrb[0].mxu0 %v386
        %v3057 = vpop.f32.mrb[0].mxu0
        %v3058 = vadd.f32 0.0, %v3057
        %v3059 = vpop.f32.mrb[0].mxu0
        %3060 = vmatprep.mubr.f32.mxu0 0.0
        %3061 = vmatmul.mubr.f32.gmra.mrb[0].mxu0 %v389
        %v3062 = vpop.f32.mrb[0].mxu0
        %v3063 = vadd.f32 0.0, %v3062
        %v3064 = vpop.f32.mrb[0].mxu0
        %3065 = vmatprep.mubr.f32.mxu0 0.0
        %3066 = vmatmul.mubr.f32.gmra.mrb[0].mxu0 %v392
        %v3067 = vpop.f32.mrb[0].mxu0
        %v3068 = vadd.f32 0.0, %v3067
        %v3069 = vpop.f32.mrb[0].mxu0
        %3070 = vmatprep.mubr.f32.mxu0 0.0
        %3071 = vmatmul.mubr.f32.gmra.mrb[0].mxu0 %v395
        %v3072 = vpop.f32.mrb[0].mxu0
        %v3073 = vadd.f32 0.0, %v3072
        %v3074 = vpop.f32.mrb[0].mxu0
        %3075 = vmatprep.mubr.f32.mxu0 0.0
        %3076 = vmatmul.mubr.f32.gmra.mrb[0].mxu0 %v398
        %v3077 = vpop.f32.mrb[0].mxu0
        %v3078 = vadd.f32 0.0, %v3077
        %v3079 = vpop.f32.mrb[0].mxu0
        %3080 = vmatprep.mubr.f32.mxu0 0.0
        %3081 = vmatmul.mubr.f32.gmra.mrb[0].mxu0 %v401
        %v3082 = vpop.f32.mrb[0].mxu0
        %v3083 = vadd.f32 0.0, %v3082
        %v3084 = vpop.f32.mrb[0].mxu0
        %3085 = vmatprep.mubr.f32.mxu0 0.0
        %3086 = vmatmul.mubr.f32.gmra.mrb[0].mxu0 %v404
        %v3087 = vpop.f32.mrb[0].mxu0
        %v3088 = vadd.f32 0.0, %v3087
        %v3089 = vpop.f32.mrb[0].mxu0
        %3090 = vmatprep.mubr.f32.mxu0 0.0
        %3091 = vmatmul.mubr.f32.gmra.mrb[0].mxu0 %v407
        %v3092 = vpop.f32.mrb[0].mxu0
        %v3093 = vadd.f32 0.0, %v3092
        %v3094 = vpop.f32.mrb[0].mxu0
        %3095 = vmatprep.mubr.f32.mxu0 0.0
        %3096 = vmatmul.mubr.f32.gmra.mrb[0].mxu0 %v410
        %v3097 = vpop.f32.mrb[0].mxu0
        %v3098 = vadd.f32 0.0, %v3097
        %v3099 = vpop.f32.mrb[0].mxu0
        %3100 = vmatprep.mubr.f32.mxu0 0.0
        %3101 = vmatmul.mubr.f32.gmra.mrb[0].mxu0 %v413
        %v3102 = vpop.f32.mrb[0].mxu0
        %v3103 = vadd.f32 0.0, %v3102
        %v3104 = vpop.f32.mrb[0].mxu0
        %3105 = vmatprep.mubr.f32.mxu0 0.0
        %3106 = vmatmul.mubr.f32.gmra.mrb[0].mxu0 %v416
        %v3107 = vpop.f32.mrb[0].mxu0
        %v3108 = vadd.f32 0.0, %v3107
        %v3109 = vpop.f32.mrb[0].mxu0
        %3110 = vmatprep.mubr.f32.mxu0 0.0
        %3111 = vmatmul.mubr.f32.gmra.mrb[0].mxu0 %v419
        %v3112 = vpop.f32.mrb[0].mxu0
        %v3113 = vadd.f32 0.0, %v3112
        %v3114 = vpop.f32.mrb[0].mxu0
        %3115 = vmatprep.mubr.f32.mxu0 0.0
        %3116 = vmatmul.mubr.f32.gmra.mrb[0].mxu0 %v422
        %v3117 = vpop.f32.mrb[0].mxu0
        %v3118 = vadd.f32 0.0, %v3117
        %v3119 = vpop.f32.mrb[0].mxu0
        %3120 = vmatprep.mubr.f32.mxu0 0.0
        %3121 = vmatmul.mubr.f32.gmra.mrb[0].mxu0 %v425
        %v3122 = vpop.f32.mrb[0].mxu0
        %v3123 = vadd.f32 0.0, %v3122
        %v3124 = vpop.f32.mrb[0].mxu0
        %3125 = vmatprep.mubr.f32.mxu0 0.0
        %3126 = vmatmul.mubr.f32.gmra.mrb[0].mxu0 %v428
        %v3127 = vpop.f32.mrb[0].mxu0
        %v3128 = vadd.f32 0.0, %v3127
        %v3129 = vpop.f32.mrb[0].mxu0
        %3130 = vmatprep.mubr.f32.mxu0 0.0
        %3131 = vmatmul.mubr.f32.gmra.mrb[0].mxu0 %v431
        %v3132 = vpop.f32.mrb[0].mxu0
        %v3133 = vadd.f32 0.0, %v3132
        %v3134 = vpop.f32.mrb[0].mxu0
        %3135 = vmatprep.mubr.f32.mxu0 0.0
        %3136 = vmatmul.mubr.f32.gmra.mrb[0].mxu0 %v434
        %v3137 = vpop.f32.mrb[0].mxu0
        %v3138 = vadd.f32 0.0, %v3137
        %v3139 = vpop.f32.mrb[0].mxu0
        %3140 = vmatprep.mubr.f32.mxu0 0.0
        %3141 = vmatmul.mubr.f32.gmra.mrb[0].mxu0 %v437
        %v3142 = vpop.f32.mrb[0].mxu0
        %v3143 = vadd.f32 0.0, %v3142
        %v3144 = vpop.f32.mrb[0].mxu0
        %3145 = vmatprep.mubr.f32.mxu0 0.0
        %3146 = vmatmul.mubr.f32.gmra.mrb[0].mxu0 %v440
        %v3147 = vpop.f32.mrb[0].mxu0
        %v3148 = vadd.f32 0.0, %v3147
        %v3149 = vpop.f32.mrb[0].mxu0
        %3150 = vmatprep.mubr.f32.mxu0 0.0
        %3151 = vmatmul.mubr.f32.gmra.mrb[0].mxu0 %v443
        %v3152 = vpop.f32.mrb[0].mxu0
        %v3153 = vadd.f32 0.0, %v3152
        %v3154 = vpop.f32.mrb[0].mxu0
        %3155 = vmatprep.mubr.f32.mxu0 0.0
        %3156 = vmatmul.mubr.f32.gmra.mrb[0].mxu0 %v446
        %v3157 = vpop.f32.mrb[0].mxu0
        %v3158 = vadd.f32 0.0, %v3157
        %v3159 = vpop.f32.mrb[0].mxu0
        %3160 = vdwg.mxu0
        %3161 = vxpose.xlu0.b32.start [1/16] %v2932, 128
        %3162 = vxpose.xlu0.b32.cont [2/16] %v2933, 128
        %3163 = vxpose.xlu0.b32.cont [3/16] %v2934, 128
        %3164 = vxpose.xlu0.b32.cont [4/16] %v2935, 128
        %3165 = vxpose.xlu0.b32.cont [5/16] 0.0, 128
        %3166 = vxpose.xlu0.b32.cont [6/16] 0.0, 128
        %3167 = vxpose.xlu0.b32.cont [7/16] 0.0, 128
        %3168 = vxpose.xlu0.b32.cont [8/16] 0.0, 128
        %3169 = vxpose.xlu0.b32.cont [9/16] 0.0, 128
        %3170 = vxpose.xlu0.b32.cont [10/16] 0.0, 128
        %3171 = vxpose.xlu0.b32.cont [11/16] 0.0, 128
        %3172 = vxpose.xlu0.b32.cont [12/16] 0.0, 128
        %3173 = vxpose.xlu0.b32.cont [13/16] 0.0, 128
        %3174 = vxpose.xlu0.b32.cont [14/16] 0.0, 128
        %3175 = vxpose.xlu0.b32.cont [15/16] 0.0, 128
        %3176 = vxpose.xlu0.b32.end [16/16] 0.0, 128
        %v3177 = vpop.trf.xlu0
        %v3178 = vpop.trf.xlu0
        %v3179 = vpop.trf.xlu0
        %v3180 = vpop.trf.xlu0
        %v3181 = vpop.trf.xlu0
        %v3182 = vpop.trf.xlu0
        %v3183 = vpop.trf.xlu0
        %v3184 = vpop.trf.xlu0
        %v3185 = vpop.trf.xlu0
        %v3186 = vpop.trf.xlu0
        %v3187 = vpop.trf.xlu0
        %v3188 = vpop.trf.xlu0
        %v3189 = vpop.trf.xlu0
        %v3190 = vpop.trf.xlu0
        %v3191 = vpop.trf.xlu0
        %v3192 = vpop.trf.xlu0
        %v3194 = vsel %vm198, %v3177, 0
        %v3197 = vsel %vm198, %v3178, 0
        %3199 = vmatprep.subr.mxu0 0.0
        %3200 = vmatpush1.msra.mxu0 %v2932
        %3201 = vmatprep.subr.mxu0 0.0
        %3202 = vmatpush1.msra.mxu0 %v2933
        %3203 = vmatprep.subr.mxu0 0.0
        %3204 = vmatpush1.msra.mxu0 %v2934
        %3205 = vmatprep.subr.mxu0 0.0
        %3206 = vmatpush1.msra.mxu0 %v2935
        %3207 = vmatprep.subr.mxu0 0.0
        %3208 = vmatpush1.msra.mxu0 0.0
        %3209 = vmatprep.subr.mxu0 0.0
        %3210 = vmatpush1.msra.mxu0 0.0
        %3211 = vmatprep.subr.mxu0 0.0
        %3212 = vmatpush1.msra.mxu0 0.0
        %3213 = vmatprep.subr.mxu0 0.0
        %3214 = vmatpush1.msra.mxu0 0.0
        %3215 = vmatprep.subr.mxu0 0.0
        %3216 = vmatpush1.msra.mxu0 0.0
        %3217 = vmatprep.subr.mxu0 0.0
        %3218 = vmatpush1.msra.mxu0 0.0
        %3219 = vmatprep.subr.mxu0 0.0
        %3220 = vmatpush1.msra.mxu0 0.0
        %3221 = vmatprep.subr.mxu0 0.0
        %3222 = vmatpush1.msra.mxu0 0.0
        %3223 = vmatprep.subr.mxu0 0.0
        %3224 = vmatpush1.msra.mxu0 0.0
        %3225 = vmatprep.subr.mxu0 0.0
        %3226 = vmatpush1.msra.mxu0 0.0
        %3227 = vmatprep.subr.mxu0 0.0
        %3228 = vmatpush1.msra.mxu0 0.0
        %3229 = vmatprep.subr.mxu0 0.0
        %3230 = vmatpush1.msra.mxu0 0.0
        %3231 = vmatprep.subr.mxu0 0.0
        %3232 = vmatpush1.msra.mxu0 0.0
        %3233 = vmatprep.subr.mxu0 0.0
        %3234 = vmatpush1.msra.mxu0 0.0
        %3235 = vmatprep.subr.mxu0 0.0
        %3236 = vmatpush1.msra.mxu0 0.0
        %3237 = vmatprep.subr.mxu0 0.0
        %3238 = vmatpush1.msra.mxu0 0.0
        %3239 = vmatprep.subr.mxu0 0.0
        %3240 = vmatpush1.msra.mxu0 0.0
        %3241 = vmatprep.subr.mxu0 0.0
        %3242 = vmatpush1.msra.mxu0 0.0
        %3243 = vmatprep.subr.mxu0 0.0
        %3244 = vmatpush1.msra.mxu0 0.0
        %3245 = vmatprep.subr.mxu0 0.0
        %3246 = vmatpush1.msra.mxu0 0.0
        %3247 = vmatprep.subr.mxu0 0.0
        %3248 = vmatpush1.msra.mxu0 0.0
        %3249 = vmatprep.subr.mxu0 0.0
        %3250 = vmatpush1.msra.mxu0 0.0
        %3251 = vmatprep.subr.mxu0 0.0
        %3252 = vmatpush1.msra.mxu0 0.0
        %3253 = vmatprep.subr.mxu0 0.0
        %3254 = vmatpush1.msra.mxu0 0.0
        %3255 = vmatprep.subr.mxu0 0.0
        %3256 = vmatpush1.msra.mxu0 0.0
        %3257 = vmatprep.subr.mxu0 0.0
        %3258 = vmatpush1.msra.mxu0 0.0
        %3259 = vmatprep.subr.mxu0 0.0
        %3260 = vmatpush1.msra.mxu0 0.0
        %3261 = vmatprep.subr.mxu0 0.0
        %3262 = vmatpush1.msra.mxu0 0.0
        %3263 = vmatprep.mubr.f32.mxu0 0.0
        %3264 = vmatmul.mubr.f32.gmra.mrb[0].mxu0 %v3194
        %v3265 = vpop.f32.mrb[0].mxu0
        %v3266 = vadd.f32 0.0, %v3265
        %v3267 = vpop.f32.mrb[0].mxu0
        %3268 = vmatprep.mubr.f32.mxu0 0.0
        %3269 = vmatmul.mubr.f32.gmra.mrb[0].mxu0 %v3197
        %v3270 = vpop.f32.mrb[0].mxu0
        %v3271 = vadd.f32 0.0, %v3270
        %v3272 = vpop.f32.mrb[0].mxu0
        %3273 = vdwg.mxu0
        %v3275 = vsel %vm673, %v2567, 0
        %v3278 = vsel %vm673, %v2568, 0
        %v3281 = vsel %vm673, %v2569, 0
        %v3284 = vsel %vm673, %v2570, 0
        %v3287 = vsel %vm673, %v2571, 0
        %v3290 = vsel %vm673, %v2572, 0
        %v3293 = vsel %vm673, %v2573, 0
        %v3296 = vsel %vm673, %v2574, 0
        %v3299 = vsel %vm673, %v2575, 0
        %v3302 = vsel %vm673, %v2576, 0
        %v3305 = vsel %vm673, %v2577, 0
        %v3308 = vsel %vm673, %v2578, 0
        %v3311 = vsel %vm673, %v2579, 0
        %v3314 = vsel %vm673, %v2580, 0
        %v3317 = vsel %vm673, %v2581, 0
        %v3320 = vsel %vm673, %v2582, 0
        %v3323 = vsel %vm673, %v2583, 0
        %v3326 = vsel %vm673, %v2584, 0
        %v3329 = vsel %vm673, %v2585, 0
        %v3332 = vsel %vm673, %v2586, 0
        %v3335 = vsel %vm673, %v2587, 0
        %v3338 = vsel %vm673, %v2588, 0
        %v3341 = vsel %vm673, %v2589, 0
        %v3344 = vsel %vm673, %v2590, 0
        %v3347 = vsel %vm673, %v2591, 0
        %v3350 = vsel %vm673, %v2592, 0
        %v3353 = vsel %vm673, %v2593, 0
        %v3356 = vsel %vm673, %v2594, 0
        %v3359 = vsel %vm673, %v2595, 0
        %v3362 = vsel %vm673, %v2596, 0
        %v3365 = vsel %vm673, %v2597, 0
        %v3368 = vsel %vm673, %v2598, 0
        %3370 = vmatprep.subr.mxu0 0.0
        %3371 = vmatpush1.msra.mxu0 %v3266
        %3372 = vmatprep.subr.mxu0 0.0
        %3373 = vmatpush1.msra.mxu0 %v3271
        %3374 = vmatprep.subr.mxu0 0.0
        %3375 = vmatpush1.msra.mxu0 0.0
        %3376 = vmatprep.subr.mxu0 0.0
        %3377 = vmatpush1.msra.mxu0 0.0
        %3378 = vmatprep.subr.mxu0 0.0
        %3379 = vmatpush1.msra.mxu0 0.0
        %3380 = vmatprep.subr.mxu0 0.0
        %3381 = vmatpush1.msra.mxu0 0.0
        %3382 = vmatprep.subr.mxu0 0.0
        %3383 = vmatpush1.msra.mxu0 0.0
        %3384 = vmatprep.subr.mxu0 0.0
        %3385 = vmatpush1.msra.mxu0 0.0
        %3386 = vmatprep.subr.mxu0 0.0
        %3387 = vmatpush1.msra.mxu0 0.0
        %3388 = vmatprep.subr.mxu0 0.0
        %3389 = vmatpush1.msra.mxu0 0.0
        %3390 = vmatprep.subr.mxu0 0.0
        %3391 = vmatpush1.msra.mxu0 0.0
        %3392 = vmatprep.subr.mxu0 0.0
        %3393 = vmatpush1.msra.mxu0 0.0
        %3394 = vmatprep.subr.mxu0 0.0
        %3395 = vmatpush1.msra.mxu0 0.0
        %3396 = vmatprep.subr.mxu0 0.0
        %3397 = vmatpush1.msra.mxu0 0.0
        %3398 = vmatprep.subr.mxu0 0.0
        %3399 = vmatpush1.msra.mxu0 0.0
        %3400 = vmatprep.subr.mxu0 0.0
        %3401 = vmatpush1.msra.mxu0 0.0
        %3402 = vmatprep.subr.mxu0 0.0
        %3403 = vmatpush1.msra.mxu0 0.0
        %3404 = vmatprep.subr.mxu0 0.0
        %3405 = vmatpush1.msra.mxu0 0.0
        %3406 = vmatprep.subr.mxu0 0.0
        %3407 = vmatpush1.msra.mxu0 0.0
        %3408 = vmatprep.subr.mxu0 0.0
        %3409 = vmatpush1.msra.mxu0 0.0
        %3410 = vmatprep.subr.mxu0 0.0
        %3411 = vmatpush1.msra.mxu0 0.0
        %3412 = vmatprep.subr.mxu0 0.0
        %3413 = vmatpush1.msra.mxu0 0.0
        %3414 = vmatprep.subr.mxu0 0.0
        %3415 = vmatpush1.msra.mxu0 0.0
        %3416 = vmatprep.subr.mxu0 0.0
        %3417 = vmatpush1.msra.mxu0 0.0
        %3418 = vmatprep.subr.mxu0 0.0
        %3419 = vmatpush1.msra.mxu0 0.0
        %3420 = vmatprep.subr.mxu0 0.0
        %3421 = vmatpush1.msra.mxu0 0.0
        %3422 = vmatprep.subr.mxu0 0.0
        %3423 = vmatpush1.msra.mxu0 0.0
        %3424 = vmatprep.subr.mxu0 0.0
        %3425 = vmatpush1.msra.mxu0 0.0
        %3426 = vmatprep.subr.mxu0 0.0
        %3427 = vmatpush1.msra.mxu0 0.0
        %3428 = vmatprep.subr.mxu0 0.0
        %3429 = vmatpush1.msra.mxu0 0.0
        %3430 = vmatprep.subr.mxu0 0.0
        %3431 = vmatpush1.msra.mxu0 0.0
        %3432 = vmatprep.subr.mxu0 0.0
        %3433 = vmatpush1.msra.mxu0 0.0
        %3434 = vmatprep.mubr.f32.mxu0 0.0
        %3435 = vmatmul.mubr.f32.gmra.mrb[0].mxu0 %v3275
        %v3436 = vpop.f32.mrb[0].mxu0
        %v3437 = vadd.f32 0.0, %v3436
        %v3438 = vpop.f32.mrb[0].mxu0
        %3439 = vmatprep.mubr.f32.mxu0 0.0
        %3440 = vmatmul.mubr.f32.gmra.mrb[0].mxu0 %v3278
        %v3441 = vpop.f32.mrb[0].mxu0
        %v3442 = vadd.f32 0.0, %v3441
        %v3443 = vpop.f32.mrb[0].mxu0
        %3444 = vmatprep.mubr.f32.mxu0 0.0
        %3445 = vmatmul.mubr.f32.gmra.mrb[0].mxu0 %v3281
        %v3446 = vpop.f32.mrb[0].mxu0
        %v3447 = vadd.f32 0.0, %v3446
        %v3448 = vpop.f32.mrb[0].mxu0
        %3449 = vmatprep.mubr.f32.mxu0 0.0
        %3450 = vmatmul.mubr.f32.gmra.mrb[0].mxu0 %v3284
        %v3451 = vpop.f32.mrb[0].mxu0
        %v3452 = vadd.f32 0.0, %v3451
        %v3453 = vpop.f32.mrb[0].mxu0
        %3454 = vmatprep.mubr.f32.mxu0 0.0
        %3455 = vmatmul.mubr.f32.gmra.mrb[0].mxu0 %v3287
        %v3456 = vpop.f32.mrb[0].mxu0
        %v3457 = vadd.f32 0.0, %v3456
        %v3458 = vpop.f32.mrb[0].mxu0
        %3459 = vmatprep.mubr.f32.mxu0 0.0
        %3460 = vmatmul.mubr.f32.gmra.mrb[0].mxu0 %v3290
        %v3461 = vpop.f32.mrb[0].mxu0
        %v3462 = vadd.f32 0.0, %v3461
        %v3463 = vpop.f32.mrb[0].mxu0
        %3464 = vmatprep.mubr.f32.mxu0 0.0
        %3465 = vmatmul.mubr.f32.gmra.mrb[0].mxu0 %v3293
        %v3466 = vpop.f32.mrb[0].mxu0
        %v3467 = vadd.f32 0.0, %v3466
        %v3468 = vpop.f32.mrb[0].mxu0
        %3469 = vmatprep.mubr.f32.mxu0 0.0
        %3470 = vmatmul.mubr.f32.gmra.mrb[0].mxu0 %v3296
        %v3471 = vpop.f32.mrb[0].mxu0
        %v3472 = vadd.f32 0.0, %v3471
        %v3473 = vpop.f32.mrb[0].mxu0
        %3474 = vmatprep.mubr.f32.mxu0 0.0
        %3475 = vmatmul.mubr.f32.gmra.mrb[0].mxu0 %v3299
        %v3476 = vpop.f32.mrb[0].mxu0
        %v3477 = vadd.f32 0.0, %v3476
        %v3478 = vpop.f32.mrb[0].mxu0
        %3479 = vmatprep.mubr.f32.mxu0 0.0
        %3480 = vmatmul.mubr.f32.gmra.mrb[0].mxu0 %v3302
        %v3481 = vpop.f32.mrb[0].mxu0
        %v3482 = vadd.f32 0.0, %v3481
        %v3483 = vpop.f32.mrb[0].mxu0
        %3484 = vmatprep.mubr.f32.mxu0 0.0
        %3485 = vmatmul.mubr.f32.gmra.mrb[0].mxu0 %v3305
        %v3486 = vpop.f32.mrb[0].mxu0
        %v3487 = vadd.f32 0.0, %v3486
        %v3488 = vpop.f32.mrb[0].mxu0
        %3489 = vmatprep.mubr.f32.mxu0 0.0
        %3490 = vmatmul.mubr.f32.gmra.mrb[0].mxu0 %v3308
        %v3491 = vpop.f32.mrb[0].mxu0
        %v3492 = vadd.f32 0.0, %v3491
        %v3493 = vpop.f32.mrb[0].mxu0
        %3494 = vmatprep.mubr.f32.mxu0 0.0
        %3495 = vmatmul.mubr.f32.gmra.mrb[0].mxu0 %v3311
        %v3496 = vpop.f32.mrb[0].mxu0
        %v3497 = vadd.f32 0.0, %v3496
        %v3498 = vpop.f32.mrb[0].mxu0
        %3499 = vmatprep.mubr.f32.mxu0 0.0
        %3500 = vmatmul.mubr.f32.gmra.mrb[0].mxu0 %v3314
        %v3501 = vpop.f32.mrb[0].mxu0
        %v3502 = vadd.f32 0.0, %v3501
        %v3503 = vpop.f32.mrb[0].mxu0
        %3504 = vmatprep.mubr.f32.mxu0 0.0
        %3505 = vmatmul.mubr.f32.gmra.mrb[0].mxu0 %v3317
        %v3506 = vpop.f32.mrb[0].mxu0
        %v3507 = vadd.f32 0.0, %v3506
        %v3508 = vpop.f32.mrb[0].mxu0
        %3509 = vmatprep.mubr.f32.mxu0 0.0
        %3510 = vmatmul.mubr.f32.gmra.mrb[0].mxu0 %v3320
        %v3511 = vpop.f32.mrb[0].mxu0
        %v3512 = vadd.f32 0.0, %v3511
        %v3513 = vpop.f32.mrb[0].mxu0
        %3514 = vmatprep.mubr.f32.mxu0 0.0
        %3515 = vmatmul.mubr.f32.gmra.mrb[0].mxu0 %v3323
        %v3516 = vpop.f32.mrb[0].mxu0
        %v3517 = vadd.f32 0.0, %v3516
        %v3518 = vpop.f32.mrb[0].mxu0
        %3519 = vmatprep.mubr.f32.mxu0 0.0
        %3520 = vmatmul.mubr.f32.gmra.mrb[0].mxu0 %v3326
        %v3521 = vpop.f32.mrb[0].mxu0
        %v3522 = vadd.f32 0.0, %v3521
        %v3523 = vpop.f32.mrb[0].mxu0
        %3524 = vmatprep.mubr.f32.mxu0 0.0
        %3525 = vmatmul.mubr.f32.gmra.mrb[0].mxu0 %v3329
        %v3526 = vpop.f32.mrb[0].mxu0
        %v3527 = vadd.f32 0.0, %v3526
        %v3528 = vpop.f32.mrb[0].mxu0
        %3529 = vmatprep.mubr.f32.mxu0 0.0
        %3530 = vmatmul.mubr.f32.gmra.mrb[0].mxu0 %v3332
        %v3531 = vpop.f32.mrb[0].mxu0
        %v3532 = vadd.f32 0.0, %v3531
        %v3533 = vpop.f32.mrb[0].mxu0
        %3534 = vmatprep.mubr.f32.mxu0 0.0
        %3535 = vmatmul.mubr.f32.gmra.mrb[0].mxu0 %v3335
        %v3536 = vpop.f32.mrb[0].mxu0
        %v3537 = vadd.f32 0.0, %v3536
        %v3538 = vpop.f32.mrb[0].mxu0
        %3539 = vmatprep.mubr.f32.mxu0 0.0
        %3540 = vmatmul.mubr.f32.gmra.mrb[0].mxu0 %v3338
        %v3541 = vpop.f32.mrb[0].mxu0
        %v3542 = vadd.f32 0.0, %v3541
        %v3543 = vpop.f32.mrb[0].mxu0
        %3544 = vmatprep.mubr.f32.mxu0 0.0
        %3545 = vmatmul.mubr.f32.gmra.mrb[0].mxu0 %v3341
        %v3546 = vpop.f32.mrb[0].mxu0
        %v3547 = vadd.f32 0.0, %v3546
        %v3548 = vpop.f32.mrb[0].mxu0
        %3549 = vmatprep.mubr.f32.mxu0 0.0
        %3550 = vmatmul.mubr.f32.gmra.mrb[0].mxu0 %v3344
        %v3551 = vpop.f32.mrb[0].mxu0
        %v3552 = vadd.f32 0.0, %v3551
        %v3553 = vpop.f32.mrb[0].mxu0
        %3554 = vmatprep.mubr.f32.mxu0 0.0
        %3555 = vmatmul.mubr.f32.gmra.mrb[0].mxu0 %v3347
        %v3556 = vpop.f32.mrb[0].mxu0
        %v3557 = vadd.f32 0.0, %v3556
        %v3558 = vpop.f32.mrb[0].mxu0
        %3559 = vmatprep.mubr.f32.mxu0 0.0
        %3560 = vmatmul.mubr.f32.gmra.mrb[0].mxu0 %v3350
        %v3561 = vpop.f32.mrb[0].mxu0
        %v3562 = vadd.f32 0.0, %v3561
        %v3563 = vpop.f32.mrb[0].mxu0
        %3564 = vmatprep.mubr.f32.mxu0 0.0
        %3565 = vmatmul.mubr.f32.gmra.mrb[0].mxu0 %v3353
        %v3566 = vpop.f32.mrb[0].mxu0
        %v3567 = vadd.f32 0.0, %v3566
        %v3568 = vpop.f32.mrb[0].mxu0
        %3569 = vmatprep.mubr.f32.mxu0 0.0
        %3570 = vmatmul.mubr.f32.gmra.mrb[0].mxu0 %v3356
        %v3571 = vpop.f32.mrb[0].mxu0
        %v3572 = vadd.f32 0.0, %v3571
        %v3573 = vpop.f32.mrb[0].mxu0
        %3574 = vmatprep.mubr.f32.mxu0 0.0
        %3575 = vmatmul.mubr.f32.gmra.mrb[0].mxu0 %v3359
        %v3576 = vpop.f32.mrb[0].mxu0
        %v3577 = vadd.f32 0.0, %v3576
        %v3578 = vpop.f32.mrb[0].mxu0
        %3579 = vmatprep.mubr.f32.mxu0 0.0
        %3580 = vmatmul.mubr.f32.gmra.mrb[0].mxu0 %v3362
        %v3581 = vpop.f32.mrb[0].mxu0
        %v3582 = vadd.f32 0.0, %v3581
        %v3583 = vpop.f32.mrb[0].mxu0
        %3584 = vmatprep.mubr.f32.mxu0 0.0
        %3585 = vmatmul.mubr.f32.gmra.mrb[0].mxu0 %v3365
        %v3586 = vpop.f32.mrb[0].mxu0
        %v3587 = vadd.f32 0.0, %v3586
        %v3588 = vpop.f32.mrb[0].mxu0
        %3589 = vmatprep.mubr.f32.mxu0 0.0
        %3590 = vmatmul.mubr.f32.gmra.mrb[0].mxu0 %v3368
        %v3591 = vpop.f32.mrb[0].mxu0
        %v3592 = vadd.f32 0.0, %v3591
        %v3593 = vpop.f32.mrb[0].mxu0
        %3594 = vdwg.mxu0
        %v3595 = vrcp.pop %v3437
        %v3596 = vmul.f32 %v3003, %v3595
        %v3597 = vrcp.pop %v3442
        %v3598 = vmul.f32 %v3008, %v3597
        %v3599 = vrcp.pop %v3447
        %v3600 = vmul.f32 %v3013, %v3599
        %v3601 = vrcp.pop %v3452
        %v3602 = vmul.f32 %v3018, %v3601
        %v3603 = vrcp.pop %v3457
        %v3604 = vmul.f32 %v3023, %v3603
        %v3605 = vrcp.pop %v3462
        %v3606 = vmul.f32 %v3028, %v3605
        %v3607 = vrcp.pop %v3467
        %v3608 = vmul.f32 %v3033, %v3607
        %v3609 = vrcp.pop %v3472
        %v3610 = vmul.f32 %v3038, %v3609
        %v3611 = vrcp.pop %v3477
        %v3612 = vmul.f32 %v3043, %v3611
        %v3613 = vrcp.pop %v3482
        %v3614 = vmul.f32 %v3048, %v3613
        %v3615 = vrcp.pop %v3487
        %v3616 = vmul.f32 %v3053, %v3615
        %v3617 = vrcp.pop %v3492
        %v3618 = vmul.f32 %v3058, %v3617
        %v3619 = vrcp.pop %v3497
        %v3620 = vmul.f32 %v3063, %v3619
        %v3621 = vrcp.pop %v3502
        %v3622 = vmul.f32 %v3068, %v3621
        %v3623 = vrcp.pop %v3507
        %v3624 = vmul.f32 %v3073, %v3623
        %v3625 = vrcp.pop %v3512
        %v3626 = vmul.f32 %v3078, %v3625
        %v3627 = vrcp.pop %v3517
        %v3628 = vmul.f32 %v3083, %v3627
        %v3629 = vrcp.pop %v3522
        %v3630 = vmul.f32 %v3088, %v3629
        %v3631 = vrcp.pop %v3527
        %v3632 = vmul.f32 %v3093, %v3631
        %v3633 = vrcp.pop %v3532
        %v3634 = vmul.f32 %v3098, %v3633
        %v3635 = vrcp.pop %v3537
        %v3636 = vmul.f32 %v3103, %v3635
        %v3637 = vrcp.pop %v3542
        %v3638 = vmul.f32 %v3108, %v3637
        %v3639 = vrcp.pop %v3547
        %v3640 = vmul.f32 %v3113, %v3639
        %v3641 = vrcp.pop %v3552
        %v3642 = vmul.f32 %v3118, %v3641
        %v3643 = vrcp.pop %v3557
        %v3644 = vmul.f32 %v3123, %v3643
        %v3645 = vrcp.pop %v3562
        %v3646 = vmul.f32 %v3128, %v3645
        %v3647 = vrcp.pop %v3567
        %v3648 = vmul.f32 %v3133, %v3647
        %v3649 = vrcp.pop %v3572
        %v3650 = vmul.f32 %v3138, %v3649
        %v3651 = vrcp.pop %v3577
        %v3652 = vmul.f32 %v3143, %v3651
        %v3653 = vrcp.pop %v3582
        %v3654 = vmul.f32 %v3148, %v3653
        %v3655 = vrcp.pop %v3587
        %v3656 = vmul.f32 %v3153, %v3655
        %v3657 = vrcp.pop %v3592
        %v3658 = vmul.f32 %v3158, %v3657
        %v3659 = vadd.f32 %v3596, 1e-06
        %v3660 = vadd.f32 %v3598, 1e-06
        %v3661 = vadd.f32 %v3600, 1e-06
        %v3662 = vadd.f32 %v3602, 1e-06
        %v3663 = vadd.f32 %v3604, 1e-06
        %v3664 = vadd.f32 %v3606, 1e-06
        %v3665 = vadd.f32 %v3608, 1e-06
        %v3666 = vadd.f32 %v3610, 1e-06
        %v3667 = vadd.f32 %v3612, 1e-06
        %v3668 = vadd.f32 %v3614, 1e-06
        %v3669 = vadd.f32 %v3616, 1e-06
        %v3670 = vadd.f32 %v3618, 1e-06
        %v3671 = vadd.f32 %v3620, 1e-06
        %v3672 = vadd.f32 %v3622, 1e-06
        %v3673 = vadd.f32 %v3624, 1e-06
        %v3674 = vadd.f32 %v3626, 1e-06
        %v3675 = vadd.f32 %v3628, 1e-06
        %v3676 = vadd.f32 %v3630, 1e-06
        %v3677 = vadd.f32 %v3632, 1e-06
        %v3678 = vadd.f32 %v3634, 1e-06
        %v3679 = vadd.f32 %v3636, 1e-06
        %v3680 = vadd.f32 %v3638, 1e-06
        %v3681 = vadd.f32 %v3640, 1e-06
        %v3682 = vadd.f32 %v3642, 1e-06
        %v3683 = vadd.f32 %v3644, 1e-06
        %v3684 = vadd.f32 %v3646, 1e-06
        %v3685 = vadd.f32 %v3648, 1e-06
        %v3686 = vadd.f32 %v3650, 1e-06
        %v3687 = vadd.f32 %v3652, 1e-06
        %v3688 = vadd.f32 %v3654, 1e-06
        %v3689 = vadd.f32 %v3656, 1e-06
        %v3690 = vadd.f32 %v3658, 1e-06
        %v3691 = vmul.f32 %v2567, %v3659
        %v3692 = vmul.f32 %v2568, %v3660
        %v3693 = vmul.f32 %v2569, %v3661
        %v3694 = vmul.f32 %v2570, %v3662
        %v3695 = vmul.f32 %v2571, %v3663
        %v3696 = vmul.f32 %v2572, %v3664
        %v3697 = vmul.f32 %v2573, %v3665
        %v3698 = vmul.f32 %v2574, %v3666
        %v3699 = vmul.f32 %v2575, %v3667
        %v3700 = vmul.f32 %v2576, %v3668
        %v3701 = vmul.f32 %v2577, %v3669
        %v3702 = vmul.f32 %v2578, %v3670
        %v3703 = vmul.f32 %v2579, %v3671
        %v3704 = vmul.f32 %v2580, %v3672
        %v3705 = vmul.f32 %v2581, %v3673
        %v3706 = vmul.f32 %v2582, %v3674
        %v3707 = vmul.f32 %v2583, %v3675
        %v3708 = vmul.f32 %v2584, %v3676
        %v3709 = vmul.f32 %v2585, %v3677
        %v3710 = vmul.f32 %v2586, %v3678
        %v3711 = vmul.f32 %v2587, %v3679
        %v3712 = vmul.f32 %v2588, %v3680
        %v3713 = vmul.f32 %v2589, %v3681
        %v3714 = vmul.f32 %v2590, %v3682
        %v3715 = vmul.f32 %v2591, %v3683
        %v3716 = vmul.f32 %v2592, %v3684
        %v3717 = vmul.f32 %v2593, %v3685
        %v3718 = vmul.f32 %v2594, %v3686
        %v3719 = vmul.f32 %v2595, %v3687
        %v3720 = vmul.f32 %v2596, %v3688
        %v3721 = vmul.f32 %v2597, %v3689
        %v3722 = vmul.f32 %v2598, %v3690
        %3723 = vmatprep.subr.mxu0 0.0
        %3724 = vmatpush1.msra.mxu0 %v3691
        %3725 = vmatprep.subr.mxu0 0.0
        %3726 = vmatpush1.msra.mxu0 %v3692
        %3727 = vmatprep.subr.mxu0 0.0
        %3728 = vmatpush1.msra.mxu0 %v3693
        %3729 = vmatprep.subr.mxu0 0.0
        %3730 = vmatpush1.msra.mxu0 %v3694
        %3731 = vmatprep.subr.mxu0 0.0
        %3732 = vmatpush1.msra.mxu0 %v3695
        %3733 = vmatprep.subr.mxu0 0.0
        %3734 = vmatpush1.msra.mxu0 %v3696
        %3735 = vmatprep.subr.mxu0 0.0
        %3736 = vmatpush1.msra.mxu0 %v3697
        %3737 = vmatprep.subr.mxu0 0.0
        %3738 = vmatpush1.msra.mxu0 %v3698
        %3739 = vmatprep.subr.mxu0 0.0
        %3740 = vmatpush1.msra.mxu0 %v3699
        %3741 = vmatprep.subr.mxu0 0.0
        %3742 = vmatpush1.msra.mxu0 %v3700
        %3743 = vmatprep.subr.mxu0 0.0
        %3744 = vmatpush1.msra.mxu0 %v3701
        %3745 = vmatprep.subr.mxu0 0.0
        %3746 = vmatpush1.msra.mxu0 %v3702
        %3747 = vmatprep.subr.mxu0 0.0
        %3748 = vmatpush1.msra.mxu0 %v3703
        %3749 = vmatprep.subr.mxu0 0.0
        %3750 = vmatpush1.msra.mxu0 %v3704
        %3751 = vmatprep.subr.mxu0 0.0
        %3752 = vmatpush1.msra.mxu0 %v3705
        %3753 = vmatprep.subr.mxu0 0.0
        %3754 = vmatpush1.msra.mxu0 %v3706
        %3755 = vmatprep.subr.mxu0 0.0
        %3756 = vmatpush1.msra.mxu0 %v3707
        %3757 = vmatprep.subr.mxu0 0.0
        %3758 = vmatpush1.msra.mxu0 %v3708
        %3759 = vmatprep.subr.mxu0 0.0
        %3760 = vmatpush1.msra.mxu0 %v3709
        %3761 = vmatprep.subr.mxu0 0.0
        %3762 = vmatpush1.msra.mxu0 %v3710
        %3763 = vmatprep.subr.mxu0 0.0
        %3764 = vmatpush1.msra.mxu0 %v3711
        %3765 = vmatprep.subr.mxu0 0.0
        %3766 = vmatpush1.msra.mxu0 %v3712
        %3767 = vmatprep.subr.mxu0 0.0
        %3768 = vmatpush1.msra.mxu0 %v3713
        %3769 = vmatprep.subr.mxu0 0.0
        %3770 = vmatpush1.msra.mxu0 %v3714
        %3771 = vmatprep.subr.mxu0 0.0
        %3772 = vmatpush1.msra.mxu0 %v3715
        %3773 = vmatprep.subr.mxu0 0.0
        %3774 = vmatpush1.msra.mxu0 %v3716
        %3775 = vmatprep.subr.mxu0 0.0
        %3776 = vmatpush1.msra.mxu0 %v3717
        %3777 = vmatprep.subr.mxu0 0.0
        %3778 = vmatpush1.msra.mxu0 %v3718
        %3779 = vmatprep.subr.mxu0 0.0
        %3780 = vmatpush1.msra.mxu0 %v3719
        %3781 = vmatprep.subr.mxu0 0.0
        %3782 = vmatpush1.msra.mxu0 %v3720
        %3783 = vmatprep.subr.mxu0 0.0
        %3784 = vmatpush1.msra.mxu0 %v3721
        %3785 = vmatprep.subr.mxu0 0.0
        %3786 = vmatpush1.msra.mxu0 %v3722
        %3787 = vmatprep.mubr.f32.mxu0 %v281
        %3788 = vmatmul.mubr.f32.gmra.mrb[0].mxu0 %v280
        %v3789 = vpop.f32.mrb[0].mxu0
        %v3790 = vadd.f32 0.0, %v3789
        %v3791 = vpop.f32.mrb[0].mxu0
        %3792 = vmatprep.mubr.f32.mxu0 %v283
        %3793 = vmatmul.mubr.f32.gmra.mrb[0].mxu0 %v282
        %v3794 = vpop.f32.mrb[0].mxu0
        %v3795 = vadd.f32 0.0, %v3794
        %v3796 = vpop.f32.mrb[0].mxu0
        %3797 = vmatprep.mubr.f32.mxu0 %v285
        %3798 = vmatmul.mubr.f32.gmra.mrb[0].mxu0 %v284
        %v3799 = vpop.f32.mrb[0].mxu0
        %v3800 = vadd.f32 0.0, %v3799
        %v3801 = vpop.f32.mrb[0].mxu0
        %3802 = vmatprep.mubr.f32.mxu0 %v287
        %3803 = vmatmul.mubr.f32.gmra.mrb[0].mxu0 %v286
        %v3804 = vpop.f32.mrb[0].mxu0
        %v3805 = vadd.f32 0.0, %v3804
        %v3806 = vpop.f32.mrb[0].mxu0
        %3807 = vdwg.mxu0
        %3808 = vxpose.xlu0.b32.start [1/16] %v3691, 128
        %3809 = vxpose.xlu0.b32.cont [2/16] %v3692, 128
        %3810 = vxpose.xlu0.b32.cont [3/16] %v3693, 128
        %3811 = vxpose.xlu0.b32.cont [4/16] %v3694, 128
        %3812 = vxpose.xlu0.b32.cont [5/16] %v3695, 128
        %3813 = vxpose.xlu0.b32.cont [6/16] %v3696, 128
        %3814 = vxpose.xlu0.b32.cont [7/16] %v3697, 128
        %3815 = vxpose.xlu0.b32.cont [8/16] %v3698, 128
        %3816 = vxpose.xlu0.b32.cont [9/16] %v3699, 128
        %3817 = vxpose.xlu0.b32.cont [10/16] %v3700, 128
        %3818 = vxpose.xlu0.b32.cont [11/16] %v3701, 128
        %3819 = vxpose.xlu0.b32.cont [12/16] %v3702, 128
        %3820 = vxpose.xlu0.b32.cont [13/16] %v3703, 128
        %3821 = vxpose.xlu0.b32.cont [14/16] %v3704, 128
        %3822 = vxpose.xlu0.b32.cont [15/16] %v3705, 128
        %3823 = vxpose.xlu0.b32.end [16/16] %v3706, 128
        %v3824 = vpop.trf.xlu0
        %v3825 = vpop.trf.xlu0
        %v3826 = vpop.trf.xlu0
        %v3827 = vpop.trf.xlu0
        %v3828 = vpop.trf.xlu0
        %v3829 = vpop.trf.xlu0
        %v3830 = vpop.trf.xlu0
        %v3831 = vpop.trf.xlu0
        %v3832 = vpop.trf.xlu0
        %v3833 = vpop.trf.xlu0
        %v3834 = vpop.trf.xlu0
        %v3835 = vpop.trf.xlu0
        %v3836 = vpop.trf.xlu0
        %v3837 = vpop.trf.xlu0
        %v3838 = vpop.trf.xlu0
        %v3839 = vpop.trf.xlu0
        %3840 = vxpose.xlu0.b32.start [1/16] %v3707, 128
        %3841 = vxpose.xlu0.b32.cont [2/16] %v3708, 128
        %3842 = vxpose.xlu0.b32.cont [3/16] %v3709, 128
        %3843 = vxpose.xlu0.b32.cont [4/16] %v3710, 128
        %3844 = vxpose.xlu0.b32.cont [5/16] %v3711, 128
        %3845 = vxpose.xlu0.b32.cont [6/16] %v3712, 128
        %3846 = vxpose.xlu0.b32.cont [7/16] %v3713, 128
        %3847 = vxpose.xlu0.b32.cont [8/16] %v3714, 128
        %3848 = vxpose.xlu0.b32.cont [9/16] %v3715, 128
        %3849 = vxpose.xlu0.b32.cont [10/16] %v3716, 128
        %3850 = vxpose.xlu0.b32.cont [11/16] %v3717, 128
        %3851 = vxpose.xlu0.b32.cont [12/16] %v3718, 128
        %3852 = vxpose.xlu0.b32.cont [13/16] %v3719, 128
        %3853 = vxpose.xlu0.b32.cont [14/16] %v3720, 128
        %3854 = vxpose.xlu0.b32.cont [15/16] %v3721, 128
        %3855 = vxpose.xlu0.b32.end [16/16] %v3722, 128
        %v3856 = vpop.trf.xlu0
        %v3857 = vpop.trf.xlu0
        %v3858 = vpop.trf.xlu0
        %v3859 = vpop.trf.xlu0
        %v3860 = vpop.trf.xlu0
        %v3861 = vpop.trf.xlu0
        %v3862 = vpop.trf.xlu0
        %v3863 = vpop.trf.xlu0
        %v3864 = vpop.trf.xlu0
        %v3865 = vpop.trf.xlu0
        %v3866 = vpop.trf.xlu0
        %v3867 = vpop.trf.xlu0
        %v3868 = vpop.trf.xlu0
        %v3869 = vpop.trf.xlu0
        %v3870 = vpop.trf.xlu0
        %v3871 = vpop.trf.xlu0
        %3872 = vmatprep.subr.mxu0 0.0
        %3873 = vmatpush1.msra.mxu0 %v3691
        %3874 = vmatprep.subr.mxu0 0.0
        %3875 = vmatpush1.msra.mxu0 %v3692
        %3876 = vmatprep.subr.mxu0 0.0
        %3877 = vmatpush1.msra.mxu0 %v3693
        %3878 = vmatprep.subr.mxu0 0.0
        %3879 = vmatpush1.msra.mxu0 %v3694
        %3880 = vmatprep.subr.mxu0 0.0
        %3881 = vmatpush1.msra.mxu0 %v3695
        %3882 = vmatprep.subr.mxu0 0.0
        %3883 = vmatpush1.msra.mxu0 %v3696
        %3884 = vmatprep.subr.mxu0 0.0
        %3885 = vmatpush1.msra.mxu0 %v3697
        %3886 = vmatprep.subr.mxu0 0.0
        %3887 = vmatpush1.msra.mxu0 %v3698
        %3888 = vmatprep.subr.mxu0 0.0
        %3889 = vmatpush1.msra.mxu0 %v3699
        %3890 = vmatprep.subr.mxu0 0.0
        %3891 = vmatpush1.msra.mxu0 %v3700
        %3892 = vmatprep.subr.mxu0 0.0
        %3893 = vmatpush1.msra.mxu0 %v3701
        %3894 = vmatprep.subr.mxu0 0.0
        %3895 = vmatpush1.msra.mxu0 %v3702
        %3896 = vmatprep.subr.mxu0 0.0
        %3897 = vmatpush1.msra.mxu0 %v3703
        %3898 = vmatprep.subr.mxu0 0.0
        %3899 = vmatpush1.msra.mxu0 %v3704
        %3900 = vmatprep.subr.mxu0 0.0
        %3901 = vmatpush1.msra.mxu0 %v3705
        %3902 = vmatprep.subr.mxu0 0.0
        %3903 = vmatpush1.msra.mxu0 %v3706
        %3904 = vmatprep.subr.mxu0 0.0
        %3905 = vmatpush1.msra.mxu0 %v3707
        %3906 = vmatprep.subr.mxu0 0.0
        %3907 = vmatpush1.msra.mxu0 %v3708
        %3908 = vmatprep.subr.mxu0 0.0
        %3909 = vmatpush1.msra.mxu0 %v3709
        %3910 = vmatprep.subr.mxu0 0.0
        %3911 = vmatpush1.msra.mxu0 %v3710
        %3912 = vmatprep.subr.mxu0 0.0
        %3913 = vmatpush1.msra.mxu0 %v3711
        %3914 = vmatprep.subr.mxu0 0.0
        %3915 = vmatpush1.msra.mxu0 %v3712
        %3916 = vmatprep.subr.mxu0 0.0
        %3917 = vmatpush1.msra.mxu0 %v3713
        %3918 = vmatprep.subr.mxu0 0.0
        %3919 = vmatpush1.msra.mxu0 %v3714
        %3920 = vmatprep.subr.mxu0 0.0
        %3921 = vmatpush1.msra.mxu0 %v3715
        %3922 = vmatprep.subr.mxu0 0.0
        %3923 = vmatpush1.msra.mxu0 %v3716
        %3924 = vmatprep.subr.mxu0 0.0
        %3925 = vmatpush1.msra.mxu0 %v3717
        %3926 = vmatprep.subr.mxu0 0.0
        %3927 = vmatpush1.msra.mxu0 %v3718
        %3928 = vmatprep.subr.mxu0 0.0
        %3929 = vmatpush1.msra.mxu0 %v3719
        %3930 = vmatprep.subr.mxu0 0.0
        %3931 = vmatpush1.msra.mxu0 %v3720
        %3932 = vmatprep.subr.mxu0 0.0
        %3933 = vmatpush1.msra.mxu0 %v3721
        %3934 = vmatprep.subr.mxu0 0.0
        %3935 = vmatpush1.msra.mxu0 %v3722
        %3936 = vmatprep.mubr.f32.mxu0 %v3856
        %3937 = vmatmul.mubr.f32.gmra.mrb[0].mxu0 %v3824
        %v3938 = vpop.f32.mrb[0].mxu0
        %v3939 = vadd.f32 0.0, %v3938
        %v3940 = vpop.f32.mrb[0].mxu0
        %3941 = vmatprep.mubr.f32.mxu0 %v3857
        %3942 = vmatmul.mubr.f32.gmra.mrb[0].mxu0 %v3825
        %v3943 = vpop.f32.mrb[0].mxu0
        %v3944 = vadd.f32 0.0, %v3943
        %v3945 = vpop.f32.mrb[0].mxu0
        %3946 = vdwg.mxu0
        %v3948 = vsel %vm673, %v2932, 0
        %v3951 = vsel %vm673, %v2933, 0
        %v3954 = vsel %vm673, %v2934, 0
        %v3957 = vsel %vm673, %v2935, 0
        %3959 = vmatprep.subr.mxu0 0.0
        %3960 = vmatpush1.msra.mxu0 %v3939
        %3961 = vmatprep.subr.mxu0 0.0
        %3962 = vmatpush1.msra.mxu0 %v3944
        %3963 = vmatprep.subr.mxu0 0.0
        %3964 = vmatpush1.msra.mxu0 0.0
        %3965 = vmatprep.subr.mxu0 0.0
        %3966 = vmatpush1.msra.mxu0 0.0
        %3967 = vmatprep.subr.mxu0 0.0
        %3968 = vmatpush1.msra.mxu0 0.0
        %3969 = vmatprep.subr.mxu0 0.0
        %3970 = vmatpush1.msra.mxu0 0.0
        %3971 = vmatprep.subr.mxu0 0.0
        %3972 = vmatpush1.msra.mxu0 0.0
        %3973 = vmatprep.subr.mxu0 0.0
        %3974 = vmatpush1.msra.mxu0 0.0
        %3975 = vmatprep.subr.mxu0 0.0
        %3976 = vmatpush1.msra.mxu0 0.0
        %3977 = vmatprep.subr.mxu0 0.0
        %3978 = vmatpush1.msra.mxu0 0.0
        %3979 = vmatprep.subr.mxu0 0.0
        %3980 = vmatpush1.msra.mxu0 0.0
        %3981 = vmatprep.subr.mxu0 0.0
        %3982 = vmatpush1.msra.mxu0 0.0
        %3983 = vmatprep.subr.mxu0 0.0
        %3984 = vmatpush1.msra.mxu0 0.0
        %3985 = vmatprep.subr.mxu0 0.0
        %3986 = vmatpush1.msra.mxu0 0.0
        %3987 = vmatprep.subr.mxu0 0.0
        %3988 = vmatpush1.msra.mxu0 0.0
        %3989 = vmatprep.subr.mxu0 0.0
        %3990 = vmatpush1.msra.mxu0 0.0
        %3991 = vmatprep.subr.mxu0 0.0
        %3992 = vmatpush1.msra.mxu0 0.0
        %3993 = vmatprep.subr.mxu0 0.0
        %3994 = vmatpush1.msra.mxu0 0.0
        %3995 = vmatprep.subr.mxu0 0.0
        %3996 = vmatpush1.msra.mxu0 0.0
        %3997 = vmatprep.subr.mxu0 0.0
        %3998 = vmatpush1.msra.mxu0 0.0
        %3999 = vmatprep.subr.mxu0 0.0
        %4000 = vmatpush1.msra.mxu0 0.0
        %4001 = vmatprep.subr.mxu0 0.0
        %4002 = vmatpush1.msra.mxu0 0.0
        %4003 = vmatprep.subr.mxu0 0.0
        %4004 = vmatpush1.msra.mxu0 0.0
        %4005 = vmatprep.subr.mxu0 0.0
        %4006 = vmatpush1.msra.mxu0 0.0
        %4007 = vmatprep.subr.mxu0 0.0
        %4008 = vmatpush1.msra.mxu0 0.0
        %4009 = vmatprep.subr.mxu0 0.0
        %4010 = vmatpush1.msra.mxu0 0.0
        %4011 = vmatprep.subr.mxu0 0.0
        %4012 = vmatpush1.msra.mxu0 0.0
        %4013 = vmatprep.subr.mxu0 0.0
        %4014 = vmatpush1.msra.mxu0 0.0
        %4015 = vmatprep.subr.mxu0 0.0
        %4016 = vmatpush1.msra.mxu0 0.0
        %4017 = vmatprep.subr.mxu0 0.0
        %4018 = vmatpush1.msra.mxu0 0.0
        %4019 = vmatprep.subr.mxu0 0.0
        %4020 = vmatpush1.msra.mxu0 0.0
        %4021 = vmatprep.subr.mxu0 0.0
        %4022 = vmatpush1.msra.mxu0 0.0
        %4023 = vmatprep.mubr.f32.mxu0 0.0
        %4024 = vmatmul.mubr.f32.gmra.mrb[0].mxu0 %v3948
        %v4025 = vpop.f32.mrb[0].mxu0
        %v4026 = vadd.f32 0.0, %v4025
        %v4027 = vpop.f32.mrb[0].mxu0
        %4028 = vmatprep.mubr.f32.mxu0 0.0
        %4029 = vmatmul.mubr.f32.gmra.mrb[0].mxu0 %v3951
        %v4030 = vpop.f32.mrb[0].mxu0
        %v4031 = vadd.f32 0.0, %v4030
        %v4032 = vpop.f32.mrb[0].mxu0
        %4033 = vmatprep.mubr.f32.mxu0 0.0
        %4034 = vmatmul.mubr.f32.gmra.mrb[0].mxu0 %v3954
        %v4035 = vpop.f32.mrb[0].mxu0
        %v4036 = vadd.f32 0.0, %v4035
        %v4037 = vpop.f32.mrb[0].mxu0
        %4038 = vmatprep.mubr.f32.mxu0 0.0
        %4039 = vmatmul.mubr.f32.gmra.mrb[0].mxu0 %v3957
        %v4040 = vpop.f32.mrb[0].mxu0
        %v4041 = vadd.f32 0.0, %v4040
        %v4042 = vpop.f32.mrb[0].mxu0
        %4043 = vdwg.mxu0
        %v4044 = vrcp.pop %v4026
        %v4045 = vmul.f32 %v3790, %v4044
        %v4046 = vrcp.pop %v4031
        %v4047 = vmul.f32 %v3795, %v4046
        %v4048 = vrcp.pop %v4036
        %v4049 = vmul.f32 %v3800, %v4048
        %v4050 = vrcp.pop %v4041
        %v4051 = vmul.f32 %v3805, %v4050
        %v4052 = vadd.f32 %v4045, 1e-06
        %v4053 = vadd.f32 %v4047, 1e-06
        %v4054 = vadd.f32 %v4049, 1e-06
        %v4055 = vadd.f32 %v4051, 1e-06
        %v4056 = vmul.f32 %v2932, %v4052
        %v4057 = vmul.f32 %v2933, %v4053
        %v4058 = vmul.f32 %v2934, %v4054
        %v4059 = vmul.f32 %v2935, %v4055
        %4060 = vmatprep.subr.mxu0 0.0
        %4061 = vmatpush1.msra.mxu0 %v4056
        %4062 = vmatprep.subr.mxu0 0.0
        %4063 = vmatpush1.msra.mxu0 %v4057
        %4064 = vmatprep.subr.mxu0 0.0
        %4065 = vmatpush1.msra.mxu0 %v4058
        %4066 = vmatprep.subr.mxu0 0.0
        %4067 = vmatpush1.msra.mxu0 %v4059
        %4068 = vmatprep.subr.mxu0 0.0
        %4069 = vmatpush1.msra.mxu0 0.0
        %4070 = vmatprep.subr.mxu0 0.0
        %4071 = vmatpush1.msra.mxu0 0.0
        %4072 = vmatprep.subr.mxu0 0.0
        %4073 = vmatpush1.msra.mxu0 0.0
        %4074 = vmatprep.subr.mxu0 0.0
        %4075 = vmatpush1.msra.mxu0 0.0
        %4076 = vmatprep.subr.mxu0 0.0
        %4077 = vmatpush1.msra.mxu0 0.0
        %4078 = vmatprep.subr.mxu0 0.0
        %4079 = vmatpush1.msra.mxu0 0.0
        %4080 = vmatprep.subr.mxu0 0.0
        %4081 = vmatpush1.msra.mxu0 0.0
        %4082 = vmatprep.subr.mxu0 0.0
        %4083 = vmatpush1.msra.mxu0 0.0
        %4084 = vmatprep.subr.mxu0 0.0
        %4085 = vmatpush1.msra.mxu0 0.0
        %4086 = vmatprep.subr.mxu0 0.0
        %4087 = vmatpush1.msra.mxu0 0.0
        %4088 = vmatprep.subr.mxu0 0.0
        %4089 = vmatpush1.msra.mxu0 0.0
        %4090 = vmatprep.subr.mxu0 0.0
        %4091 = vmatpush1.msra.mxu0 0.0
        %4092 = vmatprep.subr.mxu0 0.0
        %4093 = vmatpush1.msra.mxu0 0.0
        %4094 = vmatprep.subr.mxu0 0.0
        %4095 = vmatpush1.msra.mxu0 0.0
        %4096 = vmatprep.subr.mxu0 0.0
        %4097 = vmatpush1.msra.mxu0 0.0
        %4098 = vmatprep.subr.mxu0 0.0
        %4099 = vmatpush1.msra.mxu0 0.0
        %4100 = vmatprep.subr.mxu0 0.0
        %4101 = vmatpush1.msra.mxu0 0.0
        %4102 = vmatprep.subr.mxu0 0.0
        %4103 = vmatpush1.msra.mxu0 0.0
        %4104 = vmatprep.subr.mxu0 0.0
        %4105 = vmatpush1.msra.mxu0 0.0
        %4106 = vmatprep.subr.mxu0 0.0
        %4107 = vmatpush1.msra.mxu0 0.0
        %4108 = vmatprep.subr.mxu0 0.0
        %4109 = vmatpush1.msra.mxu0 0.0
        %4110 = vmatprep.subr.mxu0 0.0
        %4111 = vmatpush1.msra.mxu0 0.0
        %4112 = vmatprep.subr.mxu0 0.0
        %4113 = vmatpush1.msra.mxu0 0.0
        %4114 = vmatprep.subr.mxu0 0.0
        %4115 = vmatpush1.msra.mxu0 0.0
        %4116 = vmatprep.subr.mxu0 0.0
        %4117 = vmatpush1.msra.mxu0 0.0
        %4118 = vmatprep.subr.mxu0 0.0
        %4119 = vmatpush1.msra.mxu0 0.0
        %4120 = vmatprep.subr.mxu0 0.0
        %4121 = vmatpush1.msra.mxu0 0.0
        %4122 = vmatprep.subr.mxu0 0.0
        %4123 = vmatpush1.msra.mxu0 0.0
        %4124 = vmatprep.mubr.f32.mxu0 0.0
        %4125 = vmatmul.mubr.f32.gmra.mrb[0].mxu0 %v353
        %v4126 = vpop.f32.mrb[0].mxu0
        %v4127 = vadd.f32 0.0, %v4126
        %v4128 = vpop.f32.mrb[0].mxu0
        %4129 = vmatprep.mubr.f32.mxu0 0.0
        %4130 = vmatmul.mubr.f32.gmra.mrb[0].mxu0 %v356
        %v4131 = vpop.f32.mrb[0].mxu0
        %v4132 = vadd.f32 0.0, %v4131
        %v4133 = vpop.f32.mrb[0].mxu0
        %4134 = vmatprep.mubr.f32.mxu0 0.0
        %4135 = vmatmul.mubr.f32.gmra.mrb[0].mxu0 %v359
        %v4136 = vpop.f32.mrb[0].mxu0
        %v4137 = vadd.f32 0.0, %v4136
        %v4138 = vpop.f32.mrb[0].mxu0
        %4139 = vmatprep.mubr.f32.mxu0 0.0
        %4140 = vmatmul.mubr.f32.gmra.mrb[0].mxu0 %v362
        %v4141 = vpop.f32.mrb[0].mxu0
        %v4142 = vadd.f32 0.0, %v4141
        %v4143 = vpop.f32.mrb[0].mxu0
        %4144 = vmatprep.mubr.f32.mxu0 0.0
        %4145 = vmatmul.mubr.f32.gmra.mrb[0].mxu0 %v365
        %v4146 = vpop.f32.mrb[0].mxu0
        %v4147 = vadd.f32 0.0, %v4146
        %v4148 = vpop.f32.mrb[0].mxu0
        %4149 = vmatprep.mubr.f32.mxu0 0.0
        %4150 = vmatmul.mubr.f32.gmra.mrb[0].mxu0 %v368
        %v4151 = vpop.f32.mrb[0].mxu0
        %v4152 = vadd.f32 0.0, %v4151
        %v4153 = vpop.f32.mrb[0].mxu0
        %4154 = vmatprep.mubr.f32.mxu0 0.0
        %4155 = vmatmul.mubr.f32.gmra.mrb[0].mxu0 %v371
        %v4156 = vpop.f32.mrb[0].mxu0
        %v4157 = vadd.f32 0.0, %v4156
        %v4158 = vpop.f32.mrb[0].mxu0
        %4159 = vmatprep.mubr.f32.mxu0 0.0
        %4160 = vmatmul.mubr.f32.gmra.mrb[0].mxu0 %v374
        %v4161 = vpop.f32.mrb[0].mxu0
        %v4162 = vadd.f32 0.0, %v4161
        %v4163 = vpop.f32.mrb[0].mxu0
        %4164 = vmatprep.mubr.f32.mxu0 0.0
        %4165 = vmatmul.mubr.f32.gmra.mrb[0].mxu0 %v377
        %v4166 = vpop.f32.mrb[0].mxu0
        %v4167 = vadd.f32 0.0, %v4166
        %v4168 = vpop.f32.mrb[0].mxu0
        %4169 = vmatprep.mubr.f32.mxu0 0.0
        %4170 = vmatmul.mubr.f32.gmra.mrb[0].mxu0 %v380
        %v4171 = vpop.f32.mrb[0].mxu0
        %v4172 = vadd.f32 0.0, %v4171
        %v4173 = vpop.f32.mrb[0].mxu0
        %4174 = vmatprep.mubr.f32.mxu0 0.0
        %4175 = vmatmul.mubr.f32.gmra.mrb[0].mxu0 %v383
        %v4176 = vpop.f32.mrb[0].mxu0
        %v4177 = vadd.f32 0.0, %v4176
        %v4178 = vpop.f32.mrb[0].mxu0
        %4179 = vmatprep.mubr.f32.mxu0 0.0
        %4180 = vmatmul.mubr.f32.gmra.mrb[0].mxu0 %v386
        %v4181 = vpop.f32.mrb[0].mxu0
        %v4182 = vadd.f32 0.0, %v4181
        %v4183 = vpop.f32.mrb[0].mxu0
        %4184 = vmatprep.mubr.f32.mxu0 0.0
        %4185 = vmatmul.mubr.f32.gmra.mrb[0].mxu0 %v389
        %v4186 = vpop.f32.mrb[0].mxu0
        %v4187 = vadd.f32 0.0, %v4186
        %v4188 = vpop.f32.mrb[0].mxu0
        %4189 = vmatprep.mubr.f32.mxu0 0.0
        %4190 = vmatmul.mubr.f32.gmra.mrb[0].mxu0 %v392
        %v4191 = vpop.f32.mrb[0].mxu0
        %v4192 = vadd.f32 0.0, %v4191
        %v4193 = vpop.f32.mrb[0].mxu0
        %4194 = vmatprep.mubr.f32.mxu0 0.0
        %4195 = vmatmul.mubr.f32.gmra.mrb[0].mxu0 %v395
        %v4196 = vpop.f32.mrb[0].mxu0
        %v4197 = vadd.f32 0.0, %v4196
        %v4198 = vpop.f32.mrb[0].mxu0
        %4199 = vmatprep.mubr.f32.mxu0 0.0
        %4200 = vmatmul.mubr.f32.gmra.mrb[0].mxu0 %v398
        %v4201 = vpop.f32.mrb[0].mxu0
        %v4202 = vadd.f32 0.0, %v4201
        %v4203 = vpop.f32.mrb[0].mxu0
        %4204 = vmatprep.mubr.f32.mxu0 0.0
        %4205 = vmatmul.mubr.f32.gmra.mrb[0].mxu0 %v401
        %v4206 = vpop.f32.mrb[0].mxu0
        %v4207 = vadd.f32 0.0, %v4206
        %v4208 = vpop.f32.mrb[0].mxu0
        %4209 = vmatprep.mubr.f32.mxu0 0.0
        %4210 = vmatmul.mubr.f32.gmra.mrb[0].mxu0 %v404
        %v4211 = vpop.f32.mrb[0].mxu0
        %v4212 = vadd.f32 0.0, %v4211
        %v4213 = vpop.f32.mrb[0].mxu0
        %4214 = vmatprep.mubr.f32.mxu0 0.0
        %4215 = vmatmul.mubr.f32.gmra.mrb[0].mxu0 %v407
        %v4216 = vpop.f32.mrb[0].mxu0
        %v4217 = vadd.f32 0.0, %v4216
        %v4218 = vpop.f32.mrb[0].mxu0
        %4219 = vmatprep.mubr.f32.mxu0 0.0
        %4220 = vmatmul.mubr.f32.gmra.mrb[0].mxu0 %v410
        %v4221 = vpop.f32.mrb[0].mxu0
        %v4222 = vadd.f32 0.0, %v4221
        %v4223 = vpop.f32.mrb[0].mxu0
        %4224 = vmatprep.mubr.f32.mxu0 0.0
        %4225 = vmatmul.mubr.f32.gmra.mrb[0].mxu0 %v413
        %v4226 = vpop.f32.mrb[0].mxu0
        %v4227 = vadd.f32 0.0, %v4226
        %v4228 = vpop.f32.mrb[0].mxu0
        %4229 = vmatprep.mubr.f32.mxu0 0.0
        %4230 = vmatmul.mubr.f32.gmra.mrb[0].mxu0 %v416
        %v4231 = vpop.f32.mrb[0].mxu0
        %v4232 = vadd.f32 0.0, %v4231
        %v4233 = vpop.f32.mrb[0].mxu0
        %4234 = vmatprep.mubr.f32.mxu0 0.0
        %4235 = vmatmul.mubr.f32.gmra.mrb[0].mxu0 %v419
        %v4236 = vpop.f32.mrb[0].mxu0
        %v4237 = vadd.f32 0.0, %v4236
        %v4238 = vpop.f32.mrb[0].mxu0
        %4239 = vmatprep.mubr.f32.mxu0 0.0
        %4240 = vmatmul.mubr.f32.gmra.mrb[0].mxu0 %v422
        %v4241 = vpop.f32.mrb[0].mxu0
        %v4242 = vadd.f32 0.0, %v4241
        %v4243 = vpop.f32.mrb[0].mxu0
        %4244 = vmatprep.mubr.f32.mxu0 0.0
        %4245 = vmatmul.mubr.f32.gmra.mrb[0].mxu0 %v425
        %v4246 = vpop.f32.mrb[0].mxu0
        %v4247 = vadd.f32 0.0, %v4246
        %v4248 = vpop.f32.mrb[0].mxu0
        %4249 = vmatprep.mubr.f32.mxu0 0.0
        %4250 = vmatmul.mubr.f32.gmra.mrb[0].mxu0 %v428
        %v4251 = vpop.f32.mrb[0].mxu0
        %v4252 = vadd.f32 0.0, %v4251
        %v4253 = vpop.f32.mrb[0].mxu0
        %4254 = vmatprep.mubr.f32.mxu0 0.0
        %4255 = vmatmul.mubr.f32.gmra.mrb[0].mxu0 %v431
        %v4256 = vpop.f32.mrb[0].mxu0
        %v4257 = vadd.f32 0.0, %v4256
        %v4258 = vpop.f32.mrb[0].mxu0
        %4259 = vmatprep.mubr.f32.mxu0 0.0
        %4260 = vmatmul.mubr.f32.gmra.mrb[0].mxu0 %v434
        %v4261 = vpop.f32.mrb[0].mxu0
        %v4262 = vadd.f32 0.0, %v4261
        %v4263 = vpop.f32.mrb[0].mxu0
        %4264 = vmatprep.mubr.f32.mxu0 0.0
        %4265 = vmatmul.mubr.f32.gmra.mrb[0].mxu0 %v437
        %v4266 = vpop.f32.mrb[0].mxu0
        %v4267 = vadd.f32 0.0, %v4266
        %v4268 = vpop.f32.mrb[0].mxu0
        %4269 = vmatprep.mubr.f32.mxu0 0.0
        %4270 = vmatmul.mubr.f32.gmra.mrb[0].mxu0 %v440
        %v4271 = vpop.f32.mrb[0].mxu0
        %v4272 = vadd.f32 0.0, %v4271
        %v4273 = vpop.f32.mrb[0].mxu0
        %4274 = vmatprep.mubr.f32.mxu0 0.0
        %4275 = vmatmul.mubr.f32.gmra.mrb[0].mxu0 %v443
        %v4276 = vpop.f32.mrb[0].mxu0
        %v4277 = vadd.f32 0.0, %v4276
        %v4278 = vpop.f32.mrb[0].mxu0
        %4279 = vmatprep.mubr.f32.mxu0 0.0
        %4280 = vmatmul.mubr.f32.gmra.mrb[0].mxu0 %v446
        %v4281 = vpop.f32.mrb[0].mxu0
        %v4282 = vadd.f32 0.0, %v4281
        %v4283 = vpop.f32.mrb[0].mxu0
        %4284 = vdwg.mxu0
        %4285 = vxpose.xlu0.b32.start [1/16] %v4056, 128
        %4286 = vxpose.xlu0.b32.cont [2/16] %v4057, 128
        %4287 = vxpose.xlu0.b32.cont [3/16] %v4058, 128
        %4288 = vxpose.xlu0.b32.cont [4/16] %v4059, 128
        %4289 = vxpose.xlu0.b32.cont [5/16] 0.0, 128
        %4290 = vxpose.xlu0.b32.cont [6/16] 0.0, 128
        %4291 = vxpose.xlu0.b32.cont [7/16] 0.0, 128
        %4292 = vxpose.xlu0.b32.cont [8/16] 0.0, 128
        %4293 = vxpose.xlu0.b32.cont [9/16] 0.0, 128
        %4294 = vxpose.xlu0.b32.cont [10/16] 0.0, 128
        %4295 = vxpose.xlu0.b32.cont [11/16] 0.0, 128
        %4296 = vxpose.xlu0.b32.cont [12/16] 0.0, 128
        %4297 = vxpose.xlu0.b32.cont [13/16] 0.0, 128
        %4298 = vxpose.xlu0.b32.cont [14/16] 0.0, 128
        %4299 = vxpose.xlu0.b32.cont [15/16] 0.0, 128
        %4300 = vxpose.xlu0.b32.end [16/16] 0.0, 128
        %v4301 = vpop.trf.xlu0
        %v4302 = vpop.trf.xlu0
        %v4303 = vpop.trf.xlu0
        %v4304 = vpop.trf.xlu0
        %v4305 = vpop.trf.xlu0
        %v4306 = vpop.trf.xlu0
        %v4307 = vpop.trf.xlu0
        %v4308 = vpop.trf.xlu0
        %v4309 = vpop.trf.xlu0
        %v4310 = vpop.trf.xlu0
        %v4311 = vpop.trf.xlu0
        %v4312 = vpop.trf.xlu0
        %v4313 = vpop.trf.xlu0
        %v4314 = vpop.trf.xlu0
        %v4315 = vpop.trf.xlu0
        %v4316 = vpop.trf.xlu0
        %v4318 = vsel %vm198, %v4301, 0
        %v4321 = vsel %vm198, %v4302, 0
        %4323 = vmatprep.subr.mxu0 0.0
        %4324 = vmatpush1.msra.mxu0 %v4056
        %4325 = vmatprep.subr.mxu0 0.0
        %4326 = vmatpush1.msra.mxu0 %v4057
        %4327 = vmatprep.subr.mxu0 0.0
        %4328 = vmatpush1.msra.mxu0 %v4058
        %4329 = vmatprep.subr.mxu0 0.0
        %4330 = vmatpush1.msra.mxu0 %v4059
        %4331 = vmatprep.subr.mxu0 0.0
        %4332 = vmatpush1.msra.mxu0 0.0
        %4333 = vmatprep.subr.mxu0 0.0
        %4334 = vmatpush1.msra.mxu0 0.0
        %4335 = vmatprep.subr.mxu0 0.0
        %4336 = vmatpush1.msra.mxu0 0.0
        %4337 = vmatprep.subr.mxu0 0.0
        %4338 = vmatpush1.msra.mxu0 0.0
        %4339 = vmatprep.subr.mxu0 0.0
        %4340 = vmatpush1.msra.mxu0 0.0
        %4341 = vmatprep.subr.mxu0 0.0
        %4342 = vmatpush1.msra.mxu0 0.0
        %4343 = vmatprep.subr.mxu0 0.0
        %4344 = vmatpush1.msra.mxu0 0.0
        %4345 = vmatprep.subr.mxu0 0.0
        %4346 = vmatpush1.msra.mxu0 0.0
        %4347 = vmatprep.subr.mxu0 0.0
        %4348 = vmatpush1.msra.mxu0 0.0
        %4349 = vmatprep.subr.mxu0 0.0
        %4350 = vmatpush1.msra.mxu0 0.0
        %4351 = vmatprep.subr.mxu0 0.0
        %4352 = vmatpush1.msra.mxu0 0.0
        %4353 = vmatprep.subr.mxu0 0.0
        %4354 = vmatpush1.msra.mxu0 0.0
        %4355 = vmatprep.subr.mxu0 0.0
        %4356 = vmatpush1.msra.mxu0 0.0
        %4357 = vmatprep.subr.mxu0 0.0
        %4358 = vmatpush1.msra.mxu0 0.0
        %4359 = vmatprep.subr.mxu0 0.0
        %4360 = vmatpush1.msra.mxu0 0.0
        %4361 = vmatprep.subr.mxu0 0.0
        %4362 = vmatpush1.msra.mxu0 0.0
        %4363 = vmatprep.subr.mxu0 0.0
        %4364 = vmatpush1.msra.mxu0 0.0
        %4365 = vmatprep.subr.mxu0 0.0
        %4366 = vmatpush1.msra.mxu0 0.0
        %4367 = vmatprep.subr.mxu0 0.0
        %4368 = vmatpush1.msra.mxu0 0.0
        %4369 = vmatprep.subr.mxu0 0.0
        %4370 = vmatpush1.msra.mxu0 0.0
        %4371 = vmatprep.subr.mxu0 0.0
        %4372 = vmatpush1.msra.mxu0 0.0
        %4373 = vmatprep.subr.mxu0 0.0
        %4374 = vmatpush1.msra.mxu0 0.0
        %4375 = vmatprep.subr.mxu0 0.0
        %4376 = vmatpush1.msra.mxu0 0.0
        %4377 = vmatprep.subr.mxu0 0.0
        %4378 = vmatpush1.msra.mxu0 0.0
        %4379 = vmatprep.subr.mxu0 0.0
        %4380 = vmatpush1.msra.mxu0 0.0
        %4381 = vmatprep.subr.mxu0 0.0
        %4382 = vmatpush1.msra.mxu0 0.0
        %4383 = vmatprep.subr.mxu0 0.0
        %4384 = vmatpush1.msra.mxu0 0.0
        %4385 = vmatprep.subr.mxu0 0.0
        %4386 = vmatpush1.msra.mxu0 0.0
        %4387 = vmatprep.mubr.f32.mxu0 0.0
        %4388 = vmatmul.mubr.f32.gmra.mrb[0].mxu0 %v4318
        %v4389 = vpop.f32.mrb[0].mxu0
        %v4390 = vadd.f32 0.0, %v4389
        %v4391 = vpop.f32.mrb[0].mxu0
        %4392 = vmatprep.mubr.f32.mxu0 0.0
        %4393 = vmatmul.mubr.f32.gmra.mrb[0].mxu0 %v4321
        %v4394 = vpop.f32.mrb[0].mxu0
        %v4395 = vadd.f32 0.0, %v4394
        %v4396 = vpop.f32.mrb[0].mxu0
        %4397 = vdwg.mxu0
        %v4399 = vsel %vm673, %v3691, 0
        %v4402 = vsel %vm673, %v3692, 0
        %v4405 = vsel %vm673, %v3693, 0
        %v4408 = vsel %vm673, %v3694, 0
        %v4411 = vsel %vm673, %v3695, 0
        %v4414 = vsel %vm673, %v3696, 0
        %v4417 = vsel %vm673, %v3697, 0
        %v4420 = vsel %vm673, %v3698, 0
        %v4423 = vsel %vm673, %v3699, 0
        %v4426 = vsel %vm673, %v3700, 0
        %v4429 = vsel %vm673, %v3701, 0
        %v4432 = vsel %vm673, %v3702, 0
        %v4435 = vsel %vm673, %v3703, 0
        %v4438 = vsel %vm673, %v3704, 0
        %v4441 = vsel %vm673, %v3705, 0
        %v4444 = vsel %vm673, %v3706, 0
        %v4447 = vsel %vm673, %v3707, 0
        %v4450 = vsel %vm673, %v3708, 0
        %v4453 = vsel %vm673, %v3709, 0
        %v4456 = vsel %vm673, %v3710, 0
        %v4459 = vsel %vm673, %v3711, 0
        %v4462 = vsel %vm673, %v3712, 0
        %v4465 = vsel %vm673, %v3713, 0
        %v4468 = vsel %vm673, %v3714, 0
        %v4471 = vsel %vm673, %v3715, 0
        %v4474 = vsel %vm673, %v3716, 0
        %v4477 = vsel %vm673, %v3717, 0
        %v4480 = vsel %vm673, %v3718, 0
        %v4483 = vsel %vm673, %v3719, 0
        %v4486 = vsel %vm673, %v3720, 0
        %v4489 = vsel %vm673, %v3721, 0
        %v4492 = vsel %vm673, %v3722, 0
        %4494 = vmatprep.subr.mxu0 0.0
        %4495 = vmatpush1.msra.mxu0 %v4390
        %4496 = vmatprep.subr.mxu0 0.0
        %4497 = vmatpush1.msra.mxu0 %v4395
        %4498 = vmatprep.subr.mxu0 0.0
        %4499 = vmatpush1.msra.mxu0 0.0
        %4500 = vmatprep.subr.mxu0 0.0
        %4501 = vmatpush1.msra.mxu0 0.0
        %4502 = vmatprep.subr.mxu0 0.0
        %4503 = vmatpush1.msra.mxu0 0.0
        %4504 = vmatprep.subr.mxu0 0.0
        %4505 = vmatpush1.msra.mxu0 0.0
        %4506 = vmatprep.subr.mxu0 0.0
        %4507 = vmatpush1.msra.mxu0 0.0
        %4508 = vmatprep.subr.mxu0 0.0
        %4509 = vmatpush1.msra.mxu0 0.0
        %4510 = vmatprep.subr.mxu0 0.0
        %4511 = vmatpush1.msra.mxu0 0.0
        %4512 = vmatprep.subr.mxu0 0.0
        %4513 = vmatpush1.msra.mxu0 0.0
        %4514 = vmatprep.subr.mxu0 0.0
        %4515 = vmatpush1.msra.mxu0 0.0
        %4516 = vmatprep.subr.mxu0 0.0
        %4517 = vmatpush1.msra.mxu0 0.0
        %4518 = vmatprep.subr.mxu0 0.0
        %4519 = vmatpush1.msra.mxu0 0.0
        %4520 = vmatprep.subr.mxu0 0.0
        %4521 = vmatpush1.msra.mxu0 0.0
        %4522 = vmatprep.subr.mxu0 0.0
        %4523 = vmatpush1.msra.mxu0 0.0
        %4524 = vmatprep.subr.mxu0 0.0
        %4525 = vmatpush1.msra.mxu0 0.0
        %4526 = vmatprep.subr.mxu0 0.0
        %4527 = vmatpush1.msra.mxu0 0.0
        %4528 = vmatprep.subr.mxu0 0.0
        %4529 = vmatpush1.msra.mxu0 0.0
        %4530 = vmatprep.subr.mxu0 0.0
        %4531 = vmatpush1.msra.mxu0 0.0
        %4532 = vmatprep.subr.mxu0 0.0
        %4533 = vmatpush1.msra.mxu0 0.0
        %4534 = vmatprep.subr.mxu0 0.0
        %4535 = vmatpush1.msra.mxu0 0.0
        %4536 = vmatprep.subr.mxu0 0.0
        %4537 = vmatpush1.msra.mxu0 0.0
        %4538 = vmatprep.subr.mxu0 0.0
        %4539 = vmatpush1.msra.mxu0 0.0
        %4540 = vmatprep.subr.mxu0 0.0
        %4541 = vmatpush1.msra.mxu0 0.0
        %4542 = vmatprep.subr.mxu0 0.0
        %4543 = vmatpush1.msra.mxu0 0.0
        %4544 = vmatprep.subr.mxu0 0.0
        %4545 = vmatpush1.msra.mxu0 0.0
        %4546 = vmatprep.subr.mxu0 0.0
        %4547 = vmatpush1.msra.mxu0 0.0
        %4548 = vmatprep.subr.mxu0 0.0
        %4549 = vmatpush1.msra.mxu0 0.0
        %4550 = vmatprep.subr.mxu0 0.0
        %4551 = vmatpush1.msra.mxu0 0.0
        %4552 = vmatprep.subr.mxu0 0.0
        %4553 = vmatpush1.msra.mxu0 0.0
        %4554 = vmatprep.subr.mxu0 0.0
        %4555 = vmatpush1.msra.mxu0 0.0
        %4556 = vmatprep.subr.mxu0 0.0
        %4557 = vmatpush1.msra.mxu0 0.0
        %4558 = vmatprep.mubr.f32.mxu0 0.0
        %4559 = vmatmul.mubr.f32.gmra.mrb[0].mxu0 %v4399
        %v4560 = vpop.f32.mrb[0].mxu0
        %v4561 = vadd.f32 0.0, %v4560
        %v4562 = vpop.f32.mrb[0].mxu0
        %4563 = vmatprep.mubr.f32.mxu0 0.0
        %4564 = vmatmul.mubr.f32.gmra.mrb[0].mxu0 %v4402
        %v4565 = vpop.f32.mrb[0].mxu0
        %v4566 = vadd.f32 0.0, %v4565
        %v4567 = vpop.f32.mrb[0].mxu0
        %4568 = vmatprep.mubr.f32.mxu0 0.0
        %4569 = vmatmul.mubr.f32.gmra.mrb[0].mxu0 %v4405
        %v4570 = vpop.f32.mrb[0].mxu0
        %v4571 = vadd.f32 0.0, %v4570
        %v4572 = vpop.f32.mrb[0].mxu0
        %4573 = vmatprep.mubr.f32.mxu0 0.0
        %4574 = vmatmul.mubr.f32.gmra.mrb[0].mxu0 %v4408
        %v4575 = vpop.f32.mrb[0].mxu0
        %v4576 = vadd.f32 0.0, %v4575
        %v4577 = vpop.f32.mrb[0].mxu0
        %4578 = vmatprep.mubr.f32.mxu0 0.0
        %4579 = vmatmul.mubr.f32.gmra.mrb[0].mxu0 %v4411
        %v4580 = vpop.f32.mrb[0].mxu0
        %v4581 = vadd.f32 0.0, %v4580
        %v4582 = vpop.f32.mrb[0].mxu0
        %4583 = vmatprep.mubr.f32.mxu0 0.0
        %4584 = vmatmul.mubr.f32.gmra.mrb[0].mxu0 %v4414
        %v4585 = vpop.f32.mrb[0].mxu0
        %v4586 = vadd.f32 0.0, %v4585
        %v4587 = vpop.f32.mrb[0].mxu0
        %4588 = vmatprep.mubr.f32.mxu0 0.0
        %4589 = vmatmul.mubr.f32.gmra.mrb[0].mxu0 %v4417
        %v4590 = vpop.f32.mrb[0].mxu0
        %v4591 = vadd.f32 0.0, %v4590
        %v4592 = vpop.f32.mrb[0].mxu0
        %4593 = vmatprep.mubr.f32.mxu0 0.0
        %4594 = vmatmul.mubr.f32.gmra.mrb[0].mxu0 %v4420
        %v4595 = vpop.f32.mrb[0].mxu0
        %v4596 = vadd.f32 0.0, %v4595
        %v4597 = vpop.f32.mrb[0].mxu0
        %4598 = vmatprep.mubr.f32.mxu0 0.0
        %4599 = vmatmul.mubr.f32.gmra.mrb[0].mxu0 %v4423
        %v4600 = vpop.f32.mrb[0].mxu0
        %v4601 = vadd.f32 0.0, %v4600
        %v4602 = vpop.f32.mrb[0].mxu0
        %4603 = vmatprep.mubr.f32.mxu0 0.0
        %4604 = vmatmul.mubr.f32.gmra.mrb[0].mxu0 %v4426
        %v4605 = vpop.f32.mrb[0].mxu0
        %v4606 = vadd.f32 0.0, %v4605
        %v4607 = vpop.f32.mrb[0].mxu0
        %4608 = vmatprep.mubr.f32.mxu0 0.0
        %4609 = vmatmul.mubr.f32.gmra.mrb[0].mxu0 %v4429
        %v4610 = vpop.f32.mrb[0].mxu0
        %v4611 = vadd.f32 0.0, %v4610
        %v4612 = vpop.f32.mrb[0].mxu0
        %4613 = vmatprep.mubr.f32.mxu0 0.0
        %4614 = vmatmul.mubr.f32.gmra.mrb[0].mxu0 %v4432
        %v4615 = vpop.f32.mrb[0].mxu0
        %v4616 = vadd.f32 0.0, %v4615
        %v4617 = vpop.f32.mrb[0].mxu0
        %4618 = vmatprep.mubr.f32.mxu0 0.0
        %4619 = vmatmul.mubr.f32.gmra.mrb[0].mxu0 %v4435
        %v4620 = vpop.f32.mrb[0].mxu0
        %v4621 = vadd.f32 0.0, %v4620
        %v4622 = vpop.f32.mrb[0].mxu0
        %4623 = vmatprep.mubr.f32.mxu0 0.0
        %4624 = vmatmul.mubr.f32.gmra.mrb[0].mxu0 %v4438
        %v4625 = vpop.f32.mrb[0].mxu0
        %v4626 = vadd.f32 0.0, %v4625
        %v4627 = vpop.f32.mrb[0].mxu0
        %4628 = vmatprep.mubr.f32.mxu0 0.0
        %4629 = vmatmul.mubr.f32.gmra.mrb[0].mxu0 %v4441
        %v4630 = vpop.f32.mrb[0].mxu0
        %v4631 = vadd.f32 0.0, %v4630
        %v4632 = vpop.f32.mrb[0].mxu0
        %4633 = vmatprep.mubr.f32.mxu0 0.0
        %4634 = vmatmul.mubr.f32.gmra.mrb[0].mxu0 %v4444
        %v4635 = vpop.f32.mrb[0].mxu0
        %v4636 = vadd.f32 0.0, %v4635
        %v4637 = vpop.f32.mrb[0].mxu0
        %4638 = vmatprep.mubr.f32.mxu0 0.0
        %4639 = vmatmul.mubr.f32.gmra.mrb[0].mxu0 %v4447
        %v4640 = vpop.f32.mrb[0].mxu0
        %v4641 = vadd.f32 0.0, %v4640
        %v4642 = vpop.f32.mrb[0].mxu0
        %4643 = vmatprep.mubr.f32.mxu0 0.0
        %4644 = vmatmul.mubr.f32.gmra.mrb[0].mxu0 %v4450
        %v4645 = vpop.f32.mrb[0].mxu0
        %v4646 = vadd.f32 0.0, %v4645
        %v4647 = vpop.f32.mrb[0].mxu0
        %4648 = vmatprep.mubr.f32.mxu0 0.0
        %4649 = vmatmul.mubr.f32.gmra.mrb[0].mxu0 %v4453
        %v4650 = vpop.f32.mrb[0].mxu0
        %v4651 = vadd.f32 0.0, %v4650
        %v4652 = vpop.f32.mrb[0].mxu0
        %4653 = vmatprep.mubr.f32.mxu0 0.0
        %4654 = vmatmul.mubr.f32.gmra.mrb[0].mxu0 %v4456
        %v4655 = vpop.f32.mrb[0].mxu0
        %v4656 = vadd.f32 0.0, %v4655
        %v4657 = vpop.f32.mrb[0].mxu0
        %4658 = vmatprep.mubr.f32.mxu0 0.0
        %4659 = vmatmul.mubr.f32.gmra.mrb[0].mxu0 %v4459
        %v4660 = vpop.f32.mrb[0].mxu0
        %v4661 = vadd.f32 0.0, %v4660
        %v4662 = vpop.f32.mrb[0].mxu0
        %4663 = vmatprep.mubr.f32.mxu0 0.0
        %4664 = vmatmul.mubr.f32.gmra.mrb[0].mxu0 %v4462
        %v4665 = vpop.f32.mrb[0].mxu0
        %v4666 = vadd.f32 0.0, %v4665
        %v4667 = vpop.f32.mrb[0].mxu0
        %4668 = vmatprep.mubr.f32.mxu0 0.0
        %4669 = vmatmul.mubr.f32.gmra.mrb[0].mxu0 %v4465
        %v4670 = vpop.f32.mrb[0].mxu0
        %v4671 = vadd.f32 0.0, %v4670
        %v4672 = vpop.f32.mrb[0].mxu0
        %4673 = vmatprep.mubr.f32.mxu0 0.0
        %4674 = vmatmul.mubr.f32.gmra.mrb[0].mxu0 %v4468
        %v4675 = vpop.f32.mrb[0].mxu0
        %v4676 = vadd.f32 0.0, %v4675
        %v4677 = vpop.f32.mrb[0].mxu0
        %4678 = vmatprep.mubr.f32.mxu0 0.0
        %4679 = vmatmul.mubr.f32.gmra.mrb[0].mxu0 %v4471
        %v4680 = vpop.f32.mrb[0].mxu0
        %v4681 = vadd.f32 0.0, %v4680
        %v4682 = vpop.f32.mrb[0].mxu0
        %4683 = vmatprep.mubr.f32.mxu0 0.0
        %4684 = vmatmul.mubr.f32.gmra.mrb[0].mxu0 %v4474
        %v4685 = vpop.f32.mrb[0].mxu0
        %v4686 = vadd.f32 0.0, %v4685
        %v4687 = vpop.f32.mrb[0].mxu0
        %4688 = vmatprep.mubr.f32.mxu0 0.0
        %4689 = vmatmul.mubr.f32.gmra.mrb[0].mxu0 %v4477
        %v4690 = vpop.f32.mrb[0].mxu0
        %v4691 = vadd.f32 0.0, %v4690
        %v4692 = vpop.f32.mrb[0].mxu0
        %4693 = vmatprep.mubr.f32.mxu0 0.0
        %4694 = vmatmul.mubr.f32.gmra.mrb[0].mxu0 %v4480
        %v4695 = vpop.f32.mrb[0].mxu0
        %v4696 = vadd.f32 0.0, %v4695
        %v4697 = vpop.f32.mrb[0].mxu0
        %4698 = vmatprep.mubr.f32.mxu0 0.0
        %4699 = vmatmul.mubr.f32.gmra.mrb[0].mxu0 %v4483
        %v4700 = vpop.f32.mrb[0].mxu0
        %v4701 = vadd.f32 0.0, %v4700
        %v4702 = vpop.f32.mrb[0].mxu0
        %4703 = vmatprep.mubr.f32.mxu0 0.0
        %4704 = vmatmul.mubr.f32.gmra.mrb[0].mxu0 %v4486
        %v4705 = vpop.f32.mrb[0].mxu0
        %v4706 = vadd.f32 0.0, %v4705
        %v4707 = vpop.f32.mrb[0].mxu0
        %4708 = vmatprep.mubr.f32.mxu0 0.0
        %4709 = vmatmul.mubr.f32.gmra.mrb[0].mxu0 %v4489
        %v4710 = vpop.f32.mrb[0].mxu0
        %v4711 = vadd.f32 0.0, %v4710
        %v4712 = vpop.f32.mrb[0].mxu0
        %4713 = vmatprep.mubr.f32.mxu0 0.0
        %4714 = vmatmul.mubr.f32.gmra.mrb[0].mxu0 %v4492
        %v4715 = vpop.f32.mrb[0].mxu0
        %v4716 = vadd.f32 0.0, %v4715
        %v4717 = vpop.f32.mrb[0].mxu0
        %4718 = vdwg.mxu0
        %v4719 = vrcp.pop %v4561
        %v4720 = vmul.f32 %v4127, %v4719
        %v4721 = vrcp.pop %v4566
        %v4722 = vmul.f32 %v4132, %v4721
        %v4723 = vrcp.pop %v4571
        %v4724 = vmul.f32 %v4137, %v4723
        %v4725 = vrcp.pop %v4576
        %v4726 = vmul.f32 %v4142, %v4725
        %v4727 = vrcp.pop %v4581
        %v4728 = vmul.f32 %v4147, %v4727
        %v4729 = vrcp.pop %v4586
        %v4730 = vmul.f32 %v4152, %v4729
        %v4731 = vrcp.pop %v4591
        %v4732 = vmul.f32 %v4157, %v4731
        %v4733 = vrcp.pop %v4596
        %v4734 = vmul.f32 %v4162, %v4733
        %v4735 = vrcp.pop %v4601
        %v4736 = vmul.f32 %v4167, %v4735
        %v4737 = vrcp.pop %v4606
        %v4738 = vmul.f32 %v4172, %v4737
        %v4739 = vrcp.pop %v4611
        %v4740 = vmul.f32 %v4177, %v4739
        %v4741 = vrcp.pop %v4616
        %v4742 = vmul.f32 %v4182, %v4741
        %v4743 = vrcp.pop %v4621
        %v4744 = vmul.f32 %v4187, %v4743
        %v4745 = vrcp.pop %v4626
        %v4746 = vmul.f32 %v4192, %v4745
        %v4747 = vrcp.pop %v4631
        %v4748 = vmul.f32 %v4197, %v4747
        %v4749 = vrcp.pop %v4636
        %v4750 = vmul.f32 %v4202, %v4749
        %v4751 = vrcp.pop %v4641
        %v4752 = vmul.f32 %v4207, %v4751
        %v4753 = vrcp.pop %v4646
        %v4754 = vmul.f32 %v4212, %v4753
        %v4755 = vrcp.pop %v4651
        %v4756 = vmul.f32 %v4217, %v4755
        %v4757 = vrcp.pop %v4656
        %v4758 = vmul.f32 %v4222, %v4757
        %v4759 = vrcp.pop %v4661
        %v4760 = vmul.f32 %v4227, %v4759
        %v4761 = vrcp.pop %v4666
        %v4762 = vmul.f32 %v4232, %v4761
        %v4763 = vrcp.pop %v4671
        %v4764 = vmul.f32 %v4237, %v4763
        %v4765 = vrcp.pop %v4676
        %v4766 = vmul.f32 %v4242, %v4765
        %v4767 = vrcp.pop %v4681
        %v4768 = vmul.f32 %v4247, %v4767
        %v4769 = vrcp.pop %v4686
        %v4770 = vmul.f32 %v4252, %v4769
        %v4771 = vrcp.pop %v4691
        %v4772 = vmul.f32 %v4257, %v4771
        %v4773 = vrcp.pop %v4696
        %v4774 = vmul.f32 %v4262, %v4773
        %v4775 = vrcp.pop %v4701
        %v4776 = vmul.f32 %v4267, %v4775
        %v4777 = vrcp.pop %v4706
        %v4778 = vmul.f32 %v4272, %v4777
        %v4779 = vrcp.pop %v4711
        %v4780 = vmul.f32 %v4277, %v4779
        %v4781 = vrcp.pop %v4716
        %v4782 = vmul.f32 %v4282, %v4781
        %v4783 = vadd.f32 %v4720, 1e-06
        %v4784 = vadd.f32 %v4722, 1e-06
        %v4785 = vadd.f32 %v4724, 1e-06
        %v4786 = vadd.f32 %v4726, 1e-06
        %v4787 = vadd.f32 %v4728, 1e-06
        %v4788 = vadd.f32 %v4730, 1e-06
        %v4789 = vadd.f32 %v4732, 1e-06
        %v4790 = vadd.f32 %v4734, 1e-06
        %v4791 = vadd.f32 %v4736, 1e-06
        %v4792 = vadd.f32 %v4738, 1e-06
        %v4793 = vadd.f32 %v4740, 1e-06
        %v4794 = vadd.f32 %v4742, 1e-06
        %v4795 = vadd.f32 %v4744, 1e-06
        %v4796 = vadd.f32 %v4746, 1e-06
        %v4797 = vadd.f32 %v4748, 1e-06
        %v4798 = vadd.f32 %v4750, 1e-06
        %v4799 = vadd.f32 %v4752, 1e-06
        %v4800 = vadd.f32 %v4754, 1e-06
        %v4801 = vadd.f32 %v4756, 1e-06
        %v4802 = vadd.f32 %v4758, 1e-06
        %v4803 = vadd.f32 %v4760, 1e-06
        %v4804 = vadd.f32 %v4762, 1e-06
        %v4805 = vadd.f32 %v4764, 1e-06
        %v4806 = vadd.f32 %v4766, 1e-06
        %v4807 = vadd.f32 %v4768, 1e-06
        %v4808 = vadd.f32 %v4770, 1e-06
        %v4809 = vadd.f32 %v4772, 1e-06
        %v4810 = vadd.f32 %v4774, 1e-06
        %v4811 = vadd.f32 %v4776, 1e-06
        %v4812 = vadd.f32 %v4778, 1e-06
        %v4813 = vadd.f32 %v4780, 1e-06
        %v4814 = vadd.f32 %v4782, 1e-06
        %v4815 = vmul.f32 %v3691, %v4783
        %v4816 = vmul.f32 %v3692, %v4784
        %v4817 = vmul.f32 %v3693, %v4785
        %v4818 = vmul.f32 %v3694, %v4786
        %v4819 = vmul.f32 %v3695, %v4787
        %v4820 = vmul.f32 %v3696, %v4788
        %v4821 = vmul.f32 %v3697, %v4789
        %v4822 = vmul.f32 %v3698, %v4790
        %v4823 = vmul.f32 %v3699, %v4791
        %v4824 = vmul.f32 %v3700, %v4792
        %v4825 = vmul.f32 %v3701, %v4793
        %v4826 = vmul.f32 %v3702, %v4794
        %v4827 = vmul.f32 %v3703, %v4795
        %v4828 = vmul.f32 %v3704, %v4796
        %v4829 = vmul.f32 %v3705, %v4797
        %v4830 = vmul.f32 %v3706, %v4798
        %v4831 = vmul.f32 %v3707, %v4799
        %v4832 = vmul.f32 %v3708, %v4800
        %v4833 = vmul.f32 %v3709, %v4801
        %v4834 = vmul.f32 %v3710, %v4802
        %v4835 = vmul.f32 %v3711, %v4803
        %v4836 = vmul.f32 %v3712, %v4804
        %v4837 = vmul.f32 %v3713, %v4805
        %v4838 = vmul.f32 %v3714, %v4806
        %v4839 = vmul.f32 %v3715, %v4807
        %v4840 = vmul.f32 %v3716, %v4808
        %v4841 = vmul.f32 %v3717, %v4809
        %v4842 = vmul.f32 %v3718, %v4810
        %v4843 = vmul.f32 %v3719, %v4811
        %v4844 = vmul.f32 %v3720, %v4812
        %v4845 = vmul.f32 %v3721, %v4813
        %v4846 = vmul.f32 %v3722, %v4814
        %4847 = vmatprep.subr.mxu0 0.0
        %4848 = vmatpush1.msra.mxu0 %v4815
        %4849 = vmatprep.subr.mxu0 0.0
        %4850 = vmatpush1.msra.mxu0 %v4816
        %4851 = vmatprep.subr.mxu0 0.0
        %4852 = vmatpush1.msra.mxu0 %v4817
        %4853 = vmatprep.subr.mxu0 0.0
        %4854 = vmatpush1.msra.mxu0 %v4818
        %4855 = vmatprep.subr.mxu0 0.0
        %4856 = vmatpush1.msra.mxu0 %v4819
        %4857 = vmatprep.subr.mxu0 0.0
        %4858 = vmatpush1.msra.mxu0 %v4820
        %4859 = vmatprep.subr.mxu0 0.0
        %4860 = vmatpush1.msra.mxu0 %v4821
        %4861 = vmatprep.subr.mxu0 0.0
        %4862 = vmatpush1.msra.mxu0 %v4822
        %4863 = vmatprep.subr.mxu0 0.0
        %4864 = vmatpush1.msra.mxu0 %v4823
        %4865 = vmatprep.subr.mxu0 0.0
        %4866 = vmatpush1.msra.mxu0 %v4824
        %4867 = vmatprep.subr.mxu0 0.0
        %4868 = vmatpush1.msra.mxu0 %v4825
        %4869 = vmatprep.subr.mxu0 0.0
        %4870 = vmatpush1.msra.mxu0 %v4826
        %4871 = vmatprep.subr.mxu0 0.0
        %4872 = vmatpush1.msra.mxu0 %v4827
        %4873 = vmatprep.subr.mxu0 0.0
        %4874 = vmatpush1.msra.mxu0 %v4828
        %4875 = vmatprep.subr.mxu0 0.0
        %4876 = vmatpush1.msra.mxu0 %v4829
        %4877 = vmatprep.subr.mxu0 0.0
        %4878 = vmatpush1.msra.mxu0 %v4830
        %4879 = vmatprep.subr.mxu0 0.0
        %4880 = vmatpush1.msra.mxu0 %v4831
        %4881 = vmatprep.subr.mxu0 0.0
        %4882 = vmatpush1.msra.mxu0 %v4832
        %4883 = vmatprep.subr.mxu0 0.0
        %4884 = vmatpush1.msra.mxu0 %v4833
        %4885 = vmatprep.subr.mxu0 0.0
        %4886 = vmatpush1.msra.mxu0 %v4834
        %4887 = vmatprep.subr.mxu0 0.0
        %4888 = vmatpush1.msra.mxu0 %v4835
        %4889 = vmatprep.subr.mxu0 0.0
        %4890 = vmatpush1.msra.mxu0 %v4836
        %4891 = vmatprep.subr.mxu0 0.0
        %4892 = vmatpush1.msra.mxu0 %v4837
        %4893 = vmatprep.subr.mxu0 0.0
        %4894 = vmatpush1.msra.mxu0 %v4838
        %4895 = vmatprep.subr.mxu0 0.0
        %4896 = vmatpush1.msra.mxu0 %v4839
        %4897 = vmatprep.subr.mxu0 0.0
        %4898 = vmatpush1.msra.mxu0 %v4840
        %4899 = vmatprep.subr.mxu0 0.0
        %4900 = vmatpush1.msra.mxu0 %v4841
        %4901 = vmatprep.subr.mxu0 0.0
        %4902 = vmatpush1.msra.mxu0 %v4842
        %4903 = vmatprep.subr.mxu0 0.0
        %4904 = vmatpush1.msra.mxu0 %v4843
        %4905 = vmatprep.subr.mxu0 0.0
        %4906 = vmatpush1.msra.mxu0 %v4844
        %4907 = vmatprep.subr.mxu0 0.0
        %4908 = vmatpush1.msra.mxu0 %v4845
        %4909 = vmatprep.subr.mxu0 0.0
        %4910 = vmatpush1.msra.mxu0 %v4846
        %4911 = vmatprep.mubr.f32.mxu0 %v281
        %4912 = vmatmul.mubr.f32.gmra.mrb[0].mxu0 %v280
        %v4913 = vpop.f32.mrb[0].mxu0
        %v4914 = vadd.f32 0.0, %v4913
        %v4915 = vpop.f32.mrb[0].mxu0
        %4916 = vmatprep.mubr.f32.mxu0 %v283
        %4917 = vmatmul.mubr.f32.gmra.mrb[0].mxu0 %v282
        %v4918 = vpop.f32.mrb[0].mxu0
        %v4919 = vadd.f32 0.0, %v4918
        %v4920 = vpop.f32.mrb[0].mxu0
        %4921 = vmatprep.mubr.f32.mxu0 %v285
        %4922 = vmatmul.mubr.f32.gmra.mrb[0].mxu0 %v284
        %v4923 = vpop.f32.mrb[0].mxu0
        %v4924 = vadd.f32 0.0, %v4923
        %v4925 = vpop.f32.mrb[0].mxu0
        %4926 = vmatprep.mubr.f32.mxu0 %v287
        %4927 = vmatmul.mubr.f32.gmra.mrb[0].mxu0 %v286
        %v4928 = vpop.f32.mrb[0].mxu0
        %v4929 = vadd.f32 0.0, %v4928
        %v4930 = vpop.f32.mrb[0].mxu0
        %4931 = vdwg.mxu0
        %4932 = vxpose.xlu0.b32.start [1/16] %v4815, 128
        %4933 = vxpose.xlu0.b32.cont [2/16] %v4816, 128
        %4934 = vxpose.xlu0.b32.cont [3/16] %v4817, 128
        %4935 = vxpose.xlu0.b32.cont [4/16] %v4818, 128
        %4936 = vxpose.xlu0.b32.cont [5/16] %v4819, 128
        %4937 = vxpose.xlu0.b32.cont [6/16] %v4820, 128
        %4938 = vxpose.xlu0.b32.cont [7/16] %v4821, 128
        %4939 = vxpose.xlu0.b32.cont [8/16] %v4822, 128
        %4940 = vxpose.xlu0.b32.cont [9/16] %v4823, 128
        %4941 = vxpose.xlu0.b32.cont [10/16] %v4824, 128
        %4942 = vxpose.xlu0.b32.cont [11/16] %v4825, 128
        %4943 = vxpose.xlu0.b32.cont [12/16] %v4826, 128
        %4944 = vxpose.xlu0.b32.cont [13/16] %v4827, 128
        %4945 = vxpose.xlu0.b32.cont [14/16] %v4828, 128
        %4946 = vxpose.xlu0.b32.cont [15/16] %v4829, 128
        %4947 = vxpose.xlu0.b32.end [16/16] %v4830, 128
        %v4948 = vpop.trf.xlu0
        %v4949 = vpop.trf.xlu0
        %v4950 = vpop.trf.xlu0
        %v4951 = vpop.trf.xlu0
        %v4952 = vpop.trf.xlu0
        %v4953 = vpop.trf.xlu0
        %v4954 = vpop.trf.xlu0
        %v4955 = vpop.trf.xlu0
        %v4956 = vpop.trf.xlu0
        %v4957 = vpop.trf.xlu0
        %v4958 = vpop.trf.xlu0
        %v4959 = vpop.trf.xlu0
        %v4960 = vpop.trf.xlu0
        %v4961 = vpop.trf.xlu0
        %v4962 = vpop.trf.xlu0
        %v4963 = vpop.trf.xlu0
        %4964 = vxpose.xlu0.b32.start [1/16] %v4831, 128
        %4965 = vxpose.xlu0.b32.cont [2/16] %v4832, 128
        %4966 = vxpose.xlu0.b32.cont [3/16] %v4833, 128
        %4967 = vxpose.xlu0.b32.cont [4/16] %v4834, 128
        %4968 = vxpose.xlu0.b32.cont [5/16] %v4835, 128
        %4969 = vxpose.xlu0.b32.cont [6/16] %v4836, 128
        %4970 = vxpose.xlu0.b32.cont [7/16] %v4837, 128
        %4971 = vxpose.xlu0.b32.cont [8/16] %v4838, 128
        %4972 = vxpose.xlu0.b32.cont [9/16] %v4839, 128
        %4973 = vxpose.xlu0.b32.cont [10/16] %v4840, 128
        %4974 = vxpose.xlu0.b32.cont [11/16] %v4841, 128
        %4975 = vxpose.xlu0.b32.cont [12/16] %v4842, 128
        %4976 = vxpose.xlu0.b32.cont [13/16] %v4843, 128
        %4977 = vxpose.xlu0.b32.cont [14/16] %v4844, 128
        %4978 = vxpose.xlu0.b32.cont [15/16] %v4845, 128
        %4979 = vxpose.xlu0.b32.end [16/16] %v4846, 128
        %v4980 = vpop.trf.xlu0
        %v4981 = vpop.trf.xlu0
        %v4982 = vpop.trf.xlu0
        %v4983 = vpop.trf.xlu0
        %v4984 = vpop.trf.xlu0
        %v4985 = vpop.trf.xlu0
        %v4986 = vpop.trf.xlu0
        %v4987 = vpop.trf.xlu0
        %v4988 = vpop.trf.xlu0
        %v4989 = vpop.trf.xlu0
        %v4990 = vpop.trf.xlu0
        %v4991 = vpop.trf.xlu0
        %v4992 = vpop.trf.xlu0
        %v4993 = vpop.trf.xlu0
        %v4994 = vpop.trf.xlu0
        %v4995 = vpop.trf.xlu0
        %4996 = vmatprep.subr.mxu0 0.0
        %4997 = vmatpush1.msra.mxu0 %v4815
        %4998 = vmatprep.subr.mxu0 0.0
        %4999 = vmatpush1.msra.mxu0 %v4816
        %5000 = vmatprep.subr.mxu0 0.0
        %5001 = vmatpush1.msra.mxu0 %v4817
        %5002 = vmatprep.subr.mxu0 0.0
        %5003 = vmatpush1.msra.mxu0 %v4818
        %5004 = vmatprep.subr.mxu0 0.0
        %5005 = vmatpush1.msra.mxu0 %v4819
        %5006 = vmatprep.subr.mxu0 0.0
        %5007 = vmatpush1.msra.mxu0 %v4820
        %5008 = vmatprep.subr.mxu0 0.0
        %5009 = vmatpush1.msra.mxu0 %v4821
        %5010 = vmatprep.subr.mxu0 0.0
        %5011 = vmatpush1.msra.mxu0 %v4822
        %5012 = vmatprep.subr.mxu0 0.0
        %5013 = vmatpush1.msra.mxu0 %v4823
        %5014 = vmatprep.subr.mxu0 0.0
        %5015 = vmatpush1.msra.mxu0 %v4824
        %5016 = vmatprep.subr.mxu0 0.0
        %5017 = vmatpush1.msra.mxu0 %v4825
        %5018 = vmatprep.subr.mxu0 0.0
        %5019 = vmatpush1.msra.mxu0 %v4826
        %5020 = vmatprep.subr.mxu0 0.0
        %5021 = vmatpush1.msra.mxu0 %v4827
        %5022 = vmatprep.subr.mxu0 0.0
        %5023 = vmatpush1.msra.mxu0 %v4828
        %5024 = vmatprep.subr.mxu0 0.0
        %5025 = vmatpush1.msra.mxu0 %v4829
        %5026 = vmatprep.subr.mxu0 0.0
        %5027 = vmatpush1.msra.mxu0 %v4830
        %5028 = vmatprep.subr.mxu0 0.0
        %5029 = vmatpush1.msra.mxu0 %v4831
        %5030 = vmatprep.subr.mxu0 0.0
        %5031 = vmatpush1.msra.mxu0 %v4832
        %5032 = vmatprep.subr.mxu0 0.0
        %5033 = vmatpush1.msra.mxu0 %v4833
        %5034 = vmatprep.subr.mxu0 0.0
        %5035 = vmatpush1.msra.mxu0 %v4834
        %5036 = vmatprep.subr.mxu0 0.0
        %5037 = vmatpush1.msra.mxu0 %v4835
        %5038 = vmatprep.subr.mxu0 0.0
        %5039 = vmatpush1.msra.mxu0 %v4836
        %5040 = vmatprep.subr.mxu0 0.0
        %5041 = vmatpush1.msra.mxu0 %v4837
        %5042 = vmatprep.subr.mxu0 0.0
        %5043 = vmatpush1.msra.mxu0 %v4838
        %5044 = vmatprep.subr.mxu0 0.0
        %5045 = vmatpush1.msra.mxu0 %v4839
        %5046 = vmatprep.subr.mxu0 0.0
        %5047 = vmatpush1.msra.mxu0 %v4840
        %5048 = vmatprep.subr.mxu0 0.0
        %5049 = vmatpush1.msra.mxu0 %v4841
        %5050 = vmatprep.subr.mxu0 0.0
        %5051 = vmatpush1.msra.mxu0 %v4842
        %5052 = vmatprep.subr.mxu0 0.0
        %5053 = vmatpush1.msra.mxu0 %v4843
        %5054 = vmatprep.subr.mxu0 0.0
        %5055 = vmatpush1.msra.mxu0 %v4844
        %5056 = vmatprep.subr.mxu0 0.0
        %5057 = vmatpush1.msra.mxu0 %v4845
        %5058 = vmatprep.subr.mxu0 0.0
        %5059 = vmatpush1.msra.mxu0 %v4846
        %5060 = vmatprep.mubr.f32.mxu0 %v4980
        %5061 = vmatmul.mubr.f32.gmra.mrb[0].mxu0 %v4948
        %v5062 = vpop.f32.mrb[0].mxu0
        %v5063 = vadd.f32 0.0, %v5062
        %v5064 = vpop.f32.mrb[0].mxu0
        %5065 = vmatprep.mubr.f32.mxu0 %v4981
        %5066 = vmatmul.mubr.f32.gmra.mrb[0].mxu0 %v4949
        %v5067 = vpop.f32.mrb[0].mxu0
        %v5068 = vadd.f32 0.0, %v5067
        %v5069 = vpop.f32.mrb[0].mxu0
        %5070 = vdwg.mxu0
        %v5072 = vsel %vm673, %v4056, 0
        %v5075 = vsel %vm673, %v4057, 0
        %v5078 = vsel %vm673, %v4058, 0
        %v5081 = vsel %vm673, %v4059, 0
        %5083 = vmatprep.subr.mxu0 0.0
        %5084 = vmatpush1.msra.mxu0 %v5063
        %5085 = vmatprep.subr.mxu0 0.0
        %5086 = vmatpush1.msra.mxu0 %v5068
        %5087 = vmatprep.subr.mxu0 0.0
        %5088 = vmatpush1.msra.mxu0 0.0
        %5089 = vmatprep.subr.mxu0 0.0
        %5090 = vmatpush1.msra.mxu0 0.0
        %5091 = vmatprep.subr.mxu0 0.0
        %5092 = vmatpush1.msra.mxu0 0.0
        %5093 = vmatprep.subr.mxu0 0.0
        %5094 = vmatpush1.msra.mxu0 0.0
        %5095 = vmatprep.subr.mxu0 0.0
        %5096 = vmatpush1.msra.mxu0 0.0
        %5097 = vmatprep.subr.mxu0 0.0
        %5098 = vmatpush1.msra.mxu0 0.0
        %5099 = vmatprep.subr.mxu0 0.0
        %5100 = vmatpush1.msra.mxu0 0.0
        %5101 = vmatprep.subr.mxu0 0.0
        %5102 = vmatpush1.msra.mxu0 0.0
        %5103 = vmatprep.subr.mxu0 0.0
        %5104 = vmatpush1.msra.mxu0 0.0
        %5105 = vmatprep.subr.mxu0 0.0
        %5106 = vmatpush1.msra.mxu0 0.0
        %5107 = vmatprep.subr.mxu0 0.0
        %5108 = vmatpush1.msra.mxu0 0.0
        %5109 = vmatprep.subr.mxu0 0.0
        %5110 = vmatpush1.msra.mxu0 0.0
        %5111 = vmatprep.subr.mxu0 0.0
        %5112 = vmatpush1.msra.mxu0 0.0
        %5113 = vmatprep.subr.mxu0 0.0
        %5114 = vmatpush1.msra.mxu0 0.0
        %5115 = vmatprep.subr.mxu0 0.0
        %5116 = vmatpush1.msra.mxu0 0.0
        %5117 = vmatprep.subr.mxu0 0.0
        %5118 = vmatpush1.msra.mxu0 0.0
        %5119 = vmatprep.subr.mxu0 0.0
        %5120 = vmatpush1.msra.mxu0 0.0
        %5121 = vmatprep.subr.mxu0 0.0
        %5122 = vmatpush1.msra.mxu0 0.0
        %5123 = vmatprep.subr.mxu0 0.0
        %5124 = vmatpush1.msra.mxu0 0.0
        %5125 = vmatprep.subr.mxu0 0.0
        %5126 = vmatpush1.msra.mxu0 0.0
        %5127 = vmatprep.subr.mxu0 0.0
        %5128 = vmatpush1.msra.mxu0 0.0
        %5129 = vmatprep.subr.mxu0 0.0
        %5130 = vmatpush1.msra.mxu0 0.0
        %5131 = vmatprep.subr.mxu0 0.0
        %5132 = vmatpush1.msra.mxu0 0.0
        %5133 = vmatprep.subr.mxu0 0.0
        %5134 = vmatpush1.msra.mxu0 0.0
        %5135 = vmatprep.subr.mxu0 0.0
        %5136 = vmatpush1.msra.mxu0 0.0
        %5137 = vmatprep.subr.mxu0 0.0
        %5138 = vmatpush1.msra.mxu0 0.0
        %5139 = vmatprep.subr.mxu0 0.0
        %5140 = vmatpush1.msra.mxu0 0.0
        %5141 = vmatprep.subr.mxu0 0.0
        %5142 = vmatpush1.msra.mxu0 0.0
        %5143 = vmatprep.subr.mxu0 0.0
        %5144 = vmatpush1.msra.mxu0 0.0
        %5145 = vmatprep.subr.mxu0 0.0
        %5146 = vmatpush1.msra.mxu0 0.0
        %5147 = vmatprep.mubr.f32.mxu0 0.0
        %5148 = vmatmul.mubr.f32.gmra.mrb[0].mxu0 %v5072
        %v5149 = vpop.f32.mrb[0].mxu0
        %v5150 = vadd.f32 0.0, %v5149
        %v5151 = vpop.f32.mrb[0].mxu0
        %5152 = vmatprep.mubr.f32.mxu0 0.0
        %5153 = vmatmul.mubr.f32.gmra.mrb[0].mxu0 %v5075
        %v5154 = vpop.f32.mrb[0].mxu0
        %v5155 = vadd.f32 0.0, %v5154
        %v5156 = vpop.f32.mrb[0].mxu0
        %5157 = vmatprep.mubr.f32.mxu0 0.0
        %5158 = vmatmul.mubr.f32.gmra.mrb[0].mxu0 %v5078
        %v5159 = vpop.f32.mrb[0].mxu0
        %v5160 = vadd.f32 0.0, %v5159
        %v5161 = vpop.f32.mrb[0].mxu0
        %5162 = vmatprep.mubr.f32.mxu0 0.0
        %5163 = vmatmul.mubr.f32.gmra.mrb[0].mxu0 %v5081
        %v5164 = vpop.f32.mrb[0].mxu0
        %v5165 = vadd.f32 0.0, %v5164
        %v5166 = vpop.f32.mrb[0].mxu0
        %5167 = vdwg.mxu0
        %v5168 = vrcp.pop %v5150
        %v5169 = vmul.f32 %v4914, %v5168
        %v5170 = vrcp.pop %v5155
        %v5171 = vmul.f32 %v4919, %v5170
        %v5172 = vrcp.pop %v5160
        %v5173 = vmul.f32 %v4924, %v5172
        %v5174 = vrcp.pop %v5165
        %v5175 = vmul.f32 %v4929, %v5174
        %v5176 = vadd.f32 %v5169, 1e-06
        %v5177 = vadd.f32 %v5171, 1e-06
        %v5178 = vadd.f32 %v5173, 1e-06
        %v5179 = vadd.f32 %v5175, 1e-06
        %v5180 = vmul.f32 %v4056, %v5176
        %v5181 = vmul.f32 %v4057, %v5177
        %v5182 = vmul.f32 %v4058, %v5178
        %v5183 = vmul.f32 %v4059, %v5179
        %5184 = vmatprep.subr.mxu0 0.0
        %5185 = vmatpush1.msra.mxu0 %v5180
        %5186 = vmatprep.subr.mxu0 0.0
        %5187 = vmatpush1.msra.mxu0 %v5181
        %5188 = vmatprep.subr.mxu0 0.0
        %5189 = vmatpush1.msra.mxu0 %v5182
        %5190 = vmatprep.subr.mxu0 0.0
        %5191 = vmatpush1.msra.mxu0 %v5183
        %5192 = vmatprep.subr.mxu0 0.0
        %5193 = vmatpush1.msra.mxu0 0.0
        %5194 = vmatprep.subr.mxu0 0.0
        %5195 = vmatpush1.msra.mxu0 0.0
        %5196 = vmatprep.subr.mxu0 0.0
        %5197 = vmatpush1.msra.mxu0 0.0
        %5198 = vmatprep.subr.mxu0 0.0
        %5199 = vmatpush1.msra.mxu0 0.0
        %5200 = vmatprep.subr.mxu0 0.0
        %5201 = vmatpush1.msra.mxu0 0.0
        %5202 = vmatprep.subr.mxu0 0.0
        %5203 = vmatpush1.msra.mxu0 0.0
        %5204 = vmatprep.subr.mxu0 0.0
        %5205 = vmatpush1.msra.mxu0 0.0
        %5206 = vmatprep.subr.mxu0 0.0
        %5207 = vmatpush1.msra.mxu0 0.0
        %5208 = vmatprep.subr.mxu0 0.0
        %5209 = vmatpush1.msra.mxu0 0.0
        %5210 = vmatprep.subr.mxu0 0.0
        %5211 = vmatpush1.msra.mxu0 0.0
        %5212 = vmatprep.subr.mxu0 0.0
        %5213 = vmatpush1.msra.mxu0 0.0
        %5214 = vmatprep.subr.mxu0 0.0
        %5215 = vmatpush1.msra.mxu0 0.0
        %5216 = vmatprep.subr.mxu0 0.0
        %5217 = vmatpush1.msra.mxu0 0.0
        %5218 = vmatprep.subr.mxu0 0.0
        %5219 = vmatpush1.msra.mxu0 0.0
        %5220 = vmatprep.subr.mxu0 0.0
        %5221 = vmatpush1.msra.mxu0 0.0
        %5222 = vmatprep.subr.mxu0 0.0
        %5223 = vmatpush1.msra.mxu0 0.0
        %5224 = vmatprep.subr.mxu0 0.0
        %5225 = vmatpush1.msra.mxu0 0.0
        %5226 = vmatprep.subr.mxu0 0.0
        %5227 = vmatpush1.msra.mxu0 0.0
        %5228 = vmatprep.subr.mxu0 0.0
        %5229 = vmatpush1.msra.mxu0 0.0
        %5230 = vmatprep.subr.mxu0 0.0
        %5231 = vmatpush1.msra.mxu0 0.0
        %5232 = vmatprep.subr.mxu0 0.0
        %5233 = vmatpush1.msra.mxu0 0.0
        %5234 = vmatprep.subr.mxu0 0.0
        %5235 = vmatpush1.msra.mxu0 0.0
        %5236 = vmatprep.subr.mxu0 0.0
        %5237 = vmatpush1.msra.mxu0 0.0
        %5238 = vmatprep.subr.mxu0 0.0
        %5239 = vmatpush1.msra.mxu0 0.0
        %5240 = vmatprep.subr.mxu0 0.0
        %5241 = vmatpush1.msra.mxu0 0.0
        %5242 = vmatprep.subr.mxu0 0.0
        %5243 = vmatpush1.msra.mxu0 0.0
        %5244 = vmatprep.subr.mxu0 0.0
        %5245 = vmatpush1.msra.mxu0 0.0
        %5246 = vmatprep.subr.mxu0 0.0
        %5247 = vmatpush1.msra.mxu0 0.0
        %5248 = vmatprep.mubr.f32.mxu0 0.0
        %5249 = vmatmul.mubr.f32.gmra.mrb[0].mxu0 %v353
        %v5250 = vpop.f32.mrb[0].mxu0
        %v5251 = vadd.f32 0.0, %v5250
        %v5252 = vpop.f32.mrb[0].mxu0
        %5253 = vmatprep.mubr.f32.mxu0 0.0
        %5254 = vmatmul.mubr.f32.gmra.mrb[0].mxu0 %v356
        %v5255 = vpop.f32.mrb[0].mxu0
        %v5256 = vadd.f32 0.0, %v5255
        %v5257 = vpop.f32.mrb[0].mxu0
        %5258 = vmatprep.mubr.f32.mxu0 0.0
        %5259 = vmatmul.mubr.f32.gmra.mrb[0].mxu0 %v359
        %v5260 = vpop.f32.mrb[0].mxu0
        %v5261 = vadd.f32 0.0, %v5260
        %v5262 = vpop.f32.mrb[0].mxu0
        %5263 = vmatprep.mubr.f32.mxu0 0.0
        %5264 = vmatmul.mubr.f32.gmra.mrb[0].mxu0 %v362
        %v5265 = vpop.f32.mrb[0].mxu0
        %v5266 = vadd.f32 0.0, %v5265
        %v5267 = vpop.f32.mrb[0].mxu0
        %5268 = vmatprep.mubr.f32.mxu0 0.0
        %5269 = vmatmul.mubr.f32.gmra.mrb[0].mxu0 %v365
        %v5270 = vpop.f32.mrb[0].mxu0
        %v5271 = vadd.f32 0.0, %v5270
        %v5272 = vpop.f32.mrb[0].mxu0
        %5273 = vmatprep.mubr.f32.mxu0 0.0
        %5274 = vmatmul.mubr.f32.gmra.mrb[0].mxu0 %v368
        %v5275 = vpop.f32.mrb[0].mxu0
        %v5276 = vadd.f32 0.0, %v5275
        %v5277 = vpop.f32.mrb[0].mxu0
        %5278 = vmatprep.mubr.f32.mxu0 0.0
        %5279 = vmatmul.mubr.f32.gmra.mrb[0].mxu0 %v371
        %v5280 = vpop.f32.mrb[0].mxu0
        %v5281 = vadd.f32 0.0, %v5280
        %v5282 = vpop.f32.mrb[0].mxu0
        %5283 = vmatprep.mubr.f32.mxu0 0.0
        %5284 = vmatmul.mubr.f32.gmra.mrb[0].mxu0 %v374
        %v5285 = vpop.f32.mrb[0].mxu0
        %v5286 = vadd.f32 0.0, %v5285
        %v5287 = vpop.f32.mrb[0].mxu0
        %5288 = vmatprep.mubr.f32.mxu0 0.0
        %5289 = vmatmul.mubr.f32.gmra.mrb[0].mxu0 %v377
        %v5290 = vpop.f32.mrb[0].mxu0
        %v5291 = vadd.f32 0.0, %v5290
        %v5292 = vpop.f32.mrb[0].mxu0
        %5293 = vmatprep.mubr.f32.mxu0 0.0
        %5294 = vmatmul.mubr.f32.gmra.mrb[0].mxu0 %v380
        %v5295 = vpop.f32.mrb[0].mxu0
        %v5296 = vadd.f32 0.0, %v5295
        %v5297 = vpop.f32.mrb[0].mxu0
        %5298 = vmatprep.mubr.f32.mxu0 0.0
        %5299 = vmatmul.mubr.f32.gmra.mrb[0].mxu0 %v383
        %v5300 = vpop.f32.mrb[0].mxu0
        %v5301 = vadd.f32 0.0, %v5300
        %v5302 = vpop.f32.mrb[0].mxu0
        %5303 = vmatprep.mubr.f32.mxu0 0.0
        %5304 = vmatmul.mubr.f32.gmra.mrb[0].mxu0 %v386
        %v5305 = vpop.f32.mrb[0].mxu0
        %v5306 = vadd.f32 0.0, %v5305
        %v5307 = vpop.f32.mrb[0].mxu0
        %5308 = vmatprep.mubr.f32.mxu0 0.0
        %5309 = vmatmul.mubr.f32.gmra.mrb[0].mxu0 %v389
        %v5310 = vpop.f32.mrb[0].mxu0
        %v5311 = vadd.f32 0.0, %v5310
        %v5312 = vpop.f32.mrb[0].mxu0
        %5313 = vmatprep.mubr.f32.mxu0 0.0
        %5314 = vmatmul.mubr.f32.gmra.mrb[0].mxu0 %v392
        %v5315 = vpop.f32.mrb[0].mxu0
        %v5316 = vadd.f32 0.0, %v5315
        %v5317 = vpop.f32.mrb[0].mxu0
        %5318 = vmatprep.mubr.f32.mxu0 0.0
        %5319 = vmatmul.mubr.f32.gmra.mrb[0].mxu0 %v395
        %v5320 = vpop.f32.mrb[0].mxu0
        %v5321 = vadd.f32 0.0, %v5320
        %v5322 = vpop.f32.mrb[0].mxu0
        %5323 = vmatprep.mubr.f32.mxu0 0.0
        %5324 = vmatmul.mubr.f32.gmra.mrb[0].mxu0 %v398
        %v5325 = vpop.f32.mrb[0].mxu0
        %v5326 = vadd.f32 0.0, %v5325
        %v5327 = vpop.f32.mrb[0].mxu0
        %5328 = vmatprep.mubr.f32.mxu0 0.0
        %5329 = vmatmul.mubr.f32.gmra.mrb[0].mxu0 %v401
        %v5330 = vpop.f32.mrb[0].mxu0
        %v5331 = vadd.f32 0.0, %v5330
        %v5332 = vpop.f32.mrb[0].mxu0
        %5333 = vmatprep.mubr.f32.mxu0 0.0
        %5334 = vmatmul.mubr.f32.gmra.mrb[0].mxu0 %v404
        %v5335 = vpop.f32.mrb[0].mxu0
        %v5336 = vadd.f32 0.0, %v5335
        %v5337 = vpop.f32.mrb[0].mxu0
        %5338 = vmatprep.mubr.f32.mxu0 0.0
        %5339 = vmatmul.mubr.f32.gmra.mrb[0].mxu0 %v407
        %v5340 = vpop.f32.mrb[0].mxu0
        %v5341 = vadd.f32 0.0, %v5340
        %v5342 = vpop.f32.mrb[0].mxu0
        %5343 = vmatprep.mubr.f32.mxu0 0.0
        %5344 = vmatmul.mubr.f32.gmra.mrb[0].mxu0 %v410
        %v5345 = vpop.f32.mrb[0].mxu0
        %v5346 = vadd.f32 0.0, %v5345
        %v5347 = vpop.f32.mrb[0].mxu0
        %5348 = vmatprep.mubr.f32.mxu0 0.0
        %5349 = vmatmul.mubr.f32.gmra.mrb[0].mxu0 %v413
        %v5350 = vpop.f32.mrb[0].mxu0
        %v5351 = vadd.f32 0.0, %v5350
        %v5352 = vpop.f32.mrb[0].mxu0
        %5353 = vmatprep.mubr.f32.mxu0 0.0
        %5354 = vmatmul.mubr.f32.gmra.mrb[0].mxu0 %v416
        %v5355 = vpop.f32.mrb[0].mxu0
        %v5356 = vadd.f32 0.0, %v5355
        %v5357 = vpop.f32.mrb[0].mxu0
        %5358 = vmatprep.mubr.f32.mxu0 0.0
        %5359 = vmatmul.mubr.f32.gmra.mrb[0].mxu0 %v419
        %v5360 = vpop.f32.mrb[0].mxu0
        %v5361 = vadd.f32 0.0, %v5360
        %v5362 = vpop.f32.mrb[0].mxu0
        %5363 = vmatprep.mubr.f32.mxu0 0.0
        %5364 = vmatmul.mubr.f32.gmra.mrb[0].mxu0 %v422
        %v5365 = vpop.f32.mrb[0].mxu0
        %v5366 = vadd.f32 0.0, %v5365
        %v5367 = vpop.f32.mrb[0].mxu0
        %5368 = vmatprep.mubr.f32.mxu0 0.0
        %5369 = vmatmul.mubr.f32.gmra.mrb[0].mxu0 %v425
        %v5370 = vpop.f32.mrb[0].mxu0
        %v5371 = vadd.f32 0.0, %v5370
        %v5372 = vpop.f32.mrb[0].mxu0
        %5373 = vmatprep.mubr.f32.mxu0 0.0
        %5374 = vmatmul.mubr.f32.gmra.mrb[0].mxu0 %v428
        %v5375 = vpop.f32.mrb[0].mxu0
        %v5376 = vadd.f32 0.0, %v5375
        %v5377 = vpop.f32.mrb[0].mxu0
        %5378 = vmatprep.mubr.f32.mxu0 0.0
        %5379 = vmatmul.mubr.f32.gmra.mrb[0].mxu0 %v431
        %v5380 = vpop.f32.mrb[0].mxu0
        %v5381 = vadd.f32 0.0, %v5380
        %v5382 = vpop.f32.mrb[0].mxu0
        %5383 = vmatprep.mubr.f32.mxu0 0.0
        %5384 = vmatmul.mubr.f32.gmra.mrb[0].mxu0 %v434
        %v5385 = vpop.f32.mrb[0].mxu0
        %v5386 = vadd.f32 0.0, %v5385
        %v5387 = vpop.f32.mrb[0].mxu0
        %5388 = vmatprep.mubr.f32.mxu0 0.0
        %5389 = vmatmul.mubr.f32.gmra.mrb[0].mxu0 %v437
        %v5390 = vpop.f32.mrb[0].mxu0
        %v5391 = vadd.f32 0.0, %v5390
        %v5392 = vpop.f32.mrb[0].mxu0
        %5393 = vmatprep.mubr.f32.mxu0 0.0
        %5394 = vmatmul.mubr.f32.gmra.mrb[0].mxu0 %v440
        %v5395 = vpop.f32.mrb[0].mxu0
        %v5396 = vadd.f32 0.0, %v5395
        %v5397 = vpop.f32.mrb[0].mxu0
        %5398 = vmatprep.mubr.f32.mxu0 0.0
        %5399 = vmatmul.mubr.f32.gmra.mrb[0].mxu0 %v443
        %v5400 = vpop.f32.mrb[0].mxu0
        %v5401 = vadd.f32 0.0, %v5400
        %v5402 = vpop.f32.mrb[0].mxu0
        %5403 = vmatprep.mubr.f32.mxu0 0.0
        %5404 = vmatmul.mubr.f32.gmra.mrb[0].mxu0 %v446
        %v5405 = vpop.f32.mrb[0].mxu0
        %v5406 = vadd.f32 0.0, %v5405
        %v5407 = vpop.f32.mrb[0].mxu0
        %5408 = vdwg.mxu0
        %5409 = vxpose.xlu0.b32.start [1/16] %v5180, 128
        %5410 = vxpose.xlu0.b32.cont [2/16] %v5181, 128
        %5411 = vxpose.xlu0.b32.cont [3/16] %v5182, 128
        %5412 = vxpose.xlu0.b32.cont [4/16] %v5183, 128
        %5413 = vxpose.xlu0.b32.cont [5/16] 0.0, 128
        %5414 = vxpose.xlu0.b32.cont [6/16] 0.0, 128
        %5415 = vxpose.xlu0.b32.cont [7/16] 0.0, 128
        %5416 = vxpose.xlu0.b32.cont [8/16] 0.0, 128
        %5417 = vxpose.xlu0.b32.cont [9/16] 0.0, 128
        %5418 = vxpose.xlu0.b32.cont [10/16] 0.0, 128
        %5419 = vxpose.xlu0.b32.cont [11/16] 0.0, 128
        %5420 = vxpose.xlu0.b32.cont [12/16] 0.0, 128
        %5421 = vxpose.xlu0.b32.cont [13/16] 0.0, 128
        %5422 = vxpose.xlu0.b32.cont [14/16] 0.0, 128
        %5423 = vxpose.xlu0.b32.cont [15/16] 0.0, 128
        %5424 = vxpose.xlu0.b32.end [16/16] 0.0, 128
        %v5425 = vpop.trf.xlu0
        %v5426 = vpop.trf.xlu0
        %v5427 = vpop.trf.xlu0
        %v5428 = vpop.trf.xlu0
        %v5429 = vpop.trf.xlu0
        %v5430 = vpop.trf.xlu0
        %v5431 = vpop.trf.xlu0
        %v5432 = vpop.trf.xlu0
        %v5433 = vpop.trf.xlu0
        %v5434 = vpop.trf.xlu0
        %v5435 = vpop.trf.xlu0
        %v5436 = vpop.trf.xlu0
        %v5437 = vpop.trf.xlu0
        %v5438 = vpop.trf.xlu0
        %v5439 = vpop.trf.xlu0
        %v5440 = vpop.trf.xlu0
        %v5442 = vsel %vm198, %v5425, 0
        %v5445 = vsel %vm198, %v5426, 0
        %5447 = vmatprep.subr.mxu0 0.0
        %5448 = vmatpush1.msra.mxu0 %v5180
        %5449 = vmatprep.subr.mxu0 0.0
        %5450 = vmatpush1.msra.mxu0 %v5181
        %5451 = vmatprep.subr.mxu0 0.0
        %5452 = vmatpush1.msra.mxu0 %v5182
        %5453 = vmatprep.subr.mxu0 0.0
        %5454 = vmatpush1.msra.mxu0 %v5183
        %5455 = vmatprep.subr.mxu0 0.0
        %5456 = vmatpush1.msra.mxu0 0.0
        %5457 = vmatprep.subr.mxu0 0.0
        %5458 = vmatpush1.msra.mxu0 0.0
        %5459 = vmatprep.subr.mxu0 0.0
        %5460 = vmatpush1.msra.mxu0 0.0
        %5461 = vmatprep.subr.mxu0 0.0
        %5462 = vmatpush1.msra.mxu0 0.0
        %5463 = vmatprep.subr.mxu0 0.0
        %5464 = vmatpush1.msra.mxu0 0.0
        %5465 = vmatprep.subr.mxu0 0.0
        %5466 = vmatpush1.msra.mxu0 0.0
        %5467 = vmatprep.subr.mxu0 0.0
        %5468 = vmatpush1.msra.mxu0 0.0
        %5469 = vmatprep.subr.mxu0 0.0
        %5470 = vmatpush1.msra.mxu0 0.0
        %5471 = vmatprep.subr.mxu0 0.0
        %5472 = vmatpush1.msra.mxu0 0.0
        %5473 = vmatprep.subr.mxu0 0.0
        %5474 = vmatpush1.msra.mxu0 0.0
        %5475 = vmatprep.subr.mxu0 0.0
        %5476 = vmatpush1.msra.mxu0 0.0
        %5477 = vmatprep.subr.mxu0 0.0
        %5478 = vmatpush1.msra.mxu0 0.0
        %5479 = vmatprep.subr.mxu0 0.0
        %5480 = vmatpush1.msra.mxu0 0.0
        %5481 = vmatprep.subr.mxu0 0.0
        %5482 = vmatpush1.msra.mxu0 0.0
        %5483 = vmatprep.subr.mxu0 0.0
        %5484 = vmatpush1.msra.mxu0 0.0
        %5485 = vmatprep.subr.mxu0 0.0
        %5486 = vmatpush1.msra.mxu0 0.0
        %5487 = vmatprep.subr.mxu0 0.0
        %5488 = vmatpush1.msra.mxu0 0.0
        %5489 = vmatprep.subr.mxu0 0.0
        %5490 = vmatpush1.msra.mxu0 0.0
        %5491 = vmatprep.subr.mxu0 0.0
        %5492 = vmatpush1.msra.mxu0 0.0
        %5493 = vmatprep.subr.mxu0 0.0
        %5494 = vmatpush1.msra.mxu0 0.0
        %5495 = vmatprep.subr.mxu0 0.0
        %5496 = vmatpush1.msra.mxu0 0.0
        %5497 = vmatprep.subr.mxu0 0.0
        %5498 = vmatpush1.msra.mxu0 0.0
        %5499 = vmatprep.subr.mxu0 0.0
        %5500 = vmatpush1.msra.mxu0 0.0
        %5501 = vmatprep.subr.mxu0 0.0
        %5502 = vmatpush1.msra.mxu0 0.0
        %5503 = vmatprep.subr.mxu0 0.0
        %5504 = vmatpush1.msra.mxu0 0.0
        %5505 = vmatprep.subr.mxu0 0.0
        %5506 = vmatpush1.msra.mxu0 0.0
        %5507 = vmatprep.subr.mxu0 0.0
        %5508 = vmatpush1.msra.mxu0 0.0
        %5509 = vmatprep.subr.mxu0 0.0
        %5510 = vmatpush1.msra.mxu0 0.0
        %5511 = vmatprep.mubr.f32.mxu0 0.0
        %5512 = vmatmul.mubr.f32.gmra.mrb[0].mxu0 %v5442
        %v5513 = vpop.f32.mrb[0].mxu0
        %v5514 = vadd.f32 0.0, %v5513
        %v5515 = vpop.f32.mrb[0].mxu0
        %5516 = vmatprep.mubr.f32.mxu0 0.0
        %5517 = vmatmul.mubr.f32.gmra.mrb[0].mxu0 %v5445
        %v5518 = vpop.f32.mrb[0].mxu0
        %v5519 = vadd.f32 0.0, %v5518
        %v5520 = vpop.f32.mrb[0].mxu0
        %5521 = vdwg.mxu0
        %v5523 = vsel %vm673, %v4815, 0
        %v5526 = vsel %vm673, %v4816, 0
        %v5529 = vsel %vm673, %v4817, 0
        %v5532 = vsel %vm673, %v4818, 0
        %v5535 = vsel %vm673, %v4819, 0
        %v5538 = vsel %vm673, %v4820, 0
        %v5541 = vsel %vm673, %v4821, 0
        %v5544 = vsel %vm673, %v4822, 0
        %v5547 = vsel %vm673, %v4823, 0
        %v5550 = vsel %vm673, %v4824, 0
        %v5553 = vsel %vm673, %v4825, 0
        %v5556 = vsel %vm673, %v4826, 0
        %v5559 = vsel %vm673, %v4827, 0
        %v5562 = vsel %vm673, %v4828, 0
        %v5565 = vsel %vm673, %v4829, 0
        %v5568 = vsel %vm673, %v4830, 0
        %v5571 = vsel %vm673, %v4831, 0
        %v5574 = vsel %vm673, %v4832, 0
        %v5577 = vsel %vm673, %v4833, 0
        %v5580 = vsel %vm673, %v4834, 0
        %v5583 = vsel %vm673, %v4835, 0
        %v5586 = vsel %vm673, %v4836, 0
        %v5589 = vsel %vm673, %v4837, 0
        %v5592 = vsel %vm673, %v4838, 0
        %v5595 = vsel %vm673, %v4839, 0
        %v5598 = vsel %vm673, %v4840, 0
        %v5601 = vsel %vm673, %v4841, 0
        %v5604 = vsel %vm673, %v4842, 0
        %v5607 = vsel %vm673, %v4843, 0
        %v5610 = vsel %vm673, %v4844, 0
        %v5613 = vsel %vm673, %v4845, 0
        %v5616 = vsel %vm673, %v4846, 0
        %5618 = vmatprep.subr.mxu0 0.0
        %5619 = vmatpush1.msra.mxu0 %v5514
        %5620 = vmatprep.subr.mxu0 0.0
        %5621 = vmatpush1.msra.mxu0 %v5519
        %5622 = vmatprep.subr.mxu0 0.0
        %5623 = vmatpush1.msra.mxu0 0.0
        %5624 = vmatprep.subr.mxu0 0.0
        %5625 = vmatpush1.msra.mxu0 0.0
        %5626 = vmatprep.subr.mxu0 0.0
        %5627 = vmatpush1.msra.mxu0 0.0
        %5628 = vmatprep.subr.mxu0 0.0
        %5629 = vmatpush1.msra.mxu0 0.0
        %5630 = vmatprep.subr.mxu0 0.0
        %5631 = vmatpush1.msra.mxu0 0.0
        %5632 = vmatprep.subr.mxu0 0.0
        %5633 = vmatpush1.msra.mxu0 0.0
        %5634 = vmatprep.subr.mxu0 0.0
        %5635 = vmatpush1.msra.mxu0 0.0
        %5636 = vmatprep.subr.mxu0 0.0
        %5637 = vmatpush1.msra.mxu0 0.0
        %5638 = vmatprep.subr.mxu0 0.0
        %5639 = vmatpush1.msra.mxu0 0.0
        %5640 = vmatprep.subr.mxu0 0.0
        %5641 = vmatpush1.msra.mxu0 0.0
        %5642 = vmatprep.subr.mxu0 0.0
        %5643 = vmatpush1.msra.mxu0 0.0
        %5644 = vmatprep.subr.mxu0 0.0
        %5645 = vmatpush1.msra.mxu0 0.0
        %5646 = vmatprep.subr.mxu0 0.0
        %5647 = vmatpush1.msra.mxu0 0.0
        %5648 = vmatprep.subr.mxu0 0.0
        %5649 = vmatpush1.msra.mxu0 0.0
        %5650 = vmatprep.subr.mxu0 0.0
        %5651 = vmatpush1.msra.mxu0 0.0
        %5652 = vmatprep.subr.mxu0 0.0
        %5653 = vmatpush1.msra.mxu0 0.0
        %5654 = vmatprep.subr.mxu0 0.0
        %5655 = vmatpush1.msra.mxu0 0.0
        %5656 = vmatprep.subr.mxu0 0.0
        %5657 = vmatpush1.msra.mxu0 0.0
        %5658 = vmatprep.subr.mxu0 0.0
        %5659 = vmatpush1.msra.mxu0 0.0
        %5660 = vmatprep.subr.mxu0 0.0
        %5661 = vmatpush1.msra.mxu0 0.0
        %5662 = vmatprep.subr.mxu0 0.0
        %5663 = vmatpush1.msra.mxu0 0.0
        %5664 = vmatprep.subr.mxu0 0.0
        %5665 = vmatpush1.msra.mxu0 0.0
        %5666 = vmatprep.subr.mxu0 0.0
        %5667 = vmatpush1.msra.mxu0 0.0
        %5668 = vmatprep.subr.mxu0 0.0
        %5669 = vmatpush1.msra.mxu0 0.0
        %5670 = vmatprep.subr.mxu0 0.0
        %5671 = vmatpush1.msra.mxu0 0.0
        %5672 = vmatprep.subr.mxu0 0.0
        %5673 = vmatpush1.msra.mxu0 0.0
        %5674 = vmatprep.subr.mxu0 0.0
        %5675 = vmatpush1.msra.mxu0 0.0
        %5676 = vmatprep.subr.mxu0 0.0
        %5677 = vmatpush1.msra.mxu0 0.0
        %5678 = vmatprep.subr.mxu0 0.0
        %5679 = vmatpush1.msra.mxu0 0.0
        %5680 = vmatprep.subr.mxu0 0.0
        %5681 = vmatpush1.msra.mxu0 0.0
        %5682 = vmatprep.mubr.f32.mxu0 0.0
        %5683 = vmatmul.mubr.f32.gmra.mrb[0].mxu0 %v5523
        %v5684 = vpop.f32.mrb[0].mxu0
        %v5685 = vadd.f32 0.0, %v5684
        %v5686 = vpop.f32.mrb[0].mxu0
        %5687 = vmatprep.mubr.f32.mxu0 0.0
        %5688 = vmatmul.mubr.f32.gmra.mrb[0].mxu0 %v5526
        %v5689 = vpop.f32.mrb[0].mxu0
        %v5690 = vadd.f32 0.0, %v5689
        %v5691 = vpop.f32.mrb[0].mxu0
        %5692 = vmatprep.mubr.f32.mxu0 0.0
        %5693 = vmatmul.mubr.f32.gmra.mrb[0].mxu0 %v5529
        %v5694 = vpop.f32.mrb[0].mxu0
        %v5695 = vadd.f32 0.0, %v5694
        %v5696 = vpop.f32.mrb[0].mxu0
        %5697 = vmatprep.mubr.f32.mxu0 0.0
        %5698 = vmatmul.mubr.f32.gmra.mrb[0].mxu0 %v5532
        %v5699 = vpop.f32.mrb[0].mxu0
        %v5700 = vadd.f32 0.0, %v5699
        %v5701 = vpop.f32.mrb[0].mxu0
        %5702 = vmatprep.mubr.f32.mxu0 0.0
        %5703 = vmatmul.mubr.f32.gmra.mrb[0].mxu0 %v5535
        %v5704 = vpop.f32.mrb[0].mxu0
        %v5705 = vadd.f32 0.0, %v5704
        %v5706 = vpop.f32.mrb[0].mxu0
        %5707 = vmatprep.mubr.f32.mxu0 0.0
        %5708 = vmatmul.mubr.f32.gmra.mrb[0].mxu0 %v5538
        %v5709 = vpop.f32.mrb[0].mxu0
        %v5710 = vadd.f32 0.0, %v5709
        %v5711 = vpop.f32.mrb[0].mxu0
        %5712 = vmatprep.mubr.f32.mxu0 0.0
        %5713 = vmatmul.mubr.f32.gmra.mrb[0].mxu0 %v5541
        %v5714 = vpop.f32.mrb[0].mxu0
        %v5715 = vadd.f32 0.0, %v5714
        %v5716 = vpop.f32.mrb[0].mxu0
        %5717 = vmatprep.mubr.f32.mxu0 0.0
        %5718 = vmatmul.mubr.f32.gmra.mrb[0].mxu0 %v5544
        %v5719 = vpop.f32.mrb[0].mxu0
        %v5720 = vadd.f32 0.0, %v5719
        %v5721 = vpop.f32.mrb[0].mxu0
        %5722 = vmatprep.mubr.f32.mxu0 0.0
        %5723 = vmatmul.mubr.f32.gmra.mrb[0].mxu0 %v5547
        %v5724 = vpop.f32.mrb[0].mxu0
        %v5725 = vadd.f32 0.0, %v5724
        %v5726 = vpop.f32.mrb[0].mxu0
        %5727 = vmatprep.mubr.f32.mxu0 0.0
        %5728 = vmatmul.mubr.f32.gmra.mrb[0].mxu0 %v5550
        %v5729 = vpop.f32.mrb[0].mxu0
        %v5730 = vadd.f32 0.0, %v5729
        %v5731 = vpop.f32.mrb[0].mxu0
        %5732 = vmatprep.mubr.f32.mxu0 0.0
        %5733 = vmatmul.mubr.f32.gmra.mrb[0].mxu0 %v5553
        %v5734 = vpop.f32.mrb[0].mxu0
        %v5735 = vadd.f32 0.0, %v5734
        %v5736 = vpop.f32.mrb[0].mxu0
        %5737 = vmatprep.mubr.f32.mxu0 0.0
        %5738 = vmatmul.mubr.f32.gmra.mrb[0].mxu0 %v5556
        %v5739 = vpop.f32.mrb[0].mxu0
        %v5740 = vadd.f32 0.0, %v5739
        %v5741 = vpop.f32.mrb[0].mxu0
        %5742 = vmatprep.mubr.f32.mxu0 0.0
        %5743 = vmatmul.mubr.f32.gmra.mrb[0].mxu0 %v5559
        %v5744 = vpop.f32.mrb[0].mxu0
        %v5745 = vadd.f32 0.0, %v5744
        %v5746 = vpop.f32.mrb[0].mxu0
        %5747 = vmatprep.mubr.f32.mxu0 0.0
        %5748 = vmatmul.mubr.f32.gmra.mrb[0].mxu0 %v5562
        %v5749 = vpop.f32.mrb[0].mxu0
        %v5750 = vadd.f32 0.0, %v5749
        %v5751 = vpop.f32.mrb[0].mxu0
        %5752 = vmatprep.mubr.f32.mxu0 0.0
        %5753 = vmatmul.mubr.f32.gmra.mrb[0].mxu0 %v5565
        %v5754 = vpop.f32.mrb[0].mxu0
        %v5755 = vadd.f32 0.0, %v5754
        %v5756 = vpop.f32.mrb[0].mxu0
        %5757 = vmatprep.mubr.f32.mxu0 0.0
        %5758 = vmatmul.mubr.f32.gmra.mrb[0].mxu0 %v5568
        %v5759 = vpop.f32.mrb[0].mxu0
        %v5760 = vadd.f32 0.0, %v5759
        %v5761 = vpop.f32.mrb[0].mxu0
        %5762 = vmatprep.mubr.f32.mxu0 0.0
        %5763 = vmatmul.mubr.f32.gmra.mrb[0].mxu0 %v5571
        %v5764 = vpop.f32.mrb[0].mxu0
        %v5765 = vadd.f32 0.0, %v5764
        %v5766 = vpop.f32.mrb[0].mxu0
        %5767 = vmatprep.mubr.f32.mxu0 0.0
        %5768 = vmatmul.mubr.f32.gmra.mrb[0].mxu0 %v5574
        %v5769 = vpop.f32.mrb[0].mxu0
        %v5770 = vadd.f32 0.0, %v5769
        %v5771 = vpop.f32.mrb[0].mxu0
        %5772 = vmatprep.mubr.f32.mxu0 0.0
        %5773 = vmatmul.mubr.f32.gmra.mrb[0].mxu0 %v5577
        %v5774 = vpop.f32.mrb[0].mxu0
        %v5775 = vadd.f32 0.0, %v5774
        %v5776 = vpop.f32.mrb[0].mxu0
        %5777 = vmatprep.mubr.f32.mxu0 0.0
        %5778 = vmatmul.mubr.f32.gmra.mrb[0].mxu0 %v5580
        %v5779 = vpop.f32.mrb[0].mxu0
        %v5780 = vadd.f32 0.0, %v5779
        %v5781 = vpop.f32.mrb[0].mxu0
        %5782 = vmatprep.mubr.f32.mxu0 0.0
        %5783 = vmatmul.mubr.f32.gmra.mrb[0].mxu0 %v5583
        %v5784 = vpop.f32.mrb[0].mxu0
        %v5785 = vadd.f32 0.0, %v5784
        %v5786 = vpop.f32.mrb[0].mxu0
        %5787 = vmatprep.mubr.f32.mxu0 0.0
        %5788 = vmatmul.mubr.f32.gmra.mrb[0].mxu0 %v5586
        %v5789 = vpop.f32.mrb[0].mxu0
        %v5790 = vadd.f32 0.0, %v5789
        %v5791 = vpop.f32.mrb[0].mxu0
        %5792 = vmatprep.mubr.f32.mxu0 0.0
        %5793 = vmatmul.mubr.f32.gmra.mrb[0].mxu0 %v5589
        %v5794 = vpop.f32.mrb[0].mxu0
        %v5795 = vadd.f32 0.0, %v5794
        %v5796 = vpop.f32.mrb[0].mxu0
        %5797 = vmatprep.mubr.f32.mxu0 0.0
        %5798 = vmatmul.mubr.f32.gmra.mrb[0].mxu0 %v5592
        %v5799 = vpop.f32.mrb[0].mxu0
        %v5800 = vadd.f32 0.0, %v5799
        %v5801 = vpop.f32.mrb[0].mxu0
        %5802 = vmatprep.mubr.f32.mxu0 0.0
        %5803 = vmatmul.mubr.f32.gmra.mrb[0].mxu0 %v5595
        %v5804 = vpop.f32.mrb[0].mxu0
        %v5805 = vadd.f32 0.0, %v5804
        %v5806 = vpop.f32.mrb[0].mxu0
        %5807 = vmatprep.mubr.f32.mxu0 0.0
        %5808 = vmatmul.mubr.f32.gmra.mrb[0].mxu0 %v5598
        %v5809 = vpop.f32.mrb[0].mxu0
        %v5810 = vadd.f32 0.0, %v5809
        %v5811 = vpop.f32.mrb[0].mxu0
        %5812 = vmatprep.mubr.f32.mxu0 0.0
        %5813 = vmatmul.mubr.f32.gmra.mrb[0].mxu0 %v5601
        %v5814 = vpop.f32.mrb[0].mxu0
        %v5815 = vadd.f32 0.0, %v5814
        %v5816 = vpop.f32.mrb[0].mxu0
        %5817 = vmatprep.mubr.f32.mxu0 0.0
        %5818 = vmatmul.mubr.f32.gmra.mrb[0].mxu0 %v5604
        %v5819 = vpop.f32.mrb[0].mxu0
        %v5820 = vadd.f32 0.0, %v5819
        %v5821 = vpop.f32.mrb[0].mxu0
        %5822 = vmatprep.mubr.f32.mxu0 0.0
        %5823 = vmatmul.mubr.f32.gmra.mrb[0].mxu0 %v5607
        %v5824 = vpop.f32.mrb[0].mxu0
        %v5825 = vadd.f32 0.0, %v5824
        %v5826 = vpop.f32.mrb[0].mxu0
        %5827 = vmatprep.mubr.f32.mxu0 0.0
        %5828 = vmatmul.mubr.f32.gmra.mrb[0].mxu0 %v5610
        %v5829 = vpop.f32.mrb[0].mxu0
        %v5830 = vadd.f32 0.0, %v5829
        %v5831 = vpop.f32.mrb[0].mxu0
        %5832 = vmatprep.mubr.f32.mxu0 0.0
        %5833 = vmatmul.mubr.f32.gmra.mrb[0].mxu0 %v5613
        %v5834 = vpop.f32.mrb[0].mxu0
        %v5835 = vadd.f32 0.0, %v5834
        %v5836 = vpop.f32.mrb[0].mxu0
        %5837 = vmatprep.mubr.f32.mxu0 0.0
        %5838 = vmatmul.mubr.f32.gmra.mrb[0].mxu0 %v5616
        %v5839 = vpop.f32.mrb[0].mxu0
        %v5840 = vadd.f32 0.0, %v5839
        %v5841 = vpop.f32.mrb[0].mxu0
        %5842 = vdwg.mxu0
        %v5843 = vrcp.pop %v5685
        %v5844 = vmul.f32 %v5251, %v5843
        %v5845 = vrcp.pop %v5690
        %v5846 = vmul.f32 %v5256, %v5845
        %v5847 = vrcp.pop %v5695
        %v5848 = vmul.f32 %v5261, %v5847
        %v5849 = vrcp.pop %v5700
        %v5850 = vmul.f32 %v5266, %v5849
        %v5851 = vrcp.pop %v5705
        %v5852 = vmul.f32 %v5271, %v5851
        %v5853 = vrcp.pop %v5710
        %v5854 = vmul.f32 %v5276, %v5853
        %v5855 = vrcp.pop %v5715
        %v5856 = vmul.f32 %v5281, %v5855
        %v5857 = vrcp.pop %v5720
        %v5858 = vmul.f32 %v5286, %v5857
        %v5859 = vrcp.pop %v5725
        %v5860 = vmul.f32 %v5291, %v5859
        %v5861 = vrcp.pop %v5730
        %v5862 = vmul.f32 %v5296, %v5861
        %v5863 = vrcp.pop %v5735
        %v5864 = vmul.f32 %v5301, %v5863
        %v5865 = vrcp.pop %v5740
        %v5866 = vmul.f32 %v5306, %v5865
        %v5867 = vrcp.pop %v5745
        %v5868 = vmul.f32 %v5311, %v5867
        %v5869 = vrcp.pop %v5750
        %v5870 = vmul.f32 %v5316, %v5869
        %v5871 = vrcp.pop %v5755
        %v5872 = vmul.f32 %v5321, %v5871
        %v5873 = vrcp.pop %v5760
        %v5874 = vmul.f32 %v5326, %v5873
        %v5875 = vrcp.pop %v5765
        %v5876 = vmul.f32 %v5331, %v5875
        %v5877 = vrcp.pop %v5770
        %v5878 = vmul.f32 %v5336, %v5877
        %v5879 = vrcp.pop %v5775
        %v5880 = vmul.f32 %v5341, %v5879
        %v5881 = vrcp.pop %v5780
        %v5882 = vmul.f32 %v5346, %v5881
        %v5883 = vrcp.pop %v5785
        %v5884 = vmul.f32 %v5351, %v5883
        %v5885 = vrcp.pop %v5790
        %v5886 = vmul.f32 %v5356, %v5885
        %v5887 = vrcp.pop %v5795
        %v5888 = vmul.f32 %v5361, %v5887
        %v5889 = vrcp.pop %v5800
        %v5890 = vmul.f32 %v5366, %v5889
        %v5891 = vrcp.pop %v5805
        %v5892 = vmul.f32 %v5371, %v5891
        %v5893 = vrcp.pop %v5810
        %v5894 = vmul.f32 %v5376, %v5893
        %v5895 = vrcp.pop %v5815
        %v5896 = vmul.f32 %v5381, %v5895
        %v5897 = vrcp.pop %v5820
        %v5898 = vmul.f32 %v5386, %v5897
        %v5899 = vrcp.pop %v5825
        %v5900 = vmul.f32 %v5391, %v5899
        %v5901 = vrcp.pop %v5830
        %v5902 = vmul.f32 %v5396, %v5901
        %v5903 = vrcp.pop %v5835
        %v5904 = vmul.f32 %v5401, %v5903
        %v5905 = vrcp.pop %v5840
        %v5906 = vmul.f32 %v5406, %v5905
        %v5907 = vadd.f32 %v5844, 1e-06
        %v5908 = vadd.f32 %v5846, 1e-06
        %v5909 = vadd.f32 %v5848, 1e-06
        %v5910 = vadd.f32 %v5850, 1e-06
        %v5911 = vadd.f32 %v5852, 1e-06
        %v5912 = vadd.f32 %v5854, 1e-06
        %v5913 = vadd.f32 %v5856, 1e-06
        %v5914 = vadd.f32 %v5858, 1e-06
        %v5915 = vadd.f32 %v5860, 1e-06
        %v5916 = vadd.f32 %v5862, 1e-06
        %v5917 = vadd.f32 %v5864, 1e-06
        %v5918 = vadd.f32 %v5866, 1e-06
        %v5919 = vadd.f32 %v5868, 1e-06
        %v5920 = vadd.f32 %v5870, 1e-06
        %v5921 = vadd.f32 %v5872, 1e-06
        %v5922 = vadd.f32 %v5874, 1e-06
        %v5923 = vadd.f32 %v5876, 1e-06
        %v5924 = vadd.f32 %v5878, 1e-06
        %v5925 = vadd.f32 %v5880, 1e-06
        %v5926 = vadd.f32 %v5882, 1e-06
        %v5927 = vadd.f32 %v5884, 1e-06
        %v5928 = vadd.f32 %v5886, 1e-06
        %v5929 = vadd.f32 %v5888, 1e-06
        %v5930 = vadd.f32 %v5890, 1e-06
        %v5931 = vadd.f32 %v5892, 1e-06
        %v5932 = vadd.f32 %v5894, 1e-06
        %v5933 = vadd.f32 %v5896, 1e-06
        %v5934 = vadd.f32 %v5898, 1e-06
        %v5935 = vadd.f32 %v5900, 1e-06
        %v5936 = vadd.f32 %v5902, 1e-06
        %v5937 = vadd.f32 %v5904, 1e-06
        %v5938 = vadd.f32 %v5906, 1e-06
        %v5939 = vmul.f32 %v4815, %v5907
        %v5940 = vmul.f32 %v4816, %v5908
        %v5941 = vmul.f32 %v4817, %v5909
        %v5942 = vmul.f32 %v4818, %v5910
        %v5943 = vmul.f32 %v4819, %v5911
        %v5944 = vmul.f32 %v4820, %v5912
        %v5945 = vmul.f32 %v4821, %v5913
        %v5946 = vmul.f32 %v4822, %v5914
        %v5947 = vmul.f32 %v4823, %v5915
        %v5948 = vmul.f32 %v4824, %v5916
        %v5949 = vmul.f32 %v4825, %v5917
        %v5950 = vmul.f32 %v4826, %v5918
        %v5951 = vmul.f32 %v4827, %v5919
        %v5952 = vmul.f32 %v4828, %v5920
        %v5953 = vmul.f32 %v4829, %v5921
        %v5954 = vmul.f32 %v4830, %v5922
        %v5955 = vmul.f32 %v4831, %v5923
        %v5956 = vmul.f32 %v4832, %v5924
        %v5957 = vmul.f32 %v4833, %v5925
        %v5958 = vmul.f32 %v4834, %v5926
        %v5959 = vmul.f32 %v4835, %v5927
        %v5960 = vmul.f32 %v4836, %v5928
        %v5961 = vmul.f32 %v4837, %v5929
        %v5962 = vmul.f32 %v4838, %v5930
        %v5963 = vmul.f32 %v4839, %v5931
        %v5964 = vmul.f32 %v4840, %v5932
        %v5965 = vmul.f32 %v4841, %v5933
        %v5966 = vmul.f32 %v4842, %v5934
        %v5967 = vmul.f32 %v4843, %v5935
        %v5968 = vmul.f32 %v4844, %v5936
        %v5969 = vmul.f32 %v4845, %v5937
        %v5970 = vmul.f32 %v4846, %v5938
        %5971 = vmatprep.subr.mxu0 0.0
        %5972 = vmatpush1.msra.mxu0 %v5939
        %5973 = vmatprep.subr.mxu0 0.0
        %5974 = vmatpush1.msra.mxu0 %v5940
        %5975 = vmatprep.subr.mxu0 0.0
        %5976 = vmatpush1.msra.mxu0 %v5941
        %5977 = vmatprep.subr.mxu0 0.0
        %5978 = vmatpush1.msra.mxu0 %v5942
        %5979 = vmatprep.subr.mxu0 0.0
        %5980 = vmatpush1.msra.mxu0 %v5943
        %5981 = vmatprep.subr.mxu0 0.0
        %5982 = vmatpush1.msra.mxu0 %v5944
        %5983 = vmatprep.subr.mxu0 0.0
        %5984 = vmatpush1.msra.mxu0 %v5945
        %5985 = vmatprep.subr.mxu0 0.0
        %5986 = vmatpush1.msra.mxu0 %v5946
        %5987 = vmatprep.subr.mxu0 0.0
        %5988 = vmatpush1.msra.mxu0 %v5947
        %5989 = vmatprep.subr.mxu0 0.0
        %5990 = vmatpush1.msra.mxu0 %v5948
        %5991 = vmatprep.subr.mxu0 0.0
        %5992 = vmatpush1.msra.mxu0 %v5949
        %5993 = vmatprep.subr.mxu0 0.0
        %5994 = vmatpush1.msra.mxu0 %v5950
        %5995 = vmatprep.subr.mxu0 0.0
        %5996 = vmatpush1.msra.mxu0 %v5951
        %5997 = vmatprep.subr.mxu0 0.0
        %5998 = vmatpush1.msra.mxu0 %v5952
        %5999 = vmatprep.subr.mxu0 0.0
        %6000 = vmatpush1.msra.mxu0 %v5953
        %6001 = vmatprep.subr.mxu0 0.0
        %6002 = vmatpush1.msra.mxu0 %v5954
        %6003 = vmatprep.subr.mxu0 0.0
        %6004 = vmatpush1.msra.mxu0 %v5955
        %6005 = vmatprep.subr.mxu0 0.0
        %6006 = vmatpush1.msra.mxu0 %v5956
        %6007 = vmatprep.subr.mxu0 0.0
        %6008 = vmatpush1.msra.mxu0 %v5957
        %6009 = vmatprep.subr.mxu0 0.0
        %6010 = vmatpush1.msra.mxu0 %v5958
        %6011 = vmatprep.subr.mxu0 0.0
        %6012 = vmatpush1.msra.mxu0 %v5959
        %6013 = vmatprep.subr.mxu0 0.0
        %6014 = vmatpush1.msra.mxu0 %v5960
        %6015 = vmatprep.subr.mxu0 0.0
        %6016 = vmatpush1.msra.mxu0 %v5961
        %6017 = vmatprep.subr.mxu0 0.0
        %6018 = vmatpush1.msra.mxu0 %v5962
        %6019 = vmatprep.subr.mxu0 0.0
        %6020 = vmatpush1.msra.mxu0 %v5963
        %6021 = vmatprep.subr.mxu0 0.0
        %6022 = vmatpush1.msra.mxu0 %v5964
        %6023 = vmatprep.subr.mxu0 0.0
        %6024 = vmatpush1.msra.mxu0 %v5965
        %6025 = vmatprep.subr.mxu0 0.0
        %6026 = vmatpush1.msra.mxu0 %v5966
        %6027 = vmatprep.subr.mxu0 0.0
        %6028 = vmatpush1.msra.mxu0 %v5967
        %6029 = vmatprep.subr.mxu0 0.0
        %6030 = vmatpush1.msra.mxu0 %v5968
        %6031 = vmatprep.subr.mxu0 0.0
        %6032 = vmatpush1.msra.mxu0 %v5969
        %6033 = vmatprep.subr.mxu0 0.0
        %6034 = vmatpush1.msra.mxu0 %v5970
        %6035 = vmatprep.mubr.f32.mxu0 %v281
        %6036 = vmatmul.mubr.f32.gmra.mrb[0].mxu0 %v280
        %v6037 = vpop.f32.mrb[0].mxu0
        %v6038 = vadd.f32 0.0, %v6037
        %v6039 = vpop.f32.mrb[0].mxu0
        %6040 = vmatprep.mubr.f32.mxu0 %v283
        %6041 = vmatmul.mubr.f32.gmra.mrb[0].mxu0 %v282
        %v6042 = vpop.f32.mrb[0].mxu0
        %v6043 = vadd.f32 0.0, %v6042
        %v6044 = vpop.f32.mrb[0].mxu0
        %6045 = vmatprep.mubr.f32.mxu0 %v285
        %6046 = vmatmul.mubr.f32.gmra.mrb[0].mxu0 %v284
        %v6047 = vpop.f32.mrb[0].mxu0
        %v6048 = vadd.f32 0.0, %v6047
        %v6049 = vpop.f32.mrb[0].mxu0
        %6050 = vmatprep.mubr.f32.mxu0 %v287
        %6051 = vmatmul.mubr.f32.gmra.mrb[0].mxu0 %v286
        %v6052 = vpop.f32.mrb[0].mxu0
        %v6053 = vadd.f32 0.0, %v6052
        %v6054 = vpop.f32.mrb[0].mxu0
        %6055 = vdwg.mxu0
        %6056 = vxpose.xlu0.b32.start [1/16] %v5939, 128
        %6057 = vxpose.xlu0.b32.cont [2/16] %v5940, 128
        %6058 = vxpose.xlu0.b32.cont [3/16] %v5941, 128
        %6059 = vxpose.xlu0.b32.cont [4/16] %v5942, 128
        %6060 = vxpose.xlu0.b32.cont [5/16] %v5943, 128
        %6061 = vxpose.xlu0.b32.cont [6/16] %v5944, 128
        %6062 = vxpose.xlu0.b32.cont [7/16] %v5945, 128
        %6063 = vxpose.xlu0.b32.cont [8/16] %v5946, 128
        %6064 = vxpose.xlu0.b32.cont [9/16] %v5947, 128
        %6065 = vxpose.xlu0.b32.cont [10/16] %v5948, 128
        %6066 = vxpose.xlu0.b32.cont [11/16] %v5949, 128
        %6067 = vxpose.xlu0.b32.cont [12/16] %v5950, 128
        %6068 = vxpose.xlu0.b32.cont [13/16] %v5951, 128
        %6069 = vxpose.xlu0.b32.cont [14/16] %v5952, 128
        %6070 = vxpose.xlu0.b32.cont [15/16] %v5953, 128
        %6071 = vxpose.xlu0.b32.end [16/16] %v5954, 128
        %v6072 = vpop.trf.xlu0
        %v6073 = vpop.trf.xlu0
        %v6074 = vpop.trf.xlu0
        %v6075 = vpop.trf.xlu0
        %v6076 = vpop.trf.xlu0
        %v6077 = vpop.trf.xlu0
        %v6078 = vpop.trf.xlu0
        %v6079 = vpop.trf.xlu0
        %v6080 = vpop.trf.xlu0
        %v6081 = vpop.trf.xlu0
        %v6082 = vpop.trf.xlu0
        %v6083 = vpop.trf.xlu0
        %v6084 = vpop.trf.xlu0
        %v6085 = vpop.trf.xlu0
        %v6086 = vpop.trf.xlu0
        %v6087 = vpop.trf.xlu0
        %6088 = vxpose.xlu0.b32.start [1/16] %v5955, 128
        %6089 = vxpose.xlu0.b32.cont [2/16] %v5956, 128
        %6090 = vxpose.xlu0.b32.cont [3/16] %v5957, 128
        %6091 = vxpose.xlu0.b32.cont [4/16] %v5958, 128
        %6092 = vxpose.xlu0.b32.cont [5/16] %v5959, 128
        %6093 = vxpose.xlu0.b32.cont [6/16] %v5960, 128
        %6094 = vxpose.xlu0.b32.cont [7/16] %v5961, 128
        %6095 = vxpose.xlu0.b32.cont [8/16] %v5962, 128
        %6096 = vxpose.xlu0.b32.cont [9/16] %v5963, 128
        %6097 = vxpose.xlu0.b32.cont [10/16] %v5964, 128
        %6098 = vxpose.xlu0.b32.cont [11/16] %v5965, 128
        %6099 = vxpose.xlu0.b32.cont [12/16] %v5966, 128
        %6100 = vxpose.xlu0.b32.cont [13/16] %v5967, 128
        %6101 = vxpose.xlu0.b32.cont [14/16] %v5968, 128
        %6102 = vxpose.xlu0.b32.cont [15/16] %v5969, 128
        %6103 = vxpose.xlu0.b32.end [16/16] %v5970, 128
        %v6104 = vpop.trf.xlu0
        %v6105 = vpop.trf.xlu0
        %v6106 = vpop.trf.xlu0
        %v6107 = vpop.trf.xlu0
        %v6108 = vpop.trf.xlu0
        %v6109 = vpop.trf.xlu0
        %v6110 = vpop.trf.xlu0
        %v6111 = vpop.trf.xlu0
        %v6112 = vpop.trf.xlu0
        %v6113 = vpop.trf.xlu0
        %v6114 = vpop.trf.xlu0
        %v6115 = vpop.trf.xlu0
        %v6116 = vpop.trf.xlu0
        %v6117 = vpop.trf.xlu0
        %v6118 = vpop.trf.xlu0
        %v6119 = vpop.trf.xlu0
        %6120 = vmatprep.subr.mxu0 0.0
        %6121 = vmatpush1.msra.mxu0 %v5939
        %6122 = vmatprep.subr.mxu0 0.0
        %6123 = vmatpush1.msra.mxu0 %v5940
        %6124 = vmatprep.subr.mxu0 0.0
        %6125 = vmatpush1.msra.mxu0 %v5941
        %6126 = vmatprep.subr.mxu0 0.0
        %6127 = vmatpush1.msra.mxu0 %v5942
        %6128 = vmatprep.subr.mxu0 0.0
        %6129 = vmatpush1.msra.mxu0 %v5943
        %6130 = vmatprep.subr.mxu0 0.0
        %6131 = vmatpush1.msra.mxu0 %v5944
        %6132 = vmatprep.subr.mxu0 0.0
        %6133 = vmatpush1.msra.mxu0 %v5945
        %6134 = vmatprep.subr.mxu0 0.0
        %6135 = vmatpush1.msra.mxu0 %v5946
        %6136 = vmatprep.subr.mxu0 0.0
        %6137 = vmatpush1.msra.mxu0 %v5947
        %6138 = vmatprep.subr.mxu0 0.0
        %6139 = vmatpush1.msra.mxu0 %v5948
        %6140 = vmatprep.subr.mxu0 0.0
        %6141 = vmatpush1.msra.mxu0 %v5949
        %6142 = vmatprep.subr.mxu0 0.0
        %6143 = vmatpush1.msra.mxu0 %v5950
        %6144 = vmatprep.subr.mxu0 0.0
        %6145 = vmatpush1.msra.mxu0 %v5951
        %6146 = vmatprep.subr.mxu0 0.0
        %6147 = vmatpush1.msra.mxu0 %v5952
        %6148 = vmatprep.subr.mxu0 0.0
        %6149 = vmatpush1.msra.mxu0 %v5953
        %6150 = vmatprep.subr.mxu0 0.0
        %6151 = vmatpush1.msra.mxu0 %v5954
        %6152 = vmatprep.subr.mxu0 0.0
        %6153 = vmatpush1.msra.mxu0 %v5955
        %6154 = vmatprep.subr.mxu0 0.0
        %6155 = vmatpush1.msra.mxu0 %v5956
        %6156 = vmatprep.subr.mxu0 0.0
        %6157 = vmatpush1.msra.mxu0 %v5957
        %6158 = vmatprep.subr.mxu0 0.0
        %6159 = vmatpush1.msra.mxu0 %v5958
        %6160 = vmatprep.subr.mxu0 0.0
        %6161 = vmatpush1.msra.mxu0 %v5959
        %6162 = vmatprep.subr.mxu0 0.0
        %6163 = vmatpush1.msra.mxu0 %v5960
        %6164 = vmatprep.subr.mxu0 0.0
        %6165 = vmatpush1.msra.mxu0 %v5961
        %6166 = vmatprep.subr.mxu0 0.0
        %6167 = vmatpush1.msra.mxu0 %v5962
        %6168 = vmatprep.subr.mxu0 0.0
        %6169 = vmatpush1.msra.mxu0 %v5963
        %6170 = vmatprep.subr.mxu0 0.0
        %6171 = vmatpush1.msra.mxu0 %v5964
        %6172 = vmatprep.subr.mxu0 0.0
        %6173 = vmatpush1.msra.mxu0 %v5965
        %6174 = vmatprep.subr.mxu0 0.0
        %6175 = vmatpush1.msra.mxu0 %v5966
        %6176 = vmatprep.subr.mxu0 0.0
        %6177 = vmatpush1.msra.mxu0 %v5967
        %6178 = vmatprep.subr.mxu0 0.0
        %6179 = vmatpush1.msra.mxu0 %v5968
        %6180 = vmatprep.subr.mxu0 0.0
        %6181 = vmatpush1.msra.mxu0 %v5969
        %6182 = vmatprep.subr.mxu0 0.0
        %6183 = vmatpush1.msra.mxu0 %v5970
        %6184 = vmatprep.mubr.f32.mxu0 %v6104
        %6185 = vmatmul.mubr.f32.gmra.mrb[0].mxu0 %v6072
        %v6186 = vpop.f32.mrb[0].mxu0
        %v6187 = vadd.f32 0.0, %v6186
        %v6188 = vpop.f32.mrb[0].mxu0
        %6189 = vmatprep.mubr.f32.mxu0 %v6105
        %6190 = vmatmul.mubr.f32.gmra.mrb[0].mxu0 %v6073
        %v6191 = vpop.f32.mrb[0].mxu0
        %v6192 = vadd.f32 0.0, %v6191
        %v6193 = vpop.f32.mrb[0].mxu0
        %6194 = vdwg.mxu0
        %v6196 = vsel %vm673, %v5180, 0
        %v6199 = vsel %vm673, %v5181, 0
        %v6202 = vsel %vm673, %v5182, 0
        %v6205 = vsel %vm673, %v5183, 0
        %6207 = vmatprep.subr.mxu0 0.0
        %6208 = vmatpush1.msra.mxu0 %v6187
        %6209 = vmatprep.subr.mxu0 0.0
        %6210 = vmatpush1.msra.mxu0 %v6192
        %6211 = vmatprep.subr.mxu0 0.0
        %6212 = vmatpush1.msra.mxu0 0.0
        %6213 = vmatprep.subr.mxu0 0.0
        %6214 = vmatpush1.msra.mxu0 0.0
        %6215 = vmatprep.subr.mxu0 0.0
        %6216 = vmatpush1.msra.mxu0 0.0
        %6217 = vmatprep.subr.mxu0 0.0
        %6218 = vmatpush1.msra.mxu0 0.0
        %6219 = vmatprep.subr.mxu0 0.0
        %6220 = vmatpush1.msra.mxu0 0.0
        %6221 = vmatprep.subr.mxu0 0.0
        %6222 = vmatpush1.msra.mxu0 0.0
        %6223 = vmatprep.subr.mxu0 0.0
        %6224 = vmatpush1.msra.mxu0 0.0
        %6225 = vmatprep.subr.mxu0 0.0
        %6226 = vmatpush1.msra.mxu0 0.0
        %6227 = vmatprep.subr.mxu0 0.0
        %6228 = vmatpush1.msra.mxu0 0.0
        %6229 = vmatprep.subr.mxu0 0.0
        %6230 = vmatpush1.msra.mxu0 0.0
        %6231 = vmatprep.subr.mxu0 0.0
        %6232 = vmatpush1.msra.mxu0 0.0
        %6233 = vmatprep.subr.mxu0 0.0
        %6234 = vmatpush1.msra.mxu0 0.0
        %6235 = vmatprep.subr.mxu0 0.0
        %6236 = vmatpush1.msra.mxu0 0.0
        %6237 = vmatprep.subr.mxu0 0.0
        %6238 = vmatpush1.msra.mxu0 0.0
        %6239 = vmatprep.subr.mxu0 0.0
        %6240 = vmatpush1.msra.mxu0 0.0
        %6241 = vmatprep.subr.mxu0 0.0
        %6242 = vmatpush1.msra.mxu0 0.0
        %6243 = vmatprep.subr.mxu0 0.0
        %6244 = vmatpush1.msra.mxu0 0.0
        %6245 = vmatprep.subr.mxu0 0.0
        %6246 = vmatpush1.msra.mxu0 0.0
        %6247 = vmatprep.subr.mxu0 0.0
        %6248 = vmatpush1.msra.mxu0 0.0
        %6249 = vmatprep.subr.mxu0 0.0
        %6250 = vmatpush1.msra.mxu0 0.0
        %6251 = vmatprep.subr.mxu0 0.0
        %6252 = vmatpush1.msra.mxu0 0.0
        %6253 = vmatprep.subr.mxu0 0.0
        %6254 = vmatpush1.msra.mxu0 0.0
        %6255 = vmatprep.subr.mxu0 0.0
        %6256 = vmatpush1.msra.mxu0 0.0
        %6257 = vmatprep.subr.mxu0 0.0
        %6258 = vmatpush1.msra.mxu0 0.0
        %6259 = vmatprep.subr.mxu0 0.0
        %6260 = vmatpush1.msra.mxu0 0.0
        %6261 = vmatprep.subr.mxu0 0.0
        %6262 = vmatpush1.msra.mxu0 0.0
        %6263 = vmatprep.subr.mxu0 0.0
        %6264 = vmatpush1.msra.mxu0 0.0
        %6265 = vmatprep.subr.mxu0 0.0
        %6266 = vmatpush1.msra.mxu0 0.0
        %6267 = vmatprep.subr.mxu0 0.0
        %6268 = vmatpush1.msra.mxu0 0.0
        %6269 = vmatprep.subr.mxu0 0.0
        %6270 = vmatpush1.msra.mxu0 0.0
        %6271 = vmatprep.mubr.f32.mxu0 0.0
        %6272 = vmatmul.mubr.f32.gmra.mrb[0].mxu0 %v6196
        %v6273 = vpop.f32.mrb[0].mxu0
        %v6274 = vadd.f32 0.0, %v6273
        %v6275 = vpop.f32.mrb[0].mxu0
        %6276 = vmatprep.mubr.f32.mxu0 0.0
        %6277 = vmatmul.mubr.f32.gmra.mrb[0].mxu0 %v6199
        %v6278 = vpop.f32.mrb[0].mxu0
        %v6279 = vadd.f32 0.0, %v6278
        %v6280 = vpop.f32.mrb[0].mxu0
        %6281 = vmatprep.mubr.f32.mxu0 0.0
        %6282 = vmatmul.mubr.f32.gmra.mrb[0].mxu0 %v6202
        %v6283 = vpop.f32.mrb[0].mxu0
        %v6284 = vadd.f32 0.0, %v6283
        %v6285 = vpop.f32.mrb[0].mxu0
        %6286 = vmatprep.mubr.f32.mxu0 0.0
        %6287 = vmatmul.mubr.f32.gmra.mrb[0].mxu0 %v6205
        %v6288 = vpop.f32.mrb[0].mxu0
        %v6289 = vadd.f32 0.0, %v6288
        %v6290 = vpop.f32.mrb[0].mxu0
        %6291 = vdwg.mxu0
        %v6292 = vrcp.pop %v6274
        %v6293 = vmul.f32 %v6038, %v6292
        %v6294 = vrcp.pop %v6279
        %v6295 = vmul.f32 %v6043, %v6294
        %v6296 = vrcp.pop %v6284
        %v6297 = vmul.f32 %v6048, %v6296
        %v6298 = vrcp.pop %v6289
        %v6299 = vmul.f32 %v6053, %v6298
        %v6300 = vadd.f32 %v6293, 1e-06
        %v6301 = vadd.f32 %v6295, 1e-06
        %v6302 = vadd.f32 %v6297, 1e-06
        %v6303 = vadd.f32 %v6299, 1e-06
        %v6304 = vmul.f32 %v5180, %v6300
        %v6305 = vmul.f32 %v5181, %v6301
        %v6306 = vmul.f32 %v5182, %v6302
        %v6307 = vmul.f32 %v5183, %v6303
        %6308 = vmatprep.subr.mxu0 0.0
        %6309 = vmatpush1.msra.mxu0 %v6304
        %6310 = vmatprep.subr.mxu0 0.0
        %6311 = vmatpush1.msra.mxu0 %v6305
        %6312 = vmatprep.subr.mxu0 0.0
        %6313 = vmatpush1.msra.mxu0 %v6306
        %6314 = vmatprep.subr.mxu0 0.0
        %6315 = vmatpush1.msra.mxu0 %v6307
        %6316 = vmatprep.subr.mxu0 0.0
        %6317 = vmatpush1.msra.mxu0 0.0
        %6318 = vmatprep.subr.mxu0 0.0
        %6319 = vmatpush1.msra.mxu0 0.0
        %6320 = vmatprep.subr.mxu0 0.0
        %6321 = vmatpush1.msra.mxu0 0.0
        %6322 = vmatprep.subr.mxu0 0.0
        %6323 = vmatpush1.msra.mxu0 0.0
        %6324 = vmatprep.subr.mxu0 0.0
        %6325 = vmatpush1.msra.mxu0 0.0
        %6326 = vmatprep.subr.mxu0 0.0
        %6327 = vmatpush1.msra.mxu0 0.0
        %6328 = vmatprep.subr.mxu0 0.0
        %6329 = vmatpush1.msra.mxu0 0.0
        %6330 = vmatprep.subr.mxu0 0.0
        %6331 = vmatpush1.msra.mxu0 0.0
        %6332 = vmatprep.subr.mxu0 0.0
        %6333 = vmatpush1.msra.mxu0 0.0
        %6334 = vmatprep.subr.mxu0 0.0
        %6335 = vmatpush1.msra.mxu0 0.0
        %6336 = vmatprep.subr.mxu0 0.0
        %6337 = vmatpush1.msra.mxu0 0.0
        %6338 = vmatprep.subr.mxu0 0.0
        %6339 = vmatpush1.msra.mxu0 0.0
        %6340 = vmatprep.subr.mxu0 0.0
        %6341 = vmatpush1.msra.mxu0 0.0
        %6342 = vmatprep.subr.mxu0 0.0
        %6343 = vmatpush1.msra.mxu0 0.0
        %6344 = vmatprep.subr.mxu0 0.0
        %6345 = vmatpush1.msra.mxu0 0.0
        %6346 = vmatprep.subr.mxu0 0.0
        %6347 = vmatpush1.msra.mxu0 0.0
        %6348 = vmatprep.subr.mxu0 0.0
        %6349 = vmatpush1.msra.mxu0 0.0
        %6350 = vmatprep.subr.mxu0 0.0
        %6351 = vmatpush1.msra.mxu0 0.0
        %6352 = vmatprep.subr.mxu0 0.0
        %6353 = vmatpush1.msra.mxu0 0.0
        %6354 = vmatprep.subr.mxu0 0.0
        %6355 = vmatpush1.msra.mxu0 0.0
        %6356 = vmatprep.subr.mxu0 0.0
        %6357 = vmatpush1.msra.mxu0 0.0
        %6358 = vmatprep.subr.mxu0 0.0
        %6359 = vmatpush1.msra.mxu0 0.0
        %6360 = vmatprep.subr.mxu0 0.0
        %6361 = vmatpush1.msra.mxu0 0.0
        %6362 = vmatprep.subr.mxu0 0.0
        %6363 = vmatpush1.msra.mxu0 0.0
        %6364 = vmatprep.subr.mxu0 0.0
        %6365 = vmatpush1.msra.mxu0 0.0
        %6366 = vmatprep.subr.mxu0 0.0
        %6367 = vmatpush1.msra.mxu0 0.0
        %6368 = vmatprep.subr.mxu0 0.0
        %6369 = vmatpush1.msra.mxu0 0.0
        %6370 = vmatprep.subr.mxu0 0.0
        %6371 = vmatpush1.msra.mxu0 0.0
        %6372 = vmatprep.mubr.f32.mxu0 0.0
        %6373 = vmatmul.mubr.f32.gmra.mrb[0].mxu0 %v353
        %v6374 = vpop.f32.mrb[0].mxu0
        %v6375 = vadd.f32 0.0, %v6374
        %v6376 = vpop.f32.mrb[0].mxu0
        %6377 = vmatprep.mubr.f32.mxu0 0.0
        %6378 = vmatmul.mubr.f32.gmra.mrb[0].mxu0 %v356
        %v6379 = vpop.f32.mrb[0].mxu0
        %v6380 = vadd.f32 0.0, %v6379
        %v6381 = vpop.f32.mrb[0].mxu0
        %6382 = vmatprep.mubr.f32.mxu0 0.0
        %6383 = vmatmul.mubr.f32.gmra.mrb[0].mxu0 %v359
        %v6384 = vpop.f32.mrb[0].mxu0
        %v6385 = vadd.f32 0.0, %v6384
        %v6386 = vpop.f32.mrb[0].mxu0
        %6387 = vmatprep.mubr.f32.mxu0 0.0
        %6388 = vmatmul.mubr.f32.gmra.mrb[0].mxu0 %v362
        %v6389 = vpop.f32.mrb[0].mxu0
        %v6390 = vadd.f32 0.0, %v6389
        %v6391 = vpop.f32.mrb[0].mxu0
        %6392 = vmatprep.mubr.f32.mxu0 0.0
        %6393 = vmatmul.mubr.f32.gmra.mrb[0].mxu0 %v365
        %v6394 = vpop.f32.mrb[0].mxu0
        %v6395 = vadd.f32 0.0, %v6394
        %v6396 = vpop.f32.mrb[0].mxu0
        %6397 = vmatprep.mubr.f32.mxu0 0.0
        %6398 = vmatmul.mubr.f32.gmra.mrb[0].mxu0 %v368
        %v6399 = vpop.f32.mrb[0].mxu0
        %v6400 = vadd.f32 0.0, %v6399
        %v6401 = vpop.f32.mrb[0].mxu0
        %6402 = vmatprep.mubr.f32.mxu0 0.0
        %6403 = vmatmul.mubr.f32.gmra.mrb[0].mxu0 %v371
        %v6404 = vpop.f32.mrb[0].mxu0
        %v6405 = vadd.f32 0.0, %v6404
        %v6406 = vpop.f32.mrb[0].mxu0
        %6407 = vmatprep.mubr.f32.mxu0 0.0
        %6408 = vmatmul.mubr.f32.gmra.mrb[0].mxu0 %v374
        %v6409 = vpop.f32.mrb[0].mxu0
        %v6410 = vadd.f32 0.0, %v6409
        %v6411 = vpop.f32.mrb[0].mxu0
        %6412 = vmatprep.mubr.f32.mxu0 0.0
        %6413 = vmatmul.mubr.f32.gmra.mrb[0].mxu0 %v377
        %v6414 = vpop.f32.mrb[0].mxu0
        %v6415 = vadd.f32 0.0, %v6414
        %v6416 = vpop.f32.mrb[0].mxu0
        %6417 = vmatprep.mubr.f32.mxu0 0.0
        %6418 = vmatmul.mubr.f32.gmra.mrb[0].mxu0 %v380
        %v6419 = vpop.f32.mrb[0].mxu0
        %v6420 = vadd.f32 0.0, %v6419
        %v6421 = vpop.f32.mrb[0].mxu0
        %6422 = vmatprep.mubr.f32.mxu0 0.0
        %6423 = vmatmul.mubr.f32.gmra.mrb[0].mxu0 %v383
        %v6424 = vpop.f32.mrb[0].mxu0
        %v6425 = vadd.f32 0.0, %v6424
        %v6426 = vpop.f32.mrb[0].mxu0
        %6427 = vmatprep.mubr.f32.mxu0 0.0
        %6428 = vmatmul.mubr.f32.gmra.mrb[0].mxu0 %v386
        %v6429 = vpop.f32.mrb[0].mxu0
        %v6430 = vadd.f32 0.0, %v6429
        %v6431 = vpop.f32.mrb[0].mxu0
        %6432 = vmatprep.mubr.f32.mxu0 0.0
        %6433 = vmatmul.mubr.f32.gmra.mrb[0].mxu0 %v389
        %v6434 = vpop.f32.mrb[0].mxu0
        %v6435 = vadd.f32 0.0, %v6434
        %v6436 = vpop.f32.mrb[0].mxu0
        %6437 = vmatprep.mubr.f32.mxu0 0.0
        %6438 = vmatmul.mubr.f32.gmra.mrb[0].mxu0 %v392
        %v6439 = vpop.f32.mrb[0].mxu0
        %v6440 = vadd.f32 0.0, %v6439
        %v6441 = vpop.f32.mrb[0].mxu0
        %6442 = vmatprep.mubr.f32.mxu0 0.0
        %6443 = vmatmul.mubr.f32.gmra.mrb[0].mxu0 %v395
        %v6444 = vpop.f32.mrb[0].mxu0
        %v6445 = vadd.f32 0.0, %v6444
        %v6446 = vpop.f32.mrb[0].mxu0
        %6447 = vmatprep.mubr.f32.mxu0 0.0
        %6448 = vmatmul.mubr.f32.gmra.mrb[0].mxu0 %v398
        %v6449 = vpop.f32.mrb[0].mxu0
        %v6450 = vadd.f32 0.0, %v6449
        %v6451 = vpop.f32.mrb[0].mxu0
        %6452 = vmatprep.mubr.f32.mxu0 0.0
        %6453 = vmatmul.mubr.f32.gmra.mrb[0].mxu0 %v401
        %v6454 = vpop.f32.mrb[0].mxu0
        %v6455 = vadd.f32 0.0, %v6454
        %v6456 = vpop.f32.mrb[0].mxu0
        %6457 = vmatprep.mubr.f32.mxu0 0.0
        %6458 = vmatmul.mubr.f32.gmra.mrb[0].mxu0 %v404
        %v6459 = vpop.f32.mrb[0].mxu0
        %v6460 = vadd.f32 0.0, %v6459
        %v6461 = vpop.f32.mrb[0].mxu0
        %6462 = vmatprep.mubr.f32.mxu0 0.0
        %6463 = vmatmul.mubr.f32.gmra.mrb[0].mxu0 %v407
        %v6464 = vpop.f32.mrb[0].mxu0
        %v6465 = vadd.f32 0.0, %v6464
        %v6466 = vpop.f32.mrb[0].mxu0
        %6467 = vmatprep.mubr.f32.mxu0 0.0
        %6468 = vmatmul.mubr.f32.gmra.mrb[0].mxu0 %v410
        %v6469 = vpop.f32.mrb[0].mxu0
        %v6470 = vadd.f32 0.0, %v6469
        %v6471 = vpop.f32.mrb[0].mxu0
        %6472 = vmatprep.mubr.f32.mxu0 0.0
        %6473 = vmatmul.mubr.f32.gmra.mrb[0].mxu0 %v413
        %v6474 = vpop.f32.mrb[0].mxu0
        %v6475 = vadd.f32 0.0, %v6474
        %v6476 = vpop.f32.mrb[0].mxu0
        %6477 = vmatprep.mubr.f32.mxu0 0.0
        %6478 = vmatmul.mubr.f32.gmra.mrb[0].mxu0 %v416
        %v6479 = vpop.f32.mrb[0].mxu0
        %v6480 = vadd.f32 0.0, %v6479
        %v6481 = vpop.f32.mrb[0].mxu0
        %6482 = vmatprep.mubr.f32.mxu0 0.0
        %6483 = vmatmul.mubr.f32.gmra.mrb[0].mxu0 %v419
        %v6484 = vpop.f32.mrb[0].mxu0
        %v6485 = vadd.f32 0.0, %v6484
        %v6486 = vpop.f32.mrb[0].mxu0
        %6487 = vmatprep.mubr.f32.mxu0 0.0
        %6488 = vmatmul.mubr.f32.gmra.mrb[0].mxu0 %v422
        %v6489 = vpop.f32.mrb[0].mxu0
        %v6490 = vadd.f32 0.0, %v6489
        %v6491 = vpop.f32.mrb[0].mxu0
        %6492 = vmatprep.mubr.f32.mxu0 0.0
        %6493 = vmatmul.mubr.f32.gmra.mrb[0].mxu0 %v425
        %v6494 = vpop.f32.mrb[0].mxu0
        %v6495 = vadd.f32 0.0, %v6494
        %v6496 = vpop.f32.mrb[0].mxu0
        %6497 = vmatprep.mubr.f32.mxu0 0.0
        %6498 = vmatmul.mubr.f32.gmra.mrb[0].mxu0 %v428
        %v6499 = vpop.f32.mrb[0].mxu0
        %v6500 = vadd.f32 0.0, %v6499
        %v6501 = vpop.f32.mrb[0].mxu0
        %6502 = vmatprep.mubr.f32.mxu0 0.0
        %6503 = vmatmul.mubr.f32.gmra.mrb[0].mxu0 %v431
        %v6504 = vpop.f32.mrb[0].mxu0
        %v6505 = vadd.f32 0.0, %v6504
        %v6506 = vpop.f32.mrb[0].mxu0
        %6507 = vmatprep.mubr.f32.mxu0 0.0
        %6508 = vmatmul.mubr.f32.gmra.mrb[0].mxu0 %v434
        %v6509 = vpop.f32.mrb[0].mxu0
        %v6510 = vadd.f32 0.0, %v6509
        %v6511 = vpop.f32.mrb[0].mxu0
        %6512 = vmatprep.mubr.f32.mxu0 0.0
        %6513 = vmatmul.mubr.f32.gmra.mrb[0].mxu0 %v437
        %v6514 = vpop.f32.mrb[0].mxu0
        %v6515 = vadd.f32 0.0, %v6514
        %v6516 = vpop.f32.mrb[0].mxu0
        %6517 = vmatprep.mubr.f32.mxu0 0.0
        %6518 = vmatmul.mubr.f32.gmra.mrb[0].mxu0 %v440
        %v6519 = vpop.f32.mrb[0].mxu0
        %v6520 = vadd.f32 0.0, %v6519
        %v6521 = vpop.f32.mrb[0].mxu0
        %6522 = vmatprep.mubr.f32.mxu0 0.0
        %6523 = vmatmul.mubr.f32.gmra.mrb[0].mxu0 %v443
        %v6524 = vpop.f32.mrb[0].mxu0
        %v6525 = vadd.f32 0.0, %v6524
        %v6526 = vpop.f32.mrb[0].mxu0
        %6527 = vmatprep.mubr.f32.mxu0 0.0
        %6528 = vmatmul.mubr.f32.gmra.mrb[0].mxu0 %v446
        %v6529 = vpop.f32.mrb[0].mxu0
        %v6530 = vadd.f32 0.0, %v6529
        %v6531 = vpop.f32.mrb[0].mxu0
        %6532 = vdwg.mxu0
        %6533 = vxpose.xlu0.b32.start [1/16] %v6304, 128
        %6534 = vxpose.xlu0.b32.cont [2/16] %v6305, 128
        %6535 = vxpose.xlu0.b32.cont [3/16] %v6306, 128
        %6536 = vxpose.xlu0.b32.cont [4/16] %v6307, 128
        %6537 = vxpose.xlu0.b32.cont [5/16] 0.0, 128
        %6538 = vxpose.xlu0.b32.cont [6/16] 0.0, 128
        %6539 = vxpose.xlu0.b32.cont [7/16] 0.0, 128
        %6540 = vxpose.xlu0.b32.cont [8/16] 0.0, 128
        %6541 = vxpose.xlu0.b32.cont [9/16] 0.0, 128
        %6542 = vxpose.xlu0.b32.cont [10/16] 0.0, 128
        %6543 = vxpose.xlu0.b32.cont [11/16] 0.0, 128
        %6544 = vxpose.xlu0.b32.cont [12/16] 0.0, 128
        %6545 = vxpose.xlu0.b32.cont [13/16] 0.0, 128
        %6546 = vxpose.xlu0.b32.cont [14/16] 0.0, 128
        %6547 = vxpose.xlu0.b32.cont [15/16] 0.0, 128
        %6548 = vxpose.xlu0.b32.end [16/16] 0.0, 128
        %v6549 = vpop.trf.xlu0
        %v6550 = vpop.trf.xlu0
        %v6551 = vpop.trf.xlu0
        %v6552 = vpop.trf.xlu0
        %v6553 = vpop.trf.xlu0
        %v6554 = vpop.trf.xlu0
        %v6555 = vpop.trf.xlu0
        %v6556 = vpop.trf.xlu0
        %v6557 = vpop.trf.xlu0
        %v6558 = vpop.trf.xlu0
        %v6559 = vpop.trf.xlu0
        %v6560 = vpop.trf.xlu0
        %v6561 = vpop.trf.xlu0
        %v6562 = vpop.trf.xlu0
        %v6563 = vpop.trf.xlu0
        %v6564 = vpop.trf.xlu0
        %v6566 = vsel %vm198, %v6549, 0
        %v6569 = vsel %vm198, %v6550, 0
        %6571 = vmatprep.subr.mxu0 0.0
        %6572 = vmatpush1.msra.mxu0 %v6304
        %6573 = vmatprep.subr.mxu0 0.0
        %6574 = vmatpush1.msra.mxu0 %v6305
        %6575 = vmatprep.subr.mxu0 0.0
        %6576 = vmatpush1.msra.mxu0 %v6306
        %6577 = vmatprep.subr.mxu0 0.0
        %6578 = vmatpush1.msra.mxu0 %v6307
        %6579 = vmatprep.subr.mxu0 0.0
        %6580 = vmatpush1.msra.mxu0 0.0
        %6581 = vmatprep.subr.mxu0 0.0
        %6582 = vmatpush1.msra.mxu0 0.0
        %6583 = vmatprep.subr.mxu0 0.0
        %6584 = vmatpush1.msra.mxu0 0.0
        %6585 = vmatprep.subr.mxu0 0.0
        %6586 = vmatpush1.msra.mxu0 0.0
        %6587 = vmatprep.subr.mxu0 0.0
        %6588 = vmatpush1.msra.mxu0 0.0
        %6589 = vmatprep.subr.mxu0 0.0
        %6590 = vmatpush1.msra.mxu0 0.0
        %6591 = vmatprep.subr.mxu0 0.0
        %6592 = vmatpush1.msra.mxu0 0.0
        %6593 = vmatprep.subr.mxu0 0.0
        %6594 = vmatpush1.msra.mxu0 0.0
        %6595 = vmatprep.subr.mxu0 0.0
        %6596 = vmatpush1.msra.mxu0 0.0
        %6597 = vmatprep.subr.mxu0 0.0
        %6598 = vmatpush1.msra.mxu0 0.0
        %6599 = vmatprep.subr.mxu0 0.0
        %6600 = vmatpush1.msra.mxu0 0.0
        %6601 = vmatprep.subr.mxu0 0.0
        %6602 = vmatpush1.msra.mxu0 0.0
        %6603 = vmatprep.subr.mxu0 0.0
        %6604 = vmatpush1.msra.mxu0 0.0
        %6605 = vmatprep.subr.mxu0 0.0
        %6606 = vmatpush1.msra.mxu0 0.0
        %6607 = vmatprep.subr.mxu0 0.0
        %6608 = vmatpush1.msra.mxu0 0.0
        %6609 = vmatprep.subr.mxu0 0.0
        %6610 = vmatpush1.msra.mxu0 0.0
        %6611 = vmatprep.subr.mxu0 0.0
        %6612 = vmatpush1.msra.mxu0 0.0
        %6613 = vmatprep.subr.mxu0 0.0
        %6614 = vmatpush1.msra.mxu0 0.0
        %6615 = vmatprep.subr.mxu0 0.0
        %6616 = vmatpush1.msra.mxu0 0.0
        %6617 = vmatprep.subr.mxu0 0.0
        %6618 = vmatpush1.msra.mxu0 0.0
        %6619 = vmatprep.subr.mxu0 0.0
        %6620 = vmatpush1.msra.mxu0 0.0
        %6621 = vmatprep.subr.mxu0 0.0
        %6622 = vmatpush1.msra.mxu0 0.0
        %6623 = vmatprep.subr.mxu0 0.0
        %6624 = vmatpush1.msra.mxu0 0.0
        %6625 = vmatprep.subr.mxu0 0.0
        %6626 = vmatpush1.msra.mxu0 0.0
        %6627 = vmatprep.subr.mxu0 0.0
        %6628 = vmatpush1.msra.mxu0 0.0
        %6629 = vmatprep.subr.mxu0 0.0
        %6630 = vmatpush1.msra.mxu0 0.0
        %6631 = vmatprep.subr.mxu0 0.0
        %6632 = vmatpush1.msra.mxu0 0.0
        %6633 = vmatprep.subr.mxu0 0.0
        %6634 = vmatpush1.msra.mxu0 0.0
        %6635 = vmatprep.mubr.f32.mxu0 0.0
        %6636 = vmatmul.mubr.f32.gmra.mrb[0].mxu0 %v6566
        %v6637 = vpop.f32.mrb[0].mxu0
        %v6638 = vadd.f32 0.0, %v6637
        %v6639 = vpop.f32.mrb[0].mxu0
        %6640 = vmatprep.mubr.f32.mxu0 0.0
        %6641 = vmatmul.mubr.f32.gmra.mrb[0].mxu0 %v6569
        %v6642 = vpop.f32.mrb[0].mxu0
        %v6643 = vadd.f32 0.0, %v6642
        %v6644 = vpop.f32.mrb[0].mxu0
        %6645 = vdwg.mxu0
        %v6647 = vsel %vm673, %v5939, 0
        %v6650 = vsel %vm673, %v5940, 0
        %v6653 = vsel %vm673, %v5941, 0
        %v6656 = vsel %vm673, %v5942, 0
        %v6659 = vsel %vm673, %v5943, 0
        %v6662 = vsel %vm673, %v5944, 0
        %v6665 = vsel %vm673, %v5945, 0
        %v6668 = vsel %vm673, %v5946, 0
        %v6671 = vsel %vm673, %v5947, 0
        %v6674 = vsel %vm673, %v5948, 0
        %v6677 = vsel %vm673, %v5949, 0
        %v6680 = vsel %vm673, %v5950, 0
        %v6683 = vsel %vm673, %v5951, 0
        %v6686 = vsel %vm673, %v5952, 0
        %v6689 = vsel %vm673, %v5953, 0
        %v6692 = vsel %vm673, %v5954, 0
        %v6695 = vsel %vm673, %v5955, 0
        %v6698 = vsel %vm673, %v5956, 0
        %v6701 = vsel %vm673, %v5957, 0
        %v6704 = vsel %vm673, %v5958, 0
        %v6707 = vsel %vm673, %v5959, 0
        %v6710 = vsel %vm673, %v5960, 0
        %v6713 = vsel %vm673, %v5961, 0
        %v6716 = vsel %vm673, %v5962, 0
        %v6719 = vsel %vm673, %v5963, 0
        %v6722 = vsel %vm673, %v5964, 0
        %v6725 = vsel %vm673, %v5965, 0
        %v6728 = vsel %vm673, %v5966, 0
        %v6731 = vsel %vm673, %v5967, 0
        %v6734 = vsel %vm673, %v5968, 0
        %v6737 = vsel %vm673, %v5969, 0
        %v6740 = vsel %vm673, %v5970, 0
        %6742 = vmatprep.subr.mxu0 0.0
        %6743 = vmatpush1.msra.mxu0 %v6638
        %6744 = vmatprep.subr.mxu0 0.0
        %6745 = vmatpush1.msra.mxu0 %v6643
        %6746 = vmatprep.subr.mxu0 0.0
        %6747 = vmatpush1.msra.mxu0 0.0
        %6748 = vmatprep.subr.mxu0 0.0
        %6749 = vmatpush1.msra.mxu0 0.0
        %6750 = vmatprep.subr.mxu0 0.0
        %6751 = vmatpush1.msra.mxu0 0.0
        %6752 = vmatprep.subr.mxu0 0.0
        %6753 = vmatpush1.msra.mxu0 0.0
        %6754 = vmatprep.subr.mxu0 0.0
        %6755 = vmatpush1.msra.mxu0 0.0
        %6756 = vmatprep.subr.mxu0 0.0
        %6757 = vmatpush1.msra.mxu0 0.0
        %6758 = vmatprep.subr.mxu0 0.0
        %6759 = vmatpush1.msra.mxu0 0.0
        %6760 = vmatprep.subr.mxu0 0.0
        %6761 = vmatpush1.msra.mxu0 0.0
        %6762 = vmatprep.subr.mxu0 0.0
        %6763 = vmatpush1.msra.mxu0 0.0
        %6764 = vmatprep.subr.mxu0 0.0
        %6765 = vmatpush1.msra.mxu0 0.0
        %6766 = vmatprep.subr.mxu0 0.0
        %6767 = vmatpush1.msra.mxu0 0.0
        %6768 = vmatprep.subr.mxu0 0.0
        %6769 = vmatpush1.msra.mxu0 0.0
        %6770 = vmatprep.subr.mxu0 0.0
        %6771 = vmatpush1.msra.mxu0 0.0
        %6772 = vmatprep.subr.mxu0 0.0
        %6773 = vmatpush1.msra.mxu0 0.0
        %6774 = vmatprep.subr.mxu0 0.0
        %6775 = vmatpush1.msra.mxu0 0.0
        %6776 = vmatprep.subr.mxu0 0.0
        %6777 = vmatpush1.msra.mxu0 0.0
        %6778 = vmatprep.subr.mxu0 0.0
        %6779 = vmatpush1.msra.mxu0 0.0
        %6780 = vmatprep.subr.mxu0 0.0
        %6781 = vmatpush1.msra.mxu0 0.0
        %6782 = vmatprep.subr.mxu0 0.0
        %6783 = vmatpush1.msra.mxu0 0.0
        %6784 = vmatprep.subr.mxu0 0.0
        %6785 = vmatpush1.msra.mxu0 0.0
        %6786 = vmatprep.subr.mxu0 0.0
        %6787 = vmatpush1.msra.mxu0 0.0
        %6788 = vmatprep.subr.mxu0 0.0
        %6789 = vmatpush1.msra.mxu0 0.0
        %6790 = vmatprep.subr.mxu0 0.0
        %6791 = vmatpush1.msra.mxu0 0.0
        %6792 = vmatprep.subr.mxu0 0.0
        %6793 = vmatpush1.msra.mxu0 0.0
        %6794 = vmatprep.subr.mxu0 0.0
        %6795 = vmatpush1.msra.mxu0 0.0
        %6796 = vmatprep.subr.mxu0 0.0
        %6797 = vmatpush1.msra.mxu0 0.0
        %6798 = vmatprep.subr.mxu0 0.0
        %6799 = vmatpush1.msra.mxu0 0.0
        %6800 = vmatprep.subr.mxu0 0.0
        %6801 = vmatpush1.msra.mxu0 0.0
        %6802 = vmatprep.subr.mxu0 0.0
        %6803 = vmatpush1.msra.mxu0 0.0
        %6804 = vmatprep.subr.mxu0 0.0
        %6805 = vmatpush1.msra.mxu0 0.0
        %6806 = vmatprep.mubr.f32.mxu0 0.0
        %6807 = vmatmul.mubr.f32.gmra.mrb[0].mxu0 %v6647
        %v6808 = vpop.f32.mrb[0].mxu0
        %v6809 = vadd.f32 0.0, %v6808
        %v6810 = vpop.f32.mrb[0].mxu0
        %6811 = vmatprep.mubr.f32.mxu0 0.0
        %6812 = vmatmul.mubr.f32.gmra.mrb[0].mxu0 %v6650
        %v6813 = vpop.f32.mrb[0].mxu0
        %v6814 = vadd.f32 0.0, %v6813
        %v6815 = vpop.f32.mrb[0].mxu0
        %6816 = vmatprep.mubr.f32.mxu0 0.0
        %6817 = vmatmul.mubr.f32.gmra.mrb[0].mxu0 %v6653
        %v6818 = vpop.f32.mrb[0].mxu0
        %v6819 = vadd.f32 0.0, %v6818
        %v6820 = vpop.f32.mrb[0].mxu0
        %6821 = vmatprep.mubr.f32.mxu0 0.0
        %6822 = vmatmul.mubr.f32.gmra.mrb[0].mxu0 %v6656
        %v6823 = vpop.f32.mrb[0].mxu0
        %v6824 = vadd.f32 0.0, %v6823
        %v6825 = vpop.f32.mrb[0].mxu0
        %6826 = vmatprep.mubr.f32.mxu0 0.0
        %6827 = vmatmul.mubr.f32.gmra.mrb[0].mxu0 %v6659
        %v6828 = vpop.f32.mrb[0].mxu0
        %v6829 = vadd.f32 0.0, %v6828
        %v6830 = vpop.f32.mrb[0].mxu0
        %6831 = vmatprep.mubr.f32.mxu0 0.0
        %6832 = vmatmul.mubr.f32.gmra.mrb[0].mxu0 %v6662
        %v6833 = vpop.f32.mrb[0].mxu0
        %v6834 = vadd.f32 0.0, %v6833
        %v6835 = vpop.f32.mrb[0].mxu0
        %6836 = vmatprep.mubr.f32.mxu0 0.0
        %6837 = vmatmul.mubr.f32.gmra.mrb[0].mxu0 %v6665
        %v6838 = vpop.f32.mrb[0].mxu0
        %v6839 = vadd.f32 0.0, %v6838
        %v6840 = vpop.f32.mrb[0].mxu0
        %6841 = vmatprep.mubr.f32.mxu0 0.0
        %6842 = vmatmul.mubr.f32.gmra.mrb[0].mxu0 %v6668
        %v6843 = vpop.f32.mrb[0].mxu0
        %v6844 = vadd.f32 0.0, %v6843
        %v6845 = vpop.f32.mrb[0].mxu0
        %6846 = vmatprep.mubr.f32.mxu0 0.0
        %6847 = vmatmul.mubr.f32.gmra.mrb[0].mxu0 %v6671
        %v6848 = vpop.f32.mrb[0].mxu0
        %v6849 = vadd.f32 0.0, %v6848
        %v6850 = vpop.f32.mrb[0].mxu0
        %6851 = vmatprep.mubr.f32.mxu0 0.0
        %6852 = vmatmul.mubr.f32.gmra.mrb[0].mxu0 %v6674
        %v6853 = vpop.f32.mrb[0].mxu0
        %v6854 = vadd.f32 0.0, %v6853
        %v6855 = vpop.f32.mrb[0].mxu0
        %6856 = vmatprep.mubr.f32.mxu0 0.0
        %6857 = vmatmul.mubr.f32.gmra.mrb[0].mxu0 %v6677
        %v6858 = vpop.f32.mrb[0].mxu0
        %v6859 = vadd.f32 0.0, %v6858
        %v6860 = vpop.f32.mrb[0].mxu0
        %6861 = vmatprep.mubr.f32.mxu0 0.0
        %6862 = vmatmul.mubr.f32.gmra.mrb[0].mxu0 %v6680
        %v6863 = vpop.f32.mrb[0].mxu0
        %v6864 = vadd.f32 0.0, %v6863
        %v6865 = vpop.f32.mrb[0].mxu0
        %6866 = vmatprep.mubr.f32.mxu0 0.0
        %6867 = vmatmul.mubr.f32.gmra.mrb[0].mxu0 %v6683
        %v6868 = vpop.f32.mrb[0].mxu0
        %v6869 = vadd.f32 0.0, %v6868
        %v6870 = vpop.f32.mrb[0].mxu0
        %6871 = vmatprep.mubr.f32.mxu0 0.0
        %6872 = vmatmul.mubr.f32.gmra.mrb[0].mxu0 %v6686
        %v6873 = vpop.f32.mrb[0].mxu0
        %v6874 = vadd.f32 0.0, %v6873
        %v6875 = vpop.f32.mrb[0].mxu0
        %6876 = vmatprep.mubr.f32.mxu0 0.0
        %6877 = vmatmul.mubr.f32.gmra.mrb[0].mxu0 %v6689
        %v6878 = vpop.f32.mrb[0].mxu0
        %v6879 = vadd.f32 0.0, %v6878
        %v6880 = vpop.f32.mrb[0].mxu0
        %6881 = vmatprep.mubr.f32.mxu0 0.0
        %6882 = vmatmul.mubr.f32.gmra.mrb[0].mxu0 %v6692
        %v6883 = vpop.f32.mrb[0].mxu0
        %v6884 = vadd.f32 0.0, %v6883
        %v6885 = vpop.f32.mrb[0].mxu0
        %6886 = vmatprep.mubr.f32.mxu0 0.0
        %6887 = vmatmul.mubr.f32.gmra.mrb[0].mxu0 %v6695
        %v6888 = vpop.f32.mrb[0].mxu0
        %v6889 = vadd.f32 0.0, %v6888
        %v6890 = vpop.f32.mrb[0].mxu0
        %6891 = vmatprep.mubr.f32.mxu0 0.0
        %6892 = vmatmul.mubr.f32.gmra.mrb[0].mxu0 %v6698
        %v6893 = vpop.f32.mrb[0].mxu0
        %v6894 = vadd.f32 0.0, %v6893
        %v6895 = vpop.f32.mrb[0].mxu0
        %6896 = vmatprep.mubr.f32.mxu0 0.0
        %6897 = vmatmul.mubr.f32.gmra.mrb[0].mxu0 %v6701
        %v6898 = vpop.f32.mrb[0].mxu0
        %v6899 = vadd.f32 0.0, %v6898
        %v6900 = vpop.f32.mrb[0].mxu0
        %6901 = vmatprep.mubr.f32.mxu0 0.0
        %6902 = vmatmul.mubr.f32.gmra.mrb[0].mxu0 %v6704
        %v6903 = vpop.f32.mrb[0].mxu0
        %v6904 = vadd.f32 0.0, %v6903
        %v6905 = vpop.f32.mrb[0].mxu0
        %6906 = vmatprep.mubr.f32.mxu0 0.0
        %6907 = vmatmul.mubr.f32.gmra.mrb[0].mxu0 %v6707
        %v6908 = vpop.f32.mrb[0].mxu0
        %v6909 = vadd.f32 0.0, %v6908
        %v6910 = vpop.f32.mrb[0].mxu0
        %6911 = vmatprep.mubr.f32.mxu0 0.0
        %6912 = vmatmul.mubr.f32.gmra.mrb[0].mxu0 %v6710
        %v6913 = vpop.f32.mrb[0].mxu0
        %v6914 = vadd.f32 0.0, %v6913
        %v6915 = vpop.f32.mrb[0].mxu0
        %6916 = vmatprep.mubr.f32.mxu0 0.0
        %6917 = vmatmul.mubr.f32.gmra.mrb[0].mxu0 %v6713
        %v6918 = vpop.f32.mrb[0].mxu0
        %v6919 = vadd.f32 0.0, %v6918
        %v6920 = vpop.f32.mrb[0].mxu0
        %6921 = vmatprep.mubr.f32.mxu0 0.0
        %6922 = vmatmul.mubr.f32.gmra.mrb[0].mxu0 %v6716
        %v6923 = vpop.f32.mrb[0].mxu0
        %v6924 = vadd.f32 0.0, %v6923
        %v6925 = vpop.f32.mrb[0].mxu0
        %6926 = vmatprep.mubr.f32.mxu0 0.0
        %6927 = vmatmul.mubr.f32.gmra.mrb[0].mxu0 %v6719
        %v6928 = vpop.f32.mrb[0].mxu0
        %v6929 = vadd.f32 0.0, %v6928
        %v6930 = vpop.f32.mrb[0].mxu0
        %6931 = vmatprep.mubr.f32.mxu0 0.0
        %6932 = vmatmul.mubr.f32.gmra.mrb[0].mxu0 %v6722
        %v6933 = vpop.f32.mrb[0].mxu0
        %v6934 = vadd.f32 0.0, %v6933
        %v6935 = vpop.f32.mrb[0].mxu0
        %6936 = vmatprep.mubr.f32.mxu0 0.0
        %6937 = vmatmul.mubr.f32.gmra.mrb[0].mxu0 %v6725
        %v6938 = vpop.f32.mrb[0].mxu0
        %v6939 = vadd.f32 0.0, %v6938
        %v6940 = vpop.f32.mrb[0].mxu0
        %6941 = vmatprep.mubr.f32.mxu0 0.0
        %6942 = vmatmul.mubr.f32.gmra.mrb[0].mxu0 %v6728
        %v6943 = vpop.f32.mrb[0].mxu0
        %v6944 = vadd.f32 0.0, %v6943
        %v6945 = vpop.f32.mrb[0].mxu0
        %6946 = vmatprep.mubr.f32.mxu0 0.0
        %6947 = vmatmul.mubr.f32.gmra.mrb[0].mxu0 %v6731
        %v6948 = vpop.f32.mrb[0].mxu0
        %v6949 = vadd.f32 0.0, %v6948
        %v6950 = vpop.f32.mrb[0].mxu0
        %6951 = vmatprep.mubr.f32.mxu0 0.0
        %6952 = vmatmul.mubr.f32.gmra.mrb[0].mxu0 %v6734
        %v6953 = vpop.f32.mrb[0].mxu0
        %v6954 = vadd.f32 0.0, %v6953
        %v6955 = vpop.f32.mrb[0].mxu0
        %6956 = vmatprep.mubr.f32.mxu0 0.0
        %6957 = vmatmul.mubr.f32.gmra.mrb[0].mxu0 %v6737
        %v6958 = vpop.f32.mrb[0].mxu0
        %v6959 = vadd.f32 0.0, %v6958
        %v6960 = vpop.f32.mrb[0].mxu0
        %6961 = vmatprep.mubr.f32.mxu0 0.0
        %6962 = vmatmul.mubr.f32.gmra.mrb[0].mxu0 %v6740
        %v6963 = vpop.f32.mrb[0].mxu0
        %v6964 = vadd.f32 0.0, %v6963
        %v6965 = vpop.f32.mrb[0].mxu0
        %6966 = vdwg.mxu0
        %v6967 = vrcp.pop %v6809
        %v6968 = vmul.f32 %v6375, %v6967
        %v6969 = vrcp.pop %v6814
        %v6970 = vmul.f32 %v6380, %v6969
        %v6971 = vrcp.pop %v6819
        %v6972 = vmul.f32 %v6385, %v6971
        %v6973 = vrcp.pop %v6824
        %v6974 = vmul.f32 %v6390, %v6973
        %v6975 = vrcp.pop %v6829
        %v6976 = vmul.f32 %v6395, %v6975
        %v6977 = vrcp.pop %v6834
        %v6978 = vmul.f32 %v6400, %v6977
        %v6979 = vrcp.pop %v6839
        %v6980 = vmul.f32 %v6405, %v6979
        %v6981 = vrcp.pop %v6844
        %v6982 = vmul.f32 %v6410, %v6981
        %v6983 = vrcp.pop %v6849
        %v6984 = vmul.f32 %v6415, %v6983
        %v6985 = vrcp.pop %v6854
        %v6986 = vmul.f32 %v6420, %v6985
        %v6987 = vrcp.pop %v6859
        %v6988 = vmul.f32 %v6425, %v6987
        %v6989 = vrcp.pop %v6864
        %v6990 = vmul.f32 %v6430, %v6989
        %v6991 = vrcp.pop %v6869
        %v6992 = vmul.f32 %v6435, %v6991
        %v6993 = vrcp.pop %v6874
        %v6994 = vmul.f32 %v6440, %v6993
        %v6995 = vrcp.pop %v6879
        %v6996 = vmul.f32 %v6445, %v6995
        %v6997 = vrcp.pop %v6884
        %v6998 = vmul.f32 %v6450, %v6997
        %v6999 = vrcp.pop %v6889
        %v7000 = vmul.f32 %v6455, %v6999
        %v7001 = vrcp.pop %v6894
        %v7002 = vmul.f32 %v6460, %v7001
        %v7003 = vrcp.pop %v6899
        %v7004 = vmul.f32 %v6465, %v7003
        %v7005 = vrcp.pop %v6904
        %v7006 = vmul.f32 %v6470, %v7005
        %v7007 = vrcp.pop %v6909
        %v7008 = vmul.f32 %v6475, %v7007
        %v7009 = vrcp.pop %v6914
        %v7010 = vmul.f32 %v6480, %v7009
        %v7011 = vrcp.pop %v6919
        %v7012 = vmul.f32 %v6485, %v7011
        %v7013 = vrcp.pop %v6924
        %v7014 = vmul.f32 %v6490, %v7013
        %v7015 = vrcp.pop %v6929
        %v7016 = vmul.f32 %v6495, %v7015
        %v7017 = vrcp.pop %v6934
        %v7018 = vmul.f32 %v6500, %v7017
        %v7019 = vrcp.pop %v6939
        %v7020 = vmul.f32 %v6505, %v7019
        %v7021 = vrcp.pop %v6944
        %v7022 = vmul.f32 %v6510, %v7021
        %v7023 = vrcp.pop %v6949
        %v7024 = vmul.f32 %v6515, %v7023
        %v7025 = vrcp.pop %v6954
        %v7026 = vmul.f32 %v6520, %v7025
        %v7027 = vrcp.pop %v6959
        %v7028 = vmul.f32 %v6525, %v7027
        %v7029 = vrcp.pop %v6964
        %v7030 = vmul.f32 %v6530, %v7029
        %v7031 = vadd.f32 %v6968, 1e-06
        %v7032 = vadd.f32 %v6970, 1e-06
        %v7033 = vadd.f32 %v6972, 1e-06
        %v7034 = vadd.f32 %v6974, 1e-06
        %v7035 = vadd.f32 %v6976, 1e-06
        %v7036 = vadd.f32 %v6978, 1e-06
        %v7037 = vadd.f32 %v6980, 1e-06
        %v7038 = vadd.f32 %v6982, 1e-06
        %v7039 = vadd.f32 %v6984, 1e-06
        %v7040 = vadd.f32 %v6986, 1e-06
        %v7041 = vadd.f32 %v6988, 1e-06
        %v7042 = vadd.f32 %v6990, 1e-06
        %v7043 = vadd.f32 %v6992, 1e-06
        %v7044 = vadd.f32 %v6994, 1e-06
        %v7045 = vadd.f32 %v6996, 1e-06
        %v7046 = vadd.f32 %v6998, 1e-06
        %v7047 = vadd.f32 %v7000, 1e-06
        %v7048 = vadd.f32 %v7002, 1e-06
        %v7049 = vadd.f32 %v7004, 1e-06
        %v7050 = vadd.f32 %v7006, 1e-06
        %v7051 = vadd.f32 %v7008, 1e-06
        %v7052 = vadd.f32 %v7010, 1e-06
        %v7053 = vadd.f32 %v7012, 1e-06
        %v7054 = vadd.f32 %v7014, 1e-06
        %v7055 = vadd.f32 %v7016, 1e-06
        %v7056 = vadd.f32 %v7018, 1e-06
        %v7057 = vadd.f32 %v7020, 1e-06
        %v7058 = vadd.f32 %v7022, 1e-06
        %v7059 = vadd.f32 %v7024, 1e-06
        %v7060 = vadd.f32 %v7026, 1e-06
        %v7061 = vadd.f32 %v7028, 1e-06
        %v7062 = vadd.f32 %v7030, 1e-06
        %v7063 = vmul.f32 %v5939, %v7031
        %v7064 = vmul.f32 %v5940, %v7032
        %v7065 = vmul.f32 %v5941, %v7033
        %v7066 = vmul.f32 %v5942, %v7034
        %v7067 = vmul.f32 %v5943, %v7035
        %v7068 = vmul.f32 %v5944, %v7036
        %v7069 = vmul.f32 %v5945, %v7037
        %v7070 = vmul.f32 %v5946, %v7038
        %v7071 = vmul.f32 %v5947, %v7039
        %v7072 = vmul.f32 %v5948, %v7040
        %v7073 = vmul.f32 %v5949, %v7041
        %v7074 = vmul.f32 %v5950, %v7042
        %v7075 = vmul.f32 %v5951, %v7043
        %v7076 = vmul.f32 %v5952, %v7044
        %v7077 = vmul.f32 %v5953, %v7045
        %v7078 = vmul.f32 %v5954, %v7046
        %v7079 = vmul.f32 %v5955, %v7047
        %v7080 = vmul.f32 %v5956, %v7048
        %v7081 = vmul.f32 %v5957, %v7049
        %v7082 = vmul.f32 %v5958, %v7050
        %v7083 = vmul.f32 %v5959, %v7051
        %v7084 = vmul.f32 %v5960, %v7052
        %v7085 = vmul.f32 %v5961, %v7053
        %v7086 = vmul.f32 %v5962, %v7054
        %v7087 = vmul.f32 %v5963, %v7055
        %v7088 = vmul.f32 %v5964, %v7056
        %v7089 = vmul.f32 %v5965, %v7057
        %v7090 = vmul.f32 %v5966, %v7058
        %v7091 = vmul.f32 %v5967, %v7059
        %v7092 = vmul.f32 %v5968, %v7060
        %v7093 = vmul.f32 %v5969, %v7061
        %v7094 = vmul.f32 %v5970, %v7062
        %7095 = vmatprep.subr.mxu0 0.0
        %7096 = vmatpush1.msra.mxu0 %v7063
        %7097 = vmatprep.subr.mxu0 0.0
        %7098 = vmatpush1.msra.mxu0 %v7064
        %7099 = vmatprep.subr.mxu0 0.0
        %7100 = vmatpush1.msra.mxu0 %v7065
        %7101 = vmatprep.subr.mxu0 0.0
        %7102 = vmatpush1.msra.mxu0 %v7066
        %7103 = vmatprep.subr.mxu0 0.0
        %7104 = vmatpush1.msra.mxu0 %v7067
        %7105 = vmatprep.subr.mxu0 0.0
        %7106 = vmatpush1.msra.mxu0 %v7068
        %7107 = vmatprep.subr.mxu0 0.0
        %7108 = vmatpush1.msra.mxu0 %v7069
        %7109 = vmatprep.subr.mxu0 0.0
        %7110 = vmatpush1.msra.mxu0 %v7070
        %7111 = vmatprep.subr.mxu0 0.0
        %7112 = vmatpush1.msra.mxu0 %v7071
        %7113 = vmatprep.subr.mxu0 0.0
        %7114 = vmatpush1.msra.mxu0 %v7072
        %7115 = vmatprep.subr.mxu0 0.0
        %7116 = vmatpush1.msra.mxu0 %v7073
        %7117 = vmatprep.subr.mxu0 0.0
        %7118 = vmatpush1.msra.mxu0 %v7074
        %7119 = vmatprep.subr.mxu0 0.0
        %7120 = vmatpush1.msra.mxu0 %v7075
        %7121 = vmatprep.subr.mxu0 0.0
        %7122 = vmatpush1.msra.mxu0 %v7076
        %7123 = vmatprep.subr.mxu0 0.0
        %7124 = vmatpush1.msra.mxu0 %v7077
        %7125 = vmatprep.subr.mxu0 0.0
        %7126 = vmatpush1.msra.mxu0 %v7078
        %7127 = vmatprep.subr.mxu0 0.0
        %7128 = vmatpush1.msra.mxu0 %v7079
        %7129 = vmatprep.subr.mxu0 0.0
        %7130 = vmatpush1.msra.mxu0 %v7080
        %7131 = vmatprep.subr.mxu0 0.0
        %7132 = vmatpush1.msra.mxu0 %v7081
        %7133 = vmatprep.subr.mxu0 0.0
        %7134 = vmatpush1.msra.mxu0 %v7082
        %7135 = vmatprep.subr.mxu0 0.0
        %7136 = vmatpush1.msra.mxu0 %v7083
        %7137 = vmatprep.subr.mxu0 0.0
        %7138 = vmatpush1.msra.mxu0 %v7084
        %7139 = vmatprep.subr.mxu0 0.0
        %7140 = vmatpush1.msra.mxu0 %v7085
        %7141 = vmatprep.subr.mxu0 0.0
        %7142 = vmatpush1.msra.mxu0 %v7086
        %7143 = vmatprep.subr.mxu0 0.0
        %7144 = vmatpush1.msra.mxu0 %v7087
        %7145 = vmatprep.subr.mxu0 0.0
        %7146 = vmatpush1.msra.mxu0 %v7088
        %7147 = vmatprep.subr.mxu0 0.0
        %7148 = vmatpush1.msra.mxu0 %v7089
        %7149 = vmatprep.subr.mxu0 0.0
        %7150 = vmatpush1.msra.mxu0 %v7090
        %7151 = vmatprep.subr.mxu0 0.0
        %7152 = vmatpush1.msra.mxu0 %v7091
        %7153 = vmatprep.subr.mxu0 0.0
        %7154 = vmatpush1.msra.mxu0 %v7092
        %7155 = vmatprep.subr.mxu0 0.0
        %7156 = vmatpush1.msra.mxu0 %v7093
        %7157 = vmatprep.subr.mxu0 0.0
        %7158 = vmatpush1.msra.mxu0 %v7094
        %7159 = vmatprep.mubr.f32.mxu0 %v281
        %7160 = vmatmul.mubr.f32.gmra.mrb[0].mxu0 %v280
        %v7161 = vpop.f32.mrb[0].mxu0
        %v7162 = vadd.f32 0.0, %v7161
        %v7163 = vpop.f32.mrb[0].mxu0
        %7164 = vmatprep.mubr.f32.mxu0 %v283
        %7165 = vmatmul.mubr.f32.gmra.mrb[0].mxu0 %v282
        %v7166 = vpop.f32.mrb[0].mxu0
        %v7167 = vadd.f32 0.0, %v7166
        %v7168 = vpop.f32.mrb[0].mxu0
        %7169 = vmatprep.mubr.f32.mxu0 %v285
        %7170 = vmatmul.mubr.f32.gmra.mrb[0].mxu0 %v284
        %v7171 = vpop.f32.mrb[0].mxu0
        %v7172 = vadd.f32 0.0, %v7171
        %v7173 = vpop.f32.mrb[0].mxu0
        %7174 = vmatprep.mubr.f32.mxu0 %v287
        %7175 = vmatmul.mubr.f32.gmra.mrb[0].mxu0 %v286
        %v7176 = vpop.f32.mrb[0].mxu0
        %v7177 = vadd.f32 0.0, %v7176
        %v7178 = vpop.f32.mrb[0].mxu0
        %7179 = vdwg.mxu0
        %7180 = vxpose.xlu0.b32.start [1/16] %v7063, 128
        %7181 = vxpose.xlu0.b32.cont [2/16] %v7064, 128
        %7182 = vxpose.xlu0.b32.cont [3/16] %v7065, 128
        %7183 = vxpose.xlu0.b32.cont [4/16] %v7066, 128
        %7184 = vxpose.xlu0.b32.cont [5/16] %v7067, 128
        %7185 = vxpose.xlu0.b32.cont [6/16] %v7068, 128
        %7186 = vxpose.xlu0.b32.cont [7/16] %v7069, 128
        %7187 = vxpose.xlu0.b32.cont [8/16] %v7070, 128
        %7188 = vxpose.xlu0.b32.cont [9/16] %v7071, 128
        %7189 = vxpose.xlu0.b32.cont [10/16] %v7072, 128
        %7190 = vxpose.xlu0.b32.cont [11/16] %v7073, 128
        %7191 = vxpose.xlu0.b32.cont [12/16] %v7074, 128
        %7192 = vxpose.xlu0.b32.cont [13/16] %v7075, 128
        %7193 = vxpose.xlu0.b32.cont [14/16] %v7076, 128
        %7194 = vxpose.xlu0.b32.cont [15/16] %v7077, 128
        %7195 = vxpose.xlu0.b32.end [16/16] %v7078, 128
        %v7196 = vpop.trf.xlu0
        %v7197 = vpop.trf.xlu0
        %v7198 = vpop.trf.xlu0
        %v7199 = vpop.trf.xlu0
        %v7200 = vpop.trf.xlu0
        %v7201 = vpop.trf.xlu0
        %v7202 = vpop.trf.xlu0
        %v7203 = vpop.trf.xlu0
        %v7204 = vpop.trf.xlu0
        %v7205 = vpop.trf.xlu0
        %v7206 = vpop.trf.xlu0
        %v7207 = vpop.trf.xlu0
        %v7208 = vpop.trf.xlu0
        %v7209 = vpop.trf.xlu0
        %v7210 = vpop.trf.xlu0
        %v7211 = vpop.trf.xlu0
        %7212 = vxpose.xlu0.b32.start [1/16] %v7079, 128
        %7213 = vxpose.xlu0.b32.cont [2/16] %v7080, 128
        %7214 = vxpose.xlu0.b32.cont [3/16] %v7081, 128
        %7215 = vxpose.xlu0.b32.cont [4/16] %v7082, 128
        %7216 = vxpose.xlu0.b32.cont [5/16] %v7083, 128
        %7217 = vxpose.xlu0.b32.cont [6/16] %v7084, 128
        %7218 = vxpose.xlu0.b32.cont [7/16] %v7085, 128
        %7219 = vxpose.xlu0.b32.cont [8/16] %v7086, 128
        %7220 = vxpose.xlu0.b32.cont [9/16] %v7087, 128
        %7221 = vxpose.xlu0.b32.cont [10/16] %v7088, 128
        %7222 = vxpose.xlu0.b32.cont [11/16] %v7089, 128
        %7223 = vxpose.xlu0.b32.cont [12/16] %v7090, 128
        %7224 = vxpose.xlu0.b32.cont [13/16] %v7091, 128
        %7225 = vxpose.xlu0.b32.cont [14/16] %v7092, 128
        %7226 = vxpose.xlu0.b32.cont [15/16] %v7093, 128
        %7227 = vxpose.xlu0.b32.end [16/16] %v7094, 128
        %v7228 = vpop.trf.xlu0
        %v7229 = vpop.trf.xlu0
        %v7230 = vpop.trf.xlu0
        %v7231 = vpop.trf.xlu0
        %v7232 = vpop.trf.xlu0
        %v7233 = vpop.trf.xlu0
        %v7234 = vpop.trf.xlu0
        %v7235 = vpop.trf.xlu0
        %v7236 = vpop.trf.xlu0
        %v7237 = vpop.trf.xlu0
        %v7238 = vpop.trf.xlu0
        %v7239 = vpop.trf.xlu0
        %v7240 = vpop.trf.xlu0
        %v7241 = vpop.trf.xlu0
        %v7242 = vpop.trf.xlu0
        %v7243 = vpop.trf.xlu0
        %7244 = vmatprep.subr.mxu0 0.0
        %7245 = vmatpush1.msra.mxu0 %v7063
        %7246 = vmatprep.subr.mxu0 0.0
        %7247 = vmatpush1.msra.mxu0 %v7064
        %7248 = vmatprep.subr.mxu0 0.0
        %7249 = vmatpush1.msra.mxu0 %v7065
        %7250 = vmatprep.subr.mxu0 0.0
        %7251 = vmatpush1.msra.mxu0 %v7066
        %7252 = vmatprep.subr.mxu0 0.0
        %7253 = vmatpush1.msra.mxu0 %v7067
        %7254 = vmatprep.subr.mxu0 0.0
        %7255 = vmatpush1.msra.mxu0 %v7068
        %7256 = vmatprep.subr.mxu0 0.0
        %7257 = vmatpush1.msra.mxu0 %v7069
        %7258 = vmatprep.subr.mxu0 0.0
        %7259 = vmatpush1.msra.mxu0 %v7070
        %7260 = vmatprep.subr.mxu0 0.0
        %7261 = vmatpush1.msra.mxu0 %v7071
        %7262 = vmatprep.subr.mxu0 0.0
        %7263 = vmatpush1.msra.mxu0 %v7072
        %7264 = vmatprep.subr.mxu0 0.0
        %7265 = vmatpush1.msra.mxu0 %v7073
        %7266 = vmatprep.subr.mxu0 0.0
        %7267 = vmatpush1.msra.mxu0 %v7074
        %7268 = vmatprep.subr.mxu0 0.0
        %7269 = vmatpush1.msra.mxu0 %v7075
        %7270 = vmatprep.subr.mxu0 0.0
        %7271 = vmatpush1.msra.mxu0 %v7076
        %7272 = vmatprep.subr.mxu0 0.0
        %7273 = vmatpush1.msra.mxu0 %v7077
        %7274 = vmatprep.subr.mxu0 0.0
        %7275 = vmatpush1.msra.mxu0 %v7078
        %7276 = vmatprep.subr.mxu0 0.0
        %7277 = vmatpush1.msra.mxu0 %v7079
        %7278 = vmatprep.subr.mxu0 0.0
        %7279 = vmatpush1.msra.mxu0 %v7080
        %7280 = vmatprep.subr.mxu0 0.0
        %7281 = vmatpush1.msra.mxu0 %v7081
        %7282 = vmatprep.subr.mxu0 0.0
        %7283 = vmatpush1.msra.mxu0 %v7082
        %7284 = vmatprep.subr.mxu0 0.0
        %7285 = vmatpush1.msra.mxu0 %v7083
        %7286 = vmatprep.subr.mxu0 0.0
        %7287 = vmatpush1.msra.mxu0 %v7084
        %7288 = vmatprep.subr.mxu0 0.0
        %7289 = vmatpush1.msra.mxu0 %v7085
        %7290 = vmatprep.subr.mxu0 0.0
        %7291 = vmatpush1.msra.mxu0 %v7086
        %7292 = vmatprep.subr.mxu0 0.0
        %7293 = vmatpush1.msra.mxu0 %v7087
        %7294 = vmatprep.subr.mxu0 0.0
        %7295 = vmatpush1.msra.mxu0 %v7088
        %7296 = vmatprep.subr.mxu0 0.0
        %7297 = vmatpush1.msra.mxu0 %v7089
        %7298 = vmatprep.subr.mxu0 0.0
        %7299 = vmatpush1.msra.mxu0 %v7090
        %7300 = vmatprep.subr.mxu0 0.0
        %7301 = vmatpush1.msra.mxu0 %v7091
        %7302 = vmatprep.subr.mxu0 0.0
        %7303 = vmatpush1.msra.mxu0 %v7092
        %7304 = vmatprep.subr.mxu0 0.0
        %7305 = vmatpush1.msra.mxu0 %v7093
        %7306 = vmatprep.subr.mxu0 0.0
        %7307 = vmatpush1.msra.mxu0 %v7094
        %7308 = vmatprep.mubr.f32.mxu0 %v7228
        %7309 = vmatmul.mubr.f32.gmra.mrb[0].mxu0 %v7196
        %v7310 = vpop.f32.mrb[0].mxu0
        %v7311 = vadd.f32 0.0, %v7310
        %v7312 = vpop.f32.mrb[0].mxu0
        %7313 = vmatprep.mubr.f32.mxu0 %v7229
        %7314 = vmatmul.mubr.f32.gmra.mrb[0].mxu0 %v7197
        %v7315 = vpop.f32.mrb[0].mxu0
        %v7316 = vadd.f32 0.0, %v7315
        %v7317 = vpop.f32.mrb[0].mxu0
        %7318 = vdwg.mxu0
        %v7320 = vsel %vm673, %v6304, 0
        %v7323 = vsel %vm673, %v6305, 0
        %v7326 = vsel %vm673, %v6306, 0
        %v7329 = vsel %vm673, %v6307, 0
        %7331 = vmatprep.subr.mxu0 0.0
        %7332 = vmatpush1.msra.mxu0 %v7311
        %7333 = vmatprep.subr.mxu0 0.0
        %7334 = vmatpush1.msra.mxu0 %v7316
        %7335 = vmatprep.subr.mxu0 0.0
        %7336 = vmatpush1.msra.mxu0 0.0
        %7337 = vmatprep.subr.mxu0 0.0
        %7338 = vmatpush1.msra.mxu0 0.0
        %7339 = vmatprep.subr.mxu0 0.0
        %7340 = vmatpush1.msra.mxu0 0.0
        %7341 = vmatprep.subr.mxu0 0.0
        %7342 = vmatpush1.msra.mxu0 0.0
        %7343 = vmatprep.subr.mxu0 0.0
        %7344 = vmatpush1.msra.mxu0 0.0
        %7345 = vmatprep.subr.mxu0 0.0
        %7346 = vmatpush1.msra.mxu0 0.0
        %7347 = vmatprep.subr.mxu0 0.0
        %7348 = vmatpush1.msra.mxu0 0.0
        %7349 = vmatprep.subr.mxu0 0.0
        %7350 = vmatpush1.msra.mxu0 0.0
        %7351 = vmatprep.subr.mxu0 0.0
        %7352 = vmatpush1.msra.mxu0 0.0
        %7353 = vmatprep.subr.mxu0 0.0
        %7354 = vmatpush1.msra.mxu0 0.0
        %7355 = vmatprep.subr.mxu0 0.0
        %7356 = vmatpush1.msra.mxu0 0.0
        %7357 = vmatprep.subr.mxu0 0.0
        %7358 = vmatpush1.msra.mxu0 0.0
        %7359 = vmatprep.subr.mxu0 0.0
        %7360 = vmatpush1.msra.mxu0 0.0
        %7361 = vmatprep.subr.mxu0 0.0
        %7362 = vmatpush1.msra.mxu0 0.0
        %7363 = vmatprep.subr.mxu0 0.0
        %7364 = vmatpush1.msra.mxu0 0.0
        %7365 = vmatprep.subr.mxu0 0.0
        %7366 = vmatpush1.msra.mxu0 0.0
        %7367 = vmatprep.subr.mxu0 0.0
        %7368 = vmatpush1.msra.mxu0 0.0
        %7369 = vmatprep.subr.mxu0 0.0
        %7370 = vmatpush1.msra.mxu0 0.0
        %7371 = vmatprep.subr.mxu0 0.0
        %7372 = vmatpush1.msra.mxu0 0.0
        %7373 = vmatprep.subr.mxu0 0.0
        %7374 = vmatpush1.msra.mxu0 0.0
        %7375 = vmatprep.subr.mxu0 0.0
        %7376 = vmatpush1.msra.mxu0 0.0
        %7377 = vmatprep.subr.mxu0 0.0
        %7378 = vmatpush1.msra.mxu0 0.0
        %7379 = vmatprep.subr.mxu0 0.0
        %7380 = vmatpush1.msra.mxu0 0.0
        %7381 = vmatprep.subr.mxu0 0.0
        %7382 = vmatpush1.msra.mxu0 0.0
        %7383 = vmatprep.subr.mxu0 0.0
        %7384 = vmatpush1.msra.mxu0 0.0
        %7385 = vmatprep.subr.mxu0 0.0
        %7386 = vmatpush1.msra.mxu0 0.0
        %7387 = vmatprep.subr.mxu0 0.0
        %7388 = vmatpush1.msra.mxu0 0.0
        %7389 = vmatprep.subr.mxu0 0.0
        %7390 = vmatpush1.msra.mxu0 0.0
        %7391 = vmatprep.subr.mxu0 0.0
        %7392 = vmatpush1.msra.mxu0 0.0
        %7393 = vmatprep.subr.mxu0 0.0
        %7394 = vmatpush1.msra.mxu0 0.0
        %7395 = vmatprep.mubr.f32.mxu0 0.0
        %7396 = vmatmul.mubr.f32.gmra.mrb[0].mxu0 %v7320
        %v7397 = vpop.f32.mrb[0].mxu0
        %v7398 = vadd.f32 0.0, %v7397
        %v7399 = vpop.f32.mrb[0].mxu0
        %7400 = vmatprep.mubr.f32.mxu0 0.0
        %7401 = vmatmul.mubr.f32.gmra.mrb[0].mxu0 %v7323
        %v7402 = vpop.f32.mrb[0].mxu0
        %v7403 = vadd.f32 0.0, %v7402
        %v7404 = vpop.f32.mrb[0].mxu0
        %7405 = vmatprep.mubr.f32.mxu0 0.0
        %7406 = vmatmul.mubr.f32.gmra.mrb[0].mxu0 %v7326
        %v7407 = vpop.f32.mrb[0].mxu0
        %v7408 = vadd.f32 0.0, %v7407
        %v7409 = vpop.f32.mrb[0].mxu0
        %7410 = vmatprep.mubr.f32.mxu0 0.0
        %7411 = vmatmul.mubr.f32.gmra.mrb[0].mxu0 %v7329
        %v7412 = vpop.f32.mrb[0].mxu0
        %v7413 = vadd.f32 0.0, %v7412
        %v7414 = vpop.f32.mrb[0].mxu0
        %7415 = vdwg.mxu0
        %v7416 = vrcp.pop %v7398
        %v7417 = vmul.f32 %v7162, %v7416
        %v7418 = vrcp.pop %v7403
        %v7419 = vmul.f32 %v7167, %v7418
        %v7420 = vrcp.pop %v7408
        %v7421 = vmul.f32 %v7172, %v7420
        %v7422 = vrcp.pop %v7413
        %v7423 = vmul.f32 %v7177, %v7422
        %v7424 = vadd.f32 %v7417, 1e-06
        %v7425 = vadd.f32 %v7419, 1e-06
        %v7426 = vadd.f32 %v7421, 1e-06
        %v7427 = vadd.f32 %v7423, 1e-06
        %v7428 = vmul.f32 %v6304, %v7424
        %v7429 = vmul.f32 %v6305, %v7425
        %v7430 = vmul.f32 %v6306, %v7426
        %v7431 = vmul.f32 %v6307, %v7427
        %v7433 = vsel %vm673, %v7428, 0
        %v7436 = vsel %vm673, %v7429, 0
        %v7439 = vsel %vm673, %v7430, 0
        %v7442 = vsel %vm673, %v7431, 0
        %v7445 = vsel %vm673, %v7063, 0
        %v7448 = vsel %vm673, %v7064, 0
        %v7451 = vsel %vm673, %v7065, 0
        %v7454 = vsel %vm673, %v7066, 0
        %v7457 = vsel %vm673, %v7067, 0
        %v7460 = vsel %vm673, %v7068, 0
        %v7463 = vsel %vm673, %v7069, 0
        %v7466 = vsel %vm673, %v7070, 0
        %v7469 = vsel %vm673, %v7071, 0
        %v7472 = vsel %vm673, %v7072, 0
        %v7475 = vsel %vm673, %v7073, 0
        %v7478 = vsel %vm673, %v7074, 0
        %v7481 = vsel %vm673, %v7075, 0
        %v7484 = vsel %vm673, %v7076, 0
        %v7487 = vsel %vm673, %v7077, 0
        %v7490 = vsel %vm673, %v7078, 0
        %v7493 = vsel %vm673, %v7079, 0
        %v7496 = vsel %vm673, %v7080, 0
        %v7499 = vsel %vm673, %v7081, 0
        %v7502 = vsel %vm673, %v7082, 0
        %v7505 = vsel %vm673, %v7083, 0
        %v7508 = vsel %vm673, %v7084, 0
        %v7511 = vsel %vm673, %v7085, 0
        %v7514 = vsel %vm673, %v7086, 0
        %v7517 = vsel %vm673, %v7087, 0
        %v7520 = vsel %vm673, %v7088, 0
        %v7523 = vsel %vm673, %v7089, 0
        %v7526 = vsel %vm673, %v7090, 0
        %v7529 = vsel %vm673, %v7091, 0
        %v7532 = vsel %vm673, %v7092, 0
        %v7535 = vsel %vm673, %v7093, 0
        %v7538 = vsel %vm673, %v7094, 0
        %7540 = vmatprep.subr.mxu0 0.0
        %7541 = vmatpush1.xpose.msra.mxu0 %v7445
        %7542 = vmatprep.subr.mxu0 0.0
        %7543 = vmatpush1.xpose.msra.mxu0 %v7448
        %7544 = vmatprep.subr.mxu0 0.0
        %7545 = vmatpush1.xpose.msra.mxu0 %v7451
        %7546 = vmatprep.subr.mxu0 0.0
        %7547 = vmatpush1.xpose.msra.mxu0 %v7454
        %7548 = vmatprep.subr.mxu0 0.0
        %7549 = vmatpush1.xpose.msra.mxu0 %v7457
        %7550 = vmatprep.subr.mxu0 0.0
        %7551 = vmatpush1.xpose.msra.mxu0 %v7460
        %7552 = vmatprep.subr.mxu0 0.0
        %7553 = vmatpush1.xpose.msra.mxu0 %v7463
        %7554 = vmatprep.subr.mxu0 0.0
        %7555 = vmatpush1.xpose.msra.mxu0 %v7466
        %7556 = vmatprep.subr.mxu0 0.0
        %7557 = vmatpush1.xpose.msra.mxu0 %v7469
        %7558 = vmatprep.subr.mxu0 0.0
        %7559 = vmatpush1.xpose.msra.mxu0 %v7472
        %7560 = vmatprep.subr.mxu0 0.0
        %7561 = vmatpush1.xpose.msra.mxu0 %v7475
        %7562 = vmatprep.subr.mxu0 0.0
        %7563 = vmatpush1.xpose.msra.mxu0 %v7478
        %7564 = vmatprep.subr.mxu0 0.0
        %7565 = vmatpush1.xpose.msra.mxu0 %v7481
        %7566 = vmatprep.subr.mxu0 0.0
        %7567 = vmatpush1.xpose.msra.mxu0 %v7484
        %7568 = vmatprep.subr.mxu0 0.0
        %7569 = vmatpush1.xpose.msra.mxu0 %v7487
        %7570 = vmatprep.subr.mxu0 0.0
        %7571 = vmatpush1.xpose.msra.mxu0 %v7490
        %7572 = vmatprep.subr.mxu0 0.0
        %7573 = vmatpush1.xpose.msra.mxu0 %v7493
        %7574 = vmatprep.subr.mxu0 0.0
        %7575 = vmatpush1.xpose.msra.mxu0 %v7496
        %7576 = vmatprep.subr.mxu0 0.0
        %7577 = vmatpush1.xpose.msra.mxu0 %v7499
        %7578 = vmatprep.subr.mxu0 0.0
        %7579 = vmatpush1.xpose.msra.mxu0 %v7502
        %7580 = vmatprep.subr.mxu0 0.0
        %7581 = vmatpush1.xpose.msra.mxu0 %v7505
        %7582 = vmatprep.subr.mxu0 0.0
        %7583 = vmatpush1.xpose.msra.mxu0 %v7508
        %7584 = vmatprep.subr.mxu0 0.0
        %7585 = vmatpush1.xpose.msra.mxu0 %v7511
        %7586 = vmatprep.subr.mxu0 0.0
        %7587 = vmatpush1.xpose.msra.mxu0 %v7514
        %7588 = vmatprep.subr.mxu0 0.0
        %7589 = vmatpush1.xpose.msra.mxu0 %v7517
        %7590 = vmatprep.subr.mxu0 0.0
        %7591 = vmatpush1.xpose.msra.mxu0 %v7520
        %7592 = vmatprep.subr.mxu0 0.0
        %7593 = vmatpush1.xpose.msra.mxu0 %v7523
        %7594 = vmatprep.subr.mxu0 0.0
        %7595 = vmatpush1.xpose.msra.mxu0 %v7526
        %7596 = vmatprep.subr.mxu0 0.0
        %7597 = vmatpush1.xpose.msra.mxu0 %v7529
        %7598 = vmatprep.subr.mxu0 0.0
        %7599 = vmatpush1.xpose.msra.mxu0 %v7532
        %7600 = vmatprep.subr.mxu0 0.0
        %7601 = vmatpush1.xpose.msra.mxu0 %v7535
        %7602 = vmatprep.subr.mxu0 0.0
        %7603 = vmatpush1.xpose.msra.mxu0 %v7538
        %7604 = vmatprep.mubr.f32.mxu0 0.0
        %7605 = vmatmul.mubr.f32.gmra.mrb[0].mxu0 %v7433
        %v7606 = vpop.f32.mrb[0].mxu0
        %v7607 = vadd.f32 0.0, %v7606
        %v7608 = vpop.f32.mrb[0].mxu0
        %v7609 = vadd.f32 0.0, %v7608
        %7610 = vmatprep.mubr.f32.mxu0 0.0
        %7611 = vmatmul.mubr.f32.gmra.mrb[0].mxu0 %v7436
        %v7612 = vpop.f32.mrb[0].mxu0
        %v7613 = vadd.f32 0.0, %v7612
        %v7614 = vpop.f32.mrb[0].mxu0
        %v7615 = vadd.f32 0.0, %v7614
        %7616 = vmatprep.mubr.f32.mxu0 0.0
        %7617 = vmatmul.mubr.f32.gmra.mrb[0].mxu0 %v7439
        %v7618 = vpop.f32.mrb[0].mxu0
        %v7619 = vadd.f32 0.0, %v7618
        %v7620 = vpop.f32.mrb[0].mxu0
        %v7621 = vadd.f32 0.0, %v7620
        %7622 = vmatprep.mubr.f32.mxu0 0.0
        %7623 = vmatmul.mubr.f32.gmra.mrb[0].mxu0 %v7442
        %v7624 = vpop.f32.mrb[0].mxu0
        %v7625 = vadd.f32 0.0, %v7624
        %v7626 = vpop.f32.mrb[0].mxu0
        %v7627 = vadd.f32 0.0, %v7626
        %7628 = vdwg.mxu0
        %7629 = vst [vmem:[%s161] sm:$0xff] %v7607
        %7630 = vst [vmem:[%s161 + $0x8] sm:$0xff] %v7609
        %7631 = vst [vmem:[%s161 + $0x10] sm:$0xff] %v7613
        %7632 = vst [vmem:[%s161 + $0x18] sm:$0xff] %v7615
        %7633 = vst [vmem:[%s161 + $0x20] sm:$0xff] %v7619
        %7634 = vst [vmem:[%s161 + $0x28] sm:$0xff] %v7621
        %7635 = vst [vmem:[%s161 + $0x30] sm:$0xff] %v7625
        %7636 = vst [vmem:[%s161 + $0x38] sm:$0xff] %v7627
        %s7637 = sand.u32 %s74, 1
        %s7638 = scalar_lea.sflag [#allocation4], %s7637
        %s7639 = sand.u32 %s74, 1
        %s7640 = smul.addr %s7639, 64
        %s7641 = scalar_lea.vmem [#allocation5], %s7640
        // Predicated region
        $region33: #{tpu_custom_call.1} parent=27 // pred_check
          %p7642 = pneg %p84
        $region34: #{tpu_custom_call.1} parent=27 // pred_check_branch
          %7644 = sbr.rel (%p7642) target = $region36
        $region35: #{tpu_custom_call.1} parent=27 // pred_region
          %s7646 = ssub.s32 1024, 1024
          %7647 = vsyncadd %s7638, %s7646
          %s7648 = smul.addr %s19, 8
          %s7649 = smul.addr %s7648, 128
          %s7650 = scalar_lea.hbm %s2, %s7649
          %s7651 = sshll.u32 %s7641, 4
          %s7652 = int_to_ptr.vmem [resolvable:$true] %s7651
          %7657 = dma.vmem_to_hbm [thread:$0]  %s7652, 1024, %s7650, %s7638, 256, 256, 16
        $region36: #{tpu_custom_call.1} parent=27 // pred_fallthru
          _
      $region28: #{tpu_custom_call.1} parent=5 // pred_fallthru
        _
      %p7658 = scmp.le.s32.totalorder 2, %s14
      // Predicated region
      $region37: #{tpu_custom_call.1} parent=5 // pred_check
        %p7659 = pneg %p7658
      $region38: #{tpu_custom_call.1} parent=5 // pred_check_branch
        %7661 = sbr.rel (%p7659) target = $region40
      $region39: #{tpu_custom_call.1} parent=5 // pred_region
        %s7662 = ssub.s32 %s14, 2
        // Predicated region
        $region41: #{tpu_custom_call.1} parent=39 // pred_check
          %p7663 = pneg %p90
        $region42: #{tpu_custom_call.1} parent=39 // pred_check_branch
          %7665 = sbr.rel (%p7663) target = $region44
        $region43: #{tpu_custom_call.1} parent=39 // pred_region
          %s7666 = sand.u32 %s75, 1
          %s7667 = scalar_lea.sflag [#allocation4], %s7666
          %s7668 = sand.u32 %s75, 1
          %s7669 = smul.addr %s7668, 64
          %s7670 = scalar_lea.vmem [#allocation5], %s7669
          %7671 = dma.done %s7667, 1024
        $region44: #{tpu_custom_call.1} parent=39 // pred_fallthru
          _
      $region40: #{tpu_custom_call.1} parent=5 // pred_fallthru
        _
    $region6: #{tpu_custom_call.1} parent=1 // loop_footer
      %s18 = sadd.s32 1, %s14
    $region7: #{tpu_custom_call.1} parent=1 // loop_footer_branch
      %13 = sbr.rel target = $region3
    $region8: #{tpu_custom_call.1} parent=1 // loop_exit
      _
    %7672 = vsyncpa [#allocation3], 1
    %s7673 = scalar_lea.sflag [#allocation3], 1
    %7674 = vsyncpa %s7673, 1
    %7675 = vsyncpa [#allocation4], 1
    %s7676 = scalar_lea.sflag [#allocation4], 1
    %7677 = vsyncpa %s7676, 1

</llo_original>
